<compile_context>
chip_gen: v7x
topology: tpu7x:2x2x1
jax: 0.10.0
libtpu: 0.0.40
codegen_flags: <defaults>
</compile_context>

<pallas_src>
import functools
import math

import jax
import jax.numpy as jnp
from jax.experimental import pallas as pl
from jax.experimental.pallas import tpu as pltpu

LN_EPS = 1e-5


def _layernorm(x, gamma, beta):
    # Single-pass moments (mean & E[x^2]); slightly less numerically stable
    # than the two-pass form but fine for inference-scale activations here.
    mu = jnp.mean(x, axis=-1, keepdims=True)
    msq = jnp.mean(x * x, axis=-1, keepdims=True)
    var = msq - mu * mu
    return (x - mu) * jax.lax.rsqrt(var + LN_EPS) * gamma + beta


def _layernorm_ref(x, gamma, beta):
    mu = jnp.mean(x, axis=-1, keepdims=True)
    var = jnp.mean((x - mu) ** 2, axis=-1, keepdims=True)
    return (x - mu) * jax.lax.rsqrt(var + LN_EPS) * gamma + beta


def _gelu_tanh(x):
    # fairseq 'gelu_accurate' (tanh approximation)
    return 0.5 * x * (1.0 + jnp.tanh(0.7978845608028654 * (x + 0.044715 * x * x * x)))


def decoder_kernel(q_ref, z_ref,
                   ln1_g, ln1_b, ln2_g, ln2_b,
                   wq, bq, wk, bk, wv, bv,
                   wo, bo, ln3_g, ln3_b,
                   w1, b1, w2, b2, wf, bf,
                   out_ref, *, n_heads, dh, dv):
    # ---- K / V for this batch: fused full-width projections -----------------
    z = z_ref[0]                                                  # (L, D) f32
    zn = _layernorm(z, ln2_g[...], ln2_b[...]).astype(jnp.bfloat16)
    k_all = (jnp.dot(zn, wk[...], preferred_element_type=jnp.float32)
             + bk[...]).astype(jnp.bfloat16)                      # (L, H*dh)
    v_all = (jnp.dot(zn, wv[...], preferred_element_type=jnp.float32)
             + bv[...]).astype(jnp.bfloat16)                      # (L, H*dv)

    # ---- Query side for this (batch, q_tile) block ---------------------------
    q = q_ref[0]                                                  # (TQ, C) f32
    qn = _layernorm(q, ln1_g[...], ln1_b[...]).astype(jnp.bfloat16)
    q_all = jnp.dot(qn, wq[...], preferred_element_type=jnp.float32) + bq[...]  # (TQ, H*dh) f32

    scale = 1.0 / math.sqrt(dh)
    ctx_heads = []
    # Per-head attention on 128-aligned lane slices of the fused projections.
    for h in range(n_heads):
        qh = (q_all[:, h * dh:(h + 1) * dh] * scale).astype(jnp.bfloat16)   # (TQ, dh)
        kh = k_all[:, h * dh:(h + 1) * dh]                                  # (L, dh)
        vh = v_all[:, h * dv:(h + 1) * dv]                                  # (L, dv)
        s = jnp.einsum("qd,kd->qk", qh, kh,
                       preferred_element_type=jnp.float32)                  # (TQ, L)
        s = s - jnp.max(s, axis=-1, keepdims=True)
        p = jnp.exp(s)
        p = p * pl.reciprocal(jnp.sum(p, axis=-1, keepdims=True), approx=True)
        # dropout on attention probs omitted (inference / eval mode)
        ctx_heads.append(jnp.dot(p.astype(jnp.bfloat16), vh,
                                 preferred_element_type=jnp.float32))       # (TQ, dv)
    ctx = jnp.concatenate(ctx_heads, axis=-1).astype(jnp.bfloat16)          # (TQ, H*dv)

    # Single fused output projection; use_query_residual=False -> no residual.
    att = jnp.dot(ctx, wo[...], preferred_element_type=jnp.float32) + bo[...]

    # ---- MLP block (LayerNorm -> dense1 -> gelu -> dense2) + residual -------
    hln = _layernorm(att, ln3_g[...], ln3_b[...]).astype(jnp.bfloat16)
    h1 = jnp.dot(hln, w1[...], preferred_element_type=jnp.float32) + b1[...]
    h1 = _gelu_tanh(h1)
    h2 = jnp.dot(h1.astype(jnp.bfloat16), w2[...],
                 preferred_element_type=jnp.float32) + b2[...]
    layer_out = h2 + att

    # ---- final_layer (final_project=True), lane-dense padded output ---------
    logits = jnp.dot(layer_out.astype(jnp.bfloat16), wf[...],
                     preferred_element_type=jnp.float32) + bf[...]
    out_ref[0] = logits


def _prep_weights(params, *, o_pad):
    """Host-side layout plumbing: pre-transpose to (in, out), bf16 cast, pad."""
    p = params
    b16, f32 = jnp.bfloat16, jnp.float32
    C = p["wq"].shape[1]
    O = p["wf"].shape[0]

    # zero-pad the final projection to a lane-dense width; padded cols are 0
    wf_p = jnp.zeros((C, o_pad), b16).at[:, :O].set(p["wf"].T.astype(b16))
    bf_p = jnp.zeros((1, o_pad), f32).at[:, :O].set(p["bf"].astype(f32).reshape(1, O))

    return [
        p["ln1_g"].astype(f32), p["ln1_b"].astype(f32),
        p["ln2_g"].astype(f32), p["ln2_b"].astype(f32),
        p["wq"].T.astype(b16), p["bq"].astype(f32),      # (C, H*dh)
        p["wk"].T.astype(b16), p["bk"].astype(f32),      # (D, H*dh)
        p["wv"].T.astype(b16), p["bv"].astype(f32),      # (D, H*dv)
        p["wo"].T.astype(b16), p["bo"].astype(f32),      # (H*dv, C)
        p["ln3_g"].astype(f32), p["ln3_b"].astype(f32),
        p["w1"].T.astype(b16), p["b1"].astype(f32),
        p["w2"].T.astype(b16), p["b2"].astype(f32),
        wf_p, bf_p,
    ]


def _vmem_limit_bytes(TQ, C, L, D, qk, vch, hid, o_pad, weights):
    """Right-sized VMEM budget: tiles + weights + in-kernel temporaries, with
    margin, clamped to 48 MiB so v7x (64 MiB physical) keeps compiler headroom."""
    f32, b16 = 4, 2
    tiles = 2 * (TQ * C + L * D + TQ * o_pad) * f32          # double-buffered I/O tiles
    wbytes = 2 * sum(int(w.size) * w.dtype.itemsize for w in weights)
    acts = (L * (qk + vch) * (f32 + b16)                      # K/V (+bf16 copies)
            + TQ * qk * (f32 + b16)                           # fused Q projection
            + 2 * TQ * L * f32                                # scores / probs
            + TQ * vch * (f32 + b16)                          # ctx concat
            + 3 * TQ * C * f32                                # att / hln / layer_out
            + TQ * hid * (f32 + b16)                          # MLP hidden
            + TQ * o_pad * f32)                               # logits
    need = tiles + wbytes + 2 * acts                          # 2x margin for scratch/spill
    return int(min(max(need, 16 * 1024 * 1024), 48 * 1024 * 1024))


def perceiver_basic_decoder(query, z, params, *, n_heads, q_tile=None):
    B, Q, C = query.shape
    _, L, D = z.shape
    qk_channels = params["wq"].shape[0]
    v_channels = params["wv"].shape[0]
    hid = params["w1"].shape[0]
    O = params["wf"].shape[0]
    assert qk_channels % n_heads == 0 and v_channels % n_heads == 0
    dh = qk_channels // n_heads
    dv = v_channels // n_heads

    # TQ = Q by default -> grid collapses to one step per batch (K/V computed
    # exactly once per batch, no cold-path branch, no scratch reuse invariant).
    TQ = Q if q_tile is None else min(q_tile, Q)
    assert Q % TQ == 0
    n_qt = Q // TQ
    o_pad = max(128, ((O + 127) // 128) * 128)      # lane-dense output width

    weights = _prep_weights(params, o_pad=o_pad)

    in_specs = [
        pl.BlockSpec((1, TQ, C), lambda b, qt: (b, qt, 0)),      # query tile
        pl.BlockSpec((1, L, D), lambda b, qt: (b, 0, 0)),        # latents (per batch)
    ]
    for w in weights:
        in_specs.append(pl.BlockSpec(w.shape, lambda b, qt, _nd=w.ndim: (0,) * _nd))

    kernel = functools.partial(decoder_kernel, n_heads=n_heads, dh=dh, dv=dv)
    vmem_limit = _vmem_limit_bytes(TQ, C, L, D, qk_channels, v_channels,
                                   hid, o_pad, weights)

    out = pl.pallas_call(
        kernel,
        out_shape=jax.ShapeDtypeStruct((B, Q, o_pad), jnp.float32),
        grid_spec=pltpu.PrefetchScalarGridSpec(
            num_scalar_prefetch=0,
            grid=(B, n_qt),
            in_specs=in_specs,
            out_specs=pl.BlockSpec((1, TQ, o_pad), lambda b, qt: (b, qt, 0)),
        ),
        compiler_params=pltpu.CompilerParams(
            # K/V recomputed per grid step -> both axes are safely parallel
            # (feeds both v7x TensorCores even when B is small/odd).
            dimension_semantics=("parallel", "parallel"),
            vmem_limit_bytes=vmem_limit,
        ),
    )(query, z, *weights)
    return out[:, :, :O]


def reference_decoder(query, z, params, *, n_heads):
    """Pure-JAX (f32) reference mirroring the PyTorch forward (for validation)."""
    p = params
    qk = p["wq"].shape[0]
    vc = p["wv"].shape[0]
    qn = _layernorm_ref(query, p["ln1_g"], p["ln1_b"])
    zn = _layernorm_ref(z, p["ln2_g"], p["ln2_b"])
    Qp = jnp.einsum("bqc,kc->bqk", qn, p["wq"]) + p["bq"]
    K = jnp.einsum("bld,kd->blk", zn, p["wk"]) + p["bk"]
    V = jnp.einsum("bld,vd->blv", zn, p["wv"]) + p["bv"]
    B, Qlen, _ = Qp.shape
    L = K.shape[1]
    Qh = Qp.reshape(B, Qlen, n_heads, qk // n_heads).transpose(0, 2, 1, 3)
    Kh = K.reshape(B, L, n_heads, qk // n_heads).transpose(0, 2, 1, 3)
    Vh = V.reshape(B, L, n_heads, vc // n_heads).transpose(0, 2, 1, 3)
    s = jnp.einsum("bhqd,bhkd->bhqk", Qh, Kh) / math.sqrt(qk // n_heads)
    pr = jax.nn.softmax(s, axis=-1)
    ctx = jnp.einsum("bhqk,bhkd->bhqd", pr, Vh).transpose(0, 2, 1, 3).reshape(B, Qlen, vc)
    att = jnp.einsum("bqv,cv->bqc", ctx, p["wo"]) + p["bo"]
    h1 = _layernorm_ref(att, p["ln3_g"], p["ln3_b"])
    h1 = _gelu_tanh(jnp.einsum("bqc,fc->bqf", h1, p["w1"]) + p["b1"])
    h2 = jnp.einsum("bqf,cf->bqc", h1, p["w2"]) + p["b2"]
    layer_out = h2 + att
    return jnp.einsum("bqc,oc->bqo", layer_out, p["wf"]) + p["bf"]


def make_params(key, *, num_channels, d_latents, qk_channels, v_channels,
                widening_factor, output_num_channels):
    C, D = num_channels, d_latents
    ks = jax.random.split(key, 12)
    scale = 0.05

    def n(k, shape):
        return (scale * jax.random.normal(k, shape)).astype(jnp.float32)

    params = {
        "ln1_g": jnp.ones((1, C), jnp.float32), "ln1_b": jnp.zeros((1, C), jnp.float32),
        "ln2_g": jnp.ones((1, D), jnp.float32), "ln2_b": jnp.zeros((1, D), jnp.float32),
        "wq": n(ks[0], (qk_channels, C)), "bq": n(ks[1], (1, qk_channels)),
        "wk": n(ks[2], (qk_channels, D)), "bk": n(ks[3], (1, qk_channels)),
        "wv": n(ks[4], (v_channels, D)), "bv": n(ks[5], (1, v_channels)),
        "wo": n(ks[6], (C, v_channels)), "bo": n(ks[7], (1, C)),
        "ln3_g": jnp.ones((1, C), jnp.float32), "ln3_b": jnp.zeros((1, C), jnp.float32),
        "w1": n(ks[8], (widening_factor * C, C)),
        "b1": jnp.zeros((1, widening_factor * C), jnp.float32),
        "w2": n(ks[9], (C, widening_factor * C)), "b2": jnp.zeros((1, C), jnp.float32),
        "wf": n(ks[10], (output_num_channels, C)), "bf": n(ks[11], (1, output_num_channels)),
    }
    return params


if __name__ == "__main__":
    # Config (synthetic): cross_attention_shape_for_attention='q' so
    # qk_channels = v_channels = num_channels; use_query_residual=False,
    # final_project=True, widening_factor=1, hidden_act='gelu_accurate'.
    # Shapes chosen so every matmul dim is 128-aligned (head_dim = 128).
    B, Qlen, L = 2, 256, 128
    num_channels = 256          # q_dim / decoder query channels
    d_latents = 128             # cfg.d_latents (kv_dim)
    n_heads = 2                 # head_dim = 128 -> 128-aligned lane slices
    qk_channels = num_channels
    v_channels = qk_channels
    widening_factor = 1
    output_num_channels = 32    # padded to 128 inside the wrapper

    key = jax.random.PRNGKey(0)
    kq, kz, kp = jax.random.split(key, 3)
    query = jax.random.normal(kq, (B, Qlen, num_channels), dtype=jnp.float32)
    z = jax.random.normal(kz, (B, L, d_latents), dtype=jnp.float32)
    params = make_params(kp, num_channels=num_channels, d_latents=d_latents,
                         qk_channels=qk_channels, v_channels=v_channels,
                         widening_factor=widening_factor,
                         output_num_channels=output_num_channels)

    logits = perceiver_basic_decoder(query, z, params, n_heads=n_heads)
    logits = jax.block_until_ready(logits)

    ref = reference_decoder(query, z, params, n_heads=n_heads)
    assert logits.shape == (B, Qlen, output_num_channels)
    # bf16 matmul operands + approx reciprocal -> loosened tolerance vs f32 ref
    assert jnp.allclose(logits, ref, atol=5e-2, rtol=5e-2), "mismatch vs JAX reference"

    # TODO(synk): decoder_query() (trainable/fourier position encodings) is query
    # construction glue, not part of forward(query, z); not implemented in-kernel.
    print("KERNEL_OK")
</pallas_src>

<mosaic_0001>
module attributes {stable_mosaic.version = 11 : i64} {
  func.func @decoder_kernel(%arg0: i32, %arg1: i32, %arg2: memref<1x256x256xf32, #tpu.memory_space<vmem>>, %arg3: memref<1x128x128xf32, #tpu.memory_space<vmem>>, %arg4: memref<1x256xf32, #tpu.memory_space<vmem>>, %arg5: memref<1x256xf32, #tpu.memory_space<vmem>>, %arg6: memref<1x128xf32, #tpu.memory_space<vmem>>, %arg7: memref<1x128xf32, #tpu.memory_space<vmem>>, %arg8: memref<256x256xbf16, #tpu.memory_space<vmem>>, %arg9: memref<1x256xf32, #tpu.memory_space<vmem>>, %arg10: memref<128x256xbf16, #tpu.memory_space<vmem>>, %arg11: memref<1x256xf32, #tpu.memory_space<vmem>>, %arg12: memref<128x256xbf16, #tpu.memory_space<vmem>>, %arg13: memref<1x256xf32, #tpu.memory_space<vmem>>, %arg14: memref<256x256xbf16, #tpu.memory_space<vmem>>, %arg15: memref<1x256xf32, #tpu.memory_space<vmem>>, %arg16: memref<1x256xf32, #tpu.memory_space<vmem>>, %arg17: memref<1x256xf32, #tpu.memory_space<vmem>>, %arg18: memref<256x256xbf16, #tpu.memory_space<vmem>>, %arg19: memref<1x256xf32, #tpu.memory_space<vmem>>, %arg20: memref<256x256xbf16, #tpu.memory_space<vmem>>, %arg21: memref<1x256xf32, #tpu.memory_space<vmem>>, %arg22: memref<256x128xbf16, #tpu.memory_space<vmem>>, %arg23: memref<1x128xf32, #tpu.memory_space<vmem>>, %arg24: memref<1x256x128xf32, #tpu.memory_space<vmem>>) attributes {dimension_semantics = [#tpu.dimension_semantics<parallel>, #tpu.dimension_semantics<parallel>], iteration_bounds = array<i64: 2, 1>, scalar_prefetch = 0 : i64, scratch_operands = 0 : i64, tpu.core_type = #tpu.core_type<tc>, window_params = [{transform_indices = @transform_0, window_bounds = array<i64: 1, 256, 256>}, {transform_indices = @transform_1, window_bounds = array<i64: 1, 128, 128>}, {pipeline_mode = #tpu.pipeline_mode<synchronous>, transform_indices = @transform_2, window_bounds = array<i64: 1, 256>}, {pipeline_mode = #tpu.pipeline_mode<synchronous>, transform_indices = @transform_3, window_bounds = array<i64: 1, 256>}, {pipeline_mode = #tpu.pipeline_mode<synchronous>, transform_indices = @transform_4, window_bounds = array<i64: 1, 128>}, {pipeline_mode = #tpu.pipeline_mode<synchronous>, transform_indices = @transform_5, window_bounds = array<i64: 1, 128>}, {pipeline_mode = #tpu.pipeline_mode<synchronous>, transform_indices = @transform_6, window_bounds = array<i64: 256, 256>}, {pipeline_mode = #tpu.pipeline_mode<synchronous>, transform_indices = @transform_7, window_bounds = array<i64: 1, 256>}, {pipeline_mode = #tpu.pipeline_mode<synchronous>, transform_indices = @transform_8, window_bounds = array<i64: 128, 256>}, {pipeline_mode = #tpu.pipeline_mode<synchronous>, transform_indices = @transform_9, window_bounds = array<i64: 1, 256>}, {pipeline_mode = #tpu.pipeline_mode<synchronous>, transform_indices = @transform_10, window_bounds = array<i64: 128, 256>}, {pipeline_mode = #tpu.pipeline_mode<synchronous>, transform_indices = @transform_11, window_bounds = array<i64: 1, 256>}, {pipeline_mode = #tpu.pipeline_mode<synchronous>, transform_indices = @transform_12, window_bounds = array<i64: 256, 256>}, {pipeline_mode = #tpu.pipeline_mode<synchronous>, transform_indices = @transform_13, window_bounds = array<i64: 1, 256>}, {pipeline_mode = #tpu.pipeline_mode<synchronous>, transform_indices = @transform_14, window_bounds = array<i64: 1, 256>}, {pipeline_mode = #tpu.pipeline_mode<synchronous>, transform_indices = @transform_15, window_bounds = array<i64: 1, 256>}, {pipeline_mode = #tpu.pipeline_mode<synchronous>, transform_indices = @transform_16, window_bounds = array<i64: 256, 256>}, {pipeline_mode = #tpu.pipeline_mode<synchronous>, transform_indices = @transform_17, window_bounds = array<i64: 1, 256>}, {pipeline_mode = #tpu.pipeline_mode<synchronous>, transform_indices = @transform_18, window_bounds = array<i64: 256, 256>}, {pipeline_mode = #tpu.pipeline_mode<synchronous>, transform_indices = @transform_19, window_bounds = array<i64: 1, 256>}, {pipeline_mode = #tpu.pipeline_mode<synchronous>, transform_indices = @transform_20, window_bounds = array<i64: 256, 128>}, {pipeline_mode = #tpu.pipeline_mode<synchronous>, transform_indices = @transform_21, window_bounds = array<i64: 1, 128>}, {transform_indices = @transform_22, window_bounds = array<i64: 1, 256, 128>}]} {
    %c0 = arith.constant 0 : index
    %c0_0 = arith.constant 0 : index
    %c0_1 = arith.constant 0 : index
    %0 = vector.load %arg3[%c0, %c0_0, %c0_1] : memref<1x128x128xf32, #tpu.memory_space<vmem>>, vector<1x128x128xf32>
    %1 = vector.shape_cast %0 : vector<1x128x128xf32> to vector<128x128xf32>
    %c0_2 = arith.constant 0 : index
    %c0_3 = arith.constant 0 : index
    %2 = vector.load %arg6[%c0_2, %c0_3] : memref<1x128xf32, #tpu.memory_space<vmem>>, vector<1x128xf32>
    %c0_4 = arith.constant 0 : index
    %c0_5 = arith.constant 0 : index
    %3 = vector.load %arg7[%c0_4, %c0_5] : memref<1x128xf32, #tpu.memory_space<vmem>>, vector<1x128xf32>
    %cst = arith.constant dense<0.000000e+00> : vector<128xf32>
    %4 = vector.multi_reduction <add>, %1, %cst [1] : vector<128x128xf32> to vector<128xf32>
    %5 = vector.shape_cast %4 : vector<128xf32> to vector<128x1xf32>
    %cst_6 = arith.constant 1.280000e+02 : f32
    %6 = vector.broadcast %cst_6 : f32 to vector<128x1xf32>
    %7 = arith.divf %5, %6 : vector<128x1xf32>
    %8 = arith.mulf %1, %1 : vector<128x128xf32>
    %cst_7 = arith.constant dense<0.000000e+00> : vector<128xf32>
    %9 = vector.multi_reduction <add>, %8, %cst_7 [1] : vector<128x128xf32> to vector<128xf32>
    %10 = vector.shape_cast %9 : vector<128xf32> to vector<128x1xf32>
    %cst_8 = arith.constant 1.280000e+02 : f32
    %11 = vector.broadcast %cst_8 : f32 to vector<128x1xf32>
    %12 = arith.divf %10, %11 : vector<128x1xf32>
    %13 = arith.mulf %7, %7 : vector<128x1xf32>
    %14 = arith.subf %12, %13 : vector<128x1xf32>
    %15 = vector.broadcast %7 : vector<128x1xf32> to vector<128x128xf32>
    %16 = arith.subf %1, %15 : vector<128x128xf32>
    %cst_9 = arith.constant 9.99999974E-6 : f32
    %17 = vector.broadcast %cst_9 : f32 to vector<128x1xf32>
    %18 = arith.addf %14, %17 : vector<128x1xf32>
    %19 = math.rsqrt %18 : vector<128x1xf32>
    %20 = vector.broadcast %19 : vector<128x1xf32> to vector<128x128xf32>
    %21 = arith.mulf %16, %20 : vector<128x128xf32>
    %22 = vector.broadcast %2 : vector<1x128xf32> to vector<128x128xf32>
    %23 = arith.mulf %21, %22 : vector<128x128xf32>
    %24 = vector.broadcast %3 : vector<1x128xf32> to vector<128x128xf32>
    %25 = arith.addf %23, %24 : vector<128x128xf32>
    %26 = arith.truncf %25 : vector<128x128xf32> to vector<128x128xbf16>
    %c0_10 = arith.constant 0 : index
    %c0_11 = arith.constant 0 : index
    %27 = vector.load %arg10[%c0_10, %c0_11] : memref<128x256xbf16, #tpu.memory_space<vmem>>, vector<128x256xbf16>
    %cst_12 = arith.constant dense<0.000000e+00> : vector<128x256xf32>
    %28 = tpu.matmul %26, %27, %cst_12 {dimension_numbers = #tpu.dot_dimension_numbers<[1], [0], [0], [1], [0, 0, 1, 1], [], []>} : vector<128x128xbf16>, vector<128x256xbf16>, vector<128x256xf32> -> vector<128x256xf32>
    %c0_13 = arith.constant 0 : index
    %c0_14 = arith.constant 0 : index
    %29 = vector.load %arg11[%c0_13, %c0_14] : memref<1x256xf32, #tpu.memory_space<vmem>>, vector<1x256xf32>
    %30 = vector.broadcast %29 : vector<1x256xf32> to vector<128x256xf32>
    %31 = arith.addf %28, %30 : vector<128x256xf32>
    %32 = arith.truncf %31 : vector<128x256xf32> to vector<128x256xbf16>
    %c0_15 = arith.constant 0 : index
    %c0_16 = arith.constant 0 : index
    %33 = vector.load %arg12[%c0_15, %c0_16] : memref<128x256xbf16, #tpu.memory_space<vmem>>, vector<128x256xbf16>
    %cst_17 = arith.constant dense<0.000000e+00> : vector<128x256xf32>
    %34 = tpu.matmul %26, %33, %cst_17 {dimension_numbers = #tpu.dot_dimension_numbers<[1], [0], [0], [1], [0, 0, 1, 1], [], []>} : vector<128x128xbf16>, vector<128x256xbf16>, vector<128x256xf32> -> vector<128x256xf32>
    %c0_18 = arith.constant 0 : index
    %c0_19 = arith.constant 0 : index
    %35 = vector.load %arg13[%c0_18, %c0_19] : memref<1x256xf32, #tpu.memory_space<vmem>>, vector<1x256xf32>
    %36 = vector.broadcast %35 : vector<1x256xf32> to vector<128x256xf32>
    %37 = arith.addf %34, %36 : vector<128x256xf32>
    %38 = arith.truncf %37 : vector<128x256xf32> to vector<128x256xbf16>
    %c0_20 = arith.constant 0 : index
    %c0_21 = arith.constant 0 : index
    %c0_22 = arith.constant 0 : index
    %39 = vector.load %arg2[%c0_20, %c0_21, %c0_22] : memref<1x256x256xf32, #tpu.memory_space<vmem>>, vector<1x256x256xf32>
    %40 = vector.shape_cast %39 : vector<1x256x256xf32> to vector<256x256xf32>
    %c0_23 = arith.constant 0 : index
    %c0_24 = arith.constant 0 : index
    %41 = vector.load %arg4[%c0_23, %c0_24] : memref<1x256xf32, #tpu.memory_space<vmem>>, vector<1x256xf32>
    %c0_25 = arith.constant 0 : index
    %c0_26 = arith.constant 0 : index
    %42 = vector.load %arg5[%c0_25, %c0_26] : memref<1x256xf32, #tpu.memory_space<vmem>>, vector<1x256xf32>
    %cst_27 = arith.constant dense<0.000000e+00> : vector<256xf32>
    %43 = vector.multi_reduction <add>, %40, %cst_27 [1] : vector<256x256xf32> to vector<256xf32>
    %44 = vector.shape_cast %43 : vector<256xf32> to vector<256x1xf32>
    %cst_28 = arith.constant 2.560000e+02 : f32
    %45 = vector.broadcast %cst_28 : f32 to vector<256x1xf32>
    %46 = arith.divf %44, %45 : vector<256x1xf32>
    %47 = arith.mulf %40, %40 : vector<256x256xf32>
    %cst_29 = arith.constant dense<0.000000e+00> : vector<256xf32>
    %48 = vector.multi_reduction <add>, %47, %cst_29 [1] : vector<256x256xf32> to vector<256xf32>
    %49 = vector.shape_cast %48 : vector<256xf32> to vector<256x1xf32>
    %cst_30 = arith.constant 2.560000e+02 : f32
    %50 = vector.broadcast %cst_30 : f32 to vector<256x1xf32>
    %51 = arith.divf %49, %50 : vector<256x1xf32>
    %52 = arith.mulf %46, %46 : vector<256x1xf32>
    %53 = arith.subf %51, %52 : vector<256x1xf32>
    %54 = vector.broadcast %46 : vector<256x1xf32> to vector<256x256xf32>
    %55 = arith.subf %40, %54 : vector<256x256xf32>
    %cst_31 = arith.constant 9.99999974E-6 : f32
    %56 = vector.broadcast %cst_31 : f32 to vector<256x1xf32>
    %57 = arith.addf %53, %56 : vector<256x1xf32>
    %58 = math.rsqrt %57 : vector<256x1xf32>
    %59 = vector.broadcast %58 : vector<256x1xf32> to vector<256x256xf32>
    %60 = arith.mulf %55, %59 : vector<256x256xf32>
    %61 = vector.broadcast %41 : vector<1x256xf32> to vector<256x256xf32>
    %62 = arith.mulf %60, %61 : vector<256x256xf32>
    %63 = vector.broadcast %42 : vector<1x256xf32> to vector<256x256xf32>
    %64 = arith.addf %62, %63 : vector<256x256xf32>
    %65 = arith.truncf %64 : vector<256x256xf32> to vector<256x256xbf16>
    %c0_32 = arith.constant 0 : index
    %c0_33 = arith.constant 0 : index
    %66 = vector.load %arg8[%c0_32, %c0_33] : memref<256x256xbf16, #tpu.memory_space<vmem>>, vector<256x256xbf16>
    %cst_34 = arith.constant dense<0.000000e+00> : vector<256x256xf32>
    %67 = tpu.matmul %65, %66, %cst_34 {dimension_numbers = #tpu.dot_dimension_numbers<[1], [0], [0], [1], [0, 0, 1, 1], [], []>} : vector<256x256xbf16>, vector<256x256xbf16>, vector<256x256xf32> -> vector<256x256xf32>
    %c0_35 = arith.constant 0 : index
    %c0_36 = arith.constant 0 : index
    %68 = vector.load %arg9[%c0_35, %c0_36] : memref<1x256xf32, #tpu.memory_space<vmem>>, vector<1x256xf32>
    %69 = vector.broadcast %68 : vector<1x256xf32> to vector<256x256xf32>
    %70 = arith.addf %67, %69 : vector<256x256xf32>
    %71 = vector.extract_strided_slice %70 {offsets = [0, 0], sizes = [256, 128], strides = [1, 1]} : vector<256x256xf32> to vector<256x128xf32>
    %cst_37 = arith.constant 0.0883883461 : f32
    %72 = vector.broadcast %cst_37 : f32 to vector<256x128xf32>
    %73 = arith.mulf %71, %72 : vector<256x128xf32>
    %74 = arith.truncf %73 : vector<256x128xf32> to vector<256x128xbf16>
    %75 = vector.extract_strided_slice %32 {offsets = [0, 0], sizes = [128, 128], strides = [1, 1]} : vector<128x256xbf16> to vector<128x128xbf16>
    %76 = vector.extract_strided_slice %38 {offsets = [0, 0], sizes = [128, 128], strides = [1, 1]} : vector<128x256xbf16> to vector<128x128xbf16>
    "tpu.trace_start"() <{level = 10 : i32, message = "qd,kd->qk"}> : () -> ()
    %cst_38 = arith.constant dense<0.000000e+00> : vector<256x128xf32>
    %77 = tpu.matmul %74, %75, %cst_38 {dimension_numbers = #tpu.dot_dimension_numbers<[1], [1], [0], [0], [0, 0, 1, 0], [], []>} : vector<256x128xbf16>, vector<128x128xbf16>, vector<256x128xf32> -> vector<256x128xf32>
    "tpu.trace_stop"() : () -> ()
    %cst_39 = arith.constant dense<0xFF800000> : vector<256xf32>
    %78 = vector.multi_reduction <maximumf>, %77, %cst_39 [1] : vector<256x128xf32> to vector<256xf32>
    %79 = vector.shape_cast %78 : vector<256xf32> to vector<256x1xf32>
    %80 = vector.broadcast %79 : vector<256x1xf32> to vector<256x128xf32>
    %81 = arith.subf %77, %80 : vector<256x128xf32>
    %82 = math.exp %81 : vector<256x128xf32>
    %cst_40 = arith.constant dense<0.000000e+00> : vector<256xf32>
    %83 = vector.multi_reduction <add>, %82, %cst_40 [1] : vector<256x128xf32> to vector<256xf32>
    %84 = vector.shape_cast %83 : vector<256xf32> to vector<256x1xf32>
    %85 = tpu.reciprocal %84 {approx = true} : vector<256x1xf32> -> vector<256x1xf32>
    %86 = vector.broadcast %85 : vector<256x1xf32> to vector<256x128xf32>
    %87 = arith.mulf %82, %86 : vector<256x128xf32>
    %88 = arith.truncf %87 : vector<256x128xf32> to vector<256x128xbf16>
    %cst_41 = arith.constant dense<0.000000e+00> : vector<256x128xf32>
    %89 = tpu.matmul %88, %76, %cst_41 {dimension_numbers = #tpu.dot_dimension_numbers<[1], [0], [0], [1], [0, 0, 1, 1], [], []>} : vector<256x128xbf16>, vector<128x128xbf16>, vector<256x128xf32> -> vector<256x128xf32>
    %90 = vector.extract_strided_slice %70 {offsets = [0, 128], sizes = [256, 128], strides = [1, 1]} : vector<256x256xf32> to vector<256x128xf32>
    %cst_42 = arith.constant 0.0883883461 : f32
    %91 = vector.broadcast %cst_42 : f32 to vector<256x128xf32>
    %92 = arith.mulf %90, %91 : vector<256x128xf32>
    %93 = arith.truncf %92 : vector<256x128xf32> to vector<256x128xbf16>
    %94 = vector.extract_strided_slice %32 {offsets = [0, 128], sizes = [128, 128], strides = [1, 1]} : vector<128x256xbf16> to vector<128x128xbf16>
    %95 = vector.extract_strided_slice %38 {offsets = [0, 128], sizes = [128, 128], strides = [1, 1]} : vector<128x256xbf16> to vector<128x128xbf16>
    "tpu.trace_start"() <{level = 10 : i32, message = "qd,kd->qk"}> : () -> ()
    %cst_43 = arith.constant dense<0.000000e+00> : vector<256x128xf32>
    %96 = tpu.matmul %93, %94, %cst_43 {dimension_numbers = #tpu.dot_dimension_numbers<[1], [1], [0], [0], [0, 0, 1, 0], [], []>} : vector<256x128xbf16>, vector<128x128xbf16>, vector<256x128xf32> -> vector<256x128xf32>
    "tpu.trace_stop"() : () -> ()
    %cst_44 = arith.constant dense<0xFF800000> : vector<256xf32>
    %97 = vector.multi_reduction <maximumf>, %96, %cst_44 [1] : vector<256x128xf32> to vector<256xf32>
    %98 = vector.shape_cast %97 : vector<256xf32> to vector<256x1xf32>
    %99 = vector.broadcast %98 : vector<256x1xf32> to vector<256x128xf32>
    %100 = arith.subf %96, %99 : vector<256x128xf32>
    %101 = math.exp %100 : vector<256x128xf32>
    %cst_45 = arith.constant dense<0.000000e+00> : vector<256xf32>
    %102 = vector.multi_reduction <add>, %101, %cst_45 [1] : vector<256x128xf32> to vector<256xf32>
    %103 = vector.shape_cast %102 : vector<256xf32> to vector<256x1xf32>
    %104 = tpu.reciprocal %103 {approx = true} : vector<256x1xf32> -> vector<256x1xf32>
    %105 = vector.broadcast %104 : vector<256x1xf32> to vector<256x128xf32>
    %106 = arith.mulf %101, %105 : vector<256x128xf32>
    %107 = arith.truncf %106 : vector<256x128xf32> to vector<256x128xbf16>
    %cst_46 = arith.constant dense<0.000000e+00> : vector<256x128xf32>
    %108 = tpu.matmul %107, %95, %cst_46 {dimension_numbers = #tpu.dot_dimension_numbers<[1], [0], [0], [1], [0, 0, 1, 1], [], []>} : vector<256x128xbf16>, vector<128x128xbf16>, vector<256x128xf32> -> vector<256x128xf32>
    %109 = tpu.concatenate %89, %108 in 1 : vector<256x128xf32>, vector<256x128xf32> -> vector<256x256xf32>
    %110 = arith.truncf %109 : vector<256x256xf32> to vector<256x256xbf16>
    %c0_47 = arith.constant 0 : index
    %c0_48 = arith.constant 0 : index
    %111 = vector.load %arg14[%c0_47, %c0_48] : memref<256x256xbf16, #tpu.memory_space<vmem>>, vector<256x256xbf16>
    %cst_49 = arith.constant dense<0.000000e+00> : vector<256x256xf32>
    %112 = tpu.matmul %110, %111, %cst_49 {dimension_numbers = #tpu.dot_dimension_numbers<[1], [0], [0], [1], [0, 0, 1, 1], [], []>} : vector<256x256xbf16>, vector<256x256xbf16>, vector<256x256xf32> -> vector<256x256xf32>
    %c0_50 = arith.constant 0 : index
    %c0_51 = arith.constant 0 : index
    %113 = vector.load %arg15[%c0_50, %c0_51] : memref<1x256xf32, #tpu.memory_space<vmem>>, vector<1x256xf32>
    %114 = vector.broadcast %113 : vector<1x256xf32> to vector<256x256xf32>
    %115 = arith.addf %112, %114 : vector<256x256xf32>
    %c0_52 = arith.constant 0 : index
    %c0_53 = arith.constant 0 : index
    %116 = vector.load %arg16[%c0_52, %c0_53] : memref<1x256xf32, #tpu.memory_space<vmem>>, vector<1x256xf32>
    %c0_54 = arith.constant 0 : index
    %c0_55 = arith.constant 0 : index
    %117 = vector.load %arg17[%c0_54, %c0_55] : memref<1x256xf32, #tpu.memory_space<vmem>>, vector<1x256xf32>
    %cst_56 = arith.constant dense<0.000000e+00> : vector<256xf32>
    %118 = vector.multi_reduction <add>, %115, %cst_56 [1] : vector<256x256xf32> to vector<256xf32>
    %119 = vector.shape_cast %118 : vector<256xf32> to vector<256x1xf32>
    %cst_57 = arith.constant 2.560000e+02 : f32
    %120 = vector.broadcast %cst_57 : f32 to vector<256x1xf32>
    %121 = arith.divf %119, %120 : vector<256x1xf32>
    %122 = arith.mulf %115, %115 : vector<256x256xf32>
    %cst_58 = arith.constant dense<0.000000e+00> : vector<256xf32>
    %123 = vector.multi_reduction <add>, %122, %cst_58 [1] : vector<256x256xf32> to vector<256xf32>
    %124 = vector.shape_cast %123 : vector<256xf32> to vector<256x1xf32>
    %cst_59 = arith.constant 2.560000e+02 : f32
    %125 = vector.broadcast %cst_59 : f32 to vector<256x1xf32>
    %126 = arith.divf %124, %125 : vector<256x1xf32>
    %127 = arith.mulf %121, %121 : vector<256x1xf32>
    %128 = arith.subf %126, %127 : vector<256x1xf32>
    %129 = vector.broadcast %121 : vector<256x1xf32> to vector<256x256xf32>
    %130 = arith.subf %115, %129 : vector<256x256xf32>
    %cst_60 = arith.constant 9.99999974E-6 : f32
    %131 = vector.broadcast %cst_60 : f32 to vector<256x1xf32>
    %132 = arith.addf %128, %131 : vector<256x1xf32>
    %133 = math.rsqrt %132 : vector<256x1xf32>
    %134 = vector.broadcast %133 : vector<256x1xf32> to vector<256x256xf32>
    %135 = arith.mulf %130, %134 : vector<256x256xf32>
    %136 = vector.broadcast %116 : vector<1x256xf32> to vector<256x256xf32>
    %137 = arith.mulf %135, %136 : vector<256x256xf32>
    %138 = vector.broadcast %117 : vector<1x256xf32> to vector<256x256xf32>
    %139 = arith.addf %137, %138 : vector<256x256xf32>
    %140 = arith.truncf %139 : vector<256x256xf32> to vector<256x256xbf16>
    %c0_61 = arith.constant 0 : index
    %c0_62 = arith.constant 0 : index
    %141 = vector.load %arg18[%c0_61, %c0_62] : memref<256x256xbf16, #tpu.memory_space<vmem>>, vector<256x256xbf16>
    %cst_63 = arith.constant dense<0.000000e+00> : vector<256x256xf32>
    %142 = tpu.matmul %140, %141, %cst_63 {dimension_numbers = #tpu.dot_dimension_numbers<[1], [0], [0], [1], [0, 0, 1, 1], [], []>} : vector<256x256xbf16>, vector<256x256xbf16>, vector<256x256xf32> -> vector<256x256xf32>
    %c0_64 = arith.constant 0 : index
    %c0_65 = arith.constant 0 : index
    %143 = vector.load %arg19[%c0_64, %c0_65] : memref<1x256xf32, #tpu.memory_space<vmem>>, vector<1x256xf32>
    %144 = vector.broadcast %143 : vector<1x256xf32> to vector<256x256xf32>
    %145 = arith.addf %142, %144 : vector<256x256xf32>
    %cst_66 = arith.constant 5.000000e-01 : f32
    %146 = vector.broadcast %cst_66 : f32 to vector<256x256xf32>
    %147 = arith.mulf %146, %145 : vector<256x256xf32>
    %cst_67 = arith.constant 4.471500e-02 : f32
    %148 = vector.broadcast %cst_67 : f32 to vector<256x256xf32>
    %149 = arith.mulf %148, %145 : vector<256x256xf32>
    %150 = arith.mulf %149, %145 : vector<256x256xf32>
    %151 = arith.mulf %150, %145 : vector<256x256xf32>
    %152 = arith.addf %145, %151 : vector<256x256xf32>
    %cst_68 = arith.constant 0.797884583 : f32
    %153 = vector.broadcast %cst_68 : f32 to vector<256x256xf32>
    %154 = arith.mulf %153, %152 : vector<256x256xf32>
    %155 = math.tanh %154 : vector<256x256xf32>
    %cst_69 = arith.constant 1.000000e+00 : f32
    %156 = vector.broadcast %cst_69 : f32 to vector<256x256xf32>
    %157 = arith.addf %156, %155 : vector<256x256xf32>
    %158 = arith.mulf %147, %157 : vector<256x256xf32>
    %159 = arith.truncf %158 : vector<256x256xf32> to vector<256x256xbf16>
    %c0_70 = arith.constant 0 : index
    %c0_71 = arith.constant 0 : index
    %160 = vector.load %arg20[%c0_70, %c0_71] : memref<256x256xbf16, #tpu.memory_space<vmem>>, vector<256x256xbf16>
    %cst_72 = arith.constant dense<0.000000e+00> : vector<256x256xf32>
    %161 = tpu.matmul %159, %160, %cst_72 {dimension_numbers = #tpu.dot_dimension_numbers<[1], [0], [0], [1], [0, 0, 1, 1], [], []>} : vector<256x256xbf16>, vector<256x256xbf16>, vector<256x256xf32> -> vector<256x256xf32>
    %c0_73 = arith.constant 0 : index
    %c0_74 = arith.constant 0 : index
    %162 = vector.load %arg21[%c0_73, %c0_74] : memref<1x256xf32, #tpu.memory_space<vmem>>, vector<1x256xf32>
    %163 = vector.broadcast %162 : vector<1x256xf32> to vector<256x256xf32>
    %164 = arith.addf %161, %163 : vector<256x256xf32>
    %165 = arith.addf %164, %115 : vector<256x256xf32>
    %166 = arith.truncf %165 : vector<256x256xf32> to vector<256x256xbf16>
    %c0_75 = arith.constant 0 : index
    %c0_76 = arith.constant 0 : index
    %167 = vector.load %arg22[%c0_75, %c0_76] : memref<256x128xbf16, #tpu.memory_space<vmem>>, vector<256x128xbf16>
    %cst_77 = arith.constant dense<0.000000e+00> : vector<256x128xf32>
    %168 = tpu.matmul %166, %167, %cst_77 {dimension_numbers = #tpu.dot_dimension_numbers<[1], [0], [0], [1], [0, 0, 1, 1], [], []>} : vector<256x256xbf16>, vector<256x128xbf16>, vector<256x128xf32> -> vector<256x128xf32>
    %c0_78 = arith.constant 0 : index
    %c0_79 = arith.constant 0 : index
    %169 = vector.load %arg23[%c0_78, %c0_79] : memref<1x128xf32, #tpu.memory_space<vmem>>, vector<1x128xf32>
    %170 = vector.broadcast %169 : vector<1x128xf32> to vector<256x128xf32>
    %171 = arith.addf %168, %170 : vector<256x128xf32>
    %c0_80 = arith.constant 0 : index
    %c0_81 = arith.constant 0 : index
    %c0_82 = arith.constant 0 : index
    %172 = vector.load %arg24[%c0_80, %c0_81, %c0_82] : memref<1x256x128xf32, #tpu.memory_space<vmem>>, vector<1x256x128xf32>
    %173 = vector.shape_cast %172 : vector<1x256x128xf32> to vector<256x128xf32>
    %174 = vector.shape_cast %171 : vector<256x128xf32> to vector<1x256x128xf32>
    tpu.vector_store %arg24[%c0_80, %c0_81, %c0_82], %174 {strides = array<i32>} : memref<1x256x128xf32, #tpu.memory_space<vmem>>, vector<1x256x128xf32>,
    return
  }
  func.func @transform_0(%arg0: i32, %arg1: i32) -> (i32, i32, i32) {
    %c0_i32 = arith.constant 0 : i32
    %c0_i32_0 = arith.constant 0 : i32
    return %arg0, %arg1, %c0_i32 : i32, i32, i32
  }
  func.func @transform_1(%arg0: i32, %arg1: i32) -> (i32, i32, i32) {
    %c0_i32 = arith.constant 0 : i32
    %c0_i32_0 = arith.constant 0 : i32
    %c0_i32_1 = arith.constant 0 : i32
    return %arg0, %c0_i32, %c0_i32_0 : i32, i32, i32
  }
  func.func @transform_2(%arg0: i32, %arg1: i32) -> (i32, i32) {
    %c0_i32 = arith.constant 0 : i32
    %c0_i32_0 = arith.constant 0 : i32
    %c0_i32_1 = arith.constant 0 : i32
    return %c0_i32, %c0_i32_0 : i32, i32
  }
  func.func @transform_3(%arg0: i32, %arg1: i32) -> (i32, i32) {
    %c0_i32 = arith.constant 0 : i32
    %c0_i32_0 = arith.constant 0 : i32
    %c0_i32_1 = arith.constant 0 : i32
    return %c0_i32, %c0_i32_0 : i32, i32
  }
  func.func @transform_4(%arg0: i32, %arg1: i32) -> (i32, i32) {
    %c0_i32 = arith.constant 0 : i32
    %c0_i32_0 = arith.constant 0 : i32
    %c0_i32_1 = arith.constant 0 : i32
    return %c0_i32, %c0_i32_0 : i32, i32
  }
  func.func @transform_5(%arg0: i32, %arg1: i32) -> (i32, i32) {
    %c0_i32 = arith.constant 0 : i32
    %c0_i32_0 = arith.constant 0 : i32
    %c0_i32_1 = arith.constant 0 : i32
    return %c0_i32, %c0_i32_0 : i32, i32
  }
  func.func @transform_6(%arg0: i32, %arg1: i32) -> (i32, i32) {
    %c0_i32 = arith.constant 0 : i32
    %c0_i32_0 = arith.constant 0 : i32
    %c0_i32_1 = arith.constant 0 : i32
    return %c0_i32, %c0_i32_0 : i32, i32
  }
  func.func @transform_7(%arg0: i32, %arg1: i32) -> (i32, i32) {
    %c0_i32 = arith.constant 0 : i32
    %c0_i32_0 = arith.constant 0 : i32
    %c0_i32_1 = arith.constant 0 : i32
    return %c0_i32, %c0_i32_0 : i32, i32
  }
  func.func @transform_8(%arg0: i32, %arg1: i32) -> (i32, i32) {
    %c0_i32 = arith.constant 0 : i32
    %c0_i32_0 = arith.constant 0 : i32
    %c0_i32_1 = arith.constant 0 : i32
    return %c0_i32, %c0_i32_0 : i32, i32
  }
  func.func @transform_9(%arg0: i32, %arg1: i32) -> (i32, i32) {
    %c0_i32 = arith.constant 0 : i32
    %c0_i32_0 = arith.constant 0 : i32
    %c0_i32_1 = arith.constant 0 : i32
    return %c0_i32, %c0_i32_0 : i32, i32
  }
  func.func @transform_10(%arg0: i32, %arg1: i32) -> (i32, i32) {
    %c0_i32 = arith.constant 0 : i32
    %c0_i32_0 = arith.constant 0 : i32
    %c0_i32_1 = arith.constant 0 : i32
    return %c0_i32, %c0_i32_0 : i32, i32
  }
  func.func @transform_11(%arg0: i32, %arg1: i32) -> (i32, i32) {
    %c0_i32 = arith.constant 0 : i32
    %c0_i32_0 = arith.constant 0 : i32
    %c0_i32_1 = arith.constant 0 : i32
    return %c0_i32, %c0_i32_0 : i32, i32
  }
  func.func @transform_12(%arg0: i32, %arg1: i32) -> (i32, i32) {
    %c0_i32 = arith.constant 0 : i32
    %c0_i32_0 = arith.constant 0 : i32
    %c0_i32_1 = arith.constant 0 : i32
    return %c0_i32, %c0_i32_0 : i32, i32
  }
  func.func @transform_13(%arg0: i32, %arg1: i32) -> (i32, i32) {
    %c0_i32 = arith.constant 0 : i32
    %c0_i32_0 = arith.constant 0 : i32
    %c0_i32_1 = arith.constant 0 : i32
    return %c0_i32, %c0_i32_0 : i32, i32
  }
  func.func @transform_14(%arg0: i32, %arg1: i32) -> (i32, i32) {
    %c0_i32 = arith.constant 0 : i32
    %c0_i32_0 = arith.constant 0 : i32
    %c0_i32_1 = arith.constant 0 : i32
    return %c0_i32, %c0_i32_0 : i32, i32
  }
  func.func @transform_15(%arg0: i32, %arg1: i32) -> (i32, i32) {
    %c0_i32 = arith.constant 0 : i32
    %c0_i32_0 = arith.constant 0 : i32
    %c0_i32_1 = arith.constant 0 : i32
    return %c0_i32, %c0_i32_0 : i32, i32
  }
  func.func @transform_16(%arg0: i32, %arg1: i32) -> (i32, i32) {
    %c0_i32 = arith.constant 0 : i32
    %c0_i32_0 = arith.constant 0 : i32
    %c0_i32_1 = arith.constant 0 : i32
    return %c0_i32, %c0_i32_0 : i32, i32
  }
  func.func @transform_17(%arg0: i32, %arg1: i32) -> (i32, i32) {
    %c0_i32 = arith.constant 0 : i32
    %c0_i32_0 = arith.constant 0 : i32
    %c0_i32_1 = arith.constant 0 : i32
    return %c0_i32, %c0_i32_0 : i32, i32
  }
  func.func @transform_18(%arg0: i32, %arg1: i32) -> (i32, i32) {
    %c0_i32 = arith.constant 0 : i32
    %c0_i32_0 = arith.constant 0 : i32
    %c0_i32_1 = arith.constant 0 : i32
    return %c0_i32, %c0_i32_0 : i32, i32
  }
  func.func @transform_19(%arg0: i32, %arg1: i32) -> (i32, i32) {
    %c0_i32 = arith.constant 0 : i32
    %c0_i32_0 = arith.constant 0 : i32
    %c0_i32_1 = arith.constant 0 : i32
    return %c0_i32, %c0_i32_0 : i32, i32
  }
  func.func @transform_20(%arg0: i32, %arg1: i32) -> (i32, i32) {
    %c0_i32 = arith.constant 0 : i32
    %c0_i32_0 = arith.constant 0 : i32
    %c0_i32_1 = arith.constant 0 : i32
    return %c0_i32, %c0_i32_0 : i32, i32
  }
  func.func @transform_21(%arg0: i32, %arg1: i32) -> (i32, i32) {
    %c0_i32 = arith.constant 0 : i32
    %c0_i32_0 = arith.constant 0 : i32
    %c0_i32_1 = arith.constant 0 : i32
    return %c0_i32, %c0_i32_0 : i32, i32
  }
  func.func @transform_22(%arg0: i32, %arg1: i32) -> (i32, i32, i32) {
    %c0_i32 = arith.constant 0 : i32
    %c0_i32_0 = arith.constant 0 : i32
    return %arg0, %arg1, %c0_i32 : i32, i32, i32
  }
}

</mosaic_0001>

<llo_original>
// kernel: tpu_custom_call.1
$region0: #{tpu_custom_call.1}
  #allocation0 [shape = 'u32[]', space=smem, size = 0x4, offset = 0x4, fixed_abs, tag = 'smem constant byte address 0x4 - core index']
  #allocation1 [shape = 'u32[144,128]{1,0:T(1,128)}', space=vmem, size = 0x12000, scoped, tag = 'internal scratch']
  %s0 = inlined_call_operand.hbm [shape: f32[2,256,256], index: 0, kind: input, shape index: {}]
  %s1 = inlined_call_operand.hbm [shape: f32[2,128,128], index: 1, kind: input, shape index: {}]
  %s2 = inlined_call_operand.vmem [shape: f32[1,256], index: 2, kind: input, shape index: {}]
  %s3 = inlined_call_operand.vmem [shape: f32[1,256], index: 3, kind: input, shape index: {}]
  %s4 = inlined_call_operand.hbm [shape: f32[1,128], index: 4, kind: input, shape index: {}]
  %s5 = inlined_call_operand.hbm [shape: f32[1,128], index: 5, kind: input, shape index: {}]
  %s6 = inlined_call_operand.hbm [shape: bf16[256,256], index: 6, kind: input, shape index: {}]
  %s7 = inlined_call_operand.vmem [shape: f32[1,256], index: 7, kind: input, shape index: {}]
  %s8 = inlined_call_operand.hbm [shape: bf16[128,256], index: 8, kind: input, shape index: {}]
  %s9 = inlined_call_operand.vmem [shape: f32[1,256], index: 9, kind: input, shape index: {}]
  %s10 = inlined_call_operand.hbm [shape: bf16[128,256], index: 10, kind: input, shape index: {}]
  %s11 = inlined_call_operand.vmem [shape: f32[1,256], index: 11, kind: input, shape index: {}]
  %s12 = inlined_call_operand.hbm [shape: bf16[256,256], index: 12, kind: input, shape index: {}]
  %s13 = inlined_call_operand.vmem [shape: f32[1,256], index: 13, kind: input, shape index: {}]
  %s14 = inlined_call_operand.vmem [shape: f32[1,256], index: 14, kind: input, shape index: {}]
  %s15 = inlined_call_operand.vmem [shape: f32[1,256], index: 15, kind: input, shape index: {}]
  %s16 = inlined_call_operand.hbm [shape: bf16[256,256], index: 16, kind: input, shape index: {}]
  %s17 = inlined_call_operand.vmem [shape: f32[1,256], index: 17, kind: input, shape index: {}]
  %s18 = inlined_call_operand.hbm [shape: bf16[256,256], index: 18, kind: input, shape index: {}]
  %s19 = inlined_call_operand.vmem [shape: f32[1,256], index: 19, kind: input, shape index: {}]
  %s20 = inlined_call_operand.hbm [shape: bf16[256,128], index: 20, kind: input, shape index: {}]
  %s21 = inlined_call_operand.vmem [shape: f32[1,128], index: 21, kind: input, shape index: {}]
  %s22 = inlined_call_operand.hbm [shape: f32[2,256,128], index: 22, kind: output, shape index: {}]
  %s23 = sld [smem:[#allocation0]]
  $region165: #{tpu_custom_call.1} parent=0
    _
  %s25 = ssub.s32 1, %s23
  %s26 = scalar_select 0, %s25, %s23
  $region1: #{tpu_custom_call.1} parent=0
    #allocation2 [shape = 'u8[524288]{0}', space=vmem, size = 0x80000, scoped, tag = 'input window, operand 0']
    #allocation3 [shape = 's32[2]{0}', space=sflag, size = 0x8, scoped, tag = 'scoped memory for tpu_custom_call.1']
    #allocation4 [shape = 's32[2]{0}', space=sflag, size = 0x8, scoped, tag = 'scoped memory for tpu_custom_call.1']
    #allocation5 [shape = 'u8[131072]{0}', space=vmem, size = 0x20000, scoped, tag = 'input window, operand 1']
    #allocation6 [shape = 's32[2]{0}', space=sflag, size = 0x8, scoped, tag = 'scoped memory for tpu_custom_call.1']
    #allocation7 [shape = 'u8[512]{0}', space=vmem, size = 0x400, scoped, tag = 'input window, operand 4, single buffered']
    #allocation8 [shape = 'u8[512]{0}', space=vmem, size = 0x400, scoped, tag = 'input window, operand 5, single buffered']
    #allocation9 [shape = 's32[1]{0}', space=sflag, size = 0x4, scoped, tag = 'scoped memory for tpu_custom_call.1']
    #allocation10 [shape = 'u8[131072]{0}', space=vmem, size = 0x20000, scoped, tag = 'input window, operand 6, single buffered']
    #allocation11 [shape = 'u8[65536]{0}', space=vmem, size = 0x10000, scoped, tag = 'input window, operand 8, single buffered']
    #allocation12 [shape = 's32[1]{0}', space=sflag, size = 0x4, scoped, tag = 'scoped memory for tpu_custom_call.1']
    #allocation13 [shape = 'u8[65536]{0}', space=vmem, size = 0x10000, scoped, tag = 'input window, operand 10, single buffered']
    #allocation14 [shape = 'u8[131072]{0}', space=vmem, size = 0x20000, scoped, tag = 'input window, operand 12, single buffered']
    #allocation15 [shape = 's32[1]{0}', space=sflag, size = 0x4, scoped, tag = 'scoped memory for tpu_custom_call.1']
    #allocation16 [shape = 'u8[131072]{0}', space=vmem, size = 0x20000, scoped, tag = 'input window, operand 16, single buffered']
    #allocation17 [shape = 'u8[131072]{0}', space=vmem, size = 0x20000, scoped, tag = 'input window, operand 18, single buffered']
    #allocation18 [shape = 's32[1]{0}', space=sflag, size = 0x4, scoped, tag = 'scoped memory for tpu_custom_call.1']
    #allocation19 [shape = 'u8[65536]{0}', space=vmem, size = 0x10000, scoped, tag = 'input window, operand 20, single buffered']
    #allocation20 [shape = 'u8[262144]{0}', space=vmem, size = 0x40000, scoped, tag = 'output window, operand 0']
    %27 = vsyncpa [#allocation3], 0
    %s28 = scalar_lea.sflag [#allocation3], 1
    %29 = vsyncpa %s28, 0
    %30 = vsyncpa [#allocation6], 0
    %s31 = scalar_lea.sflag [#allocation6], 1
    %32 = vsyncpa %s31, 0
    %33 = vsyncpa [#allocation9], 0
    %34 = vsyncpa [#allocation12], 0
    %35 = vsyncpa [#allocation15], 0
    %36 = vsyncpa [#allocation18], 0
    %37 = vsyncpa [#allocation4], 0
    %s38 = scalar_lea.sflag [#allocation4], 1
    %39 = vsyncpa %s38, 0
    loop: start=0, step=1, limit=4
    $region2: #{tpu_custom_call.1} parent=1 // loop_pre_header
      _
    $region3: #{tpu_custom_call.1} parent=1 // loop_header
      %s41 = sphi 0, %s45
      %p42 = scmp.ge.s32.totalorder %s41, 4
      %s48 = sphi 0, %s60
      %s49 = sphi 0, %s56
      %s50 = sphi 0, %s48
      %s51 = sphi 0, %s49
      %s52 = sphi 0, %s50
      %s53 = sphi 0, %s51
      %s65 = sphi 0, %s67
      %s68 = sphi 0, %s65
      %s69 = sphi 0, %s68
      %s85 = sphi 0, %s69
      %s91 = sphi 0, %s93
      %s94 = sphi 0, %s91
      %s95 = sphi 0, %s94
      %s111 = sphi 0, %s95
      %s115 = sphi 0, %s115
      %s117 = sphi 0, %s115
      %s118 = sphi 0, %s117
      %s132 = sphi 0, %s118
      %s136 = sphi 0, %s136
      %s138 = sphi 0, %s136
      %s139 = sphi 0, %s138
      %s153 = sphi 0, %s139
      %s157 = sphi 0, %s157
      %s159 = sphi 0, %s157
      %s160 = sphi 0, %s159
      %s174 = sphi 0, %s160
      %s178 = sphi 0, %s178
      %s180 = sphi 0, %s178
      %s181 = sphi 0, %s180
      %s195 = sphi 0, %s181
      %s199 = sphi 0, %s199
      %s201 = sphi 0, %s199
      %s202 = sphi 0, %s201
      %s216 = sphi 0, %s202
      %s220 = sphi 0, %s220
      %s222 = sphi 0, %s220
      %s223 = sphi 0, %s222
      %s237 = sphi 0, %s223
      %s241 = sphi 0, %s241
      %s243 = sphi 0, %s241
      %s244 = sphi 0, %s243
      %s258 = sphi 0, %s244
      %s262 = sphi 0, %s262
      %s264 = sphi 0, %s262
      %s265 = sphi 0, %s264
      %s279 = sphi 0, %s265
      %s283 = sphi 0, %s283
      %s285 = sphi 0, %s283
      %s286 = sphi 0, %s285
      %s300 = sphi 0, %s286
      %s304 = sphi 0, %s304
      %s306 = sphi 0, %s304
      %s307 = sphi 0, %s306
      %s321 = sphi 0, %s307
      %s325 = sphi 0, %s325
      %s327 = sphi 0, %s325
      %s328 = sphi 0, %s327
      %s342 = sphi 0, %s328
      %s346 = sphi 0, %s346
      %s348 = sphi 0, %s346
      %s349 = sphi 0, %s348
      %s363 = sphi 0, %s349
      %s367 = sphi 0, %s367
      %s369 = sphi 0, %s367
      %s370 = sphi 0, %s369
      %s384 = sphi 0, %s370
      %s388 = sphi 0, %s388
      %s390 = sphi 0, %s388
      %s391 = sphi 0, %s390
      %s405 = sphi 0, %s391
      %s409 = sphi 0, %s409
      %s411 = sphi 0, %s409
      %s412 = sphi 0, %s411
      %s426 = sphi 0, %s412
      %s430 = sphi 0, %s430
      %s432 = sphi 0, %s430
      %s433 = sphi 0, %s432
      %s447 = sphi 0, %s433
      %s451 = sphi 0, %s451
      %s453 = sphi 0, %s451
      %s454 = sphi 0, %s453
      %s468 = sphi 0, %s454
      %s472 = sphi 0, %s472
      %s474 = sphi 0, %s472
      %s475 = sphi 0, %s474
      %s489 = sphi 0, %s475
      %s493 = sphi 0, %s493
      %s495 = sphi 0, %s493
      %s496 = sphi 0, %s495
      %s510 = sphi 0, %s496
      %s514 = sphi 0, %s514
      %s516 = sphi 0, %s514
      %s517 = sphi 0, %s516
      %s531 = sphi 0, %s517
      %s539 = sphi 0, %s541
      %s542 = sphi 0, %s539
      %s543 = sphi 0, %s542
      %s559 = sphi 0, %s543
    $region4: #{tpu_custom_call.1} parent=1 // loop_header_branch
      %44 = sbr.rel (%p42) target = $region8
    $region5: #{tpu_custom_call.1} parent=1 // loop_body
      %s46 = ssub.s32 %s41, 1
      %s47 = ssub.s32 %s41, 2
      %s54 = sadd.s32 1, %s49
      %p55 = scmp.ge.s32.totalorder %s54, 1
      %s56 = scalar_select %p55, 0, %s54
      %s57 = sadd.s32 1, %s48
      %s58 = scalar_select %p55, %s57, %s48
      %p59 = scmp.ge.s32.totalorder %s58, 2
      %s60 = scalar_select %p59, 0, %s58
      %s61 = ssub.s32 %s48, %s60
      %s62 = ssub.s32 %s49, %s56
      %s63 = sor.u32 %s61, %s62
      %p64 = scmp.eq.s32.totalorder %s63, 0
      %s66 = sadd.s32 %s65, 1
      %s67 = scalar_select %p64, %s65, %s66
      %p70 = pneg %p64
      %p71 = scmp.eq.s32.totalorder %s41, 1
      %p72 = por %p70, %p71
      %p73 = scmp.ne.s32.totalorder %s65, %s68
      %p74 = scmp.eq.s32.totalorder %s41, 0
      %p75 = por %p73, %p74
      %p76 = scmp.ne.s32.totalorder %s65, %s68
      %p77 = scmp.eq.s32.totalorder %s46, 1
      %p78 = por %p76, %p77
      %p79 = scmp.ne.s32.totalorder %s68, %s69
      %p80 = scmp.eq.s32.totalorder %s46, 0
      %p81 = por %p79, %p80
      %p82 = scmp.ne.s32.totalorder %s68, %s69
      %p83 = scmp.eq.s32.totalorder %s47, 1
      %p84 = por %p82, %p83
      %p86 = scmp.ne.s32.totalorder %s69, %s85
      %p87 = scmp.eq.s32.totalorder %s47, 0
      %p88 = por %p86, %p87
      %s89 = ssub.s32 %s48, %s60
      %p90 = scmp.eq.s32.totalorder %s89, 0
      %s92 = sadd.s32 %s91, 1
      %s93 = scalar_select %p90, %s91, %s92
      %p96 = pneg %p90
      %p97 = scmp.eq.s32.totalorder %s41, 1
      %p98 = por %p96, %p97
      %p99 = scmp.ne.s32.totalorder %s91, %s94
      %p100 = scmp.eq.s32.totalorder %s41, 0
      %p101 = por %p99, %p100
      %p102 = scmp.ne.s32.totalorder %s91, %s94
      %p103 = scmp.eq.s32.totalorder %s46, 1
      %p104 = por %p102, %p103
      %p105 = scmp.ne.s32.totalorder %s94, %s95
      %p106 = scmp.eq.s32.totalorder %s46, 0
      %p107 = por %p105, %p106
      %p108 = scmp.ne.s32.totalorder %s94, %s95
      %p109 = scmp.eq.s32.totalorder %s47, 1
      %p110 = por %p108, %p109
      %p112 = scmp.ne.s32.totalorder %s95, %s111
      %p113 = scmp.eq.s32.totalorder %s47, 0
      %p114 = por %p112, %p113
      %s116 = sadd.s32 %s115, 1
      %p119 = scmp.eq.s32.totalorder %s41, 1
      %p120 = scmp.ne.s32.totalorder %s115, %s117
      %p121 = scmp.eq.s32.totalorder %s41, 0
      %p122 = por %p120, %p121
      %p123 = scmp.ne.s32.totalorder %s115, %s117
      %p124 = scmp.eq.s32.totalorder %s46, 1
      %p125 = por %p123, %p124
      %p126 = scmp.ne.s32.totalorder %s117, %s118
      %p127 = scmp.eq.s32.totalorder %s46, 0
      %p128 = por %p126, %p127
      %p129 = scmp.ne.s32.totalorder %s117, %s118
      %p130 = scmp.eq.s32.totalorder %s47, 1
      %p131 = por %p129, %p130
      %p133 = scmp.ne.s32.totalorder %s118, %s132
      %p134 = scmp.eq.s32.totalorder %s47, 0
      %p135 = por %p133, %p134
      %s137 = sadd.s32 %s136, 1
      %p140 = scmp.eq.s32.totalorder %s41, 1
      %p141 = scmp.ne.s32.totalorder %s136, %s138
      %p142 = scmp.eq.s32.totalorder %s41, 0
      %p143 = por %p141, %p142
      %p144 = scmp.ne.s32.totalorder %s136, %s138
      %p145 = scmp.eq.s32.totalorder %s46, 1
      %p146 = por %p144, %p145
      %p147 = scmp.ne.s32.totalorder %s138, %s139
      %p148 = scmp.eq.s32.totalorder %s46, 0
      %p149 = por %p147, %p148
      %p150 = scmp.ne.s32.totalorder %s138, %s139
      %p151 = scmp.eq.s32.totalorder %s47, 1
      %p152 = por %p150, %p151
      %p154 = scmp.ne.s32.totalorder %s139, %s153
      %p155 = scmp.eq.s32.totalorder %s47, 0
      %p156 = por %p154, %p155
      %s158 = sadd.s32 %s157, 1
      %p161 = scmp.eq.s32.totalorder %s41, 1
      %p162 = scmp.ne.s32.totalorder %s157, %s159
      %p163 = scmp.eq.s32.totalorder %s41, 0
      %p164 = por %p162, %p163
      %p165 = scmp.ne.s32.totalorder %s157, %s159
      %p166 = scmp.eq.s32.totalorder %s46, 1
      %p167 = por %p165, %p166
      %p168 = scmp.ne.s32.totalorder %s159, %s160
      %p169 = scmp.eq.s32.totalorder %s46, 0
      %p170 = por %p168, %p169
      %p171 = scmp.ne.s32.totalorder %s159, %s160
      %p172 = scmp.eq.s32.totalorder %s47, 1
      %p173 = por %p171, %p172
      %p175 = scmp.ne.s32.totalorder %s160, %s174
      %p176 = scmp.eq.s32.totalorder %s47, 0
      %p177 = por %p175, %p176
      %s179 = sadd.s32 %s178, 1
      %p182 = scmp.eq.s32.totalorder %s41, 1
      %p183 = scmp.ne.s32.totalorder %s178, %s180
      %p184 = scmp.eq.s32.totalorder %s41, 0
      %p185 = por %p183, %p184
      %p186 = scmp.ne.s32.totalorder %s178, %s180
      %p187 = scmp.eq.s32.totalorder %s46, 1
      %p188 = por %p186, %p187
      %p189 = scmp.ne.s32.totalorder %s180, %s181
      %p190 = scmp.eq.s32.totalorder %s46, 0
      %p191 = por %p189, %p190
      %p192 = scmp.ne.s32.totalorder %s180, %s181
      %p193 = scmp.eq.s32.totalorder %s47, 1
      %p194 = por %p192, %p193
      %p196 = scmp.ne.s32.totalorder %s181, %s195
      %p197 = scmp.eq.s32.totalorder %s47, 0
      %p198 = por %p196, %p197
      %s200 = sadd.s32 %s199, 1
      %p203 = scmp.eq.s32.totalorder %s41, 1
      %p204 = scmp.ne.s32.totalorder %s199, %s201
      %p205 = scmp.eq.s32.totalorder %s41, 0
      %p206 = por %p204, %p205
      %p207 = scmp.ne.s32.totalorder %s199, %s201
      %p208 = scmp.eq.s32.totalorder %s46, 1
      %p209 = por %p207, %p208
      %p210 = scmp.ne.s32.totalorder %s201, %s202
      %p211 = scmp.eq.s32.totalorder %s46, 0
      %p212 = por %p210, %p211
      %p213 = scmp.ne.s32.totalorder %s201, %s202
      %p214 = scmp.eq.s32.totalorder %s47, 1
      %p215 = por %p213, %p214
      %p217 = scmp.ne.s32.totalorder %s202, %s216
      %p218 = scmp.eq.s32.totalorder %s47, 0
      %p219 = por %p217, %p218
      %s221 = sadd.s32 %s220, 1
      %p224 = scmp.eq.s32.totalorder %s41, 1
      %p225 = scmp.ne.s32.totalorder %s220, %s222
      %p226 = scmp.eq.s32.totalorder %s41, 0
      %p227 = por %p225, %p226
      %p228 = scmp.ne.s32.totalorder %s220, %s222
      %p229 = scmp.eq.s32.totalorder %s46, 1
      %p230 = por %p228, %p229
      %p231 = scmp.ne.s32.totalorder %s222, %s223
      %p232 = scmp.eq.s32.totalorder %s46, 0
      %p233 = por %p231, %p232
      %p234 = scmp.ne.s32.totalorder %s222, %s223
      %p235 = scmp.eq.s32.totalorder %s47, 1
      %p236 = por %p234, %p235
      %p238 = scmp.ne.s32.totalorder %s223, %s237
      %p239 = scmp.eq.s32.totalorder %s47, 0
      %p240 = por %p238, %p239
      %s242 = sadd.s32 %s241, 1
      %p245 = scmp.eq.s32.totalorder %s41, 1
      %p246 = scmp.ne.s32.totalorder %s241, %s243
      %p247 = scmp.eq.s32.totalorder %s41, 0
      %p248 = por %p246, %p247
      %p249 = scmp.ne.s32.totalorder %s241, %s243
      %p250 = scmp.eq.s32.totalorder %s46, 1
      %p251 = por %p249, %p250
      %p252 = scmp.ne.s32.totalorder %s243, %s244
      %p253 = scmp.eq.s32.totalorder %s46, 0
      %p254 = por %p252, %p253
      %p255 = scmp.ne.s32.totalorder %s243, %s244
      %p256 = scmp.eq.s32.totalorder %s47, 1
      %p257 = por %p255, %p256
      %p259 = scmp.ne.s32.totalorder %s244, %s258
      %p260 = scmp.eq.s32.totalorder %s47, 0
      %p261 = por %p259, %p260
      %s263 = sadd.s32 %s262, 1
      %p266 = scmp.eq.s32.totalorder %s41, 1
      %p267 = scmp.ne.s32.totalorder %s262, %s264
      %p268 = scmp.eq.s32.totalorder %s41, 0
      %p269 = por %p267, %p268
      %p270 = scmp.ne.s32.totalorder %s262, %s264
      %p271 = scmp.eq.s32.totalorder %s46, 1
      %p272 = por %p270, %p271
      %p273 = scmp.ne.s32.totalorder %s264, %s265
      %p274 = scmp.eq.s32.totalorder %s46, 0
      %p275 = por %p273, %p274
      %p276 = scmp.ne.s32.totalorder %s264, %s265
      %p277 = scmp.eq.s32.totalorder %s47, 1
      %p278 = por %p276, %p277
      %p280 = scmp.ne.s32.totalorder %s265, %s279
      %p281 = scmp.eq.s32.totalorder %s47, 0
      %p282 = por %p280, %p281
      %s284 = sadd.s32 %s283, 1
      %p287 = scmp.eq.s32.totalorder %s41, 1
      %p288 = scmp.ne.s32.totalorder %s283, %s285
      %p289 = scmp.eq.s32.totalorder %s41, 0
      %p290 = por %p288, %p289
      %p291 = scmp.ne.s32.totalorder %s283, %s285
      %p292 = scmp.eq.s32.totalorder %s46, 1
      %p293 = por %p291, %p292
      %p294 = scmp.ne.s32.totalorder %s285, %s286
      %p295 = scmp.eq.s32.totalorder %s46, 0
      %p296 = por %p294, %p295
      %p297 = scmp.ne.s32.totalorder %s285, %s286
      %p298 = scmp.eq.s32.totalorder %s47, 1
      %p299 = por %p297, %p298
      %p301 = scmp.ne.s32.totalorder %s286, %s300
      %p302 = scmp.eq.s32.totalorder %s47, 0
      %p303 = por %p301, %p302
      %s305 = sadd.s32 %s304, 1
      %p308 = scmp.eq.s32.totalorder %s41, 1
      %p309 = scmp.ne.s32.totalorder %s304, %s306
      %p310 = scmp.eq.s32.totalorder %s41, 0
      %p311 = por %p309, %p310
      %p312 = scmp.ne.s32.totalorder %s304, %s306
      %p313 = scmp.eq.s32.totalorder %s46, 1
      %p314 = por %p312, %p313
      %p315 = scmp.ne.s32.totalorder %s306, %s307
      %p316 = scmp.eq.s32.totalorder %s46, 0
      %p317 = por %p315, %p316
      %p318 = scmp.ne.s32.totalorder %s306, %s307
      %p319 = scmp.eq.s32.totalorder %s47, 1
      %p320 = por %p318, %p319
      %p322 = scmp.ne.s32.totalorder %s307, %s321
      %p323 = scmp.eq.s32.totalorder %s47, 0
      %p324 = por %p322, %p323
      %s326 = sadd.s32 %s325, 1
      %p329 = scmp.eq.s32.totalorder %s41, 1
      %p330 = scmp.ne.s32.totalorder %s325, %s327
      %p331 = scmp.eq.s32.totalorder %s41, 0
      %p332 = por %p330, %p331
      %p333 = scmp.ne.s32.totalorder %s325, %s327
      %p334 = scmp.eq.s32.totalorder %s46, 1
      %p335 = por %p333, %p334
      %p336 = scmp.ne.s32.totalorder %s327, %s328
      %p337 = scmp.eq.s32.totalorder %s46, 0
      %p338 = por %p336, %p337
      %p339 = scmp.ne.s32.totalorder %s327, %s328
      %p340 = scmp.eq.s32.totalorder %s47, 1
      %p341 = por %p339, %p340
      %p343 = scmp.ne.s32.totalorder %s328, %s342
      %p344 = scmp.eq.s32.totalorder %s47, 0
      %p345 = por %p343, %p344
      %s347 = sadd.s32 %s346, 1
      %p350 = scmp.eq.s32.totalorder %s41, 1
      %p351 = scmp.ne.s32.totalorder %s346, %s348
      %p352 = scmp.eq.s32.totalorder %s41, 0
      %p353 = por %p351, %p352
      %p354 = scmp.ne.s32.totalorder %s346, %s348
      %p355 = scmp.eq.s32.totalorder %s46, 1
      %p356 = por %p354, %p355
      %p357 = scmp.ne.s32.totalorder %s348, %s349
      %p358 = scmp.eq.s32.totalorder %s46, 0
      %p359 = por %p357, %p358
      %p360 = scmp.ne.s32.totalorder %s348, %s349
      %p361 = scmp.eq.s32.totalorder %s47, 1
      %p362 = por %p360, %p361
      %p364 = scmp.ne.s32.totalorder %s349, %s363
      %p365 = scmp.eq.s32.totalorder %s47, 0
      %p366 = por %p364, %p365
      %s368 = sadd.s32 %s367, 1
      %p371 = scmp.eq.s32.totalorder %s41, 1
      %p372 = scmp.ne.s32.totalorder %s367, %s369
      %p373 = scmp.eq.s32.totalorder %s41, 0
      %p374 = por %p372, %p373
      %p375 = scmp.ne.s32.totalorder %s367, %s369
      %p376 = scmp.eq.s32.totalorder %s46, 1
      %p377 = por %p375, %p376
      %p378 = scmp.ne.s32.totalorder %s369, %s370
      %p379 = scmp.eq.s32.totalorder %s46, 0
      %p380 = por %p378, %p379
      %p381 = scmp.ne.s32.totalorder %s369, %s370
      %p382 = scmp.eq.s32.totalorder %s47, 1
      %p383 = por %p381, %p382
      %p385 = scmp.ne.s32.totalorder %s370, %s384
      %p386 = scmp.eq.s32.totalorder %s47, 0
      %p387 = por %p385, %p386
      %s389 = sadd.s32 %s388, 1
      %p392 = scmp.eq.s32.totalorder %s41, 1
      %p393 = scmp.ne.s32.totalorder %s388, %s390
      %p394 = scmp.eq.s32.totalorder %s41, 0
      %p395 = por %p393, %p394
      %p396 = scmp.ne.s32.totalorder %s388, %s390
      %p397 = scmp.eq.s32.totalorder %s46, 1
      %p398 = por %p396, %p397
      %p399 = scmp.ne.s32.totalorder %s390, %s391
      %p400 = scmp.eq.s32.totalorder %s46, 0
      %p401 = por %p399, %p400
      %p402 = scmp.ne.s32.totalorder %s390, %s391
      %p403 = scmp.eq.s32.totalorder %s47, 1
      %p404 = por %p402, %p403
      %p406 = scmp.ne.s32.totalorder %s391, %s405
      %p407 = scmp.eq.s32.totalorder %s47, 0
      %p408 = por %p406, %p407
      %s410 = sadd.s32 %s409, 1
      %p413 = scmp.eq.s32.totalorder %s41, 1
      %p414 = scmp.ne.s32.totalorder %s409, %s411
      %p415 = scmp.eq.s32.totalorder %s41, 0
      %p416 = por %p414, %p415
      %p417 = scmp.ne.s32.totalorder %s409, %s411
      %p418 = scmp.eq.s32.totalorder %s46, 1
      %p419 = por %p417, %p418
      %p420 = scmp.ne.s32.totalorder %s411, %s412
      %p421 = scmp.eq.s32.totalorder %s46, 0
      %p422 = por %p420, %p421
      %p423 = scmp.ne.s32.totalorder %s411, %s412
      %p424 = scmp.eq.s32.totalorder %s47, 1
      %p425 = por %p423, %p424
      %p427 = scmp.ne.s32.totalorder %s412, %s426
      %p428 = scmp.eq.s32.totalorder %s47, 0
      %p429 = por %p427, %p428
      %s431 = sadd.s32 %s430, 1
      %p434 = scmp.eq.s32.totalorder %s41, 1
      %p435 = scmp.ne.s32.totalorder %s430, %s432
      %p436 = scmp.eq.s32.totalorder %s41, 0
      %p437 = por %p435, %p436
      %p438 = scmp.ne.s32.totalorder %s430, %s432
      %p439 = scmp.eq.s32.totalorder %s46, 1
      %p440 = por %p438, %p439
      %p441 = scmp.ne.s32.totalorder %s432, %s433
      %p442 = scmp.eq.s32.totalorder %s46, 0
      %p443 = por %p441, %p442
      %p444 = scmp.ne.s32.totalorder %s432, %s433
      %p445 = scmp.eq.s32.totalorder %s47, 1
      %p446 = por %p444, %p445
      %p448 = scmp.ne.s32.totalorder %s433, %s447
      %p449 = scmp.eq.s32.totalorder %s47, 0
      %p450 = por %p448, %p449
      %s452 = sadd.s32 %s451, 1
      %p455 = scmp.eq.s32.totalorder %s41, 1
      %p456 = scmp.ne.s32.totalorder %s451, %s453
      %p457 = scmp.eq.s32.totalorder %s41, 0
      %p458 = por %p456, %p457
      %p459 = scmp.ne.s32.totalorder %s451, %s453
      %p460 = scmp.eq.s32.totalorder %s46, 1
      %p461 = por %p459, %p460
      %p462 = scmp.ne.s32.totalorder %s453, %s454
      %p463 = scmp.eq.s32.totalorder %s46, 0
      %p464 = por %p462, %p463
      %p465 = scmp.ne.s32.totalorder %s453, %s454
      %p466 = scmp.eq.s32.totalorder %s47, 1
      %p467 = por %p465, %p466
      %p469 = scmp.ne.s32.totalorder %s454, %s468
      %p470 = scmp.eq.s32.totalorder %s47, 0
      %p471 = por %p469, %p470
      %s473 = sadd.s32 %s472, 1
      %p476 = scmp.eq.s32.totalorder %s41, 1
      %p477 = scmp.ne.s32.totalorder %s472, %s474
      %p478 = scmp.eq.s32.totalorder %s41, 0
      %p479 = por %p477, %p478
      %p480 = scmp.ne.s32.totalorder %s472, %s474
      %p481 = scmp.eq.s32.totalorder %s46, 1
      %p482 = por %p480, %p481
      %p483 = scmp.ne.s32.totalorder %s474, %s475
      %p484 = scmp.eq.s32.totalorder %s46, 0
      %p485 = por %p483, %p484
      %p486 = scmp.ne.s32.totalorder %s474, %s475
      %p487 = scmp.eq.s32.totalorder %s47, 1
      %p488 = por %p486, %p487
      %p490 = scmp.ne.s32.totalorder %s475, %s489
      %p491 = scmp.eq.s32.totalorder %s47, 0
      %p492 = por %p490, %p491
      %s494 = sadd.s32 %s493, 1
      %p497 = scmp.eq.s32.totalorder %s41, 1
      %p498 = scmp.ne.s32.totalorder %s493, %s495
      %p499 = scmp.eq.s32.totalorder %s41, 0
      %p500 = por %p498, %p499
      %p501 = scmp.ne.s32.totalorder %s493, %s495
      %p502 = scmp.eq.s32.totalorder %s46, 1
      %p503 = por %p501, %p502
      %p504 = scmp.ne.s32.totalorder %s495, %s496
      %p505 = scmp.eq.s32.totalorder %s46, 0
      %p506 = por %p504, %p505
      %p507 = scmp.ne.s32.totalorder %s495, %s496
      %p508 = scmp.eq.s32.totalorder %s47, 1
      %p509 = por %p507, %p508
      %p511 = scmp.ne.s32.totalorder %s496, %s510
      %p512 = scmp.eq.s32.totalorder %s47, 0
      %p513 = por %p511, %p512
      %s515 = sadd.s32 %s514, 1
      %p518 = scmp.eq.s32.totalorder %s41, 1
      %p519 = scmp.ne.s32.totalorder %s514, %s516
      %p520 = scmp.eq.s32.totalorder %s41, 0
      %p521 = por %p519, %p520
      %p522 = scmp.ne.s32.totalorder %s514, %s516
      %p523 = scmp.eq.s32.totalorder %s46, 1
      %p524 = por %p522, %p523
      %p525 = scmp.ne.s32.totalorder %s516, %s517
      %p526 = scmp.eq.s32.totalorder %s46, 0
      %p527 = por %p525, %p526
      %p528 = scmp.ne.s32.totalorder %s516, %s517
      %p529 = scmp.eq.s32.totalorder %s47, 1
      %p530 = por %p528, %p529
      %p532 = scmp.ne.s32.totalorder %s517, %s531
      %p533 = scmp.eq.s32.totalorder %s47, 0
      %p534 = por %p532, %p533
      %s535 = ssub.s32 %s48, %s60
      %s536 = ssub.s32 %s49, %s56
      %s537 = sor.u32 %s535, %s536
      %p538 = scmp.eq.s32.totalorder %s537, 0
      %s540 = sadd.s32 %s539, 1
      %s541 = scalar_select %p538, %s539, %s540
      %p544 = pneg %p538
      %p545 = scmp.eq.s32.totalorder %s41, 1
      %p546 = por %p544, %p545
      %p547 = scmp.ne.s32.totalorder %s539, %s542
      %p548 = scmp.eq.s32.totalorder %s41, 0
      %p549 = por %p547, %p548
      %p550 = scmp.ne.s32.totalorder %s539, %s542
      %p551 = scmp.eq.s32.totalorder %s46, 1
      %p552 = por %p550, %p551
      %p553 = scmp.ne.s32.totalorder %s542, %s543
      %p554 = scmp.eq.s32.totalorder %s46, 0
      %p555 = por %p553, %p554
      %p556 = scmp.ne.s32.totalorder %s542, %s543
      %p557 = scmp.eq.s32.totalorder %s47, 1
      %p558 = por %p556, %p557
      %p560 = scmp.ne.s32.totalorder %s543, %s559
      %p561 = scmp.eq.s32.totalorder %s47, 0
      %p562 = por %p560, %p561
      %p563 = scmp.le.s32.totalorder 1, %s41
      %p564 = scmp.lt.s32.totalorder %s41, 3
      %p565 = pnand %p563, %p564
      %p566 = pneg %p565
      // Predicated region
      $region9: #{tpu_custom_call.1} parent=5 // pred_check
        _
      $region10: #{tpu_custom_call.1} parent=5 // pred_check_branch
        %568 = sbr.rel (%p565) target = $region12
      $region11: #{tpu_custom_call.1} parent=5 // pred_region
        %s569 = ssub.s32 %s41, 1
        // Predicated region
        $region13: #{tpu_custom_call.1} parent=11 // pred_check
          %p570 = pneg %p128
        $region14: #{tpu_custom_call.1} parent=11 // pred_check_branch
          %572 = sbr.rel (%p570) target = $region16
        $region15: #{tpu_custom_call.1} parent=11 // pred_region
          _
        $region16: #{tpu_custom_call.1} parent=11 // pred_fallthru
          _
        // Predicated region
        $region17: #{tpu_custom_call.1} parent=11 // pred_check
          %p573 = pneg %p149
        $region18: #{tpu_custom_call.1} parent=11 // pred_check_branch
          %575 = sbr.rel (%p573) target = $region20
        $region19: #{tpu_custom_call.1} parent=11 // pred_region
          _
        $region20: #{tpu_custom_call.1} parent=11 // pred_fallthru
          _
        // Predicated region
        $region21: #{tpu_custom_call.1} parent=11 // pred_check
          %p576 = pneg %p170
        $region22: #{tpu_custom_call.1} parent=11 // pred_check_branch
          %578 = sbr.rel (%p576) target = $region24
        $region23: #{tpu_custom_call.1} parent=11 // pred_region
          %s580 = ssub.s32 16, 16
          %581 = vsyncadd [#allocation6], %s580
          %s583 = sshll.u32 [#allocation7], 4
          %s584 = int_to_ptr.vmem [resolvable:$true] %s583
          %586 = dma.hbm_to_vmem [thread:$0]  %s4, 16, %s584, [#allocation6]
        $region24: #{tpu_custom_call.1} parent=11 // pred_fallthru
          _
        // Predicated region
        $region25: #{tpu_custom_call.1} parent=11 // pred_check
          %p587 = pneg %p191
        $region26: #{tpu_custom_call.1} parent=11 // pred_check_branch
          %589 = sbr.rel (%p587) target = $region28
        $region27: #{tpu_custom_call.1} parent=11 // pred_region
          %s591 = ssub.s32 16, 16
          %592 = vsyncadd [#allocation9], %s591
          %s594 = sshll.u32 [#allocation8], 4
          %s595 = int_to_ptr.vmem [resolvable:$true] %s594
          %597 = dma.hbm_to_vmem [thread:$0]  %s5, 16, %s595, [#allocation9]
        $region28: #{tpu_custom_call.1} parent=11 // pred_fallthru
          _
        // Predicated region
        $region29: #{tpu_custom_call.1} parent=11 // pred_check
          %p598 = pneg %p212
        $region30: #{tpu_custom_call.1} parent=11 // pred_check_branch
          %600 = sbr.rel (%p598) target = $region32
        $region31: #{tpu_custom_call.1} parent=11 // pred_region
          %s602 = ssub.s32 4096, 4096
          %603 = vsyncadd [#allocation9], %s602
          %s604 = sshll.u32 [#allocation10], 4
          %s605 = int_to_ptr.vmem [resolvable:$true] %s604
          %610 = dma.hbm_to_vmem [thread:$0]  %s6, 4096, %s605, [#allocation9], 128, 128, 8
        $region32: #{tpu_custom_call.1} parent=11 // pred_fallthru
          _
        // Predicated region
        $region33: #{tpu_custom_call.1} parent=11 // pred_check
          %p611 = pneg %p233
        $region34: #{tpu_custom_call.1} parent=11 // pred_check_branch
          %613 = sbr.rel (%p611) target = $region36
        $region35: #{tpu_custom_call.1} parent=11 // pred_region
          _
        $region36: #{tpu_custom_call.1} parent=11 // pred_fallthru
          _
        // Predicated region
        $region37: #{tpu_custom_call.1} parent=11 // pred_check
          %p614 = pneg %p254
        $region38: #{tpu_custom_call.1} parent=11 // pred_check_branch
          %616 = sbr.rel (%p614) target = $region40
        $region39: #{tpu_custom_call.1} parent=11 // pred_region
          %s618 = ssub.s32 2048, 2048
          %619 = vsyncadd [#allocation12], %s618
          %s620 = sshll.u32 [#allocation11], 4
          %s621 = int_to_ptr.vmem [resolvable:$true] %s620
          %626 = dma.hbm_to_vmem [thread:$0]  %s8, 2048, %s621, [#allocation12], 128, 128, 8
        $region40: #{tpu_custom_call.1} parent=11 // pred_fallthru
          _
        // Predicated region
        $region41: #{tpu_custom_call.1} parent=11 // pred_check
          %p627 = pneg %p275
        $region42: #{tpu_custom_call.1} parent=11 // pred_check_branch
          %629 = sbr.rel (%p627) target = $region44
        $region43: #{tpu_custom_call.1} parent=11 // pred_region
          _
        $region44: #{tpu_custom_call.1} parent=11 // pred_fallthru
          _
        // Predicated region
        $region45: #{tpu_custom_call.1} parent=11 // pred_check
          %p630 = pneg %p296
        $region46: #{tpu_custom_call.1} parent=11 // pred_check_branch
          %632 = sbr.rel (%p630) target = $region48
        $region47: #{tpu_custom_call.1} parent=11 // pred_region
          %s634 = ssub.s32 2048, 2048
          %635 = vsyncadd [#allocation12], %s634
          %s636 = sshll.u32 [#allocation13], 4
          %s637 = int_to_ptr.vmem [resolvable:$true] %s636
          %642 = dma.hbm_to_vmem [thread:$0]  %s10, 2048, %s637, [#allocation12], 128, 128, 8
        $region48: #{tpu_custom_call.1} parent=11 // pred_fallthru
          _
        // Predicated region
        $region49: #{tpu_custom_call.1} parent=11 // pred_check
          %p643 = pneg %p317
        $region50: #{tpu_custom_call.1} parent=11 // pred_check_branch
          %645 = sbr.rel (%p643) target = $region52
        $region51: #{tpu_custom_call.1} parent=11 // pred_region
          _
        $region52: #{tpu_custom_call.1} parent=11 // pred_fallthru
          _
        // Predicated region
        $region53: #{tpu_custom_call.1} parent=11 // pred_check
          %p646 = pneg %p338
        $region54: #{tpu_custom_call.1} parent=11 // pred_check_branch
          %648 = sbr.rel (%p646) target = $region56
        $region55: #{tpu_custom_call.1} parent=11 // pred_region
          %s650 = ssub.s32 4096, 4096
          %651 = vsyncadd [#allocation15], %s650
          %s652 = sshll.u32 [#allocation14], 4
          %s653 = int_to_ptr.vmem [resolvable:$true] %s652
          %658 = dma.hbm_to_vmem [thread:$0]  %s12, 4096, %s653, [#allocation15], 128, 128, 8
        $region56: #{tpu_custom_call.1} parent=11 // pred_fallthru
          _
        // Predicated region
        $region57: #{tpu_custom_call.1} parent=11 // pred_check
          %p659 = pneg %p359
        $region58: #{tpu_custom_call.1} parent=11 // pred_check_branch
          %661 = sbr.rel (%p659) target = $region60
        $region59: #{tpu_custom_call.1} parent=11 // pred_region
          _
        $region60: #{tpu_custom_call.1} parent=11 // pred_fallthru
          _
        // Predicated region
        $region61: #{tpu_custom_call.1} parent=11 // pred_check
          %p662 = pneg %p380
        $region62: #{tpu_custom_call.1} parent=11 // pred_check_branch
          %664 = sbr.rel (%p662) target = $region64
        $region63: #{tpu_custom_call.1} parent=11 // pred_region
          _
        $region64: #{tpu_custom_call.1} parent=11 // pred_fallthru
          _
        // Predicated region
        $region65: #{tpu_custom_call.1} parent=11 // pred_check
          %p665 = pneg %p401
        $region66: #{tpu_custom_call.1} parent=11 // pred_check_branch
          %667 = sbr.rel (%p665) target = $region68
        $region67: #{tpu_custom_call.1} parent=11 // pred_region
          _
        $region68: #{tpu_custom_call.1} parent=11 // pred_fallthru
          _
        // Predicated region
        $region69: #{tpu_custom_call.1} parent=11 // pred_check
          %p668 = pneg %p422
        $region70: #{tpu_custom_call.1} parent=11 // pred_check_branch
          %670 = sbr.rel (%p668) target = $region72
        $region71: #{tpu_custom_call.1} parent=11 // pred_region
          %s672 = ssub.s32 4096, 4096
          %673 = vsyncadd [#allocation15], %s672
          %s674 = sshll.u32 [#allocation16], 4
          %s675 = int_to_ptr.vmem [resolvable:$true] %s674
          %680 = dma.hbm_to_vmem [thread:$0]  %s16, 4096, %s675, [#allocation15], 128, 128, 8
        $region72: #{tpu_custom_call.1} parent=11 // pred_fallthru
          _
        // Predicated region
        $region73: #{tpu_custom_call.1} parent=11 // pred_check
          %p681 = pneg %p443
        $region74: #{tpu_custom_call.1} parent=11 // pred_check_branch
          %683 = sbr.rel (%p681) target = $region76
        $region75: #{tpu_custom_call.1} parent=11 // pred_region
          _
        $region76: #{tpu_custom_call.1} parent=11 // pred_fallthru
          _
        // Predicated region
        $region77: #{tpu_custom_call.1} parent=11 // pred_check
          %p684 = pneg %p464
        $region78: #{tpu_custom_call.1} parent=11 // pred_check_branch
          %686 = sbr.rel (%p684) target = $region80
        $region79: #{tpu_custom_call.1} parent=11 // pred_region
          %s688 = ssub.s32 4096, 4096
          %689 = vsyncadd [#allocation18], %s688
          %s690 = sshll.u32 [#allocation17], 4
          %s691 = int_to_ptr.vmem [resolvable:$true] %s690
          %696 = dma.hbm_to_vmem [thread:$0]  %s18, 4096, %s691, [#allocation18], 128, 128, 8
        $region80: #{tpu_custom_call.1} parent=11 // pred_fallthru
          _
        // Predicated region
        $region81: #{tpu_custom_call.1} parent=11 // pred_check
          %p697 = pneg %p485
        $region82: #{tpu_custom_call.1} parent=11 // pred_check_branch
          %699 = sbr.rel (%p697) target = $region84
        $region83: #{tpu_custom_call.1} parent=11 // pred_region
          _
        $region84: #{tpu_custom_call.1} parent=11 // pred_fallthru
          _
        // Predicated region
        $region85: #{tpu_custom_call.1} parent=11 // pred_check
          %p700 = pneg %p506
        $region86: #{tpu_custom_call.1} parent=11 // pred_check_branch
          %702 = sbr.rel (%p700) target = $region88
        $region87: #{tpu_custom_call.1} parent=11 // pred_region
          %s704 = ssub.s32 2048, 2048
          %705 = vsyncadd [#allocation18], %s704
          %s706 = sshll.u32 [#allocation19], 4
          %s707 = int_to_ptr.vmem [resolvable:$true] %s706
          %712 = dma.hbm_to_vmem [thread:$0]  %s20, 2048, %s707, [#allocation18], 64, 64, 4
        $region88: #{tpu_custom_call.1} parent=11 // pred_fallthru
          _
        // Predicated region
        $region89: #{tpu_custom_call.1} parent=11 // pred_check
          %p713 = pneg %p527
        $region90: #{tpu_custom_call.1} parent=11 // pred_check_branch
          %715 = sbr.rel (%p713) target = $region92
        $region91: #{tpu_custom_call.1} parent=11 // pred_region
          _
        $region92: #{tpu_custom_call.1} parent=11 // pred_fallthru
          _
      $region12: #{tpu_custom_call.1} parent=5 // pred_fallthru
        _
      %p716 = scmp.lt.s32.totalorder %s41, 2
      // Predicated region
      $region93: #{tpu_custom_call.1} parent=5 // pred_check
        %p717 = pneg %p716
      $region94: #{tpu_custom_call.1} parent=5 // pred_check_branch
        %719 = sbr.rel (%p717) target = $region96
      $region95: #{tpu_custom_call.1} parent=5 // pred_region
        // Predicated region
        $region97: #{tpu_custom_call.1} parent=95 // pred_check
          %p720 = pneg %p75
        $region98: #{tpu_custom_call.1} parent=95 // pred_check_branch
          %722 = sbr.rel (%p720) target = $region100
        $region99: #{tpu_custom_call.1} parent=95 // pred_region
          %s723 = sand.u32 %s65, 1
          %s724 = scalar_lea.sflag [#allocation3], %s723
          %s725 = sand.u32 %s65, 1
          %s726 = smul.addr %s725, 512
          %s727 = scalar_lea.vmem [#allocation2], %s726
          %s728 = smul.u32 32, %s49
          %s730 = ssub.s32 8192, 8192
          %731 = vsyncadd %s724, %s730
          %s732 = smul.addr %s728, 2
          %s733 = smul.addr %s48, 64
          %s734 = sadd.s32 %s732, %s733
          %s735 = smul.addr %s734, 128
          %s736 = scalar_lea.hbm %s0, %s735
          %s737 = sshll.u32 %s727, 4
          %s738 = int_to_ptr.vmem [resolvable:$true] %s737
          %743 = dma.hbm_to_vmem [thread:$0]  %s736, 8192, %s738, %s724, 256, 256, 16
        $region100: #{tpu_custom_call.1} parent=95 // pred_fallthru
          _
        // Predicated region
        $region101: #{tpu_custom_call.1} parent=95 // pred_check
          %p744 = pneg %p101
        $region102: #{tpu_custom_call.1} parent=95 // pred_check_branch
          %746 = sbr.rel (%p744) target = $region104
        $region103: #{tpu_custom_call.1} parent=95 // pred_region
          %s747 = sand.u32 %s41, 1
          %s748 = scalar_lea.sflag [#allocation6], %s747
          %s749 = sand.u32 %s91, 1
          %s750 = smul.addr %s749, 128
          %s751 = scalar_lea.vmem [#allocation5], %s750
          %s753 = ssub.s32 2048, 2048
          %754 = vsyncadd %s748, %s753
          %s755 = smul.addr %s48, 16
          %s756 = smul.addr %s755, 128
          %s757 = scalar_lea.hbm %s1, %s756
          %s758 = sshll.u32 %s751, 4
          %s759 = int_to_ptr.vmem [resolvable:$true] %s758
          %764 = dma.hbm_to_vmem [thread:$0]  %s757, 2048, %s759, %s748, 128, 128, 8
        $region104: #{tpu_custom_call.1} parent=95 // pred_fallthru
          _
      $region96: #{tpu_custom_call.1} parent=5 // pred_fallthru
        _
      %p765 = scmp.le.s32.totalorder 1, %s41
      %p766 = scmp.lt.s32.totalorder %s41, 3
      %p767 = pnand %p765, %p766
      %p768 = pneg %p767
      // Predicated region
      $region105: #{tpu_custom_call.1} parent=5 // pred_check
        _
      $region106: #{tpu_custom_call.1} parent=5 // pred_check_branch
        %770 = sbr.rel (%p767) target = $region108
      $region107: #{tpu_custom_call.1} parent=5 // pred_region
        %s771 = ssub.s32 %s41, 1
        %s772 = sand.u32 %s68, 1
        %s773 = scalar_lea.sflag [#allocation3], %s772
        %s774 = sand.u32 %s68, 1
        %s775 = smul.addr %s774, 512
        %s776 = scalar_lea.vmem [#allocation2], %s775
        // Predicated region
        $region109: #{tpu_custom_call.1} parent=107 // pred_check
          %p777 = pneg %p81
        $region110: #{tpu_custom_call.1} parent=107 // pred_check_branch
          %779 = sbr.rel (%p777) target = $region112
        $region111: #{tpu_custom_call.1} parent=107 // pred_region
          %780 = dma.done %s773, 8192
        $region112: #{tpu_custom_call.1} parent=107 // pred_fallthru
          _
        %s781 = sand.u32 %s46, 1
        %s782 = scalar_lea.sflag [#allocation6], %s781
        %s783 = sand.u32 %s94, 1
        %s784 = smul.addr %s783, 128
        %s785 = scalar_lea.vmem [#allocation5], %s784
        // Predicated region
        $region113: #{tpu_custom_call.1} parent=107 // pred_check
          %p786 = pneg %p107
        $region114: #{tpu_custom_call.1} parent=107 // pred_check_branch
          %788 = sbr.rel (%p786) target = $region116
        $region115: #{tpu_custom_call.1} parent=107 // pred_region
          %789 = dma.done %s782, 2048
        $region116: #{tpu_custom_call.1} parent=107 // pred_fallthru
          _
        // Predicated region
        $region117: #{tpu_custom_call.1} parent=107 // pred_check
          %p790 = pneg %p170
        $region118: #{tpu_custom_call.1} parent=107 // pred_check_branch
          %792 = sbr.rel (%p790) target = $region120
        $region119: #{tpu_custom_call.1} parent=107 // pred_region
          %793 = dma.done [#allocation6], 16
        $region120: #{tpu_custom_call.1} parent=107 // pred_fallthru
          _
        // Predicated region
        $region121: #{tpu_custom_call.1} parent=107 // pred_check
          %p794 = pneg %p191
        $region122: #{tpu_custom_call.1} parent=107 // pred_check_branch
          %796 = sbr.rel (%p794) target = $region124
        $region123: #{tpu_custom_call.1} parent=107 // pred_region
          %797 = dma.done [#allocation9], 16
        $region124: #{tpu_custom_call.1} parent=107 // pred_fallthru
          _
        // Predicated region
        $region125: #{tpu_custom_call.1} parent=107 // pred_check
          %p798 = pneg %p212
        $region126: #{tpu_custom_call.1} parent=107 // pred_check_branch
          %800 = sbr.rel (%p798) target = $region128
        $region127: #{tpu_custom_call.1} parent=107 // pred_region
          %801 = dma.done [#allocation9], 4096
        $region128: #{tpu_custom_call.1} parent=107 // pred_fallthru
          _
        // Predicated region
        $region129: #{tpu_custom_call.1} parent=107 // pred_check
          %p802 = pneg %p254
        $region130: #{tpu_custom_call.1} parent=107 // pred_check_branch
          %804 = sbr.rel (%p802) target = $region132
        $region131: #{tpu_custom_call.1} parent=107 // pred_region
          %805 = dma.done [#allocation12], 2048
        $region132: #{tpu_custom_call.1} parent=107 // pred_fallthru
          _
        // Predicated region
        $region133: #{tpu_custom_call.1} parent=107 // pred_check
          %p806 = pneg %p296
        $region134: #{tpu_custom_call.1} parent=107 // pred_check_branch
          %808 = sbr.rel (%p806) target = $region136
        $region135: #{tpu_custom_call.1} parent=107 // pred_region
          %809 = dma.done [#allocation12], 2048
        $region136: #{tpu_custom_call.1} parent=107 // pred_fallthru
          _
        // Predicated region
        $region137: #{tpu_custom_call.1} parent=107 // pred_check
          %p810 = pneg %p338
        $region138: #{tpu_custom_call.1} parent=107 // pred_check_branch
          %812 = sbr.rel (%p810) target = $region140
        $region139: #{tpu_custom_call.1} parent=107 // pred_region
          %813 = dma.done [#allocation15], 4096
        $region140: #{tpu_custom_call.1} parent=107 // pred_fallthru
          _
        // Predicated region
        $region141: #{tpu_custom_call.1} parent=107 // pred_check
          %p814 = pneg %p422
        $region142: #{tpu_custom_call.1} parent=107 // pred_check_branch
          %816 = sbr.rel (%p814) target = $region144
        $region143: #{tpu_custom_call.1} parent=107 // pred_region
          %817 = dma.done [#allocation15], 4096
        $region144: #{tpu_custom_call.1} parent=107 // pred_fallthru
          _
        // Predicated region
        $region145: #{tpu_custom_call.1} parent=107 // pred_check
          %p818 = pneg %p464
        $region146: #{tpu_custom_call.1} parent=107 // pred_check_branch
          %820 = sbr.rel (%p818) target = $region148
        $region147: #{tpu_custom_call.1} parent=107 // pred_region
          %821 = dma.done [#allocation18], 4096
        $region148: #{tpu_custom_call.1} parent=107 // pred_fallthru
          _
        // Predicated region
        $region149: #{tpu_custom_call.1} parent=107 // pred_check
          %p822 = pneg %p506
        $region150: #{tpu_custom_call.1} parent=107 // pred_check_branch
          %824 = sbr.rel (%p822) target = $region152
        $region151: #{tpu_custom_call.1} parent=107 // pred_region
          %825 = dma.done [#allocation18], 2048
        $region152: #{tpu_custom_call.1} parent=107 // pred_fallthru
          _
        %s826 = sand.u32 %s68, 1
        %s827 = scalar_lea.sflag [#allocation3], %s826
        %s828 = sand.u32 %s68, 1
        %s829 = smul.addr %s828, 512
        %s830 = scalar_lea.vmem [#allocation2], %s829
        %p831 = pneg %p81
        %p832 = pneg %p78
        %s833 = sand.u32 %s46, 1
        %s834 = scalar_lea.sflag [#allocation6], %s833
        %s835 = sand.u32 %s94, 1
        %s836 = smul.addr %s835, 128
        %s837 = scalar_lea.vmem [#allocation5], %s836
        %p838 = pneg %p107
        %p839 = pneg %p104
        %p840 = pneg %p128
        %p841 = pneg %p125
        %p842 = pneg %p149
        %p843 = pneg %p146
        %p844 = pneg %p170
        %p845 = pneg %p167
        %p846 = pneg %p191
        %p847 = pneg %p188
        %p848 = pneg %p212
        %p849 = pneg %p209
        %p850 = pneg %p233
        %p851 = pneg %p230
        %p852 = pneg %p254
        %p853 = pneg %p251
        %p854 = pneg %p275
        %p855 = pneg %p272
        %p856 = pneg %p296
        %p857 = pneg %p293
        %p858 = pneg %p317
        %p859 = pneg %p314
        %p860 = pneg %p338
        %p861 = pneg %p335
        %p862 = pneg %p359
        %p863 = pneg %p356
        %p864 = pneg %p380
        %p865 = pneg %p377
        %p866 = pneg %p401
        %p867 = pneg %p398
        %p868 = pneg %p422
        %p869 = pneg %p419
        %p870 = pneg %p443
        %p871 = pneg %p440
        %p872 = pneg %p464
        %p873 = pneg %p461
        %p874 = pneg %p485
        %p875 = pneg %p482
        %p876 = pneg %p506
        %p877 = pneg %p503
        %p878 = pneg %p527
        %p879 = pneg %p524
        %p880 = pneg %p555
        %p881 = pneg %p552
        %s882 = sand.u32 %s542, 1
        %s883 = scalar_lea.sflag [#allocation4], %s882
        %s884 = sand.u32 %s542, 1
        %s885 = smul.addr %s884, 256
        %s886 = scalar_lea.vmem [#allocation20], %s885
        %s887 = smul.u32 32, %s51
        %s888 = smul.u32 32, %s51
        %v890 = vld [vmem:[%s785] sm:$0xff]
        %v891 = vld [vmem:[%s785 + $0x8] sm:$0xff]
        %v892 = vld [vmem:[%s785 + $0x10] sm:$0xff]
        %v893 = vld [vmem:[%s785 + $0x18] sm:$0xff]
        %v894 = vld [vmem:[%s785 + $0x20] sm:$0xff]
        %v895 = vld [vmem:[%s785 + $0x28] sm:$0xff]
        %v896 = vld [vmem:[%s785 + $0x30] sm:$0xff]
        %v897 = vld [vmem:[%s785 + $0x38] sm:$0xff]
        %v898 = vld [vmem:[%s785 + $0x40] sm:$0xff]
        %v899 = vld [vmem:[%s785 + $0x48] sm:$0xff]
        %v900 = vld [vmem:[%s785 + $0x50] sm:$0xff]
        %v901 = vld [vmem:[%s785 + $0x58] sm:$0xff]
        %v902 = vld [vmem:[%s785 + $0x60] sm:$0xff]
        %v903 = vld [vmem:[%s785 + $0x68] sm:$0xff]
        %v904 = vld [vmem:[%s785 + $0x70] sm:$0xff]
        %v905 = vld [vmem:[%s785 + $0x78] sm:$0xff]
        %v906 = vld [vmem:[#allocation7] sm:$0x1]
        %v907 = vld [vmem:[#allocation8] sm:$0x1]
        %908 = vadd.xlane.f32.xlu0 %v890
        %v909 = vpop.xlane.xlu0 %908
        %910 = vadd.xlane.f32.xlu0 %v891
        %v911 = vpop.xlane.xlu0 %910
        %912 = vadd.xlane.f32.xlu0 %v892
        %v913 = vpop.xlane.xlu0 %912
        %914 = vadd.xlane.f32.xlu0 %v893
        %v915 = vpop.xlane.xlu0 %914
        %916 = vadd.xlane.f32.xlu0 %v894
        %v917 = vpop.xlane.xlu0 %916
        %918 = vadd.xlane.f32.xlu0 %v895
        %v919 = vpop.xlane.xlu0 %918
        %920 = vadd.xlane.f32.xlu0 %v896
        %v921 = vpop.xlane.xlu0 %920
        %922 = vadd.xlane.f32.xlu0 %v897
        %v923 = vpop.xlane.xlu0 %922
        %924 = vadd.xlane.f32.xlu0 %v898
        %v925 = vpop.xlane.xlu0 %924
        %926 = vadd.xlane.f32.xlu0 %v899
        %v927 = vpop.xlane.xlu0 %926
        %928 = vadd.xlane.f32.xlu0 %v900
        %v929 = vpop.xlane.xlu0 %928
        %930 = vadd.xlane.f32.xlu0 %v901
        %v931 = vpop.xlane.xlu0 %930
        %932 = vadd.xlane.f32.xlu0 %v902
        %v933 = vpop.xlane.xlu0 %932
        %934 = vadd.xlane.f32.xlu0 %v903
        %v935 = vpop.xlane.xlu0 %934
        %936 = vadd.xlane.f32.xlu0 %v904
        %v937 = vpop.xlane.xlu0 %936
        %938 = vadd.xlane.f32.xlu0 %v905
        %v939 = vpop.xlane.xlu0 %938
        %v940 = vrcp.pop 128.0
        %v941 = vmul.f32 %v909, %v940
        %v942 = vmul.f32 %v911, %v940
        %v943 = vmul.f32 %v913, %v940
        %v944 = vmul.f32 %v915, %v940
        %v945 = vmul.f32 %v917, %v940
        %v946 = vmul.f32 %v919, %v940
        %v947 = vmul.f32 %v921, %v940
        %v948 = vmul.f32 %v923, %v940
        %v949 = vmul.f32 %v925, %v940
        %v950 = vmul.f32 %v927, %v940
        %v951 = vmul.f32 %v929, %v940
        %v952 = vmul.f32 %v931, %v940
        %v953 = vmul.f32 %v933, %v940
        %v954 = vmul.f32 %v935, %v940
        %v955 = vmul.f32 %v937, %v940
        %v956 = vmul.f32 %v939, %v940
        %v957 = vmul.f32 %v890, %v890
        %v958 = vmul.f32 %v891, %v891
        %v959 = vmul.f32 %v892, %v892
        %v960 = vmul.f32 %v893, %v893
        %v961 = vmul.f32 %v894, %v894
        %v962 = vmul.f32 %v895, %v895
        %v963 = vmul.f32 %v896, %v896
        %v964 = vmul.f32 %v897, %v897
        %v965 = vmul.f32 %v898, %v898
        %v966 = vmul.f32 %v899, %v899
        %v967 = vmul.f32 %v900, %v900
        %v968 = vmul.f32 %v901, %v901
        %v969 = vmul.f32 %v902, %v902
        %v970 = vmul.f32 %v903, %v903
        %v971 = vmul.f32 %v904, %v904
        %v972 = vmul.f32 %v905, %v905
        %973 = vadd.xlane.f32.xlu0 %v957
        %v974 = vpop.xlane.xlu0 %973
        %975 = vadd.xlane.f32.xlu0 %v958
        %v976 = vpop.xlane.xlu0 %975
        %977 = vadd.xlane.f32.xlu0 %v959
        %v978 = vpop.xlane.xlu0 %977
        %979 = vadd.xlane.f32.xlu0 %v960
        %v980 = vpop.xlane.xlu0 %979
        %981 = vadd.xlane.f32.xlu0 %v961
        %v982 = vpop.xlane.xlu0 %981
        %983 = vadd.xlane.f32.xlu0 %v962
        %v984 = vpop.xlane.xlu0 %983
        %985 = vadd.xlane.f32.xlu0 %v963
        %v986 = vpop.xlane.xlu0 %985
        %987 = vadd.xlane.f32.xlu0 %v964
        %v988 = vpop.xlane.xlu0 %987
        %989 = vadd.xlane.f32.xlu0 %v965
        %v990 = vpop.xlane.xlu0 %989
        %991 = vadd.xlane.f32.xlu0 %v966
        %v992 = vpop.xlane.xlu0 %991
        %993 = vadd.xlane.f32.xlu0 %v967
        %v994 = vpop.xlane.xlu0 %993
        %995 = vadd.xlane.f32.xlu0 %v968
        %v996 = vpop.xlane.xlu0 %995
        %997 = vadd.xlane.f32.xlu0 %v969
        %v998 = vpop.xlane.xlu0 %997
        %999 = vadd.xlane.f32.xlu0 %v970
        %v1000 = vpop.xlane.xlu0 %999
        %1001 = vadd.xlane.f32.xlu0 %v971
        %v1002 = vpop.xlane.xlu0 %1001
        %1003 = vadd.xlane.f32.xlu0 %v972
        %v1004 = vpop.xlane.xlu0 %1003
        %v1005 = vmul.f32 %v974, %v940
        %v1006 = vmul.f32 %v976, %v940
        %v1007 = vmul.f32 %v978, %v940
        %v1008 = vmul.f32 %v980, %v940
        %v1009 = vmul.f32 %v982, %v940
        %v1010 = vmul.f32 %v984, %v940
        %v1011 = vmul.f32 %v986, %v940
        %v1012 = vmul.f32 %v988, %v940
        %v1013 = vmul.f32 %v990, %v940
        %v1014 = vmul.f32 %v992, %v940
        %v1015 = vmul.f32 %v994, %v940
        %v1016 = vmul.f32 %v996, %v940
        %v1017 = vmul.f32 %v998, %v940
        %v1018 = vmul.f32 %v1000, %v940
        %v1019 = vmul.f32 %v1002, %v940
        %v1020 = vmul.f32 %v1004, %v940
        %v1021 = vmul.f32 %v941, %v941
        %v1022 = vmul.f32 %v942, %v942
        %v1023 = vmul.f32 %v943, %v943
        %v1024 = vmul.f32 %v944, %v944
        %v1025 = vmul.f32 %v945, %v945
        %v1026 = vmul.f32 %v946, %v946
        %v1027 = vmul.f32 %v947, %v947
        %v1028 = vmul.f32 %v948, %v948
        %v1029 = vmul.f32 %v949, %v949
        %v1030 = vmul.f32 %v950, %v950
        %v1031 = vmul.f32 %v951, %v951
        %v1032 = vmul.f32 %v952, %v952
        %v1033 = vmul.f32 %v953, %v953
        %v1034 = vmul.f32 %v954, %v954
        %v1035 = vmul.f32 %v955, %v955
        %v1036 = vmul.f32 %v956, %v956
        %v1037 = vsub.f32 %v1005, %v1021
        %v1038 = vsub.f32 %v1006, %v1022
        %v1039 = vsub.f32 %v1007, %v1023
        %v1040 = vsub.f32 %v1008, %v1024
        %v1041 = vsub.f32 %v1009, %v1025
        %v1042 = vsub.f32 %v1010, %v1026
        %v1043 = vsub.f32 %v1011, %v1027
        %v1044 = vsub.f32 %v1012, %v1028
        %v1045 = vsub.f32 %v1013, %v1029
        %v1046 = vsub.f32 %v1014, %v1030
        %v1047 = vsub.f32 %v1015, %v1031
        %v1048 = vsub.f32 %v1016, %v1032
        %v1049 = vsub.f32 %v1017, %v1033
        %v1050 = vsub.f32 %v1018, %v1034
        %v1051 = vsub.f32 %v1019, %v1035
        %v1052 = vsub.f32 %v1020, %v1036
        %v1053 = vsub.f32 %v890, %v941
        %v1054 = vsub.f32 %v891, %v942
        %v1055 = vsub.f32 %v892, %v943
        %v1056 = vsub.f32 %v893, %v944
        %v1057 = vsub.f32 %v894, %v945
        %v1058 = vsub.f32 %v895, %v946
        %v1059 = vsub.f32 %v896, %v947
        %v1060 = vsub.f32 %v897, %v948
        %v1061 = vsub.f32 %v898, %v949
        %v1062 = vsub.f32 %v899, %v950
        %v1063 = vsub.f32 %v900, %v951
        %v1064 = vsub.f32 %v901, %v952
        %v1065 = vsub.f32 %v902, %v953
        %v1066 = vsub.f32 %v903, %v954
        %v1067 = vsub.f32 %v904, %v955
        %v1068 = vsub.f32 %v905, %v956
        %v1069 = vadd.f32 %v1037, 1e-05
        %v1070 = vadd.f32 %v1038, 1e-05
        %v1071 = vadd.f32 %v1039, 1e-05
        %v1072 = vadd.f32 %v1040, 1e-05
        %v1073 = vadd.f32 %v1041, 1e-05
        %v1074 = vadd.f32 %v1042, 1e-05
        %v1075 = vadd.f32 %v1043, 1e-05
        %v1076 = vadd.f32 %v1044, 1e-05
        %v1077 = vadd.f32 %v1045, 1e-05
        %v1078 = vadd.f32 %v1046, 1e-05
        %v1079 = vadd.f32 %v1047, 1e-05
        %v1080 = vadd.f32 %v1048, 1e-05
        %v1081 = vadd.f32 %v1049, 1e-05
        %v1082 = vadd.f32 %v1050, 1e-05
        %v1083 = vadd.f32 %v1051, 1e-05
        %v1084 = vadd.f32 %v1052, 1e-05
        %v1085 = vrsqrt.pop %v1069
        %v1086 = vrsqrt.pop %v1070
        %v1087 = vrsqrt.pop %v1071
        %v1088 = vrsqrt.pop %v1072
        %v1089 = vrsqrt.pop %v1073
        %v1090 = vrsqrt.pop %v1074
        %v1091 = vrsqrt.pop %v1075
        %v1092 = vrsqrt.pop %v1076
        %v1093 = vrsqrt.pop %v1077
        %v1094 = vrsqrt.pop %v1078
        %v1095 = vrsqrt.pop %v1079
        %v1096 = vrsqrt.pop %v1080
        %v1097 = vrsqrt.pop %v1081
        %v1098 = vrsqrt.pop %v1082
        %v1099 = vrsqrt.pop %v1083
        %v1100 = vrsqrt.pop %v1084
        %v1101 = vmul.f32 %v1053, %v1085
        %v1102 = vmul.f32 %v1054, %v1086
        %v1103 = vmul.f32 %v1055, %v1087
        %v1104 = vmul.f32 %v1056, %v1088
        %v1105 = vmul.f32 %v1057, %v1089
        %v1106 = vmul.f32 %v1058, %v1090
        %v1107 = vmul.f32 %v1059, %v1091
        %v1108 = vmul.f32 %v1060, %v1092
        %v1109 = vmul.f32 %v1061, %v1093
        %v1110 = vmul.f32 %v1062, %v1094
        %v1111 = vmul.f32 %v1063, %v1095
        %v1112 = vmul.f32 %v1064, %v1096
        %v1113 = vmul.f32 %v1065, %v1097
        %v1114 = vmul.f32 %v1066, %v1098
        %v1115 = vmul.f32 %v1067, %v1099
        %v1116 = vmul.f32 %v1068, %v1100
        %v1118 = vlaneseq
        %v1119 = vshrl.u32 %v1118, 7
        %v1120 = vsub.s32 0, %v1119
        %v1121 = vrot.slane %v906, %v1120
        %v1123 = vmul.f32 %v1101, %v1121
        %v1124 = vmul.f32 %v1102, %v1121
        %v1125 = vmul.f32 %v1103, %v1121
        %v1126 = vmul.f32 %v1104, %v1121
        %v1127 = vmul.f32 %v1105, %v1121
        %v1128 = vmul.f32 %v1106, %v1121
        %v1129 = vmul.f32 %v1107, %v1121
        %v1130 = vmul.f32 %v1108, %v1121
        %v1131 = vmul.f32 %v1109, %v1121
        %v1132 = vmul.f32 %v1110, %v1121
        %v1133 = vmul.f32 %v1111, %v1121
        %v1134 = vmul.f32 %v1112, %v1121
        %v1135 = vmul.f32 %v1113, %v1121
        %v1136 = vmul.f32 %v1114, %v1121
        %v1137 = vmul.f32 %v1115, %v1121
        %v1138 = vmul.f32 %v1116, %v1121
        %v1140 = vlaneseq
        %v1141 = vshrl.u32 %v1140, 7
        %v1142 = vsub.s32 0, %v1141
        %v1143 = vrot.slane %v907, %v1142
        %v1145 = vadd.f32 %v1123, %v1143
        %v1146 = vadd.f32 %v1124, %v1143
        %v1147 = vadd.f32 %v1125, %v1143
        %v1148 = vadd.f32 %v1126, %v1143
        %v1149 = vadd.f32 %v1127, %v1143
        %v1150 = vadd.f32 %v1128, %v1143
        %v1151 = vadd.f32 %v1129, %v1143
        %v1152 = vadd.f32 %v1130, %v1143
        %v1153 = vadd.f32 %v1131, %v1143
        %v1154 = vadd.f32 %v1132, %v1143
        %v1155 = vadd.f32 %v1133, %v1143
        %v1156 = vadd.f32 %v1134, %v1143
        %v1157 = vadd.f32 %v1135, %v1143
        %v1158 = vadd.f32 %v1136, %v1143
        %v1159 = vadd.f32 %v1137, %v1143
        %v1160 = vadd.f32 %v1138, %v1143
        %v1161 = vpack.c.bf16 %v1146, %v1145
        %v1162 = vpack.c.bf16 %v1148, %v1147
        %v1163 = vpack.c.bf16 %v1150, %v1149
        %v1164 = vpack.c.bf16 %v1152, %v1151
        %v1165 = vpack.c.bf16 %v1154, %v1153
        %v1166 = vpack.c.bf16 %v1156, %v1155
        %v1167 = vpack.c.bf16 %v1158, %v1157
        %v1168 = vpack.c.bf16 %v1160, %v1159
        %v1169 = vld [vmem:[#allocation11] sm:$0xff]
        %v1170 = vld [vmem:[#allocation11 + $0x8] sm:$0xff]
        %v1171 = vld [vmem:[#allocation11 + $0x10] sm:$0xff]
        %v1172 = vld [vmem:[#allocation11 + $0x18] sm:$0xff]
        %v1173 = vld [vmem:[#allocation11 + $0x20] sm:$0xff]
        %v1174 = vld [vmem:[#allocation11 + $0x28] sm:$0xff]
        %v1175 = vld [vmem:[#allocation11 + $0x30] sm:$0xff]
        %v1176 = vld [vmem:[#allocation11 + $0x38] sm:$0xff]
        %v1177 = vld [vmem:[#allocation11 + $0x40] sm:$0xff]
        %v1178 = vld [vmem:[#allocation11 + $0x48] sm:$0xff]
        %v1179 = vld [vmem:[#allocation11 + $0x50] sm:$0xff]
        %v1180 = vld [vmem:[#allocation11 + $0x58] sm:$0xff]
        %v1181 = vld [vmem:[#allocation11 + $0x60] sm:$0xff]
        %v1182 = vld [vmem:[#allocation11 + $0x68] sm:$0xff]
        %v1183 = vld [vmem:[#allocation11 + $0x70] sm:$0xff]
        %v1184 = vld [vmem:[#allocation11 + $0x78] sm:$0xff]
        %v1185 = vld [vmem:[%s9] sm:$0x3]
        %v1187 = vlaneseq
        %v1188 = vshrl.u32 %v1187, 7
        %v1189 = vsub.s32 0, %v1188
        %v1190 = vrot.slane %v1185, %v1189
        %v1191 = vlaneseq
        %v1192 = vshrl.u32 %v1191, 7
        %v1193 = vsub.s32 1, %v1192
        %v1194 = vrot.slane %v1185, %v1193
        %v1213 = vunpack.c.l.b16 %v1169
        %v1214 = vunpack.c.h.b16 %v1169
        %v1215 = vunpack.c.l.b16 %v1170
        %v1216 = vunpack.c.h.b16 %v1170
        %v1217 = vunpack.c.l.b16 %v1171
        %v1218 = vunpack.c.h.b16 %v1171
        %v1219 = vunpack.c.l.b16 %v1172
        %v1220 = vunpack.c.h.b16 %v1172
        %v1221 = vunpack.c.l.b16 %v1173
        %v1222 = vunpack.c.h.b16 %v1173
        %v1223 = vunpack.c.l.b16 %v1174
        %v1224 = vunpack.c.h.b16 %v1174
        %v1225 = vunpack.c.l.b16 %v1175
        %v1226 = vunpack.c.h.b16 %v1175
        %v1227 = vunpack.c.l.b16 %v1176
        %v1228 = vunpack.c.h.b16 %v1176
        %v1229 = vunpack.c.l.b16 %v1177
        %v1230 = vunpack.c.h.b16 %v1177
        %v1231 = vunpack.c.l.b16 %v1178
        %v1232 = vunpack.c.h.b16 %v1178
        %v1233 = vunpack.c.l.b16 %v1179
        %v1234 = vunpack.c.h.b16 %v1179
        %v1235 = vunpack.c.l.b16 %v1180
        %v1236 = vunpack.c.h.b16 %v1180
        %v1237 = vunpack.c.l.b16 %v1181
        %v1238 = vunpack.c.h.b16 %v1181
        %v1239 = vunpack.c.l.b16 %v1182
        %v1240 = vunpack.c.h.b16 %v1182
        %v1241 = vunpack.c.l.b16 %v1183
        %v1242 = vunpack.c.h.b16 %v1183
        %v1243 = vunpack.c.l.b16 %v1184
        %v1244 = vunpack.c.h.b16 %v1184
        %v1245 = vpack.c.b16 %v1215, %v1213
        %v1246 = vpack.c.b16 %v1216, %v1214
        %v1247 = vpack.c.b16 %v1219, %v1217
        %v1248 = vpack.c.b16 %v1220, %v1218
        %v1249 = vpack.c.b16 %v1223, %v1221
        %v1250 = vpack.c.b16 %v1224, %v1222
        %v1251 = vpack.c.b16 %v1227, %v1225
        %v1252 = vpack.c.b16 %v1228, %v1226
        %v1253 = vpack.c.b16 %v1231, %v1229
        %v1254 = vpack.c.b16 %v1232, %v1230
        %v1255 = vpack.c.b16 %v1235, %v1233
        %v1256 = vpack.c.b16 %v1236, %v1234
        %v1257 = vpack.c.b16 %v1239, %v1237
        %v1258 = vpack.c.b16 %v1240, %v1238
        %v1259 = vpack.c.b16 %v1243, %v1241
        %v1260 = vpack.c.b16 %v1244, %v1242
        %1277 = vmatprep.subr.bf16.mxu0 %v1246
        %1278 = vmatpush1.bf16.msra.mxu0 %v1245
        %1279 = vmatprep.subr.bf16.mxu0 %v1248
        %1280 = vmatpush1.bf16.msra.mxu0 %v1247
        %1281 = vmatprep.subr.bf16.mxu0 %v1250
        %1282 = vmatpush1.bf16.msra.mxu0 %v1249
        %1283 = vmatprep.subr.bf16.mxu0 %v1252
        %1284 = vmatpush1.bf16.msra.mxu0 %v1251
        %1285 = vmatprep.subr.bf16.mxu0 %v1254
        %1286 = vmatpush1.bf16.msra.mxu0 %v1253
        %1287 = vmatprep.subr.bf16.mxu0 %v1256
        %1288 = vmatpush1.bf16.msra.mxu0 %v1255
        %1289 = vmatprep.subr.bf16.mxu0 %v1258
        %1290 = vmatpush1.bf16.msra.mxu0 %v1257
        %1291 = vmatprep.subr.bf16.mxu0 %v1260
        %1292 = vmatpush1.bf16.msra.mxu0 %v1259
        %1293 = vmatprep.subr.bf16.mxu0 0
        %1294 = vmatpush1.bf16.msra.mxu0 0
        %1295 = vmatprep.subr.bf16.mxu0 0
        %1296 = vmatpush1.bf16.msra.mxu0 0
        %1297 = vmatprep.subr.bf16.mxu0 0
        %1298 = vmatpush1.bf16.msra.mxu0 0
        %1299 = vmatprep.subr.bf16.mxu0 0
        %1300 = vmatpush1.bf16.msra.mxu0 0
        %1301 = vmatprep.subr.bf16.mxu0 0
        %1302 = vmatpush1.bf16.msra.mxu0 0
        %1303 = vmatprep.subr.bf16.mxu0 0
        %1304 = vmatpush1.bf16.msra.mxu0 0
        %1305 = vmatprep.subr.bf16.mxu0 0
        %1306 = vmatpush1.bf16.msra.mxu0 0
        %1307 = vmatprep.subr.bf16.mxu0 0
        %1308 = vmatpush1.bf16.msra.mxu0 0
        %1309 = vmatprep.mubr.bf16.mxu0 0
        %1310 = vmatmul.mubr.bf16.gmra.mrb[0].mxu0 %v1161
        %v1311 = vpop.f32.mrb[0].mxu0
        %v1312 = vadd.f32 %v1190, %v1311
        %v1313 = vpop.f32.mrb[0].mxu0
        %v1314 = vadd.f32 %v1194, %v1313
        %v1315 = vpop.f32.mrb[0].mxu0
        %v1316 = vadd.f32 %v1190, %v1315
        %v1317 = vpop.f32.mrb[0].mxu0
        %v1318 = vadd.f32 %v1194, %v1317
        %1319 = vmatprep.mubr.bf16.mxu0 0
        %1320 = vmatmul.mubr.bf16.gmra.mrb[0].mxu0 %v1162
        %v1321 = vpop.f32.mrb[0].mxu0
        %v1322 = vadd.f32 %v1190, %v1321
        %v1323 = vpop.f32.mrb[0].mxu0
        %v1324 = vadd.f32 %v1194, %v1323
        %v1325 = vpop.f32.mrb[0].mxu0
        %v1326 = vadd.f32 %v1190, %v1325
        %v1327 = vpop.f32.mrb[0].mxu0
        %v1328 = vadd.f32 %v1194, %v1327
        %1329 = vmatprep.mubr.bf16.mxu0 0
        %1330 = vmatmul.mubr.bf16.gmra.mrb[0].mxu0 %v1163
        %v1331 = vpop.f32.mrb[0].mxu0
        %v1332 = vadd.f32 %v1190, %v1331
        %v1333 = vpop.f32.mrb[0].mxu0
        %v1334 = vadd.f32 %v1194, %v1333
        %v1335 = vpop.f32.mrb[0].mxu0
        %v1336 = vadd.f32 %v1190, %v1335
        %v1337 = vpop.f32.mrb[0].mxu0
        %v1338 = vadd.f32 %v1194, %v1337
        %1339 = vmatprep.mubr.bf16.mxu0 0
        %1340 = vmatmul.mubr.bf16.gmra.mrb[0].mxu0 %v1164
        %v1341 = vpop.f32.mrb[0].mxu0
        %v1342 = vadd.f32 %v1190, %v1341
        %v1343 = vpop.f32.mrb[0].mxu0
        %v1344 = vadd.f32 %v1194, %v1343
        %v1345 = vpop.f32.mrb[0].mxu0
        %v1346 = vadd.f32 %v1190, %v1345
        %v1347 = vpop.f32.mrb[0].mxu0
        %v1348 = vadd.f32 %v1194, %v1347
        %1349 = vmatprep.mubr.bf16.mxu0 0
        %1350 = vmatmul.mubr.bf16.gmra.mrb[0].mxu0 %v1165
        %v1351 = vpop.f32.mrb[0].mxu0
        %v1352 = vadd.f32 %v1190, %v1351
        %v1353 = vpop.f32.mrb[0].mxu0
        %v1354 = vadd.f32 %v1194, %v1353
        %v1355 = vpop.f32.mrb[0].mxu0
        %v1356 = vadd.f32 %v1190, %v1355
        %v1357 = vpop.f32.mrb[0].mxu0
        %v1358 = vadd.f32 %v1194, %v1357
        %1359 = vmatprep.mubr.bf16.mxu0 0
        %1360 = vmatmul.mubr.bf16.gmra.mrb[0].mxu0 %v1166
        %v1361 = vpop.f32.mrb[0].mxu0
        %v1362 = vadd.f32 %v1190, %v1361
        %v1363 = vpop.f32.mrb[0].mxu0
        %v1364 = vadd.f32 %v1194, %v1363
        %v1365 = vpop.f32.mrb[0].mxu0
        %v1366 = vadd.f32 %v1190, %v1365
        %v1367 = vpop.f32.mrb[0].mxu0
        %v1368 = vadd.f32 %v1194, %v1367
        %1369 = vmatprep.mubr.bf16.mxu0 0
        %1370 = vmatmul.mubr.bf16.gmra.mrb[0].mxu0 %v1167
        %v1371 = vpop.f32.mrb[0].mxu0
        %v1372 = vadd.f32 %v1190, %v1371
        %v1373 = vpop.f32.mrb[0].mxu0
        %v1374 = vadd.f32 %v1194, %v1373
        %v1375 = vpop.f32.mrb[0].mxu0
        %v1376 = vadd.f32 %v1190, %v1375
        %v1377 = vpop.f32.mrb[0].mxu0
        %v1378 = vadd.f32 %v1194, %v1377
        %1379 = vmatprep.mubr.bf16.mxu0 0
        %1380 = vmatmul.mubr.bf16.gmra.mrb[0].mxu0 %v1168
        %v1381 = vpop.f32.mrb[0].mxu0
        %v1382 = vadd.f32 %v1190, %v1381
        %v1383 = vpop.f32.mrb[0].mxu0
        %v1384 = vadd.f32 %v1194, %v1383
        %v1385 = vpop.f32.mrb[0].mxu0
        %v1386 = vadd.f32 %v1190, %v1385
        %v1387 = vpop.f32.mrb[0].mxu0
        %v1388 = vadd.f32 %v1194, %v1387
        %1389 = vdwg.mxu0
        %v1390 = vpack.c.bf16 %v1316, %v1312
        %v1391 = vpack.c.bf16 %v1318, %v1314
        %v1392 = vpack.c.bf16 %v1326, %v1322
        %v1393 = vpack.c.bf16 %v1328, %v1324
        %v1394 = vpack.c.bf16 %v1336, %v1332
        %v1395 = vpack.c.bf16 %v1338, %v1334
        %v1396 = vpack.c.bf16 %v1346, %v1342
        %v1397 = vpack.c.bf16 %v1348, %v1344
        %v1398 = vpack.c.bf16 %v1356, %v1352
        %v1399 = vpack.c.bf16 %v1358, %v1354
        %v1400 = vpack.c.bf16 %v1366, %v1362
        %v1401 = vpack.c.bf16 %v1368, %v1364
        %v1402 = vpack.c.bf16 %v1376, %v1372
        %v1403 = vpack.c.bf16 %v1378, %v1374
        %v1404 = vpack.c.bf16 %v1386, %v1382
        %v1405 = vpack.c.bf16 %v1388, %v1384
        %v1406 = vld [vmem:[#allocation13] sm:$0xff]
        %v1407 = vld [vmem:[#allocation13 + $0x8] sm:$0xff]
        %v1408 = vld [vmem:[#allocation13 + $0x10] sm:$0xff]
        %v1409 = vld [vmem:[#allocation13 + $0x18] sm:$0xff]
        %v1410 = vld [vmem:[#allocation13 + $0x20] sm:$0xff]
        %v1411 = vld [vmem:[#allocation13 + $0x28] sm:$0xff]
        %v1412 = vld [vmem:[#allocation13 + $0x30] sm:$0xff]
        %v1413 = vld [vmem:[#allocation13 + $0x38] sm:$0xff]
        %v1414 = vld [vmem:[#allocation13 + $0x40] sm:$0xff]
        %v1415 = vld [vmem:[#allocation13 + $0x48] sm:$0xff]
        %v1416 = vld [vmem:[#allocation13 + $0x50] sm:$0xff]
        %v1417 = vld [vmem:[#allocation13 + $0x58] sm:$0xff]
        %v1418 = vld [vmem:[#allocation13 + $0x60] sm:$0xff]
        %v1419 = vld [vmem:[#allocation13 + $0x68] sm:$0xff]
        %v1420 = vld [vmem:[#allocation13 + $0x70] sm:$0xff]
        %v1421 = vld [vmem:[#allocation13 + $0x78] sm:$0xff]
        %v1422 = vld [vmem:[%s11] sm:$0x3]
        %v1424 = vlaneseq
        %v1425 = vshrl.u32 %v1424, 7
        %v1426 = vsub.s32 0, %v1425
        %v1427 = vrot.slane %v1422, %v1426
        %v1428 = vlaneseq
        %v1429 = vshrl.u32 %v1428, 7
        %v1430 = vsub.s32 1, %v1429
        %v1431 = vrot.slane %v1422, %v1430
        %v1450 = vunpack.c.l.b16 %v1406
        %v1451 = vunpack.c.h.b16 %v1406
        %v1452 = vunpack.c.l.b16 %v1407
        %v1453 = vunpack.c.h.b16 %v1407
        %v1454 = vunpack.c.l.b16 %v1408
        %v1455 = vunpack.c.h.b16 %v1408
        %v1456 = vunpack.c.l.b16 %v1409
        %v1457 = vunpack.c.h.b16 %v1409
        %v1458 = vunpack.c.l.b16 %v1410
        %v1459 = vunpack.c.h.b16 %v1410
        %v1460 = vunpack.c.l.b16 %v1411
        %v1461 = vunpack.c.h.b16 %v1411
        %v1462 = vunpack.c.l.b16 %v1412
        %v1463 = vunpack.c.h.b16 %v1412
        %v1464 = vunpack.c.l.b16 %v1413
        %v1465 = vunpack.c.h.b16 %v1413
        %v1466 = vunpack.c.l.b16 %v1414
        %v1467 = vunpack.c.h.b16 %v1414
        %v1468 = vunpack.c.l.b16 %v1415
        %v1469 = vunpack.c.h.b16 %v1415
        %v1470 = vunpack.c.l.b16 %v1416
        %v1471 = vunpack.c.h.b16 %v1416
        %v1472 = vunpack.c.l.b16 %v1417
        %v1473 = vunpack.c.h.b16 %v1417
        %v1474 = vunpack.c.l.b16 %v1418
        %v1475 = vunpack.c.h.b16 %v1418
        %v1476 = vunpack.c.l.b16 %v1419
        %v1477 = vunpack.c.h.b16 %v1419
        %v1478 = vunpack.c.l.b16 %v1420
        %v1479 = vunpack.c.h.b16 %v1420
        %v1480 = vunpack.c.l.b16 %v1421
        %v1481 = vunpack.c.h.b16 %v1421
        %v1482 = vpack.c.b16 %v1452, %v1450
        %v1483 = vpack.c.b16 %v1453, %v1451
        %v1484 = vpack.c.b16 %v1456, %v1454
        %v1485 = vpack.c.b16 %v1457, %v1455
        %v1486 = vpack.c.b16 %v1460, %v1458
        %v1487 = vpack.c.b16 %v1461, %v1459
        %v1488 = vpack.c.b16 %v1464, %v1462
        %v1489 = vpack.c.b16 %v1465, %v1463
        %v1490 = vpack.c.b16 %v1468, %v1466
        %v1491 = vpack.c.b16 %v1469, %v1467
        %v1492 = vpack.c.b16 %v1472, %v1470
        %v1493 = vpack.c.b16 %v1473, %v1471
        %v1494 = vpack.c.b16 %v1476, %v1474
        %v1495 = vpack.c.b16 %v1477, %v1475
        %v1496 = vpack.c.b16 %v1480, %v1478
        %v1497 = vpack.c.b16 %v1481, %v1479
        %1514 = vmatprep.subr.bf16.mxu0 %v1483
        %1515 = vmatpush1.bf16.msra.mxu0 %v1482
        %1516 = vmatprep.subr.bf16.mxu0 %v1485
        %1517 = vmatpush1.bf16.msra.mxu0 %v1484
        %1518 = vmatprep.subr.bf16.mxu0 %v1487
        %1519 = vmatpush1.bf16.msra.mxu0 %v1486
        %1520 = vmatprep.subr.bf16.mxu0 %v1489
        %1521 = vmatpush1.bf16.msra.mxu0 %v1488
        %1522 = vmatprep.subr.bf16.mxu0 %v1491
        %1523 = vmatpush1.bf16.msra.mxu0 %v1490
        %1524 = vmatprep.subr.bf16.mxu0 %v1493
        %1525 = vmatpush1.bf16.msra.mxu0 %v1492
        %1526 = vmatprep.subr.bf16.mxu0 %v1495
        %1527 = vmatpush1.bf16.msra.mxu0 %v1494
        %1528 = vmatprep.subr.bf16.mxu0 %v1497
        %1529 = vmatpush1.bf16.msra.mxu0 %v1496
        %1530 = vmatprep.subr.bf16.mxu0 0
        %1531 = vmatpush1.bf16.msra.mxu0 0
        %1532 = vmatprep.subr.bf16.mxu0 0
        %1533 = vmatpush1.bf16.msra.mxu0 0
        %1534 = vmatprep.subr.bf16.mxu0 0
        %1535 = vmatpush1.bf16.msra.mxu0 0
        %1536 = vmatprep.subr.bf16.mxu0 0
        %1537 = vmatpush1.bf16.msra.mxu0 0
        %1538 = vmatprep.subr.bf16.mxu0 0
        %1539 = vmatpush1.bf16.msra.mxu0 0
        %1540 = vmatprep.subr.bf16.mxu0 0
        %1541 = vmatpush1.bf16.msra.mxu0 0
        %1542 = vmatprep.subr.bf16.mxu0 0
        %1543 = vmatpush1.bf16.msra.mxu0 0
        %1544 = vmatprep.subr.bf16.mxu0 0
        %1545 = vmatpush1.bf16.msra.mxu0 0
        %1546 = vmatprep.mubr.bf16.mxu0 0
        %1547 = vmatmul.mubr.bf16.gmra.mrb[0].mxu0 %v1161
        %v1548 = vpop.f32.mrb[0].mxu0
        %v1549 = vadd.f32 %v1427, %v1548
        %v1550 = vpop.f32.mrb[0].mxu0
        %v1551 = vadd.f32 %v1431, %v1550
        %v1552 = vpop.f32.mrb[0].mxu0
        %v1553 = vadd.f32 %v1427, %v1552
        %v1554 = vpop.f32.mrb[0].mxu0
        %v1555 = vadd.f32 %v1431, %v1554
        %1556 = vmatprep.mubr.bf16.mxu0 0
        %1557 = vmatmul.mubr.bf16.gmra.mrb[0].mxu0 %v1162
        %v1558 = vpop.f32.mrb[0].mxu0
        %v1559 = vadd.f32 %v1427, %v1558
        %v1560 = vpop.f32.mrb[0].mxu0
        %v1561 = vadd.f32 %v1431, %v1560
        %v1562 = vpop.f32.mrb[0].mxu0
        %v1563 = vadd.f32 %v1427, %v1562
        %v1564 = vpop.f32.mrb[0].mxu0
        %v1565 = vadd.f32 %v1431, %v1564
        %1566 = vmatprep.mubr.bf16.mxu0 0
        %1567 = vmatmul.mubr.bf16.gmra.mrb[0].mxu0 %v1163
        %v1568 = vpop.f32.mrb[0].mxu0
        %v1569 = vadd.f32 %v1427, %v1568
        %v1570 = vpop.f32.mrb[0].mxu0
        %v1571 = vadd.f32 %v1431, %v1570
        %v1572 = vpop.f32.mrb[0].mxu0
        %v1573 = vadd.f32 %v1427, %v1572
        %v1574 = vpop.f32.mrb[0].mxu0
        %v1575 = vadd.f32 %v1431, %v1574
        %1576 = vmatprep.mubr.bf16.mxu0 0
        %1577 = vmatmul.mubr.bf16.gmra.mrb[0].mxu0 %v1164
        %v1578 = vpop.f32.mrb[0].mxu0
        %v1579 = vadd.f32 %v1427, %v1578
        %v1580 = vpop.f32.mrb[0].mxu0
        %v1581 = vadd.f32 %v1431, %v1580
        %v1582 = vpop.f32.mrb[0].mxu0
        %v1583 = vadd.f32 %v1427, %v1582
        %v1584 = vpop.f32.mrb[0].mxu0
        %v1585 = vadd.f32 %v1431, %v1584
        %1586 = vmatprep.mubr.bf16.mxu0 0
        %1587 = vmatmul.mubr.bf16.gmra.mrb[0].mxu0 %v1165
        %v1588 = vpop.f32.mrb[0].mxu0
        %v1589 = vadd.f32 %v1427, %v1588
        %v1590 = vpop.f32.mrb[0].mxu0
        %v1591 = vadd.f32 %v1431, %v1590
        %v1592 = vpop.f32.mrb[0].mxu0
        %v1593 = vadd.f32 %v1427, %v1592
        %v1594 = vpop.f32.mrb[0].mxu0
        %v1595 = vadd.f32 %v1431, %v1594
        %1596 = vmatprep.mubr.bf16.mxu0 0
        %1597 = vmatmul.mubr.bf16.gmra.mrb[0].mxu0 %v1166
        %v1598 = vpop.f32.mrb[0].mxu0
        %v1599 = vadd.f32 %v1427, %v1598
        %v1600 = vpop.f32.mrb[0].mxu0
        %v1601 = vadd.f32 %v1431, %v1600
        %v1602 = vpop.f32.mrb[0].mxu0
        %v1603 = vadd.f32 %v1427, %v1602
        %v1604 = vpop.f32.mrb[0].mxu0
        %v1605 = vadd.f32 %v1431, %v1604
        %1606 = vmatprep.mubr.bf16.mxu0 0
        %1607 = vmatmul.mubr.bf16.gmra.mrb[0].mxu0 %v1167
        %v1608 = vpop.f32.mrb[0].mxu0
        %v1609 = vadd.f32 %v1427, %v1608
        %v1610 = vpop.f32.mrb[0].mxu0
        %v1611 = vadd.f32 %v1431, %v1610
        %v1612 = vpop.f32.mrb[0].mxu0
        %v1613 = vadd.f32 %v1427, %v1612
        %v1614 = vpop.f32.mrb[0].mxu0
        %v1615 = vadd.f32 %v1431, %v1614
        %1616 = vmatprep.mubr.bf16.mxu0 0
        %1617 = vmatmul.mubr.bf16.gmra.mrb[0].mxu0 %v1168
        %v1618 = vpop.f32.mrb[0].mxu0
        %v1619 = vadd.f32 %v1427, %v1618
        %v1620 = vpop.f32.mrb[0].mxu0
        %v1621 = vadd.f32 %v1431, %v1620
        %v1622 = vpop.f32.mrb[0].mxu0
        %v1623 = vadd.f32 %v1427, %v1622
        %v1624 = vpop.f32.mrb[0].mxu0
        %v1625 = vadd.f32 %v1431, %v1624
        %1626 = vdwg.mxu0
        %v1627 = vpack.c.bf16 %v1553, %v1549
        %v1628 = vpack.c.bf16 %v1555, %v1551
        %v1629 = vpack.c.bf16 %v1563, %v1559
        %v1630 = vpack.c.bf16 %v1565, %v1561
        %v1631 = vpack.c.bf16 %v1573, %v1569
        %v1632 = vpack.c.bf16 %v1575, %v1571
        %v1633 = vpack.c.bf16 %v1583, %v1579
        %v1634 = vpack.c.bf16 %v1585, %v1581
        %v1635 = vpack.c.bf16 %v1593, %v1589
        %v1636 = vpack.c.bf16 %v1595, %v1591
        %v1637 = vpack.c.bf16 %v1603, %v1599
        %v1638 = vpack.c.bf16 %v1605, %v1601
        %v1639 = vpack.c.bf16 %v1613, %v1609
        %v1640 = vpack.c.bf16 %v1615, %v1611
        %v1641 = vpack.c.bf16 %v1623, %v1619
        %v1642 = vpack.c.bf16 %v1625, %v1621
        %v1643 = vld [vmem:[%s776] sm:$0xff]
        %v1644 = vld [vmem:[%s776 + $0x8] sm:$0xff]
        %v1645 = vld [vmem:[%s776 + $0x10] sm:$0xff]
        %v1646 = vld [vmem:[%s776 + $0x18] sm:$0xff]
        %v1647 = vld [vmem:[%s776 + $0x20] sm:$0xff]
        %v1648 = vld [vmem:[%s776 + $0x28] sm:$0xff]
        %v1649 = vld [vmem:[%s776 + $0x30] sm:$0xff]
        %v1650 = vld [vmem:[%s776 + $0x38] sm:$0xff]
        %v1651 = vld [vmem:[%s776 + $0x40] sm:$0xff]
        %v1652 = vld [vmem:[%s776 + $0x48] sm:$0xff]
        %v1653 = vld [vmem:[%s776 + $0x50] sm:$0xff]
        %v1654 = vld [vmem:[%s776 + $0x58] sm:$0xff]
        %v1655 = vld [vmem:[%s776 + $0x60] sm:$0xff]
        %v1656 = vld [vmem:[%s776 + $0x68] sm:$0xff]
        %v1657 = vld [vmem:[%s776 + $0x70] sm:$0xff]
        %v1658 = vld [vmem:[%s776 + $0x78] sm:$0xff]
        %v1659 = vld [vmem:[%s776 + $0x80] sm:$0xff]
        %v1660 = vld [vmem:[%s776 + $0x88] sm:$0xff]
        %v1661 = vld [vmem:[%s776 + $0x90] sm:$0xff]
        %v1662 = vld [vmem:[%s776 + $0x98] sm:$0xff]
        %v1663 = vld [vmem:[%s776 + $0xa0] sm:$0xff]
        %v1664 = vld [vmem:[%s776 + $0xa8] sm:$0xff]
        %v1665 = vld [vmem:[%s776 + $0xb0] sm:$0xff]
        %v1666 = vld [vmem:[%s776 + $0xb8] sm:$0xff]
        %v1667 = vld [vmem:[%s776 + $0xc0] sm:$0xff]
        %v1668 = vld [vmem:[%s776 + $0xc8] sm:$0xff]
        %v1669 = vld [vmem:[%s776 + $0xd0] sm:$0xff]
        %v1670 = vld [vmem:[%s776 + $0xd8] sm:$0xff]
        %v1671 = vld [vmem:[%s776 + $0xe0] sm:$0xff]
        %v1672 = vld [vmem:[%s776 + $0xe8] sm:$0xff]
        %v1673 = vld [vmem:[%s776 + $0xf0] sm:$0xff]
        %v1674 = vld [vmem:[%s776 + $0xf8] sm:$0xff]
        %v1675 = vld [vmem:[%s776 + $0x100] sm:$0xff]
        %v1676 = vld [vmem:[%s776 + $0x108] sm:$0xff]
        %v1677 = vld [vmem:[%s776 + $0x110] sm:$0xff]
        %v1678 = vld [vmem:[%s776 + $0x118] sm:$0xff]
        %v1679 = vld [vmem:[%s776 + $0x120] sm:$0xff]
        %v1680 = vld [vmem:[%s776 + $0x128] sm:$0xff]
        %v1681 = vld [vmem:[%s776 + $0x130] sm:$0xff]
        %v1682 = vld [vmem:[%s776 + $0x138] sm:$0xff]
        %v1683 = vld [vmem:[%s776 + $0x140] sm:$0xff]
        %v1684 = vld [vmem:[%s776 + $0x148] sm:$0xff]
        %v1685 = vld [vmem:[%s776 + $0x150] sm:$0xff]
        %v1686 = vld [vmem:[%s776 + $0x158] sm:$0xff]
        %v1687 = vld [vmem:[%s776 + $0x160] sm:$0xff]
        %v1688 = vld [vmem:[%s776 + $0x168] sm:$0xff]
        %v1689 = vld [vmem:[%s776 + $0x170] sm:$0xff]
        %v1690 = vld [vmem:[%s776 + $0x178] sm:$0xff]
        %v1691 = vld [vmem:[%s776 + $0x180] sm:$0xff]
        %v1692 = vld [vmem:[%s776 + $0x188] sm:$0xff]
        %v1693 = vld [vmem:[%s776 + $0x190] sm:$0xff]
        %v1694 = vld [vmem:[%s776 + $0x198] sm:$0xff]
        %v1695 = vld [vmem:[%s776 + $0x1a0] sm:$0xff]
        %v1696 = vld [vmem:[%s776 + $0x1a8] sm:$0xff]
        %v1697 = vld [vmem:[%s776 + $0x1b0] sm:$0xff]
        %v1698 = vld [vmem:[%s776 + $0x1b8] sm:$0xff]
        %v1699 = vld [vmem:[%s776 + $0x1c0] sm:$0xff]
        %v1700 = vld [vmem:[%s776 + $0x1c8] sm:$0xff]
        %v1701 = vld [vmem:[%s776 + $0x1d0] sm:$0xff]
        %v1702 = vld [vmem:[%s776 + $0x1d8] sm:$0xff]
        %v1703 = vld [vmem:[%s776 + $0x1e0] sm:$0xff]
        %v1704 = vld [vmem:[%s776 + $0x1e8] sm:$0xff]
        %v1705 = vld [vmem:[%s776 + $0x1f0] sm:$0xff]
        %v1706 = vld [vmem:[%s776 + $0x1f8] sm:$0xff]
        %v1707 = vld [vmem:[%s2] sm:$0x3]
        %v1708 = vld [vmem:[%s3] sm:$0x3]
        %v1709 = vadd.f32 %v1643, %v1644
        %1710 = vadd.xlane.f32.xlu0 %v1709
        %v1711 = vpop.xlane.xlu0 %1710
        %v1712 = vadd.f32 %v1645, %v1646
        %1713 = vadd.xlane.f32.xlu0 %v1712
        %v1714 = vpop.xlane.xlu0 %1713
        %v1715 = vadd.f32 %v1647, %v1648
        %1716 = vadd.xlane.f32.xlu0 %v1715
        %v1717 = vpop.xlane.xlu0 %1716
        %v1718 = vadd.f32 %v1649, %v1650
        %1719 = vadd.xlane.f32.xlu0 %v1718
        %v1720 = vpop.xlane.xlu0 %1719
        %v1721 = vadd.f32 %v1651, %v1652
        %1722 = vadd.xlane.f32.xlu0 %v1721
        %v1723 = vpop.xlane.xlu0 %1722
        %v1724 = vadd.f32 %v1653, %v1654
        %1725 = vadd.xlane.f32.xlu0 %v1724
        %v1726 = vpop.xlane.xlu0 %1725
        %v1727 = vadd.f32 %v1655, %v1656
        %1728 = vadd.xlane.f32.xlu0 %v1727
        %v1729 = vpop.xlane.xlu0 %1728
        %v1730 = vadd.f32 %v1657, %v1658
        %1731 = vadd.xlane.f32.xlu0 %v1730
        %v1732 = vpop.xlane.xlu0 %1731
        %v1733 = vadd.f32 %v1659, %v1660
        %1734 = vadd.xlane.f32.xlu0 %v1733
        %v1735 = vpop.xlane.xlu0 %1734
        %v1736 = vadd.f32 %v1661, %v1662
        %1737 = vadd.xlane.f32.xlu0 %v1736
        %v1738 = vpop.xlane.xlu0 %1737
        %v1739 = vadd.f32 %v1663, %v1664
        %1740 = vadd.xlane.f32.xlu0 %v1739
        %v1741 = vpop.xlane.xlu0 %1740
        %v1742 = vadd.f32 %v1665, %v1666
        %1743 = vadd.xlane.f32.xlu0 %v1742
        %v1744 = vpop.xlane.xlu0 %1743
        %v1745 = vadd.f32 %v1667, %v1668
        %1746 = vadd.xlane.f32.xlu0 %v1745
        %v1747 = vpop.xlane.xlu0 %1746
        %v1748 = vadd.f32 %v1669, %v1670
        %1749 = vadd.xlane.f32.xlu0 %v1748
        %v1750 = vpop.xlane.xlu0 %1749
        %v1751 = vadd.f32 %v1671, %v1672
        %1752 = vadd.xlane.f32.xlu0 %v1751
        %v1753 = vpop.xlane.xlu0 %1752
        %v1754 = vadd.f32 %v1673, %v1674
        %1755 = vadd.xlane.f32.xlu0 %v1754
        %v1756 = vpop.xlane.xlu0 %1755
        %v1757 = vadd.f32 %v1675, %v1676
        %1758 = vadd.xlane.f32.xlu0 %v1757
        %v1759 = vpop.xlane.xlu0 %1758
        %v1760 = vadd.f32 %v1677, %v1678
        %1761 = vadd.xlane.f32.xlu0 %v1760
        %v1762 = vpop.xlane.xlu0 %1761
        %v1763 = vadd.f32 %v1679, %v1680
        %1764 = vadd.xlane.f32.xlu0 %v1763
        %v1765 = vpop.xlane.xlu0 %1764
        %v1766 = vadd.f32 %v1681, %v1682
        %1767 = vadd.xlane.f32.xlu0 %v1766
        %v1768 = vpop.xlane.xlu0 %1767
        %v1769 = vadd.f32 %v1683, %v1684
        %1770 = vadd.xlane.f32.xlu0 %v1769
        %v1771 = vpop.xlane.xlu0 %1770
        %v1772 = vadd.f32 %v1685, %v1686
        %1773 = vadd.xlane.f32.xlu0 %v1772
        %v1774 = vpop.xlane.xlu0 %1773
        %v1775 = vadd.f32 %v1687, %v1688
        %1776 = vadd.xlane.f32.xlu0 %v1775
        %v1777 = vpop.xlane.xlu0 %1776
        %v1778 = vadd.f32 %v1689, %v1690
        %1779 = vadd.xlane.f32.xlu0 %v1778
        %v1780 = vpop.xlane.xlu0 %1779
        %v1781 = vadd.f32 %v1691, %v1692
        %1782 = vadd.xlane.f32.xlu0 %v1781
        %v1783 = vpop.xlane.xlu0 %1782
        %v1784 = vadd.f32 %v1693, %v1694
        %1785 = vadd.xlane.f32.xlu0 %v1784
        %v1786 = vpop.xlane.xlu0 %1785
        %v1787 = vadd.f32 %v1695, %v1696
        %1788 = vadd.xlane.f32.xlu0 %v1787
        %v1789 = vpop.xlane.xlu0 %1788
        %v1790 = vadd.f32 %v1697, %v1698
        %1791 = vadd.xlane.f32.xlu0 %v1790
        %v1792 = vpop.xlane.xlu0 %1791
        %v1793 = vadd.f32 %v1699, %v1700
        %1794 = vadd.xlane.f32.xlu0 %v1793
        %v1795 = vpop.xlane.xlu0 %1794
        %v1796 = vadd.f32 %v1701, %v1702
        %1797 = vadd.xlane.f32.xlu0 %v1796
        %v1798 = vpop.xlane.xlu0 %1797
        %v1799 = vadd.f32 %v1703, %v1704
        %1800 = vadd.xlane.f32.xlu0 %v1799
        %v1801 = vpop.xlane.xlu0 %1800
        %v1802 = vadd.f32 %v1705, %v1706
        %1803 = vadd.xlane.f32.xlu0 %v1802
        %v1804 = vpop.xlane.xlu0 %1803
        %v1805 = vrcp.pop 256.0
        %v1806 = vmul.f32 %v1711, %v1805
        %v1807 = vmul.f32 %v1714, %v1805
        %v1808 = vmul.f32 %v1717, %v1805
        %v1809 = vmul.f32 %v1720, %v1805
        %v1810 = vmul.f32 %v1723, %v1805
        %v1811 = vmul.f32 %v1726, %v1805
        %v1812 = vmul.f32 %v1729, %v1805
        %v1813 = vmul.f32 %v1732, %v1805
        %v1814 = vmul.f32 %v1735, %v1805
        %v1815 = vmul.f32 %v1738, %v1805
        %v1816 = vmul.f32 %v1741, %v1805
        %v1817 = vmul.f32 %v1744, %v1805
        %v1818 = vmul.f32 %v1747, %v1805
        %v1819 = vmul.f32 %v1750, %v1805
        %v1820 = vmul.f32 %v1753, %v1805
        %v1821 = vmul.f32 %v1756, %v1805
        %v1822 = vmul.f32 %v1759, %v1805
        %v1823 = vmul.f32 %v1762, %v1805
        %v1824 = vmul.f32 %v1765, %v1805
        %v1825 = vmul.f32 %v1768, %v1805
        %v1826 = vmul.f32 %v1771, %v1805
        %v1827 = vmul.f32 %v1774, %v1805
        %v1828 = vmul.f32 %v1777, %v1805
        %v1829 = vmul.f32 %v1780, %v1805
        %v1830 = vmul.f32 %v1783, %v1805
        %v1831 = vmul.f32 %v1786, %v1805
        %v1832 = vmul.f32 %v1789, %v1805
        %v1833 = vmul.f32 %v1792, %v1805
        %v1834 = vmul.f32 %v1795, %v1805
        %v1835 = vmul.f32 %v1798, %v1805
        %v1836 = vmul.f32 %v1801, %v1805
        %v1837 = vmul.f32 %v1804, %v1805
        %v1838 = vmul.f32 %v1643, %v1643
        %v1839 = vmul.f32 %v1644, %v1644
        %v1840 = vmul.f32 %v1645, %v1645
        %v1841 = vmul.f32 %v1646, %v1646
        %v1842 = vmul.f32 %v1647, %v1647
        %v1843 = vmul.f32 %v1648, %v1648
        %v1844 = vmul.f32 %v1649, %v1649
        %v1845 = vmul.f32 %v1650, %v1650
        %v1846 = vmul.f32 %v1651, %v1651
        %v1847 = vmul.f32 %v1652, %v1652
        %v1848 = vmul.f32 %v1653, %v1653
        %v1849 = vmul.f32 %v1654, %v1654
        %v1850 = vmul.f32 %v1655, %v1655
        %v1851 = vmul.f32 %v1656, %v1656
        %v1852 = vmul.f32 %v1657, %v1657
        %v1853 = vmul.f32 %v1658, %v1658
        %v1854 = vmul.f32 %v1659, %v1659
        %v1855 = vmul.f32 %v1660, %v1660
        %v1856 = vmul.f32 %v1661, %v1661
        %v1857 = vmul.f32 %v1662, %v1662
        %v1858 = vmul.f32 %v1663, %v1663
        %v1859 = vmul.f32 %v1664, %v1664
        %v1860 = vmul.f32 %v1665, %v1665
        %v1861 = vmul.f32 %v1666, %v1666
        %v1862 = vmul.f32 %v1667, %v1667
        %v1863 = vmul.f32 %v1668, %v1668
        %v1864 = vmul.f32 %v1669, %v1669
        %v1865 = vmul.f32 %v1670, %v1670
        %v1866 = vmul.f32 %v1671, %v1671
        %v1867 = vmul.f32 %v1672, %v1672
        %v1868 = vmul.f32 %v1673, %v1673
        %v1869 = vmul.f32 %v1674, %v1674
        %v1870 = vmul.f32 %v1675, %v1675
        %v1871 = vmul.f32 %v1676, %v1676
        %v1872 = vmul.f32 %v1677, %v1677
        %v1873 = vmul.f32 %v1678, %v1678
        %v1874 = vmul.f32 %v1679, %v1679
        %v1875 = vmul.f32 %v1680, %v1680
        %v1876 = vmul.f32 %v1681, %v1681
        %v1877 = vmul.f32 %v1682, %v1682
        %v1878 = vmul.f32 %v1683, %v1683
        %v1879 = vmul.f32 %v1684, %v1684
        %v1880 = vmul.f32 %v1685, %v1685
        %v1881 = vmul.f32 %v1686, %v1686
        %v1882 = vmul.f32 %v1687, %v1687
        %v1883 = vmul.f32 %v1688, %v1688
        %v1884 = vmul.f32 %v1689, %v1689
        %v1885 = vmul.f32 %v1690, %v1690
        %v1886 = vmul.f32 %v1691, %v1691
        %v1887 = vmul.f32 %v1692, %v1692
        %v1888 = vmul.f32 %v1693, %v1693
        %v1889 = vmul.f32 %v1694, %v1694
        %v1890 = vmul.f32 %v1695, %v1695
        %v1891 = vmul.f32 %v1696, %v1696
        %v1892 = vmul.f32 %v1697, %v1697
        %v1893 = vmul.f32 %v1698, %v1698
        %v1894 = vmul.f32 %v1699, %v1699
        %v1895 = vmul.f32 %v1700, %v1700
        %v1896 = vmul.f32 %v1701, %v1701
        %v1897 = vmul.f32 %v1702, %v1702
        %v1898 = vmul.f32 %v1703, %v1703
        %v1899 = vmul.f32 %v1704, %v1704
        %v1900 = vmul.f32 %v1705, %v1705
        %v1901 = vmul.f32 %v1706, %v1706
        %v1902 = vadd.f32 %v1838, %v1839
        %1903 = vadd.xlane.f32.xlu0 %v1902
        %v1904 = vpop.xlane.xlu0 %1903
        %v1905 = vadd.f32 %v1840, %v1841
        %1906 = vadd.xlane.f32.xlu0 %v1905
        %v1907 = vpop.xlane.xlu0 %1906
        %v1908 = vadd.f32 %v1842, %v1843
        %1909 = vadd.xlane.f32.xlu0 %v1908
        %v1910 = vpop.xlane.xlu0 %1909
        %v1911 = vadd.f32 %v1844, %v1845
        %1912 = vadd.xlane.f32.xlu0 %v1911
        %v1913 = vpop.xlane.xlu0 %1912
        %v1914 = vadd.f32 %v1846, %v1847
        %1915 = vadd.xlane.f32.xlu0 %v1914
        %v1916 = vpop.xlane.xlu0 %1915
        %v1917 = vadd.f32 %v1848, %v1849
        %1918 = vadd.xlane.f32.xlu0 %v1917
        %v1919 = vpop.xlane.xlu0 %1918
        %v1920 = vadd.f32 %v1850, %v1851
        %1921 = vadd.xlane.f32.xlu0 %v1920
        %v1922 = vpop.xlane.xlu0 %1921
        %v1923 = vadd.f32 %v1852, %v1853
        %1924 = vadd.xlane.f32.xlu0 %v1923
        %v1925 = vpop.xlane.xlu0 %1924
        %v1926 = vadd.f32 %v1854, %v1855
        %1927 = vadd.xlane.f32.xlu0 %v1926
        %v1928 = vpop.xlane.xlu0 %1927
        %v1929 = vadd.f32 %v1856, %v1857
        %1930 = vadd.xlane.f32.xlu0 %v1929
        %v1931 = vpop.xlane.xlu0 %1930
        %v1932 = vadd.f32 %v1858, %v1859
        %1933 = vadd.xlane.f32.xlu0 %v1932
        %v1934 = vpop.xlane.xlu0 %1933
        %v1935 = vadd.f32 %v1860, %v1861
        %1936 = vadd.xlane.f32.xlu0 %v1935
        %v1937 = vpop.xlane.xlu0 %1936
        %v1938 = vadd.f32 %v1862, %v1863
        %1939 = vadd.xlane.f32.xlu0 %v1938
        %v1940 = vpop.xlane.xlu0 %1939
        %v1941 = vadd.f32 %v1864, %v1865
        %1942 = vadd.xlane.f32.xlu0 %v1941
        %v1943 = vpop.xlane.xlu0 %1942
        %v1944 = vadd.f32 %v1866, %v1867
        %1945 = vadd.xlane.f32.xlu0 %v1944
        %v1946 = vpop.xlane.xlu0 %1945
        %v1947 = vadd.f32 %v1868, %v1869
        %1948 = vadd.xlane.f32.xlu0 %v1947
        %v1949 = vpop.xlane.xlu0 %1948
        %v1950 = vadd.f32 %v1870, %v1871
        %1951 = vadd.xlane.f32.xlu0 %v1950
        %v1952 = vpop.xlane.xlu0 %1951
        %v1953 = vadd.f32 %v1872, %v1873
        %1954 = vadd.xlane.f32.xlu0 %v1953
        %v1955 = vpop.xlane.xlu0 %1954
        %v1956 = vadd.f32 %v1874, %v1875
        %1957 = vadd.xlane.f32.xlu0 %v1956
        %v1958 = vpop.xlane.xlu0 %1957
        %v1959 = vadd.f32 %v1876, %v1877
        %1960 = vadd.xlane.f32.xlu0 %v1959
        %v1961 = vpop.xlane.xlu0 %1960
        %v1962 = vadd.f32 %v1878, %v1879
        %1963 = vadd.xlane.f32.xlu0 %v1962
        %v1964 = vpop.xlane.xlu0 %1963
        %v1965 = vadd.f32 %v1880, %v1881
        %1966 = vadd.xlane.f32.xlu0 %v1965
        %v1967 = vpop.xlane.xlu0 %1966
        %v1968 = vadd.f32 %v1882, %v1883
        %1969 = vadd.xlane.f32.xlu0 %v1968
        %v1970 = vpop.xlane.xlu0 %1969
        %v1971 = vadd.f32 %v1884, %v1885
        %1972 = vadd.xlane.f32.xlu0 %v1971
        %v1973 = vpop.xlane.xlu0 %1972
        %v1974 = vadd.f32 %v1886, %v1887
        %1975 = vadd.xlane.f32.xlu0 %v1974
        %v1976 = vpop.xlane.xlu0 %1975
        %v1977 = vadd.f32 %v1888, %v1889
        %1978 = vadd.xlane.f32.xlu0 %v1977
        %v1979 = vpop.xlane.xlu0 %1978
        %v1980 = vadd.f32 %v1890, %v1891
        %1981 = vadd.xlane.f32.xlu0 %v1980
        %v1982 = vpop.xlane.xlu0 %1981
        %v1983 = vadd.f32 %v1892, %v1893
        %1984 = vadd.xlane.f32.xlu0 %v1983
        %v1985 = vpop.xlane.xlu0 %1984
        %v1986 = vadd.f32 %v1894, %v1895
        %1987 = vadd.xlane.f32.xlu0 %v1986
        %v1988 = vpop.xlane.xlu0 %1987
        %v1989 = vadd.f32 %v1896, %v1897
        %1990 = vadd.xlane.f32.xlu0 %v1989
        %v1991 = vpop.xlane.xlu0 %1990
        %v1992 = vadd.f32 %v1898, %v1899
        %1993 = vadd.xlane.f32.xlu0 %v1992
        %v1994 = vpop.xlane.xlu0 %1993
        %v1995 = vadd.f32 %v1900, %v1901
        %1996 = vadd.xlane.f32.xlu0 %v1995
        %v1997 = vpop.xlane.xlu0 %1996
        %v1998 = vmul.f32 %v1904, %v1805
        %v1999 = vmul.f32 %v1907, %v1805
        %v2000 = vmul.f32 %v1910, %v1805
        %v2001 = vmul.f32 %v1913, %v1805
        %v2002 = vmul.f32 %v1916, %v1805
        %v2003 = vmul.f32 %v1919, %v1805
        %v2004 = vmul.f32 %v1922, %v1805
        %v2005 = vmul.f32 %v1925, %v1805
        %v2006 = vmul.f32 %v1928, %v1805
        %v2007 = vmul.f32 %v1931, %v1805
        %v2008 = vmul.f32 %v1934, %v1805
        %v2009 = vmul.f32 %v1937, %v1805
        %v2010 = vmul.f32 %v1940, %v1805
        %v2011 = vmul.f32 %v1943, %v1805
        %v2012 = vmul.f32 %v1946, %v1805
        %v2013 = vmul.f32 %v1949, %v1805
        %v2014 = vmul.f32 %v1952, %v1805
        %v2015 = vmul.f32 %v1955, %v1805
        %v2016 = vmul.f32 %v1958, %v1805
        %v2017 = vmul.f32 %v1961, %v1805
        %v2018 = vmul.f32 %v1964, %v1805
        %v2019 = vmul.f32 %v1967, %v1805
        %v2020 = vmul.f32 %v1970, %v1805
        %v2021 = vmul.f32 %v1973, %v1805
        %v2022 = vmul.f32 %v1976, %v1805
        %v2023 = vmul.f32 %v1979, %v1805
        %v2024 = vmul.f32 %v1982, %v1805
        %v2025 = vmul.f32 %v1985, %v1805
        %v2026 = vmul.f32 %v1988, %v1805
        %v2027 = vmul.f32 %v1991, %v1805
        %v2028 = vmul.f32 %v1994, %v1805
        %v2029 = vmul.f32 %v1997, %v1805
        %v2030 = vmul.f32 %v1806, %v1806
        %v2031 = vmul.f32 %v1807, %v1807
        %v2032 = vmul.f32 %v1808, %v1808
        %v2033 = vmul.f32 %v1809, %v1809
        %v2034 = vmul.f32 %v1810, %v1810
        %v2035 = vmul.f32 %v1811, %v1811
        %v2036 = vmul.f32 %v1812, %v1812
        %v2037 = vmul.f32 %v1813, %v1813
        %v2038 = vmul.f32 %v1814, %v1814
        %v2039 = vmul.f32 %v1815, %v1815
        %v2040 = vmul.f32 %v1816, %v1816
        %v2041 = vmul.f32 %v1817, %v1817
        %v2042 = vmul.f32 %v1818, %v1818
        %v2043 = vmul.f32 %v1819, %v1819
        %v2044 = vmul.f32 %v1820, %v1820
        %v2045 = vmul.f32 %v1821, %v1821
        %v2046 = vmul.f32 %v1822, %v1822
        %v2047 = vmul.f32 %v1823, %v1823
        %v2048 = vmul.f32 %v1824, %v1824
        %v2049 = vmul.f32 %v1825, %v1825
        %v2050 = vmul.f32 %v1826, %v1826
        %v2051 = vmul.f32 %v1827, %v1827
        %v2052 = vmul.f32 %v1828, %v1828
        %v2053 = vmul.f32 %v1829, %v1829
        %v2054 = vmul.f32 %v1830, %v1830
        %v2055 = vmul.f32 %v1831, %v1831
        %v2056 = vmul.f32 %v1832, %v1832
        %v2057 = vmul.f32 %v1833, %v1833
        %v2058 = vmul.f32 %v1834, %v1834
        %v2059 = vmul.f32 %v1835, %v1835
        %v2060 = vmul.f32 %v1836, %v1836
        %v2061 = vmul.f32 %v1837, %v1837
        %v2062 = vsub.f32 %v1998, %v2030
        %v2063 = vsub.f32 %v1999, %v2031
        %v2064 = vsub.f32 %v2000, %v2032
        %v2065 = vsub.f32 %v2001, %v2033
        %v2066 = vsub.f32 %v2002, %v2034
        %v2067 = vsub.f32 %v2003, %v2035
        %v2068 = vsub.f32 %v2004, %v2036
        %v2069 = vsub.f32 %v2005, %v2037
        %v2070 = vsub.f32 %v2006, %v2038
        %v2071 = vsub.f32 %v2007, %v2039
        %v2072 = vsub.f32 %v2008, %v2040
        %v2073 = vsub.f32 %v2009, %v2041
        %v2074 = vsub.f32 %v2010, %v2042
        %v2075 = vsub.f32 %v2011, %v2043
        %v2076 = vsub.f32 %v2012, %v2044
        %v2077 = vsub.f32 %v2013, %v2045
        %v2078 = vsub.f32 %v2014, %v2046
        %v2079 = vsub.f32 %v2015, %v2047
        %v2080 = vsub.f32 %v2016, %v2048
        %v2081 = vsub.f32 %v2017, %v2049
        %v2082 = vsub.f32 %v2018, %v2050
        %v2083 = vsub.f32 %v2019, %v2051
        %v2084 = vsub.f32 %v2020, %v2052
        %v2085 = vsub.f32 %v2021, %v2053
        %v2086 = vsub.f32 %v2022, %v2054
        %v2087 = vsub.f32 %v2023, %v2055
        %v2088 = vsub.f32 %v2024, %v2056
        %v2089 = vsub.f32 %v2025, %v2057
        %v2090 = vsub.f32 %v2026, %v2058
        %v2091 = vsub.f32 %v2027, %v2059
        %v2092 = vsub.f32 %v2028, %v2060
        %v2093 = vsub.f32 %v2029, %v2061
        %v2094 = vsub.f32 %v1643, %v1806
        %v2095 = vsub.f32 %v1644, %v1806
        %v2096 = vsub.f32 %v1645, %v1807
        %v2097 = vsub.f32 %v1646, %v1807
        %v2098 = vsub.f32 %v1647, %v1808
        %v2099 = vsub.f32 %v1648, %v1808
        %v2100 = vsub.f32 %v1649, %v1809
        %v2101 = vsub.f32 %v1650, %v1809
        %v2102 = vsub.f32 %v1651, %v1810
        %v2103 = vsub.f32 %v1652, %v1810
        %v2104 = vsub.f32 %v1653, %v1811
        %v2105 = vsub.f32 %v1654, %v1811
        %v2106 = vsub.f32 %v1655, %v1812
        %v2107 = vsub.f32 %v1656, %v1812
        %v2108 = vsub.f32 %v1657, %v1813
        %v2109 = vsub.f32 %v1658, %v1813
        %v2110 = vsub.f32 %v1659, %v1814
        %v2111 = vsub.f32 %v1660, %v1814
        %v2112 = vsub.f32 %v1661, %v1815
        %v2113 = vsub.f32 %v1662, %v1815
        %v2114 = vsub.f32 %v1663, %v1816
        %v2115 = vsub.f32 %v1664, %v1816
        %v2116 = vsub.f32 %v1665, %v1817
        %v2117 = vsub.f32 %v1666, %v1817
        %v2118 = vsub.f32 %v1667, %v1818
        %v2119 = vsub.f32 %v1668, %v1818
        %v2120 = vsub.f32 %v1669, %v1819
        %v2121 = vsub.f32 %v1670, %v1819
        %v2122 = vsub.f32 %v1671, %v1820
        %v2123 = vsub.f32 %v1672, %v1820
        %v2124 = vsub.f32 %v1673, %v1821
        %v2125 = vsub.f32 %v1674, %v1821
        %v2126 = vsub.f32 %v1675, %v1822
        %v2127 = vsub.f32 %v1676, %v1822
        %v2128 = vsub.f32 %v1677, %v1823
        %v2129 = vsub.f32 %v1678, %v1823
        %v2130 = vsub.f32 %v1679, %v1824
        %v2131 = vsub.f32 %v1680, %v1824
        %v2132 = vsub.f32 %v1681, %v1825
        %v2133 = vsub.f32 %v1682, %v1825
        %v2134 = vsub.f32 %v1683, %v1826
        %v2135 = vsub.f32 %v1684, %v1826
        %v2136 = vsub.f32 %v1685, %v1827
        %v2137 = vsub.f32 %v1686, %v1827
        %v2138 = vsub.f32 %v1687, %v1828
        %v2139 = vsub.f32 %v1688, %v1828
        %v2140 = vsub.f32 %v1689, %v1829
        %v2141 = vsub.f32 %v1690, %v1829
        %v2142 = vsub.f32 %v1691, %v1830
        %v2143 = vsub.f32 %v1692, %v1830
        %v2144 = vsub.f32 %v1693, %v1831
        %v2145 = vsub.f32 %v1694, %v1831
        %v2146 = vsub.f32 %v1695, %v1832
        %v2147 = vsub.f32 %v1696, %v1832
        %v2148 = vsub.f32 %v1697, %v1833
        %v2149 = vsub.f32 %v1698, %v1833
        %v2150 = vsub.f32 %v1699, %v1834
        %v2151 = vsub.f32 %v1700, %v1834
        %v2152 = vsub.f32 %v1701, %v1835
        %v2153 = vsub.f32 %v1702, %v1835
        %v2154 = vsub.f32 %v1703, %v1836
        %v2155 = vsub.f32 %v1704, %v1836
        %v2156 = vsub.f32 %v1705, %v1837
        %v2157 = vsub.f32 %v1706, %v1837
        %v2158 = vadd.f32 %v2062, 1e-05
        %v2159 = vadd.f32 %v2063, 1e-05
        %v2160 = vadd.f32 %v2064, 1e-05
        %v2161 = vadd.f32 %v2065, 1e-05
        %v2162 = vadd.f32 %v2066, 1e-05
        %v2163 = vadd.f32 %v2067, 1e-05
        %v2164 = vadd.f32 %v2068, 1e-05
        %v2165 = vadd.f32 %v2069, 1e-05
        %v2166 = vadd.f32 %v2070, 1e-05
        %v2167 = vadd.f32 %v2071, 1e-05
        %v2168 = vadd.f32 %v2072, 1e-05
        %v2169 = vadd.f32 %v2073, 1e-05
        %v2170 = vadd.f32 %v2074, 1e-05
        %v2171 = vadd.f32 %v2075, 1e-05
        %v2172 = vadd.f32 %v2076, 1e-05
        %v2173 = vadd.f32 %v2077, 1e-05
        %v2174 = vadd.f32 %v2078, 1e-05
        %v2175 = vadd.f32 %v2079, 1e-05
        %v2176 = vadd.f32 %v2080, 1e-05
        %v2177 = vadd.f32 %v2081, 1e-05
        %v2178 = vadd.f32 %v2082, 1e-05
        %v2179 = vadd.f32 %v2083, 1e-05
        %v2180 = vadd.f32 %v2084, 1e-05
        %v2181 = vadd.f32 %v2085, 1e-05
        %v2182 = vadd.f32 %v2086, 1e-05
        %v2183 = vadd.f32 %v2087, 1e-05
        %v2184 = vadd.f32 %v2088, 1e-05
        %v2185 = vadd.f32 %v2089, 1e-05
        %v2186 = vadd.f32 %v2090, 1e-05
        %v2187 = vadd.f32 %v2091, 1e-05
        %v2188 = vadd.f32 %v2092, 1e-05
        %v2189 = vadd.f32 %v2093, 1e-05
        %v2190 = vrsqrt.pop %v2158
        %v2191 = vrsqrt.pop %v2159
        %v2192 = vrsqrt.pop %v2160
        %v2193 = vrsqrt.pop %v2161
        %v2194 = vrsqrt.pop %v2162
        %v2195 = vrsqrt.pop %v2163
        %v2196 = vrsqrt.pop %v2164
        %v2197 = vrsqrt.pop %v2165
        %v2198 = vrsqrt.pop %v2166
        %v2199 = vrsqrt.pop %v2167
        %v2200 = vrsqrt.pop %v2168
        %v2201 = vrsqrt.pop %v2169
        %v2202 = vrsqrt.pop %v2170
        %v2203 = vrsqrt.pop %v2171
        %v2204 = vrsqrt.pop %v2172
        %v2205 = vrsqrt.pop %v2173
        %v2206 = vrsqrt.pop %v2174
        %v2207 = vrsqrt.pop %v2175
        %v2208 = vrsqrt.pop %v2176
        %v2209 = vrsqrt.pop %v2177
        %v2210 = vrsqrt.pop %v2178
        %v2211 = vrsqrt.pop %v2179
        %v2212 = vrsqrt.pop %v2180
        %v2213 = vrsqrt.pop %v2181
        %v2214 = vrsqrt.pop %v2182
        %v2215 = vrsqrt.pop %v2183
        %v2216 = vrsqrt.pop %v2184
        %v2217 = vrsqrt.pop %v2185
        %v2218 = vrsqrt.pop %v2186
        %v2219 = vrsqrt.pop %v2187
        %v2220 = vrsqrt.pop %v2188
        %v2221 = vrsqrt.pop %v2189
        %v2222 = vmul.f32 %v2094, %v2190
        %v2223 = vmul.f32 %v2095, %v2190
        %v2224 = vmul.f32 %v2096, %v2191
        %v2225 = vmul.f32 %v2097, %v2191
        %v2226 = vmul.f32 %v2098, %v2192
        %v2227 = vmul.f32 %v2099, %v2192
        %v2228 = vmul.f32 %v2100, %v2193
        %v2229 = vmul.f32 %v2101, %v2193
        %v2230 = vmul.f32 %v2102, %v2194
        %v2231 = vmul.f32 %v2103, %v2194
        %v2232 = vmul.f32 %v2104, %v2195
        %v2233 = vmul.f32 %v2105, %v2195
        %v2234 = vmul.f32 %v2106, %v2196
        %v2235 = vmul.f32 %v2107, %v2196
        %v2236 = vmul.f32 %v2108, %v2197
        %v2237 = vmul.f32 %v2109, %v2197
        %v2238 = vmul.f32 %v2110, %v2198
        %v2239 = vmul.f32 %v2111, %v2198
        %v2240 = vmul.f32 %v2112, %v2199
        %v2241 = vmul.f32 %v2113, %v2199
        %v2242 = vmul.f32 %v2114, %v2200
        %v2243 = vmul.f32 %v2115, %v2200
        %v2244 = vmul.f32 %v2116, %v2201
        %v2245 = vmul.f32 %v2117, %v2201
        %v2246 = vmul.f32 %v2118, %v2202
        %v2247 = vmul.f32 %v2119, %v2202
        %v2248 = vmul.f32 %v2120, %v2203
        %v2249 = vmul.f32 %v2121, %v2203
        %v2250 = vmul.f32 %v2122, %v2204
        %v2251 = vmul.f32 %v2123, %v2204
        %v2252 = vmul.f32 %v2124, %v2205
        %v2253 = vmul.f32 %v2125, %v2205
        %v2254 = vmul.f32 %v2126, %v2206
        %v2255 = vmul.f32 %v2127, %v2206
        %v2256 = vmul.f32 %v2128, %v2207
        %v2257 = vmul.f32 %v2129, %v2207
        %v2258 = vmul.f32 %v2130, %v2208
        %v2259 = vmul.f32 %v2131, %v2208
        %v2260 = vmul.f32 %v2132, %v2209
        %v2261 = vmul.f32 %v2133, %v2209
        %v2262 = vmul.f32 %v2134, %v2210
        %v2263 = vmul.f32 %v2135, %v2210
        %v2264 = vmul.f32 %v2136, %v2211
        %v2265 = vmul.f32 %v2137, %v2211
        %v2266 = vmul.f32 %v2138, %v2212
        %v2267 = vmul.f32 %v2139, %v2212
        %v2268 = vmul.f32 %v2140, %v2213
        %v2269 = vmul.f32 %v2141, %v2213
        %v2270 = vmul.f32 %v2142, %v2214
        %v2271 = vmul.f32 %v2143, %v2214
        %v2272 = vmul.f32 %v2144, %v2215
        %v2273 = vmul.f32 %v2145, %v2215
        %v2274 = vmul.f32 %v2146, %v2216
        %v2275 = vmul.f32 %v2147, %v2216
        %v2276 = vmul.f32 %v2148, %v2217
        %v2277 = vmul.f32 %v2149, %v2217
        %v2278 = vmul.f32 %v2150, %v2218
        %v2279 = vmul.f32 %v2151, %v2218
        %v2280 = vmul.f32 %v2152, %v2219
        %v2281 = vmul.f32 %v2153, %v2219
        %v2282 = vmul.f32 %v2154, %v2220
        %v2283 = vmul.f32 %v2155, %v2220
        %v2284 = vmul.f32 %v2156, %v2221
        %v2285 = vmul.f32 %v2157, %v2221
        %v2287 = vlaneseq
        %v2288 = vshrl.u32 %v2287, 7
        %v2289 = vsub.s32 0, %v2288
        %v2290 = vrot.slane %v1707, %v2289
        %v2291 = vlaneseq
        %v2292 = vshrl.u32 %v2291, 7
        %v2293 = vsub.s32 1, %v2292
        %v2294 = vrot.slane %v1707, %v2293
        %v2297 = vmul.f32 %v2222, %v2290
        %v2298 = vmul.f32 %v2223, %v2294
        %v2299 = vmul.f32 %v2224, %v2290
        %v2300 = vmul.f32 %v2225, %v2294
        %v2301 = vmul.f32 %v2226, %v2290
        %v2302 = vmul.f32 %v2227, %v2294
        %v2303 = vmul.f32 %v2228, %v2290
        %v2304 = vmul.f32 %v2229, %v2294
        %v2305 = vmul.f32 %v2230, %v2290
        %v2306 = vmul.f32 %v2231, %v2294
        %v2307 = vmul.f32 %v2232, %v2290
        %v2308 = vmul.f32 %v2233, %v2294
        %v2309 = vmul.f32 %v2234, %v2290
        %v2310 = vmul.f32 %v2235, %v2294
        %v2311 = vmul.f32 %v2236, %v2290
        %v2312 = vmul.f32 %v2237, %v2294
        %v2313 = vmul.f32 %v2238, %v2290
        %v2314 = vmul.f32 %v2239, %v2294
        %v2315 = vmul.f32 %v2240, %v2290
        %v2316 = vmul.f32 %v2241, %v2294
        %v2317 = vmul.f32 %v2242, %v2290
        %v2318 = vmul.f32 %v2243, %v2294
        %v2319 = vmul.f32 %v2244, %v2290
        %v2320 = vmul.f32 %v2245, %v2294
        %v2321 = vmul.f32 %v2246, %v2290
        %v2322 = vmul.f32 %v2247, %v2294
        %v2323 = vmul.f32 %v2248, %v2290
        %v2324 = vmul.f32 %v2249, %v2294
        %v2325 = vmul.f32 %v2250, %v2290
        %v2326 = vmul.f32 %v2251, %v2294
        %v2327 = vmul.f32 %v2252, %v2290
        %v2328 = vmul.f32 %v2253, %v2294
        %v2329 = vmul.f32 %v2254, %v2290
        %v2330 = vmul.f32 %v2255, %v2294
        %v2331 = vmul.f32 %v2256, %v2290
        %v2332 = vmul.f32 %v2257, %v2294
        %v2333 = vmul.f32 %v2258, %v2290
        %v2334 = vmul.f32 %v2259, %v2294
        %v2335 = vmul.f32 %v2260, %v2290
        %v2336 = vmul.f32 %v2261, %v2294
        %v2337 = vmul.f32 %v2262, %v2290
        %v2338 = vmul.f32 %v2263, %v2294
        %v2339 = vmul.f32 %v2264, %v2290
        %v2340 = vmul.f32 %v2265, %v2294
        %v2341 = vmul.f32 %v2266, %v2290
        %v2342 = vmul.f32 %v2267, %v2294
        %v2343 = vmul.f32 %v2268, %v2290
        %v2344 = vmul.f32 %v2269, %v2294
        %v2345 = vmul.f32 %v2270, %v2290
        %v2346 = vmul.f32 %v2271, %v2294
        %v2347 = vmul.f32 %v2272, %v2290
        %v2348 = vmul.f32 %v2273, %v2294
        %v2349 = vmul.f32 %v2274, %v2290
        %v2350 = vmul.f32 %v2275, %v2294
        %v2351 = vmul.f32 %v2276, %v2290
        %v2352 = vmul.f32 %v2277, %v2294
        %v2353 = vmul.f32 %v2278, %v2290
        %v2354 = vmul.f32 %v2279, %v2294
        %v2355 = vmul.f32 %v2280, %v2290
        %v2356 = vmul.f32 %v2281, %v2294
        %v2357 = vmul.f32 %v2282, %v2290
        %v2358 = vmul.f32 %v2283, %v2294
        %v2359 = vmul.f32 %v2284, %v2290
        %v2360 = vmul.f32 %v2285, %v2294
        %v2362 = vlaneseq
        %v2363 = vshrl.u32 %v2362, 7
        %v2364 = vsub.s32 0, %v2363
        %v2365 = vrot.slane %v1708, %v2364
        %v2366 = vlaneseq
        %v2367 = vshrl.u32 %v2366, 7
        %v2368 = vsub.s32 1, %v2367
        %v2369 = vrot.slane %v1708, %v2368
        %v2372 = vadd.f32 %v2297, %v2365
        %v2373 = vadd.f32 %v2298, %v2369
        %v2374 = vadd.f32 %v2299, %v2365
        %v2375 = vadd.f32 %v2300, %v2369
        %v2376 = vadd.f32 %v2301, %v2365
        %v2377 = vadd.f32 %v2302, %v2369
        %v2378 = vadd.f32 %v2303, %v2365
        %v2379 = vadd.f32 %v2304, %v2369
        %v2380 = vadd.f32 %v2305, %v2365
        %v2381 = vadd.f32 %v2306, %v2369
        %v2382 = vadd.f32 %v2307, %v2365
        %v2383 = vadd.f32 %v2308, %v2369
        %v2384 = vadd.f32 %v2309, %v2365
        %v2385 = vadd.f32 %v2310, %v2369
        %v2386 = vadd.f32 %v2311, %v2365
        %v2387 = vadd.f32 %v2312, %v2369
        %v2388 = vadd.f32 %v2313, %v2365
        %v2389 = vadd.f32 %v2314, %v2369
        %v2390 = vadd.f32 %v2315, %v2365
        %v2391 = vadd.f32 %v2316, %v2369
        %v2392 = vadd.f32 %v2317, %v2365
        %v2393 = vadd.f32 %v2318, %v2369
        %v2394 = vadd.f32 %v2319, %v2365
        %v2395 = vadd.f32 %v2320, %v2369
        %v2396 = vadd.f32 %v2321, %v2365
        %v2397 = vadd.f32 %v2322, %v2369
        %v2398 = vadd.f32 %v2323, %v2365
        %v2399 = vadd.f32 %v2324, %v2369
        %v2400 = vadd.f32 %v2325, %v2365
        %v2401 = vadd.f32 %v2326, %v2369
        %v2402 = vadd.f32 %v2327, %v2365
        %v2403 = vadd.f32 %v2328, %v2369
        %v2404 = vadd.f32 %v2329, %v2365
        %v2405 = vadd.f32 %v2330, %v2369
        %v2406 = vadd.f32 %v2331, %v2365
        %v2407 = vadd.f32 %v2332, %v2369
        %v2408 = vadd.f32 %v2333, %v2365
        %v2409 = vadd.f32 %v2334, %v2369
        %v2410 = vadd.f32 %v2335, %v2365
        %v2411 = vadd.f32 %v2336, %v2369
        %v2412 = vadd.f32 %v2337, %v2365
        %v2413 = vadd.f32 %v2338, %v2369
        %v2414 = vadd.f32 %v2339, %v2365
        %v2415 = vadd.f32 %v2340, %v2369
        %v2416 = vadd.f32 %v2341, %v2365
        %v2417 = vadd.f32 %v2342, %v2369
        %v2418 = vadd.f32 %v2343, %v2365
        %v2419 = vadd.f32 %v2344, %v2369
        %v2420 = vadd.f32 %v2345, %v2365
        %v2421 = vadd.f32 %v2346, %v2369
        %v2422 = vadd.f32 %v2347, %v2365
        %v2423 = vadd.f32 %v2348, %v2369
        %v2424 = vadd.f32 %v2349, %v2365
        %v2425 = vadd.f32 %v2350, %v2369
        %v2426 = vadd.f32 %v2351, %v2365
        %v2427 = vadd.f32 %v2352, %v2369
        %v2428 = vadd.f32 %v2353, %v2365
        %v2429 = vadd.f32 %v2354, %v2369
        %v2430 = vadd.f32 %v2355, %v2365
        %v2431 = vadd.f32 %v2356, %v2369
        %v2432 = vadd.f32 %v2357, %v2365
        %v2433 = vadd.f32 %v2358, %v2369
        %v2434 = vadd.f32 %v2359, %v2365
        %v2435 = vadd.f32 %v2360, %v2369
        %v2436 = vpack.c.bf16 %v2374, %v2372
        %v2437 = vpack.c.bf16 %v2375, %v2373
        %v2438 = vpack.c.bf16 %v2378, %v2376
        %v2439 = vpack.c.bf16 %v2379, %v2377
        %v2440 = vpack.c.bf16 %v2382, %v2380
        %v2441 = vpack.c.bf16 %v2383, %v2381
        %v2442 = vpack.c.bf16 %v2386, %v2384
        %v2443 = vpack.c.bf16 %v2387, %v2385
        %v2444 = vpack.c.bf16 %v2390, %v2388
        %v2445 = vpack.c.bf16 %v2391, %v2389
        %v2446 = vpack.c.bf16 %v2394, %v2392
        %v2447 = vpack.c.bf16 %v2395, %v2393
        %v2448 = vpack.c.bf16 %v2398, %v2396
        %v2449 = vpack.c.bf16 %v2399, %v2397
        %v2450 = vpack.c.bf16 %v2402, %v2400
        %v2451 = vpack.c.bf16 %v2403, %v2401
        %v2452 = vpack.c.bf16 %v2406, %v2404
        %v2453 = vpack.c.bf16 %v2407, %v2405
        %v2454 = vpack.c.bf16 %v2410, %v2408
        %v2455 = vpack.c.bf16 %v2411, %v2409
        %v2456 = vpack.c.bf16 %v2414, %v2412
        %v2457 = vpack.c.bf16 %v2415, %v2413
        %v2458 = vpack.c.bf16 %v2418, %v2416
        %v2459 = vpack.c.bf16 %v2419, %v2417
        %v2460 = vpack.c.bf16 %v2422, %v2420
        %v2461 = vpack.c.bf16 %v2423, %v2421
        %v2462 = vpack.c.bf16 %v2426, %v2424
        %v2463 = vpack.c.bf16 %v2427, %v2425
        %v2464 = vpack.c.bf16 %v2430, %v2428
        %v2465 = vpack.c.bf16 %v2431, %v2429
        %v2466 = vpack.c.bf16 %v2434, %v2432
        %v2467 = vpack.c.bf16 %v2435, %v2433
        %v2468 = vld [vmem:[#allocation10] sm:$0xff]
        %v2469 = vld [vmem:[#allocation10 + $0x8] sm:$0xff]
        %v2470 = vld [vmem:[#allocation10 + $0x10] sm:$0xff]
        %v2471 = vld [vmem:[#allocation10 + $0x18] sm:$0xff]
        %v2472 = vld [vmem:[#allocation10 + $0x20] sm:$0xff]
        %v2473 = vld [vmem:[#allocation10 + $0x28] sm:$0xff]
        %v2474 = vld [vmem:[#allocation10 + $0x30] sm:$0xff]
        %v2475 = vld [vmem:[#allocation10 + $0x38] sm:$0xff]
        %v2476 = vld [vmem:[#allocation10 + $0x40] sm:$0xff]
        %v2477 = vld [vmem:[#allocation10 + $0x48] sm:$0xff]
        %v2478 = vld [vmem:[#allocation10 + $0x50] sm:$0xff]
        %v2479 = vld [vmem:[#allocation10 + $0x58] sm:$0xff]
        %v2480 = vld [vmem:[#allocation10 + $0x60] sm:$0xff]
        %v2481 = vld [vmem:[#allocation10 + $0x68] sm:$0xff]
        %v2482 = vld [vmem:[#allocation10 + $0x70] sm:$0xff]
        %v2483 = vld [vmem:[#allocation10 + $0x78] sm:$0xff]
        %v2484 = vld [vmem:[#allocation10 + $0x80] sm:$0xff]
        %v2485 = vld [vmem:[#allocation10 + $0x88] sm:$0xff]
        %v2486 = vld [vmem:[#allocation10 + $0x90] sm:$0xff]
        %v2487 = vld [vmem:[#allocation10 + $0x98] sm:$0xff]
        %v2488 = vld [vmem:[#allocation10 + $0xa0] sm:$0xff]
        %v2489 = vld [vmem:[#allocation10 + $0xa8] sm:$0xff]
        %v2490 = vld [vmem:[#allocation10 + $0xb0] sm:$0xff]
        %v2491 = vld [vmem:[#allocation10 + $0xb8] sm:$0xff]
        %v2492 = vld [vmem:[#allocation10 + $0xc0] sm:$0xff]
        %v2493 = vld [vmem:[#allocation10 + $0xc8] sm:$0xff]
        %v2494 = vld [vmem:[#allocation10 + $0xd0] sm:$0xff]
        %v2495 = vld [vmem:[#allocation10 + $0xd8] sm:$0xff]
        %v2496 = vld [vmem:[#allocation10 + $0xe0] sm:$0xff]
        %v2497 = vld [vmem:[#allocation10 + $0xe8] sm:$0xff]
        %v2498 = vld [vmem:[#allocation10 + $0xf0] sm:$0xff]
        %v2499 = vld [vmem:[#allocation10 + $0xf8] sm:$0xff]
        %v2500 = vld [vmem:[%s7] sm:$0x3]
        %v2502 = vlaneseq
        %v2503 = vshrl.u32 %v2502, 7
        %v2504 = vsub.s32 0, %v2503
        %v2505 = vrot.slane %v2500, %v2504
        %v2506 = vlaneseq
        %v2507 = vshrl.u32 %v2506, 7
        %v2508 = vsub.s32 1, %v2507
        %v2509 = vrot.slane %v2500, %v2508
        %v2544 = vunpack.c.l.b16 %v2468
        %v2545 = vunpack.c.h.b16 %v2468
        %v2546 = vunpack.c.l.b16 %v2469
        %v2547 = vunpack.c.h.b16 %v2469
        %v2548 = vunpack.c.l.b16 %v2470
        %v2549 = vunpack.c.h.b16 %v2470
        %v2550 = vunpack.c.l.b16 %v2471
        %v2551 = vunpack.c.h.b16 %v2471
        %v2552 = vunpack.c.l.b16 %v2472
        %v2553 = vunpack.c.h.b16 %v2472
        %v2554 = vunpack.c.l.b16 %v2473
        %v2555 = vunpack.c.h.b16 %v2473
        %v2556 = vunpack.c.l.b16 %v2474
        %v2557 = vunpack.c.h.b16 %v2474
        %v2558 = vunpack.c.l.b16 %v2475
        %v2559 = vunpack.c.h.b16 %v2475
        %v2560 = vunpack.c.l.b16 %v2476
        %v2561 = vunpack.c.h.b16 %v2476
        %v2562 = vunpack.c.l.b16 %v2477
        %v2563 = vunpack.c.h.b16 %v2477
        %v2564 = vunpack.c.l.b16 %v2478
        %v2565 = vunpack.c.h.b16 %v2478
        %v2566 = vunpack.c.l.b16 %v2479
        %v2567 = vunpack.c.h.b16 %v2479
        %v2568 = vunpack.c.l.b16 %v2480
        %v2569 = vunpack.c.h.b16 %v2480
        %v2570 = vunpack.c.l.b16 %v2481
        %v2571 = vunpack.c.h.b16 %v2481
        %v2572 = vunpack.c.l.b16 %v2482
        %v2573 = vunpack.c.h.b16 %v2482
        %v2574 = vunpack.c.l.b16 %v2483
        %v2575 = vunpack.c.h.b16 %v2483
        %v2576 = vunpack.c.l.b16 %v2484
        %v2577 = vunpack.c.h.b16 %v2484
        %v2578 = vunpack.c.l.b16 %v2485
        %v2579 = vunpack.c.h.b16 %v2485
        %v2580 = vunpack.c.l.b16 %v2486
        %v2581 = vunpack.c.h.b16 %v2486
        %v2582 = vunpack.c.l.b16 %v2487
        %v2583 = vunpack.c.h.b16 %v2487
        %v2584 = vunpack.c.l.b16 %v2488
        %v2585 = vunpack.c.h.b16 %v2488
        %v2586 = vunpack.c.l.b16 %v2489
        %v2587 = vunpack.c.h.b16 %v2489
        %v2588 = vunpack.c.l.b16 %v2490
        %v2589 = vunpack.c.h.b16 %v2490
        %v2590 = vunpack.c.l.b16 %v2491
        %v2591 = vunpack.c.h.b16 %v2491
        %v2592 = vunpack.c.l.b16 %v2492
        %v2593 = vunpack.c.h.b16 %v2492
        %v2594 = vunpack.c.l.b16 %v2493
        %v2595 = vunpack.c.h.b16 %v2493
        %v2596 = vunpack.c.l.b16 %v2494
        %v2597 = vunpack.c.h.b16 %v2494
        %v2598 = vunpack.c.l.b16 %v2495
        %v2599 = vunpack.c.h.b16 %v2495
        %v2600 = vunpack.c.l.b16 %v2496
        %v2601 = vunpack.c.h.b16 %v2496
        %v2602 = vunpack.c.l.b16 %v2497
        %v2603 = vunpack.c.h.b16 %v2497
        %v2604 = vunpack.c.l.b16 %v2498
        %v2605 = vunpack.c.h.b16 %v2498
        %v2606 = vunpack.c.l.b16 %v2499
        %v2607 = vunpack.c.h.b16 %v2499
        %v2608 = vpack.c.b16 %v2546, %v2544
        %v2609 = vpack.c.b16 %v2547, %v2545
        %v2610 = vpack.c.b16 %v2550, %v2548
        %v2611 = vpack.c.b16 %v2551, %v2549
        %v2612 = vpack.c.b16 %v2554, %v2552
        %v2613 = vpack.c.b16 %v2555, %v2553
        %v2614 = vpack.c.b16 %v2558, %v2556
        %v2615 = vpack.c.b16 %v2559, %v2557
        %v2616 = vpack.c.b16 %v2562, %v2560
        %v2617 = vpack.c.b16 %v2563, %v2561
        %v2618 = vpack.c.b16 %v2566, %v2564
        %v2619 = vpack.c.b16 %v2567, %v2565
        %v2620 = vpack.c.b16 %v2570, %v2568
        %v2621 = vpack.c.b16 %v2571, %v2569
        %v2622 = vpack.c.b16 %v2574, %v2572
        %v2623 = vpack.c.b16 %v2575, %v2573
        %v2624 = vpack.c.b16 %v2578, %v2576
        %v2625 = vpack.c.b16 %v2579, %v2577
        %v2626 = vpack.c.b16 %v2582, %v2580
        %v2627 = vpack.c.b16 %v2583, %v2581
        %v2628 = vpack.c.b16 %v2586, %v2584
        %v2629 = vpack.c.b16 %v2587, %v2585
        %v2630 = vpack.c.b16 %v2590, %v2588
        %v2631 = vpack.c.b16 %v2591, %v2589
        %v2632 = vpack.c.b16 %v2594, %v2592
        %v2633 = vpack.c.b16 %v2595, %v2593
        %v2634 = vpack.c.b16 %v2598, %v2596
        %v2635 = vpack.c.b16 %v2599, %v2597
        %v2636 = vpack.c.b16 %v2602, %v2600
        %v2637 = vpack.c.b16 %v2603, %v2601
        %v2638 = vpack.c.b16 %v2606, %v2604
        %v2639 = vpack.c.b16 %v2607, %v2605
        %2672 = vmatprep.subr.bf16.mxu0 %v2609
        %2673 = vmatpush1.bf16.msra.mxu0 %v2608
        %2674 = vmatprep.subr.bf16.mxu0 %v2611
        %2675 = vmatpush1.bf16.msra.mxu0 %v2610
        %2676 = vmatprep.subr.bf16.mxu0 %v2613
        %2677 = vmatpush1.bf16.msra.mxu0 %v2612
        %2678 = vmatprep.subr.bf16.mxu0 %v2615
        %2679 = vmatpush1.bf16.msra.mxu0 %v2614
        %2680 = vmatprep.subr.bf16.mxu0 %v2617
        %2681 = vmatpush1.bf16.msra.mxu0 %v2616
        %2682 = vmatprep.subr.bf16.mxu0 %v2619
        %2683 = vmatpush1.bf16.msra.mxu0 %v2618
        %2684 = vmatprep.subr.bf16.mxu0 %v2621
        %2685 = vmatpush1.bf16.msra.mxu0 %v2620
        %2686 = vmatprep.subr.bf16.mxu0 %v2623
        %2687 = vmatpush1.bf16.msra.mxu0 %v2622
        %2688 = vmatprep.subr.bf16.mxu0 %v2625
        %2689 = vmatpush1.bf16.msra.mxu0 %v2624
        %2690 = vmatprep.subr.bf16.mxu0 %v2627
        %2691 = vmatpush1.bf16.msra.mxu0 %v2626
        %2692 = vmatprep.subr.bf16.mxu0 %v2629
        %2693 = vmatpush1.bf16.msra.mxu0 %v2628
        %2694 = vmatprep.subr.bf16.mxu0 %v2631
        %2695 = vmatpush1.bf16.msra.mxu0 %v2630
        %2696 = vmatprep.subr.bf16.mxu0 %v2633
        %2697 = vmatpush1.bf16.msra.mxu0 %v2632
        %2698 = vmatprep.subr.bf16.mxu0 %v2635
        %2699 = vmatpush1.bf16.msra.mxu0 %v2634
        %2700 = vmatprep.subr.bf16.mxu0 %v2637
        %2701 = vmatpush1.bf16.msra.mxu0 %v2636
        %2702 = vmatprep.subr.bf16.mxu0 %v2639
        %2703 = vmatpush1.bf16.msra.mxu0 %v2638
        %2704 = vmatprep.mubr.bf16.mxu0 %v2437
        %2705 = vmatmul.mubr.bf16.gmra.mrb[0].mxu0 %v2436
        %v2706 = vpop.f32.mrb[0].mxu0
        %v2707 = vadd.f32 %v2505, %v2706
        %v2708 = vpop.f32.mrb[0].mxu0
        %v2709 = vadd.f32 %v2509, %v2708
        %v2710 = vpop.f32.mrb[0].mxu0
        %v2711 = vadd.f32 %v2505, %v2710
        %v2712 = vpop.f32.mrb[0].mxu0
        %v2713 = vadd.f32 %v2509, %v2712
        %2714 = vmatprep.mubr.bf16.mxu0 %v2439
        %2715 = vmatmul.mubr.bf16.gmra.mrb[0].mxu0 %v2438
        %v2716 = vpop.f32.mrb[0].mxu0
        %v2717 = vadd.f32 %v2505, %v2716
        %v2718 = vpop.f32.mrb[0].mxu0
        %v2719 = vadd.f32 %v2509, %v2718
        %v2720 = vpop.f32.mrb[0].mxu0
        %v2721 = vadd.f32 %v2505, %v2720
        %v2722 = vpop.f32.mrb[0].mxu0
        %v2723 = vadd.f32 %v2509, %v2722
        %2724 = vmatprep.mubr.bf16.mxu0 %v2441
        %2725 = vmatmul.mubr.bf16.gmra.mrb[0].mxu0 %v2440
        %v2726 = vpop.f32.mrb[0].mxu0
        %v2727 = vadd.f32 %v2505, %v2726
        %v2728 = vpop.f32.mrb[0].mxu0
        %v2729 = vadd.f32 %v2509, %v2728
        %v2730 = vpop.f32.mrb[0].mxu0
        %v2731 = vadd.f32 %v2505, %v2730
        %v2732 = vpop.f32.mrb[0].mxu0
        %v2733 = vadd.f32 %v2509, %v2732
        %2734 = vmatprep.mubr.bf16.mxu0 %v2443
        %2735 = vmatmul.mubr.bf16.gmra.mrb[0].mxu0 %v2442
        %v2736 = vpop.f32.mrb[0].mxu0
        %v2737 = vadd.f32 %v2505, %v2736
        %v2738 = vpop.f32.mrb[0].mxu0
        %v2739 = vadd.f32 %v2509, %v2738
        %v2740 = vpop.f32.mrb[0].mxu0
        %v2741 = vadd.f32 %v2505, %v2740
        %v2742 = vpop.f32.mrb[0].mxu0
        %v2743 = vadd.f32 %v2509, %v2742
        %2744 = vmatprep.mubr.bf16.mxu0 %v2445
        %2745 = vmatmul.mubr.bf16.gmra.mrb[0].mxu0 %v2444
        %v2746 = vpop.f32.mrb[0].mxu0
        %v2747 = vadd.f32 %v2505, %v2746
        %v2748 = vpop.f32.mrb[0].mxu0
        %v2749 = vadd.f32 %v2509, %v2748
        %v2750 = vpop.f32.mrb[0].mxu0
        %v2751 = vadd.f32 %v2505, %v2750
        %v2752 = vpop.f32.mrb[0].mxu0
        %v2753 = vadd.f32 %v2509, %v2752
        %2754 = vmatprep.mubr.bf16.mxu0 %v2447
        %2755 = vmatmul.mubr.bf16.gmra.mrb[0].mxu0 %v2446
        %v2756 = vpop.f32.mrb[0].mxu0
        %v2757 = vadd.f32 %v2505, %v2756
        %v2758 = vpop.f32.mrb[0].mxu0
        %v2759 = vadd.f32 %v2509, %v2758
        %v2760 = vpop.f32.mrb[0].mxu0
        %v2761 = vadd.f32 %v2505, %v2760
        %v2762 = vpop.f32.mrb[0].mxu0
        %v2763 = vadd.f32 %v2509, %v2762
        %2764 = vmatprep.mubr.bf16.mxu0 %v2449
        %2765 = vmatmul.mubr.bf16.gmra.mrb[0].mxu0 %v2448
        %v2766 = vpop.f32.mrb[0].mxu0
        %v2767 = vadd.f32 %v2505, %v2766
        %v2768 = vpop.f32.mrb[0].mxu0
        %v2769 = vadd.f32 %v2509, %v2768
        %v2770 = vpop.f32.mrb[0].mxu0
        %v2771 = vadd.f32 %v2505, %v2770
        %v2772 = vpop.f32.mrb[0].mxu0
        %v2773 = vadd.f32 %v2509, %v2772
        %2774 = vmatprep.mubr.bf16.mxu0 %v2451
        %2775 = vmatmul.mubr.bf16.gmra.mrb[0].mxu0 %v2450
        %v2776 = vpop.f32.mrb[0].mxu0
        %v2777 = vadd.f32 %v2505, %v2776
        %v2778 = vpop.f32.mrb[0].mxu0
        %v2779 = vadd.f32 %v2509, %v2778
        %v2780 = vpop.f32.mrb[0].mxu0
        %v2781 = vadd.f32 %v2505, %v2780
        %v2782 = vpop.f32.mrb[0].mxu0
        %v2783 = vadd.f32 %v2509, %v2782
        %2784 = vmatprep.mubr.bf16.mxu0 %v2453
        %2785 = vmatmul.mubr.bf16.gmra.mrb[0].mxu0 %v2452
        %v2786 = vpop.f32.mrb[0].mxu0
        %v2787 = vadd.f32 %v2505, %v2786
        %v2788 = vpop.f32.mrb[0].mxu0
        %v2789 = vadd.f32 %v2509, %v2788
        %v2790 = vpop.f32.mrb[0].mxu0
        %v2791 = vadd.f32 %v2505, %v2790
        %v2792 = vpop.f32.mrb[0].mxu0
        %v2793 = vadd.f32 %v2509, %v2792
        %2794 = vmatprep.mubr.bf16.mxu0 %v2455
        %2795 = vmatmul.mubr.bf16.gmra.mrb[0].mxu0 %v2454
        %v2796 = vpop.f32.mrb[0].mxu0
        %v2797 = vadd.f32 %v2505, %v2796
        %v2798 = vpop.f32.mrb[0].mxu0
        %v2799 = vadd.f32 %v2509, %v2798
        %v2800 = vpop.f32.mrb[0].mxu0
        %v2801 = vadd.f32 %v2505, %v2800
        %v2802 = vpop.f32.mrb[0].mxu0
        %v2803 = vadd.f32 %v2509, %v2802
        %2804 = vmatprep.mubr.bf16.mxu0 %v2457
        %2805 = vmatmul.mubr.bf16.gmra.mrb[0].mxu0 %v2456
        %v2806 = vpop.f32.mrb[0].mxu0
        %v2807 = vadd.f32 %v2505, %v2806
        %v2808 = vpop.f32.mrb[0].mxu0
        %v2809 = vadd.f32 %v2509, %v2808
        %v2810 = vpop.f32.mrb[0].mxu0
        %v2811 = vadd.f32 %v2505, %v2810
        %v2812 = vpop.f32.mrb[0].mxu0
        %v2813 = vadd.f32 %v2509, %v2812
        %2814 = vmatprep.mubr.bf16.mxu0 %v2459
        %2815 = vmatmul.mubr.bf16.gmra.mrb[0].mxu0 %v2458
        %v2816 = vpop.f32.mrb[0].mxu0
        %v2817 = vadd.f32 %v2505, %v2816
        %v2818 = vpop.f32.mrb[0].mxu0
        %v2819 = vadd.f32 %v2509, %v2818
        %v2820 = vpop.f32.mrb[0].mxu0
        %v2821 = vadd.f32 %v2505, %v2820
        %v2822 = vpop.f32.mrb[0].mxu0
        %v2823 = vadd.f32 %v2509, %v2822
        %2824 = vmatprep.mubr.bf16.mxu0 %v2461
        %2825 = vmatmul.mubr.bf16.gmra.mrb[0].mxu0 %v2460
        %v2826 = vpop.f32.mrb[0].mxu0
        %v2827 = vadd.f32 %v2505, %v2826
        %v2828 = vpop.f32.mrb[0].mxu0
        %v2829 = vadd.f32 %v2509, %v2828
        %v2830 = vpop.f32.mrb[0].mxu0
        %v2831 = vadd.f32 %v2505, %v2830
        %v2832 = vpop.f32.mrb[0].mxu0
        %v2833 = vadd.f32 %v2509, %v2832
        %2834 = vmatprep.mubr.bf16.mxu0 %v2463
        %2835 = vmatmul.mubr.bf16.gmra.mrb[0].mxu0 %v2462
        %v2836 = vpop.f32.mrb[0].mxu0
        %v2837 = vadd.f32 %v2505, %v2836
        %v2838 = vpop.f32.mrb[0].mxu0
        %v2839 = vadd.f32 %v2509, %v2838
        %v2840 = vpop.f32.mrb[0].mxu0
        %v2841 = vadd.f32 %v2505, %v2840
        %v2842 = vpop.f32.mrb[0].mxu0
        %v2843 = vadd.f32 %v2509, %v2842
        %2844 = vmatprep.mubr.bf16.mxu0 %v2465
        %2845 = vmatmul.mubr.bf16.gmra.mrb[0].mxu0 %v2464
        %v2846 = vpop.f32.mrb[0].mxu0
        %v2847 = vadd.f32 %v2505, %v2846
        %v2848 = vpop.f32.mrb[0].mxu0
        %v2849 = vadd.f32 %v2509, %v2848
        %v2850 = vpop.f32.mrb[0].mxu0
        %v2851 = vadd.f32 %v2505, %v2850
        %v2852 = vpop.f32.mrb[0].mxu0
        %v2853 = vadd.f32 %v2509, %v2852
        %2854 = vmatprep.mubr.bf16.mxu0 %v2467
        %2855 = vmatmul.mubr.bf16.gmra.mrb[0].mxu0 %v2466
        %v2856 = vpop.f32.mrb[0].mxu0
        %v2857 = vadd.f32 %v2505, %v2856
        %v2858 = vpop.f32.mrb[0].mxu0
        %v2859 = vadd.f32 %v2509, %v2858
        %v2860 = vpop.f32.mrb[0].mxu0
        %v2861 = vadd.f32 %v2505, %v2860
        %v2862 = vpop.f32.mrb[0].mxu0
        %v2863 = vadd.f32 %v2509, %v2862
        %2864 = vdwg.mxu0
        %v2865 = vmul.f32 %v2707, 0.088388346
        %v2866 = vmul.f32 %v2711, 0.088388346
        %v2867 = vmul.f32 %v2717, 0.088388346
        %v2868 = vmul.f32 %v2721, 0.088388346
        %v2869 = vmul.f32 %v2727, 0.088388346
        %v2870 = vmul.f32 %v2731, 0.088388346
        %v2871 = vmul.f32 %v2737, 0.088388346
        %v2872 = vmul.f32 %v2741, 0.088388346
        %v2873 = vmul.f32 %v2747, 0.088388346
        %v2874 = vmul.f32 %v2751, 0.088388346
        %v2875 = vmul.f32 %v2757, 0.088388346
        %v2876 = vmul.f32 %v2761, 0.088388346
        %v2877 = vmul.f32 %v2767, 0.088388346
        %v2878 = vmul.f32 %v2771, 0.088388346
        %v2879 = vmul.f32 %v2777, 0.088388346
        %v2880 = vmul.f32 %v2781, 0.088388346
        %v2881 = vmul.f32 %v2787, 0.088388346
        %v2882 = vmul.f32 %v2791, 0.088388346
        %v2883 = vmul.f32 %v2797, 0.088388346
        %v2884 = vmul.f32 %v2801, 0.088388346
        %v2885 = vmul.f32 %v2807, 0.088388346
        %v2886 = vmul.f32 %v2811, 0.088388346
        %v2887 = vmul.f32 %v2817, 0.088388346
        %v2888 = vmul.f32 %v2821, 0.088388346
        %v2889 = vmul.f32 %v2827, 0.088388346
        %v2890 = vmul.f32 %v2831, 0.088388346
        %v2891 = vmul.f32 %v2837, 0.088388346
        %v2892 = vmul.f32 %v2841, 0.088388346
        %v2893 = vmul.f32 %v2847, 0.088388346
        %v2894 = vmul.f32 %v2851, 0.088388346
        %v2895 = vmul.f32 %v2857, 0.088388346
        %v2896 = vmul.f32 %v2861, 0.088388346
        %v2897 = vpack.c.bf16 %v2866, %v2865
        %v2898 = vpack.c.bf16 %v2868, %v2867
        %v2899 = vpack.c.bf16 %v2870, %v2869
        %v2900 = vpack.c.bf16 %v2872, %v2871
        %v2901 = vpack.c.bf16 %v2874, %v2873
        %v2902 = vpack.c.bf16 %v2876, %v2875
        %v2903 = vpack.c.bf16 %v2878, %v2877
        %v2904 = vpack.c.bf16 %v2880, %v2879
        %v2905 = vpack.c.bf16 %v2882, %v2881
        %v2906 = vpack.c.bf16 %v2884, %v2883
        %v2907 = vpack.c.bf16 %v2886, %v2885
        %v2908 = vpack.c.bf16 %v2888, %v2887
        %v2909 = vpack.c.bf16 %v2890, %v2889
        %v2910 = vpack.c.bf16 %v2892, %v2891
        %v2911 = vpack.c.bf16 %v2894, %v2893
        %v2912 = vpack.c.bf16 %v2896, %v2895
        %2913 = vmatprep.subr.bf16.mxu0 0
        %2914 = vmatpush1.bf16.xpose.msra.mxu0 %v1390
        %2915 = vmatprep.subr.bf16.mxu0 0
        %2916 = vmatpush1.bf16.xpose.msra.mxu0 %v1392
        %2917 = vmatprep.subr.bf16.mxu0 0
        %2918 = vmatpush1.bf16.xpose.msra.mxu0 %v1394
        %2919 = vmatprep.subr.bf16.mxu0 0
        %2920 = vmatpush1.bf16.xpose.msra.mxu0 %v1396
        %2921 = vmatprep.subr.bf16.mxu0 0
        %2922 = vmatpush1.bf16.xpose.msra.mxu0 %v1398
        %2923 = vmatprep.subr.bf16.mxu0 0
        %2924 = vmatpush1.bf16.xpose.msra.mxu0 %v1400
        %2925 = vmatprep.subr.bf16.mxu0 0
        %2926 = vmatpush1.bf16.xpose.msra.mxu0 %v1402
        %2927 = vmatprep.subr.bf16.mxu0 0
        %2928 = vmatpush1.bf16.xpose.msra.mxu0 %v1404
        %2929 = vmatprep.subr.bf16.mxu0 0
        %2930 = vmatpush1.bf16.xpose.msra.mxu0 0
        %2931 = vmatprep.subr.bf16.mxu0 0
        %2932 = vmatpush1.bf16.xpose.msra.mxu0 0
        %2933 = vmatprep.subr.bf16.mxu0 0
        %2934 = vmatpush1.bf16.xpose.msra.mxu0 0
        %2935 = vmatprep.subr.bf16.mxu0 0
        %2936 = vmatpush1.bf16.xpose.msra.mxu0 0
        %2937 = vmatprep.subr.bf16.mxu0 0
        %2938 = vmatpush1.bf16.xpose.msra.mxu0 0
        %2939 = vmatprep.subr.bf16.mxu0 0
        %2940 = vmatpush1.bf16.xpose.msra.mxu0 0
        %2941 = vmatprep.subr.bf16.mxu0 0
        %2942 = vmatpush1.bf16.xpose.msra.mxu0 0
        %2943 = vmatprep.subr.bf16.mxu0 0
        %2944 = vmatpush1.bf16.xpose.msra.mxu0 0
        %2945 = vmatprep.mubr.bf16.mxu0 0
        %2946 = vmatmul.mubr.bf16.gmra.mrb[0].mxu0 %v2897
        %v2947 = vpop.f32.mrb[0].mxu0
        %v2948 = vadd.f32 0.0, %v2947
        %v2949 = vpop.f32.mrb[0].mxu0
        %v2950 = vpop.f32.mrb[0].mxu0
        %v2951 = vadd.f32 0.0, %v2950
        %v2952 = vpop.f32.mrb[0].mxu0
        %2953 = vmatprep.mubr.bf16.mxu0 0
        %2954 = vmatmul.mubr.bf16.gmra.mrb[0].mxu0 %v2898
        %v2955 = vpop.f32.mrb[0].mxu0
        %v2956 = vadd.f32 0.0, %v2955
        %v2957 = vpop.f32.mrb[0].mxu0
        %v2958 = vpop.f32.mrb[0].mxu0
        %v2959 = vadd.f32 0.0, %v2958
        %v2960 = vpop.f32.mrb[0].mxu0
        %2961 = vmatprep.mubr.bf16.mxu0 0
        %2962 = vmatmul.mubr.bf16.gmra.mrb[0].mxu0 %v2899
        %v2963 = vpop.f32.mrb[0].mxu0
        %v2964 = vadd.f32 0.0, %v2963
        %v2965 = vpop.f32.mrb[0].mxu0
        %v2966 = vpop.f32.mrb[0].mxu0
        %v2967 = vadd.f32 0.0, %v2966
        %v2968 = vpop.f32.mrb[0].mxu0
        %2969 = vmatprep.mubr.bf16.mxu0 0
        %2970 = vmatmul.mubr.bf16.gmra.mrb[0].mxu0 %v2900
        %v2971 = vpop.f32.mrb[0].mxu0
        %v2972 = vadd.f32 0.0, %v2971
        %v2973 = vpop.f32.mrb[0].mxu0
        %v2974 = vpop.f32.mrb[0].mxu0
        %v2975 = vadd.f32 0.0, %v2974
        %v2976 = vpop.f32.mrb[0].mxu0
        %2977 = vmatprep.mubr.bf16.mxu0 0
        %2978 = vmatmul.mubr.bf16.gmra.mrb[0].mxu0 %v2901
        %v2979 = vpop.f32.mrb[0].mxu0
        %v2980 = vadd.f32 0.0, %v2979
        %v2981 = vpop.f32.mrb[0].mxu0
        %v2982 = vpop.f32.mrb[0].mxu0
        %v2983 = vadd.f32 0.0, %v2982
        %v2984 = vpop.f32.mrb[0].mxu0
        %2985 = vmatprep.mubr.bf16.mxu0 0
        %2986 = vmatmul.mubr.bf16.gmra.mrb[0].mxu0 %v2902
        %v2987 = vpop.f32.mrb[0].mxu0
        %v2988 = vadd.f32 0.0, %v2987
        %v2989 = vpop.f32.mrb[0].mxu0
        %v2990 = vpop.f32.mrb[0].mxu0
        %v2991 = vadd.f32 0.0, %v2990
        %v2992 = vpop.f32.mrb[0].mxu0
        %2993 = vmatprep.mubr.bf16.mxu0 0
        %2994 = vmatmul.mubr.bf16.gmra.mrb[0].mxu0 %v2903
        %v2995 = vpop.f32.mrb[0].mxu0
        %v2996 = vadd.f32 0.0, %v2995
        %v2997 = vpop.f32.mrb[0].mxu0
        %v2998 = vpop.f32.mrb[0].mxu0
        %v2999 = vadd.f32 0.0, %v2998
        %v3000 = vpop.f32.mrb[0].mxu0
        %3001 = vmatprep.mubr.bf16.mxu0 0
        %3002 = vmatmul.mubr.bf16.gmra.mrb[0].mxu0 %v2904
        %v3003 = vpop.f32.mrb[0].mxu0
        %v3004 = vadd.f32 0.0, %v3003
        %v3005 = vpop.f32.mrb[0].mxu0
        %v3006 = vpop.f32.mrb[0].mxu0
        %v3007 = vadd.f32 0.0, %v3006
        %v3008 = vpop.f32.mrb[0].mxu0
        %3009 = vmatprep.mubr.bf16.mxu0 0
        %3010 = vmatmul.mubr.bf16.gmra.mrb[0].mxu0 %v2905
        %v3011 = vpop.f32.mrb[0].mxu0
        %v3012 = vadd.f32 0.0, %v3011
        %v3013 = vpop.f32.mrb[0].mxu0
        %v3014 = vpop.f32.mrb[0].mxu0
        %v3015 = vadd.f32 0.0, %v3014
        %v3016 = vpop.f32.mrb[0].mxu0
        %3017 = vmatprep.mubr.bf16.mxu0 0
        %3018 = vmatmul.mubr.bf16.gmra.mrb[0].mxu0 %v2906
        %v3019 = vpop.f32.mrb[0].mxu0
        %v3020 = vadd.f32 0.0, %v3019
        %v3021 = vpop.f32.mrb[0].mxu0
        %v3022 = vpop.f32.mrb[0].mxu0
        %v3023 = vadd.f32 0.0, %v3022
        %v3024 = vpop.f32.mrb[0].mxu0
        %3025 = vmatprep.mubr.bf16.mxu0 0
        %3026 = vmatmul.mubr.bf16.gmra.mrb[0].mxu0 %v2907
        %v3027 = vpop.f32.mrb[0].mxu0
        %v3028 = vadd.f32 0.0, %v3027
        %v3029 = vpop.f32.mrb[0].mxu0
        %v3030 = vpop.f32.mrb[0].mxu0
        %v3031 = vadd.f32 0.0, %v3030
        %v3032 = vpop.f32.mrb[0].mxu0
        %3033 = vmatprep.mubr.bf16.mxu0 0
        %3034 = vmatmul.mubr.bf16.gmra.mrb[0].mxu0 %v2908
        %v3035 = vpop.f32.mrb[0].mxu0
        %v3036 = vadd.f32 0.0, %v3035
        %v3037 = vpop.f32.mrb[0].mxu0
        %v3038 = vpop.f32.mrb[0].mxu0
        %v3039 = vadd.f32 0.0, %v3038
        %v3040 = vpop.f32.mrb[0].mxu0
        %3041 = vmatprep.mubr.bf16.mxu0 0
        %3042 = vmatmul.mubr.bf16.gmra.mrb[0].mxu0 %v2909
        %v3043 = vpop.f32.mrb[0].mxu0
        %v3044 = vadd.f32 0.0, %v3043
        %v3045 = vpop.f32.mrb[0].mxu0
        %v3046 = vpop.f32.mrb[0].mxu0
        %v3047 = vadd.f32 0.0, %v3046
        %v3048 = vpop.f32.mrb[0].mxu0
        %3049 = vmatprep.mubr.bf16.mxu0 0
        %3050 = vmatmul.mubr.bf16.gmra.mrb[0].mxu0 %v2910
        %v3051 = vpop.f32.mrb[0].mxu0
        %v3052 = vadd.f32 0.0, %v3051
        %v3053 = vpop.f32.mrb[0].mxu0
        %v3054 = vpop.f32.mrb[0].mxu0
        %v3055 = vadd.f32 0.0, %v3054
        %v3056 = vpop.f32.mrb[0].mxu0
        %3057 = vmatprep.mubr.bf16.mxu0 0
        %3058 = vmatmul.mubr.bf16.gmra.mrb[0].mxu0 %v2911
        %v3059 = vpop.f32.mrb[0].mxu0
        %v3060 = vadd.f32 0.0, %v3059
        %v3061 = vpop.f32.mrb[0].mxu0
        %v3062 = vpop.f32.mrb[0].mxu0
        %v3063 = vadd.f32 0.0, %v3062
        %v3064 = vpop.f32.mrb[0].mxu0
        %3065 = vmatprep.mubr.bf16.mxu0 0
        %3066 = vmatmul.mubr.bf16.gmra.mrb[0].mxu0 %v2912
        %v3067 = vpop.f32.mrb[0].mxu0
        %v3068 = vadd.f32 0.0, %v3067
        %v3069 = vpop.f32.mrb[0].mxu0
        %v3070 = vpop.f32.mrb[0].mxu0
        %v3071 = vadd.f32 0.0, %v3070
        %v3072 = vpop.f32.mrb[0].mxu0
        %3073 = vdwg.mxu0
        %3074 = vmax.xlane.f32.xlu0 %v2948
        %v3075 = vpop.xlane.xlu0 %3074
        %3076 = vmax.xlane.f32.xlu0 %v2951
        %v3077 = vpop.xlane.xlu0 %3076
        %3078 = vmax.xlane.f32.xlu0 %v2956
        %v3079 = vpop.xlane.xlu0 %3078
        %3080 = vmax.xlane.f32.xlu0 %v2959
        %v3081 = vpop.xlane.xlu0 %3080
        %3082 = vmax.xlane.f32.xlu0 %v2964
        %v3083 = vpop.xlane.xlu0 %3082
        %3084 = vmax.xlane.f32.xlu0 %v2967
        %v3085 = vpop.xlane.xlu0 %3084
        %3086 = vmax.xlane.f32.xlu0 %v2972
        %v3087 = vpop.xlane.xlu0 %3086
        %3088 = vmax.xlane.f32.xlu0 %v2975
        %v3089 = vpop.xlane.xlu0 %3088
        %3090 = vmax.xlane.f32.xlu0 %v2980
        %v3091 = vpop.xlane.xlu0 %3090
        %3092 = vmax.xlane.f32.xlu0 %v2983
        %v3093 = vpop.xlane.xlu0 %3092
        %3094 = vmax.xlane.f32.xlu0 %v2988
        %v3095 = vpop.xlane.xlu0 %3094
        %3096 = vmax.xlane.f32.xlu0 %v2991
        %v3097 = vpop.xlane.xlu0 %3096
        %3098 = vmax.xlane.f32.xlu0 %v2996
        %v3099 = vpop.xlane.xlu0 %3098
        %3100 = vmax.xlane.f32.xlu0 %v2999
        %v3101 = vpop.xlane.xlu0 %3100
        %3102 = vmax.xlane.f32.xlu0 %v3004
        %v3103 = vpop.xlane.xlu0 %3102
        %3104 = vmax.xlane.f32.xlu0 %v3007
        %v3105 = vpop.xlane.xlu0 %3104
        %3106 = vmax.xlane.f32.xlu0 %v3012
        %v3107 = vpop.xlane.xlu0 %3106
        %3108 = vmax.xlane.f32.xlu0 %v3015
        %v3109 = vpop.xlane.xlu0 %3108
        %3110 = vmax.xlane.f32.xlu0 %v3020
        %v3111 = vpop.xlane.xlu0 %3110
        %3112 = vmax.xlane.f32.xlu0 %v3023
        %v3113 = vpop.xlane.xlu0 %3112
        %3114 = vmax.xlane.f32.xlu0 %v3028
        %v3115 = vpop.xlane.xlu0 %3114
        %3116 = vmax.xlane.f32.xlu0 %v3031
        %v3117 = vpop.xlane.xlu0 %3116
        %3118 = vmax.xlane.f32.xlu0 %v3036
        %v3119 = vpop.xlane.xlu0 %3118
        %3120 = vmax.xlane.f32.xlu0 %v3039
        %v3121 = vpop.xlane.xlu0 %3120
        %3122 = vmax.xlane.f32.xlu0 %v3044
        %v3123 = vpop.xlane.xlu0 %3122
        %3124 = vmax.xlane.f32.xlu0 %v3047
        %v3125 = vpop.xlane.xlu0 %3124
        %3126 = vmax.xlane.f32.xlu0 %v3052
        %v3127 = vpop.xlane.xlu0 %3126
        %3128 = vmax.xlane.f32.xlu0 %v3055
        %v3129 = vpop.xlane.xlu0 %3128
        %3130 = vmax.xlane.f32.xlu0 %v3060
        %v3131 = vpop.xlane.xlu0 %3130
        %3132 = vmax.xlane.f32.xlu0 %v3063
        %v3133 = vpop.xlane.xlu0 %3132
        %3134 = vmax.xlane.f32.xlu0 %v3068
        %v3135 = vpop.xlane.xlu0 %3134
        %3136 = vmax.xlane.f32.xlu0 %v3071
        %v3137 = vpop.xlane.xlu0 %3136
        %v3138 = vsub.f32 %v2948, %v3075
        %v3139 = vsub.f32 %v2951, %v3077
        %v3140 = vsub.f32 %v2956, %v3079
        %v3141 = vsub.f32 %v2959, %v3081
        %v3142 = vsub.f32 %v2964, %v3083
        %v3143 = vsub.f32 %v2967, %v3085
        %v3144 = vsub.f32 %v2972, %v3087
        %v3145 = vsub.f32 %v2975, %v3089
        %v3146 = vsub.f32 %v2980, %v3091
        %v3147 = vsub.f32 %v2983, %v3093
        %v3148 = vsub.f32 %v2988, %v3095
        %v3149 = vsub.f32 %v2991, %v3097
        %v3150 = vsub.f32 %v2996, %v3099
        %v3151 = vsub.f32 %v2999, %v3101
        %v3152 = vsub.f32 %v3004, %v3103
        %v3153 = vsub.f32 %v3007, %v3105
        %v3154 = vsub.f32 %v3012, %v3107
        %v3155 = vsub.f32 %v3015, %v3109
        %v3156 = vsub.f32 %v3020, %v3111
        %v3157 = vsub.f32 %v3023, %v3113
        %v3158 = vsub.f32 %v3028, %v3115
        %v3159 = vsub.f32 %v3031, %v3117
        %v3160 = vsub.f32 %v3036, %v3119
        %v3161 = vsub.f32 %v3039, %v3121
        %v3162 = vsub.f32 %v3044, %v3123
        %v3163 = vsub.f32 %v3047, %v3125
        %v3164 = vsub.f32 %v3052, %v3127
        %v3165 = vsub.f32 %v3055, %v3129
        %v3166 = vsub.f32 %v3060, %v3131
        %v3167 = vsub.f32 %v3063, %v3133
        %v3168 = vsub.f32 %v3068, %v3135
        %v3169 = vsub.f32 %v3071, %v3137
        %v3170 = vmul.f32 %v3138, 1.442695
        %v3171 = vpow.pop %v3170
        %v3172 = vmul.f32 %v3139, 1.442695
        %v3173 = vpow.pop %v3172
        %v3174 = vmul.f32 %v3140, 1.442695
        %v3175 = vpow.pop %v3174
        %v3176 = vmul.f32 %v3141, 1.442695
        %v3177 = vpow.pop %v3176
        %v3178 = vmul.f32 %v3142, 1.442695
        %v3179 = vpow.pop %v3178
        %v3180 = vmul.f32 %v3143, 1.442695
        %v3181 = vpow.pop %v3180
        %v3182 = vmul.f32 %v3144, 1.442695
        %v3183 = vpow.pop %v3182
        %v3184 = vmul.f32 %v3145, 1.442695
        %v3185 = vpow.pop %v3184
        %v3186 = vmul.f32 %v3146, 1.442695
        %v3187 = vpow.pop %v3186
        %v3188 = vmul.f32 %v3147, 1.442695
        %v3189 = vpow.pop %v3188
        %v3190 = vmul.f32 %v3148, 1.442695
        %v3191 = vpow.pop %v3190
        %v3192 = vmul.f32 %v3149, 1.442695
        %v3193 = vpow.pop %v3192
        %v3194 = vmul.f32 %v3150, 1.442695
        %v3195 = vpow.pop %v3194
        %v3196 = vmul.f32 %v3151, 1.442695
        %v3197 = vpow.pop %v3196
        %v3198 = vmul.f32 %v3152, 1.442695
        %v3199 = vpow.pop %v3198
        %v3200 = vmul.f32 %v3153, 1.442695
        %v3201 = vpow.pop %v3200
        %v3202 = vmul.f32 %v3154, 1.442695
        %v3203 = vpow.pop %v3202
        %v3204 = vmul.f32 %v3155, 1.442695
        %v3205 = vpow.pop %v3204
        %v3206 = vmul.f32 %v3156, 1.442695
        %v3207 = vpow.pop %v3206
        %v3208 = vmul.f32 %v3157, 1.442695
        %v3209 = vpow.pop %v3208
        %v3210 = vmul.f32 %v3158, 1.442695
        %v3211 = vpow.pop %v3210
        %v3212 = vmul.f32 %v3159, 1.442695
        %v3213 = vpow.pop %v3212
        %v3214 = vmul.f32 %v3160, 1.442695
        %v3215 = vpow.pop %v3214
        %v3216 = vmul.f32 %v3161, 1.442695
        %v3217 = vpow.pop %v3216
        %v3218 = vmul.f32 %v3162, 1.442695
        %v3219 = vpow.pop %v3218
        %v3220 = vmul.f32 %v3163, 1.442695
        %v3221 = vpow.pop %v3220
        %v3222 = vmul.f32 %v3164, 1.442695
        %v3223 = vpow.pop %v3222
        %v3224 = vmul.f32 %v3165, 1.442695
        %v3225 = vpow.pop %v3224
        %v3226 = vmul.f32 %v3166, 1.442695
        %v3227 = vpow.pop %v3226
        %v3228 = vmul.f32 %v3167, 1.442695
        %v3229 = vpow.pop %v3228
        %v3230 = vmul.f32 %v3168, 1.442695
        %v3231 = vpow.pop %v3230
        %v3232 = vmul.f32 %v3169, 1.442695
        %v3233 = vpow.pop %v3232
        %3234 = vadd.xlane.f32.xlu0 %v3171
        %v3235 = vpop.xlane.xlu0 %3234
        %3236 = vadd.xlane.f32.xlu0 %v3173
        %v3237 = vpop.xlane.xlu0 %3236
        %3238 = vadd.xlane.f32.xlu0 %v3175
        %v3239 = vpop.xlane.xlu0 %3238
        %3240 = vadd.xlane.f32.xlu0 %v3177
        %v3241 = vpop.xlane.xlu0 %3240
        %3242 = vadd.xlane.f32.xlu0 %v3179
        %v3243 = vpop.xlane.xlu0 %3242
        %3244 = vadd.xlane.f32.xlu0 %v3181
        %v3245 = vpop.xlane.xlu0 %3244
        %3246 = vadd.xlane.f32.xlu0 %v3183
        %v3247 = vpop.xlane.xlu0 %3246
        %3248 = vadd.xlane.f32.xlu0 %v3185
        %v3249 = vpop.xlane.xlu0 %3248
        %3250 = vadd.xlane.f32.xlu0 %v3187
        %v3251 = vpop.xlane.xlu0 %3250
        %3252 = vadd.xlane.f32.xlu0 %v3189
        %v3253 = vpop.xlane.xlu0 %3252
        %3254 = vadd.xlane.f32.xlu0 %v3191
        %v3255 = vpop.xlane.xlu0 %3254
        %3256 = vadd.xlane.f32.xlu0 %v3193
        %v3257 = vpop.xlane.xlu0 %3256
        %3258 = vadd.xlane.f32.xlu0 %v3195
        %v3259 = vpop.xlane.xlu0 %3258
        %3260 = vadd.xlane.f32.xlu0 %v3197
        %v3261 = vpop.xlane.xlu0 %3260
        %3262 = vadd.xlane.f32.xlu0 %v3199
        %v3263 = vpop.xlane.xlu0 %3262
        %3264 = vadd.xlane.f32.xlu0 %v3201
        %v3265 = vpop.xlane.xlu0 %3264
        %3266 = vadd.xlane.f32.xlu0 %v3203
        %v3267 = vpop.xlane.xlu0 %3266
        %3268 = vadd.xlane.f32.xlu0 %v3205
        %v3269 = vpop.xlane.xlu0 %3268
        %3270 = vadd.xlane.f32.xlu0 %v3207
        %v3271 = vpop.xlane.xlu0 %3270
        %3272 = vadd.xlane.f32.xlu0 %v3209
        %v3273 = vpop.xlane.xlu0 %3272
        %3274 = vadd.xlane.f32.xlu0 %v3211
        %v3275 = vpop.xlane.xlu0 %3274
        %3276 = vadd.xlane.f32.xlu0 %v3213
        %v3277 = vpop.xlane.xlu0 %3276
        %3278 = vadd.xlane.f32.xlu0 %v3215
        %v3279 = vpop.xlane.xlu0 %3278
        %3280 = vadd.xlane.f32.xlu0 %v3217
        %v3281 = vpop.xlane.xlu0 %3280
        %3282 = vadd.xlane.f32.xlu0 %v3219
        %v3283 = vpop.xlane.xlu0 %3282
        %3284 = vadd.xlane.f32.xlu0 %v3221
        %v3285 = vpop.xlane.xlu0 %3284
        %3286 = vadd.xlane.f32.xlu0 %v3223
        %v3287 = vpop.xlane.xlu0 %3286
        %3288 = vadd.xlane.f32.xlu0 %v3225
        %v3289 = vpop.xlane.xlu0 %3288
        %3290 = vadd.xlane.f32.xlu0 %v3227
        %v3291 = vpop.xlane.xlu0 %3290
        %3292 = vadd.xlane.f32.xlu0 %v3229
        %v3293 = vpop.xlane.xlu0 %3292
        %3294 = vadd.xlane.f32.xlu0 %v3231
        %v3295 = vpop.xlane.xlu0 %3294
        %3296 = vadd.xlane.f32.xlu0 %v3233
        %v3297 = vpop.xlane.xlu0 %3296
        %v3298 = vrcp.pop %v3235
        %v3299 = vrcp.pop %v3237
        %v3300 = vrcp.pop %v3239
        %v3301 = vrcp.pop %v3241
        %v3302 = vrcp.pop %v3243
        %v3303 = vrcp.pop %v3245
        %v3304 = vrcp.pop %v3247
        %v3305 = vrcp.pop %v3249
        %v3306 = vrcp.pop %v3251
        %v3307 = vrcp.pop %v3253
        %v3308 = vrcp.pop %v3255
        %v3309 = vrcp.pop %v3257
        %v3310 = vrcp.pop %v3259
        %v3311 = vrcp.pop %v3261
        %v3312 = vrcp.pop %v3263
        %v3313 = vrcp.pop %v3265
        %v3314 = vrcp.pop %v3267
        %v3315 = vrcp.pop %v3269
        %v3316 = vrcp.pop %v3271
        %v3317 = vrcp.pop %v3273
        %v3318 = vrcp.pop %v3275
        %v3319 = vrcp.pop %v3277
        %v3320 = vrcp.pop %v3279
        %v3321 = vrcp.pop %v3281
        %v3322 = vrcp.pop %v3283
        %v3323 = vrcp.pop %v3285
        %v3324 = vrcp.pop %v3287
        %v3325 = vrcp.pop %v3289
        %v3326 = vrcp.pop %v3291
        %v3327 = vrcp.pop %v3293
        %v3328 = vrcp.pop %v3295
        %v3329 = vrcp.pop %v3297
        %v3330 = vmul.f32 %v3171, %v3298
        %v3331 = vmul.f32 %v3173, %v3299
        %v3332 = vmul.f32 %v3175, %v3300
        %v3333 = vmul.f32 %v3177, %v3301
        %v3334 = vmul.f32 %v3179, %v3302
        %v3335 = vmul.f32 %v3181, %v3303
        %v3336 = vmul.f32 %v3183, %v3304
        %v3337 = vmul.f32 %v3185, %v3305
        %v3338 = vmul.f32 %v3187, %v3306
        %v3339 = vmul.f32 %v3189, %v3307
        %v3340 = vmul.f32 %v3191, %v3308
        %v3341 = vmul.f32 %v3193, %v3309
        %v3342 = vmul.f32 %v3195, %v3310
        %v3343 = vmul.f32 %v3197, %v3311
        %v3344 = vmul.f32 %v3199, %v3312
        %v3345 = vmul.f32 %v3201, %v3313
        %v3346 = vmul.f32 %v3203, %v3314
        %v3347 = vmul.f32 %v3205, %v3315
        %v3348 = vmul.f32 %v3207, %v3316
        %v3349 = vmul.f32 %v3209, %v3317
        %v3350 = vmul.f32 %v3211, %v3318
        %v3351 = vmul.f32 %v3213, %v3319
        %v3352 = vmul.f32 %v3215, %v3320
        %v3353 = vmul.f32 %v3217, %v3321
        %v3354 = vmul.f32 %v3219, %v3322
        %v3355 = vmul.f32 %v3221, %v3323
        %v3356 = vmul.f32 %v3223, %v3324
        %v3357 = vmul.f32 %v3225, %v3325
        %v3358 = vmul.f32 %v3227, %v3326
        %v3359 = vmul.f32 %v3229, %v3327
        %v3360 = vmul.f32 %v3231, %v3328
        %v3361 = vmul.f32 %v3233, %v3329
        %v3362 = vpack.c.bf16 %v3331, %v3330
        %v3363 = vpack.c.bf16 %v3333, %v3332
        %v3364 = vpack.c.bf16 %v3335, %v3334
        %v3365 = vpack.c.bf16 %v3337, %v3336
        %v3366 = vpack.c.bf16 %v3339, %v3338
        %v3367 = vpack.c.bf16 %v3341, %v3340
        %v3368 = vpack.c.bf16 %v3343, %v3342
        %v3369 = vpack.c.bf16 %v3345, %v3344
        %v3370 = vpack.c.bf16 %v3347, %v3346
        %v3371 = vpack.c.bf16 %v3349, %v3348
        %v3372 = vpack.c.bf16 %v3351, %v3350
        %v3373 = vpack.c.bf16 %v3353, %v3352
        %v3374 = vpack.c.bf16 %v3355, %v3354
        %v3375 = vpack.c.bf16 %v3357, %v3356
        %v3376 = vpack.c.bf16 %v3359, %v3358
        %v3377 = vpack.c.bf16 %v3361, %v3360
        %3378 = vmatprep.subr.bf16.mxu0 0
        %3379 = vmatpush1.bf16.msra.mxu0 %v1627
        %3380 = vmatprep.subr.bf16.mxu0 0
        %3381 = vmatpush1.bf16.msra.mxu0 %v1629
        %3382 = vmatprep.subr.bf16.mxu0 0
        %3383 = vmatpush1.bf16.msra.mxu0 %v1631
        %3384 = vmatprep.subr.bf16.mxu0 0
        %3385 = vmatpush1.bf16.msra.mxu0 %v1633
        %3386 = vmatprep.subr.bf16.mxu0 0
        %3387 = vmatpush1.bf16.msra.mxu0 %v1635
        %3388 = vmatprep.subr.bf16.mxu0 0
        %3389 = vmatpush1.bf16.msra.mxu0 %v1637
        %3390 = vmatprep.subr.bf16.mxu0 0
        %3391 = vmatpush1.bf16.msra.mxu0 %v1639
        %3392 = vmatprep.subr.bf16.mxu0 0
        %3393 = vmatpush1.bf16.msra.mxu0 %v1641
        %3394 = vmatprep.subr.bf16.mxu0 0
        %3395 = vmatpush1.bf16.msra.mxu0 0
        %3396 = vmatprep.subr.bf16.mxu0 0
        %3397 = vmatpush1.bf16.msra.mxu0 0
        %3398 = vmatprep.subr.bf16.mxu0 0
        %3399 = vmatpush1.bf16.msra.mxu0 0
        %3400 = vmatprep.subr.bf16.mxu0 0
        %3401 = vmatpush1.bf16.msra.mxu0 0
        %3402 = vmatprep.subr.bf16.mxu0 0
        %3403 = vmatpush1.bf16.msra.mxu0 0
        %3404 = vmatprep.subr.bf16.mxu0 0
        %3405 = vmatpush1.bf16.msra.mxu0 0
        %3406 = vmatprep.subr.bf16.mxu0 0
        %3407 = vmatpush1.bf16.msra.mxu0 0
        %3408 = vmatprep.subr.bf16.mxu0 0
        %3409 = vmatpush1.bf16.msra.mxu0 0
        %3410 = vmatprep.mubr.bf16.mxu0 0
        %3411 = vmatmul.mubr.bf16.gmra.mrb[0].mxu0 %v3362
        %v3412 = vpop.f32.mrb[0].mxu0
        %v3413 = vadd.f32 0.0, %v3412
        %v3414 = vpop.f32.mrb[0].mxu0
        %v3415 = vpop.f32.mrb[0].mxu0
        %v3416 = vadd.f32 0.0, %v3415
        %v3417 = vpop.f32.mrb[0].mxu0
        %3418 = vmatprep.mubr.bf16.mxu0 0
        %3419 = vmatmul.mubr.bf16.gmra.mrb[0].mxu0 %v3363
        %v3420 = vpop.f32.mrb[0].mxu0
        %v3421 = vadd.f32 0.0, %v3420
        %v3422 = vpop.f32.mrb[0].mxu0
        %v3423 = vpop.f32.mrb[0].mxu0
        %v3424 = vadd.f32 0.0, %v3423
        %v3425 = vpop.f32.mrb[0].mxu0
        %3426 = vmatprep.mubr.bf16.mxu0 0
        %3427 = vmatmul.mubr.bf16.gmra.mrb[0].mxu0 %v3364
        %v3428 = vpop.f32.mrb[0].mxu0
        %v3429 = vadd.f32 0.0, %v3428
        %v3430 = vpop.f32.mrb[0].mxu0
        %v3431 = vpop.f32.mrb[0].mxu0
        %v3432 = vadd.f32 0.0, %v3431
        %v3433 = vpop.f32.mrb[0].mxu0
        %3434 = vmatprep.mubr.bf16.mxu0 0
        %3435 = vmatmul.mubr.bf16.gmra.mrb[0].mxu0 %v3365
        %v3436 = vpop.f32.mrb[0].mxu0
        %v3437 = vadd.f32 0.0, %v3436
        %v3438 = vpop.f32.mrb[0].mxu0
        %v3439 = vpop.f32.mrb[0].mxu0
        %v3440 = vadd.f32 0.0, %v3439
        %v3441 = vpop.f32.mrb[0].mxu0
        %3442 = vmatprep.mubr.bf16.mxu0 0
        %3443 = vmatmul.mubr.bf16.gmra.mrb[0].mxu0 %v3366
        %v3444 = vpop.f32.mrb[0].mxu0
        %v3445 = vadd.f32 0.0, %v3444
        %v3446 = vpop.f32.mrb[0].mxu0
        %v3447 = vpop.f32.mrb[0].mxu0
        %v3448 = vadd.f32 0.0, %v3447
        %v3449 = vpop.f32.mrb[0].mxu0
        %3450 = vmatprep.mubr.bf16.mxu0 0
        %3451 = vmatmul.mubr.bf16.gmra.mrb[0].mxu0 %v3367
        %v3452 = vpop.f32.mrb[0].mxu0
        %v3453 = vadd.f32 0.0, %v3452
        %v3454 = vpop.f32.mrb[0].mxu0
        %v3455 = vpop.f32.mrb[0].mxu0
        %v3456 = vadd.f32 0.0, %v3455
        %v3457 = vpop.f32.mrb[0].mxu0
        %3458 = vmatprep.mubr.bf16.mxu0 0
        %3459 = vmatmul.mubr.bf16.gmra.mrb[0].mxu0 %v3368
        %v3460 = vpop.f32.mrb[0].mxu0
        %v3461 = vadd.f32 0.0, %v3460
        %v3462 = vpop.f32.mrb[0].mxu0
        %v3463 = vpop.f32.mrb[0].mxu0
        %v3464 = vadd.f32 0.0, %v3463
        %v3465 = vpop.f32.mrb[0].mxu0
        %3466 = vmatprep.mubr.bf16.mxu0 0
        %3467 = vmatmul.mubr.bf16.gmra.mrb[0].mxu0 %v3369
        %v3468 = vpop.f32.mrb[0].mxu0
        %v3469 = vadd.f32 0.0, %v3468
        %v3470 = vpop.f32.mrb[0].mxu0
        %v3471 = vpop.f32.mrb[0].mxu0
        %v3472 = vadd.f32 0.0, %v3471
        %v3473 = vpop.f32.mrb[0].mxu0
        %3474 = vmatprep.mubr.bf16.mxu0 0
        %3475 = vmatmul.mubr.bf16.gmra.mrb[0].mxu0 %v3370
        %v3476 = vpop.f32.mrb[0].mxu0
        %v3477 = vadd.f32 0.0, %v3476
        %v3478 = vpop.f32.mrb[0].mxu0
        %v3479 = vpop.f32.mrb[0].mxu0
        %v3480 = vadd.f32 0.0, %v3479
        %v3481 = vpop.f32.mrb[0].mxu0
        %3482 = vmatprep.mubr.bf16.mxu0 0
        %3483 = vmatmul.mubr.bf16.gmra.mrb[0].mxu0 %v3371
        %v3484 = vpop.f32.mrb[0].mxu0
        %v3485 = vadd.f32 0.0, %v3484
        %v3486 = vpop.f32.mrb[0].mxu0
        %v3487 = vpop.f32.mrb[0].mxu0
        %v3488 = vadd.f32 0.0, %v3487
        %v3489 = vpop.f32.mrb[0].mxu0
        %3490 = vmatprep.mubr.bf16.mxu0 0
        %3491 = vmatmul.mubr.bf16.gmra.mrb[0].mxu0 %v3372
        %v3492 = vpop.f32.mrb[0].mxu0
        %v3493 = vadd.f32 0.0, %v3492
        %v3494 = vpop.f32.mrb[0].mxu0
        %v3495 = vpop.f32.mrb[0].mxu0
        %v3496 = vadd.f32 0.0, %v3495
        %v3497 = vpop.f32.mrb[0].mxu0
        %3498 = vmatprep.mubr.bf16.mxu0 0
        %3499 = vmatmul.mubr.bf16.gmra.mrb[0].mxu0 %v3373
        %v3500 = vpop.f32.mrb[0].mxu0
        %v3501 = vadd.f32 0.0, %v3500
        %v3502 = vpop.f32.mrb[0].mxu0
        %v3503 = vpop.f32.mrb[0].mxu0
        %v3504 = vadd.f32 0.0, %v3503
        %v3505 = vpop.f32.mrb[0].mxu0
        %3506 = vmatprep.mubr.bf16.mxu0 0
        %3507 = vmatmul.mubr.bf16.gmra.mrb[0].mxu0 %v3374
        %v3508 = vpop.f32.mrb[0].mxu0
        %v3509 = vadd.f32 0.0, %v3508
        %v3510 = vpop.f32.mrb[0].mxu0
        %v3511 = vpop.f32.mrb[0].mxu0
        %v3512 = vadd.f32 0.0, %v3511
        %v3513 = vpop.f32.mrb[0].mxu0
        %3514 = vmatprep.mubr.bf16.mxu0 0
        %3515 = vmatmul.mubr.bf16.gmra.mrb[0].mxu0 %v3375
        %v3516 = vpop.f32.mrb[0].mxu0
        %v3517 = vadd.f32 0.0, %v3516
        %v3518 = vpop.f32.mrb[0].mxu0
        %v3519 = vpop.f32.mrb[0].mxu0
        %v3520 = vadd.f32 0.0, %v3519
        %v3521 = vpop.f32.mrb[0].mxu0
        %3522 = vmatprep.mubr.bf16.mxu0 0
        %3523 = vmatmul.mubr.bf16.gmra.mrb[0].mxu0 %v3376
        %v3524 = vpop.f32.mrb[0].mxu0
        %v3525 = vadd.f32 0.0, %v3524
        %v3526 = vpop.f32.mrb[0].mxu0
        %v3527 = vpop.f32.mrb[0].mxu0
        %v3528 = vadd.f32 0.0, %v3527
        %v3529 = vpop.f32.mrb[0].mxu0
        %3530 = vmatprep.mubr.bf16.mxu0 0
        %3531 = vmatmul.mubr.bf16.gmra.mrb[0].mxu0 %v3377
        %v3532 = vpop.f32.mrb[0].mxu0
        %v3533 = vadd.f32 0.0, %v3532
        %v3534 = vpop.f32.mrb[0].mxu0
        %v3535 = vpop.f32.mrb[0].mxu0
        %v3536 = vadd.f32 0.0, %v3535
        %v3537 = vpop.f32.mrb[0].mxu0
        %3538 = vdwg.mxu0
        %v3539 = vmul.f32 %v2709, 0.088388346
        %v3540 = vmul.f32 %v2713, 0.088388346
        %v3541 = vmul.f32 %v2719, 0.088388346
        %v3542 = vmul.f32 %v2723, 0.088388346
        %v3543 = vmul.f32 %v2729, 0.088388346
        %v3544 = vmul.f32 %v2733, 0.088388346
        %v3545 = vmul.f32 %v2739, 0.088388346
        %v3546 = vmul.f32 %v2743, 0.088388346
        %v3547 = vmul.f32 %v2749, 0.088388346
        %v3548 = vmul.f32 %v2753, 0.088388346
        %v3549 = vmul.f32 %v2759, 0.088388346
        %v3550 = vmul.f32 %v2763, 0.088388346
        %v3551 = vmul.f32 %v2769, 0.088388346
        %v3552 = vmul.f32 %v2773, 0.088388346
        %v3553 = vmul.f32 %v2779, 0.088388346
        %v3554 = vmul.f32 %v2783, 0.088388346
        %v3555 = vmul.f32 %v2789, 0.088388346
        %v3556 = vmul.f32 %v2793, 0.088388346
        %v3557 = vmul.f32 %v2799, 0.088388346
        %v3558 = vmul.f32 %v2803, 0.088388346
        %v3559 = vmul.f32 %v2809, 0.088388346
        %v3560 = vmul.f32 %v2813, 0.088388346
        %v3561 = vmul.f32 %v2819, 0.088388346
        %v3562 = vmul.f32 %v2823, 0.088388346
        %v3563 = vmul.f32 %v2829, 0.088388346
        %v3564 = vmul.f32 %v2833, 0.088388346
        %v3565 = vmul.f32 %v2839, 0.088388346
        %v3566 = vmul.f32 %v2843, 0.088388346
        %v3567 = vmul.f32 %v2849, 0.088388346
        %v3568 = vmul.f32 %v2853, 0.088388346
        %v3569 = vmul.f32 %v2859, 0.088388346
        %v3570 = vmul.f32 %v2863, 0.088388346
        %v3571 = vpack.c.bf16 %v3540, %v3539
        %v3572 = vpack.c.bf16 %v3542, %v3541
        %v3573 = vpack.c.bf16 %v3544, %v3543
        %v3574 = vpack.c.bf16 %v3546, %v3545
        %v3575 = vpack.c.bf16 %v3548, %v3547
        %v3576 = vpack.c.bf16 %v3550, %v3549
        %v3577 = vpack.c.bf16 %v3552, %v3551
        %v3578 = vpack.c.bf16 %v3554, %v3553
        %v3579 = vpack.c.bf16 %v3556, %v3555
        %v3580 = vpack.c.bf16 %v3558, %v3557
        %v3581 = vpack.c.bf16 %v3560, %v3559
        %v3582 = vpack.c.bf16 %v3562, %v3561
        %v3583 = vpack.c.bf16 %v3564, %v3563
        %v3584 = vpack.c.bf16 %v3566, %v3565
        %v3585 = vpack.c.bf16 %v3568, %v3567
        %v3586 = vpack.c.bf16 %v3570, %v3569
        %3587 = vmatprep.subr.bf16.mxu0 0
        %3588 = vmatpush1.bf16.xpose.msra.mxu0 %v1391
        %3589 = vmatprep.subr.bf16.mxu0 0
        %3590 = vmatpush1.bf16.xpose.msra.mxu0 %v1393
        %3591 = vmatprep.subr.bf16.mxu0 0
        %3592 = vmatpush1.bf16.xpose.msra.mxu0 %v1395
        %3593 = vmatprep.subr.bf16.mxu0 0
        %3594 = vmatpush1.bf16.xpose.msra.mxu0 %v1397
        %3595 = vmatprep.subr.bf16.mxu0 0
        %3596 = vmatpush1.bf16.xpose.msra.mxu0 %v1399
        %3597 = vmatprep.subr.bf16.mxu0 0
        %3598 = vmatpush1.bf16.xpose.msra.mxu0 %v1401
        %3599 = vmatprep.subr.bf16.mxu0 0
        %3600 = vmatpush1.bf16.xpose.msra.mxu0 %v1403
        %3601 = vmatprep.subr.bf16.mxu0 0
        %3602 = vmatpush1.bf16.xpose.msra.mxu0 %v1405
        %3603 = vmatprep.subr.bf16.mxu0 0
        %3604 = vmatpush1.bf16.xpose.msra.mxu0 0
        %3605 = vmatprep.subr.bf16.mxu0 0
        %3606 = vmatpush1.bf16.xpose.msra.mxu0 0
        %3607 = vmatprep.subr.bf16.mxu0 0
        %3608 = vmatpush1.bf16.xpose.msra.mxu0 0
        %3609 = vmatprep.subr.bf16.mxu0 0
        %3610 = vmatpush1.bf16.xpose.msra.mxu0 0
        %3611 = vmatprep.subr.bf16.mxu0 0
        %3612 = vmatpush1.bf16.xpose.msra.mxu0 0
        %3613 = vmatprep.subr.bf16.mxu0 0
        %3614 = vmatpush1.bf16.xpose.msra.mxu0 0
        %3615 = vmatprep.subr.bf16.mxu0 0
        %3616 = vmatpush1.bf16.xpose.msra.mxu0 0
        %3617 = vmatprep.subr.bf16.mxu0 0
        %3618 = vmatpush1.bf16.xpose.msra.mxu0 0
        %3619 = vmatprep.mubr.bf16.mxu0 0
        %3620 = vmatmul.mubr.bf16.gmra.mrb[0].mxu0 %v3571
        %v3621 = vpop.f32.mrb[0].mxu0
        %v3622 = vadd.f32 0.0, %v3621
        %v3623 = vpop.f32.mrb[0].mxu0
        %v3624 = vpop.f32.mrb[0].mxu0
        %v3625 = vadd.f32 0.0, %v3624
        %v3626 = vpop.f32.mrb[0].mxu0
        %3627 = vmatprep.mubr.bf16.mxu0 0
        %3628 = vmatmul.mubr.bf16.gmra.mrb[0].mxu0 %v3572
        %v3629 = vpop.f32.mrb[0].mxu0
        %v3630 = vadd.f32 0.0, %v3629
        %v3631 = vpop.f32.mrb[0].mxu0
        %v3632 = vpop.f32.mrb[0].mxu0
        %v3633 = vadd.f32 0.0, %v3632
        %v3634 = vpop.f32.mrb[0].mxu0
        %3635 = vmatprep.mubr.bf16.mxu0 0
        %3636 = vmatmul.mubr.bf16.gmra.mrb[0].mxu0 %v3573
        %v3637 = vpop.f32.mrb[0].mxu0
        %v3638 = vadd.f32 0.0, %v3637
        %v3639 = vpop.f32.mrb[0].mxu0
        %v3640 = vpop.f32.mrb[0].mxu0
        %v3641 = vadd.f32 0.0, %v3640
        %v3642 = vpop.f32.mrb[0].mxu0
        %3643 = vmatprep.mubr.bf16.mxu0 0
        %3644 = vmatmul.mubr.bf16.gmra.mrb[0].mxu0 %v3574
        %v3645 = vpop.f32.mrb[0].mxu0
        %v3646 = vadd.f32 0.0, %v3645
        %v3647 = vpop.f32.mrb[0].mxu0
        %v3648 = vpop.f32.mrb[0].mxu0
        %v3649 = vadd.f32 0.0, %v3648
        %v3650 = vpop.f32.mrb[0].mxu0
        %3651 = vmatprep.mubr.bf16.mxu0 0
        %3652 = vmatmul.mubr.bf16.gmra.mrb[0].mxu0 %v3575
        %v3653 = vpop.f32.mrb[0].mxu0
        %v3654 = vadd.f32 0.0, %v3653
        %v3655 = vpop.f32.mrb[0].mxu0
        %v3656 = vpop.f32.mrb[0].mxu0
        %v3657 = vadd.f32 0.0, %v3656
        %v3658 = vpop.f32.mrb[0].mxu0
        %3659 = vmatprep.mubr.bf16.mxu0 0
        %3660 = vmatmul.mubr.bf16.gmra.mrb[0].mxu0 %v3576
        %v3661 = vpop.f32.mrb[0].mxu0
        %v3662 = vadd.f32 0.0, %v3661
        %v3663 = vpop.f32.mrb[0].mxu0
        %v3664 = vpop.f32.mrb[0].mxu0
        %v3665 = vadd.f32 0.0, %v3664
        %v3666 = vpop.f32.mrb[0].mxu0
        %3667 = vmatprep.mubr.bf16.mxu0 0
        %3668 = vmatmul.mubr.bf16.gmra.mrb[0].mxu0 %v3577
        %v3669 = vpop.f32.mrb[0].mxu0
        %v3670 = vadd.f32 0.0, %v3669
        %v3671 = vpop.f32.mrb[0].mxu0
        %v3672 = vpop.f32.mrb[0].mxu0
        %v3673 = vadd.f32 0.0, %v3672
        %v3674 = vpop.f32.mrb[0].mxu0
        %3675 = vmatprep.mubr.bf16.mxu0 0
        %3676 = vmatmul.mubr.bf16.gmra.mrb[0].mxu0 %v3578
        %v3677 = vpop.f32.mrb[0].mxu0
        %v3678 = vadd.f32 0.0, %v3677
        %v3679 = vpop.f32.mrb[0].mxu0
        %v3680 = vpop.f32.mrb[0].mxu0
        %v3681 = vadd.f32 0.0, %v3680
        %v3682 = vpop.f32.mrb[0].mxu0
        %3683 = vmatprep.mubr.bf16.mxu0 0
        %3684 = vmatmul.mubr.bf16.gmra.mrb[0].mxu0 %v3579
        %v3685 = vpop.f32.mrb[0].mxu0
        %v3686 = vadd.f32 0.0, %v3685
        %v3687 = vpop.f32.mrb[0].mxu0
        %v3688 = vpop.f32.mrb[0].mxu0
        %v3689 = vadd.f32 0.0, %v3688
        %v3690 = vpop.f32.mrb[0].mxu0
        %3691 = vmatprep.mubr.bf16.mxu0 0
        %3692 = vmatmul.mubr.bf16.gmra.mrb[0].mxu0 %v3580
        %v3693 = vpop.f32.mrb[0].mxu0
        %v3694 = vadd.f32 0.0, %v3693
        %v3695 = vpop.f32.mrb[0].mxu0
        %v3696 = vpop.f32.mrb[0].mxu0
        %v3697 = vadd.f32 0.0, %v3696
        %v3698 = vpop.f32.mrb[0].mxu0
        %3699 = vmatprep.mubr.bf16.mxu0 0
        %3700 = vmatmul.mubr.bf16.gmra.mrb[0].mxu0 %v3581
        %v3701 = vpop.f32.mrb[0].mxu0
        %v3702 = vadd.f32 0.0, %v3701
        %v3703 = vpop.f32.mrb[0].mxu0
        %v3704 = vpop.f32.mrb[0].mxu0
        %v3705 = vadd.f32 0.0, %v3704
        %v3706 = vpop.f32.mrb[0].mxu0
        %3707 = vmatprep.mubr.bf16.mxu0 0
        %3708 = vmatmul.mubr.bf16.gmra.mrb[0].mxu0 %v3582
        %v3709 = vpop.f32.mrb[0].mxu0
        %v3710 = vadd.f32 0.0, %v3709
        %v3711 = vpop.f32.mrb[0].mxu0
        %v3712 = vpop.f32.mrb[0].mxu0
        %v3713 = vadd.f32 0.0, %v3712
        %v3714 = vpop.f32.mrb[0].mxu0
        %3715 = vmatprep.mubr.bf16.mxu0 0
        %3716 = vmatmul.mubr.bf16.gmra.mrb[0].mxu0 %v3583
        %v3717 = vpop.f32.mrb[0].mxu0
        %v3718 = vadd.f32 0.0, %v3717
        %v3719 = vpop.f32.mrb[0].mxu0
        %v3720 = vpop.f32.mrb[0].mxu0
        %v3721 = vadd.f32 0.0, %v3720
        %v3722 = vpop.f32.mrb[0].mxu0
        %3723 = vmatprep.mubr.bf16.mxu0 0
        %3724 = vmatmul.mubr.bf16.gmra.mrb[0].mxu0 %v3584
        %v3725 = vpop.f32.mrb[0].mxu0
        %v3726 = vadd.f32 0.0, %v3725
        %v3727 = vpop.f32.mrb[0].mxu0
        %v3728 = vpop.f32.mrb[0].mxu0
        %v3729 = vadd.f32 0.0, %v3728
        %v3730 = vpop.f32.mrb[0].mxu0
        %3731 = vmatprep.mubr.bf16.mxu0 0
        %3732 = vmatmul.mubr.bf16.gmra.mrb[0].mxu0 %v3585
        %v3733 = vpop.f32.mrb[0].mxu0
        %v3734 = vadd.f32 0.0, %v3733
        %v3735 = vpop.f32.mrb[0].mxu0
        %v3736 = vpop.f32.mrb[0].mxu0
        %v3737 = vadd.f32 0.0, %v3736
        %v3738 = vpop.f32.mrb[0].mxu0
        %3739 = vmatprep.mubr.bf16.mxu0 0
        %3740 = vmatmul.mubr.bf16.gmra.mrb[0].mxu0 %v3586
        %v3741 = vpop.f32.mrb[0].mxu0
        %v3742 = vadd.f32 0.0, %v3741
        %v3743 = vpop.f32.mrb[0].mxu0
        %v3744 = vpop.f32.mrb[0].mxu0
        %v3745 = vadd.f32 0.0, %v3744
        %v3746 = vpop.f32.mrb[0].mxu0
        %3747 = vdwg.mxu0
        %3748 = vmax.xlane.f32.xlu0 %v3622
        %v3749 = vpop.xlane.xlu0 %3748
        %3750 = vmax.xlane.f32.xlu0 %v3625
        %v3751 = vpop.xlane.xlu0 %3750
        %3752 = vmax.xlane.f32.xlu0 %v3630
        %v3753 = vpop.xlane.xlu0 %3752
        %3754 = vmax.xlane.f32.xlu0 %v3633
        %v3755 = vpop.xlane.xlu0 %3754
        %3756 = vmax.xlane.f32.xlu0 %v3638
        %v3757 = vpop.xlane.xlu0 %3756
        %3758 = vmax.xlane.f32.xlu0 %v3641
        %v3759 = vpop.xlane.xlu0 %3758
        %3760 = vmax.xlane.f32.xlu0 %v3646
        %v3761 = vpop.xlane.xlu0 %3760
        %3762 = vmax.xlane.f32.xlu0 %v3649
        %v3763 = vpop.xlane.xlu0 %3762
        %3764 = vmax.xlane.f32.xlu0 %v3654
        %v3765 = vpop.xlane.xlu0 %3764
        %3766 = vmax.xlane.f32.xlu0 %v3657
        %v3767 = vpop.xlane.xlu0 %3766
        %3768 = vmax.xlane.f32.xlu0 %v3662
        %v3769 = vpop.xlane.xlu0 %3768
        %3770 = vmax.xlane.f32.xlu0 %v3665
        %v3771 = vpop.xlane.xlu0 %3770
        %3772 = vmax.xlane.f32.xlu0 %v3670
        %v3773 = vpop.xlane.xlu0 %3772
        %3774 = vmax.xlane.f32.xlu0 %v3673
        %v3775 = vpop.xlane.xlu0 %3774
        %3776 = vmax.xlane.f32.xlu0 %v3678
        %v3777 = vpop.xlane.xlu0 %3776
        %3778 = vmax.xlane.f32.xlu0 %v3681
        %v3779 = vpop.xlane.xlu0 %3778
        %3780 = vmax.xlane.f32.xlu0 %v3686
        %v3781 = vpop.xlane.xlu0 %3780
        %3782 = vmax.xlane.f32.xlu0 %v3689
        %v3783 = vpop.xlane.xlu0 %3782
        %3784 = vmax.xlane.f32.xlu0 %v3694
        %v3785 = vpop.xlane.xlu0 %3784
        %3786 = vmax.xlane.f32.xlu0 %v3697
        %v3787 = vpop.xlane.xlu0 %3786
        %3788 = vmax.xlane.f32.xlu0 %v3702
        %v3789 = vpop.xlane.xlu0 %3788
        %3790 = vmax.xlane.f32.xlu0 %v3705
        %v3791 = vpop.xlane.xlu0 %3790
        %3792 = vmax.xlane.f32.xlu0 %v3710
        %v3793 = vpop.xlane.xlu0 %3792
        %3794 = vmax.xlane.f32.xlu0 %v3713
        %v3795 = vpop.xlane.xlu0 %3794
        %3796 = vmax.xlane.f32.xlu0 %v3718
        %v3797 = vpop.xlane.xlu0 %3796
        %3798 = vmax.xlane.f32.xlu0 %v3721
        %v3799 = vpop.xlane.xlu0 %3798
        %3800 = vmax.xlane.f32.xlu0 %v3726
        %v3801 = vpop.xlane.xlu0 %3800
        %3802 = vmax.xlane.f32.xlu0 %v3729
        %v3803 = vpop.xlane.xlu0 %3802
        %3804 = vmax.xlane.f32.xlu0 %v3734
        %v3805 = vpop.xlane.xlu0 %3804
        %3806 = vmax.xlane.f32.xlu0 %v3737
        %v3807 = vpop.xlane.xlu0 %3806
        %3808 = vmax.xlane.f32.xlu0 %v3742
        %v3809 = vpop.xlane.xlu0 %3808
        %3810 = vmax.xlane.f32.xlu0 %v3745
        %v3811 = vpop.xlane.xlu0 %3810
        %v3812 = vsub.f32 %v3622, %v3749
        %v3813 = vsub.f32 %v3625, %v3751
        %v3814 = vsub.f32 %v3630, %v3753
        %v3815 = vsub.f32 %v3633, %v3755
        %v3816 = vsub.f32 %v3638, %v3757
        %v3817 = vsub.f32 %v3641, %v3759
        %v3818 = vsub.f32 %v3646, %v3761
        %v3819 = vsub.f32 %v3649, %v3763
        %v3820 = vsub.f32 %v3654, %v3765
        %v3821 = vsub.f32 %v3657, %v3767
        %v3822 = vsub.f32 %v3662, %v3769
        %v3823 = vsub.f32 %v3665, %v3771
        %v3824 = vsub.f32 %v3670, %v3773
        %v3825 = vsub.f32 %v3673, %v3775
        %v3826 = vsub.f32 %v3678, %v3777
        %v3827 = vsub.f32 %v3681, %v3779
        %v3828 = vsub.f32 %v3686, %v3781
        %v3829 = vsub.f32 %v3689, %v3783
        %v3830 = vsub.f32 %v3694, %v3785
        %v3831 = vsub.f32 %v3697, %v3787
        %v3832 = vsub.f32 %v3702, %v3789
        %v3833 = vsub.f32 %v3705, %v3791
        %v3834 = vsub.f32 %v3710, %v3793
        %v3835 = vsub.f32 %v3713, %v3795
        %v3836 = vsub.f32 %v3718, %v3797
        %v3837 = vsub.f32 %v3721, %v3799
        %v3838 = vsub.f32 %v3726, %v3801
        %v3839 = vsub.f32 %v3729, %v3803
        %v3840 = vsub.f32 %v3734, %v3805
        %v3841 = vsub.f32 %v3737, %v3807
        %v3842 = vsub.f32 %v3742, %v3809
        %v3843 = vsub.f32 %v3745, %v3811
        %v3844 = vmul.f32 %v3812, 1.442695
        %v3845 = vpow.pop %v3844
        %v3846 = vmul.f32 %v3813, 1.442695
        %v3847 = vpow.pop %v3846
        %v3848 = vmul.f32 %v3814, 1.442695
        %v3849 = vpow.pop %v3848
        %v3850 = vmul.f32 %v3815, 1.442695
        %v3851 = vpow.pop %v3850
        %v3852 = vmul.f32 %v3816, 1.442695
        %v3853 = vpow.pop %v3852
        %v3854 = vmul.f32 %v3817, 1.442695
        %v3855 = vpow.pop %v3854
        %v3856 = vmul.f32 %v3818, 1.442695
        %v3857 = vpow.pop %v3856
        %v3858 = vmul.f32 %v3819, 1.442695
        %v3859 = vpow.pop %v3858
        %v3860 = vmul.f32 %v3820, 1.442695
        %v3861 = vpow.pop %v3860
        %v3862 = vmul.f32 %v3821, 1.442695
        %v3863 = vpow.pop %v3862
        %v3864 = vmul.f32 %v3822, 1.442695
        %v3865 = vpow.pop %v3864
        %v3866 = vmul.f32 %v3823, 1.442695
        %v3867 = vpow.pop %v3866
        %v3868 = vmul.f32 %v3824, 1.442695
        %v3869 = vpow.pop %v3868
        %v3870 = vmul.f32 %v3825, 1.442695
        %v3871 = vpow.pop %v3870
        %v3872 = vmul.f32 %v3826, 1.442695
        %v3873 = vpow.pop %v3872
        %v3874 = vmul.f32 %v3827, 1.442695
        %v3875 = vpow.pop %v3874
        %v3876 = vmul.f32 %v3828, 1.442695
        %v3877 = vpow.pop %v3876
        %v3878 = vmul.f32 %v3829, 1.442695
        %v3879 = vpow.pop %v3878
        %v3880 = vmul.f32 %v3830, 1.442695
        %v3881 = vpow.pop %v3880
        %v3882 = vmul.f32 %v3831, 1.442695
        %v3883 = vpow.pop %v3882
        %v3884 = vmul.f32 %v3832, 1.442695
        %v3885 = vpow.pop %v3884
        %v3886 = vmul.f32 %v3833, 1.442695
        %v3887 = vpow.pop %v3886
        %v3888 = vmul.f32 %v3834, 1.442695
        %v3889 = vpow.pop %v3888
        %v3890 = vmul.f32 %v3835, 1.442695
        %v3891 = vpow.pop %v3890
        %v3892 = vmul.f32 %v3836, 1.442695
        %v3893 = vpow.pop %v3892
        %v3894 = vmul.f32 %v3837, 1.442695
        %v3895 = vpow.pop %v3894
        %v3896 = vmul.f32 %v3838, 1.442695
        %v3897 = vpow.pop %v3896
        %v3898 = vmul.f32 %v3839, 1.442695
        %v3899 = vpow.pop %v3898
        %v3900 = vmul.f32 %v3840, 1.442695
        %v3901 = vpow.pop %v3900
        %v3902 = vmul.f32 %v3841, 1.442695
        %v3903 = vpow.pop %v3902
        %v3904 = vmul.f32 %v3842, 1.442695
        %v3905 = vpow.pop %v3904
        %v3906 = vmul.f32 %v3843, 1.442695
        %v3907 = vpow.pop %v3906
        %3908 = vadd.xlane.f32.xlu0 %v3845
        %v3909 = vpop.xlane.xlu0 %3908
        %3910 = vadd.xlane.f32.xlu0 %v3847
        %v3911 = vpop.xlane.xlu0 %3910
        %3912 = vadd.xlane.f32.xlu0 %v3849
        %v3913 = vpop.xlane.xlu0 %3912
        %3914 = vadd.xlane.f32.xlu0 %v3851
        %v3915 = vpop.xlane.xlu0 %3914
        %3916 = vadd.xlane.f32.xlu0 %v3853
        %v3917 = vpop.xlane.xlu0 %3916
        %3918 = vadd.xlane.f32.xlu0 %v3855
        %v3919 = vpop.xlane.xlu0 %3918
        %3920 = vadd.xlane.f32.xlu0 %v3857
        %v3921 = vpop.xlane.xlu0 %3920
        %3922 = vadd.xlane.f32.xlu0 %v3859
        %v3923 = vpop.xlane.xlu0 %3922
        %3924 = vadd.xlane.f32.xlu0 %v3861
        %v3925 = vpop.xlane.xlu0 %3924
        %3926 = vadd.xlane.f32.xlu0 %v3863
        %v3927 = vpop.xlane.xlu0 %3926
        %3928 = vadd.xlane.f32.xlu0 %v3865
        %v3929 = vpop.xlane.xlu0 %3928
        %3930 = vadd.xlane.f32.xlu0 %v3867
        %v3931 = vpop.xlane.xlu0 %3930
        %3932 = vadd.xlane.f32.xlu0 %v3869
        %v3933 = vpop.xlane.xlu0 %3932
        %3934 = vadd.xlane.f32.xlu0 %v3871
        %v3935 = vpop.xlane.xlu0 %3934
        %3936 = vadd.xlane.f32.xlu0 %v3873
        %v3937 = vpop.xlane.xlu0 %3936
        %3938 = vadd.xlane.f32.xlu0 %v3875
        %v3939 = vpop.xlane.xlu0 %3938
        %3940 = vadd.xlane.f32.xlu0 %v3877
        %v3941 = vpop.xlane.xlu0 %3940
        %3942 = vadd.xlane.f32.xlu0 %v3879
        %v3943 = vpop.xlane.xlu0 %3942
        %3944 = vadd.xlane.f32.xlu0 %v3881
        %v3945 = vpop.xlane.xlu0 %3944
        %3946 = vadd.xlane.f32.xlu0 %v3883
        %v3947 = vpop.xlane.xlu0 %3946
        %3948 = vadd.xlane.f32.xlu0 %v3885
        %v3949 = vpop.xlane.xlu0 %3948
        %3950 = vadd.xlane.f32.xlu0 %v3887
        %v3951 = vpop.xlane.xlu0 %3950
        %3952 = vadd.xlane.f32.xlu0 %v3889
        %v3953 = vpop.xlane.xlu0 %3952
        %3954 = vadd.xlane.f32.xlu0 %v3891
        %v3955 = vpop.xlane.xlu0 %3954
        %3956 = vadd.xlane.f32.xlu0 %v3893
        %v3957 = vpop.xlane.xlu0 %3956
        %3958 = vadd.xlane.f32.xlu0 %v3895
        %v3959 = vpop.xlane.xlu0 %3958
        %3960 = vadd.xlane.f32.xlu0 %v3897
        %v3961 = vpop.xlane.xlu0 %3960
        %3962 = vadd.xlane.f32.xlu0 %v3899
        %v3963 = vpop.xlane.xlu0 %3962
        %3964 = vadd.xlane.f32.xlu0 %v3901
        %v3965 = vpop.xlane.xlu0 %3964
        %3966 = vadd.xlane.f32.xlu0 %v3903
        %v3967 = vpop.xlane.xlu0 %3966
        %3968 = vadd.xlane.f32.xlu0 %v3905
        %v3969 = vpop.xlane.xlu0 %3968
        %3970 = vadd.xlane.f32.xlu0 %v3907
        %v3971 = vpop.xlane.xlu0 %3970
        %v3972 = vrcp.pop %v3909
        %v3973 = vrcp.pop %v3911
        %v3974 = vrcp.pop %v3913
        %v3975 = vrcp.pop %v3915
        %v3976 = vrcp.pop %v3917
        %v3977 = vrcp.pop %v3919
        %v3978 = vrcp.pop %v3921
        %v3979 = vrcp.pop %v3923
        %v3980 = vrcp.pop %v3925
        %v3981 = vrcp.pop %v3927
        %v3982 = vrcp.pop %v3929
        %v3983 = vrcp.pop %v3931
        %v3984 = vrcp.pop %v3933
        %v3985 = vrcp.pop %v3935
        %v3986 = vrcp.pop %v3937
        %v3987 = vrcp.pop %v3939
        %v3988 = vrcp.pop %v3941
        %v3989 = vrcp.pop %v3943
        %v3990 = vrcp.pop %v3945
        %v3991 = vrcp.pop %v3947
        %v3992 = vrcp.pop %v3949
        %v3993 = vrcp.pop %v3951
        %v3994 = vrcp.pop %v3953
        %v3995 = vrcp.pop %v3955
        %v3996 = vrcp.pop %v3957
        %v3997 = vrcp.pop %v3959
        %v3998 = vrcp.pop %v3961
        %v3999 = vrcp.pop %v3963
        %v4000 = vrcp.pop %v3965
        %v4001 = vrcp.pop %v3967
        %v4002 = vrcp.pop %v3969
        %v4003 = vrcp.pop %v3971
        %v4004 = vmul.f32 %v3845, %v3972
        %v4005 = vmul.f32 %v3847, %v3973
        %v4006 = vmul.f32 %v3849, %v3974
        %v4007 = vmul.f32 %v3851, %v3975
        %v4008 = vmul.f32 %v3853, %v3976
        %v4009 = vmul.f32 %v3855, %v3977
        %v4010 = vmul.f32 %v3857, %v3978
        %v4011 = vmul.f32 %v3859, %v3979
        %v4012 = vmul.f32 %v3861, %v3980
        %v4013 = vmul.f32 %v3863, %v3981
        %v4014 = vmul.f32 %v3865, %v3982
        %v4015 = vmul.f32 %v3867, %v3983
        %v4016 = vmul.f32 %v3869, %v3984
        %v4017 = vmul.f32 %v3871, %v3985
        %v4018 = vmul.f32 %v3873, %v3986
        %v4019 = vmul.f32 %v3875, %v3987
        %v4020 = vmul.f32 %v3877, %v3988
        %v4021 = vmul.f32 %v3879, %v3989
        %v4022 = vmul.f32 %v3881, %v3990
        %v4023 = vmul.f32 %v3883, %v3991
        %v4024 = vmul.f32 %v3885, %v3992
        %v4025 = vmul.f32 %v3887, %v3993
        %v4026 = vmul.f32 %v3889, %v3994
        %v4027 = vmul.f32 %v3891, %v3995
        %v4028 = vmul.f32 %v3893, %v3996
        %v4029 = vmul.f32 %v3895, %v3997
        %v4030 = vmul.f32 %v3897, %v3998
        %v4031 = vmul.f32 %v3899, %v3999
        %v4032 = vmul.f32 %v3901, %v4000
        %v4033 = vmul.f32 %v3903, %v4001
        %v4034 = vmul.f32 %v3905, %v4002
        %v4035 = vmul.f32 %v3907, %v4003
        %v4036 = vpack.c.bf16 %v4005, %v4004
        %v4037 = vpack.c.bf16 %v4007, %v4006
        %v4038 = vpack.c.bf16 %v4009, %v4008
        %v4039 = vpack.c.bf16 %v4011, %v4010
        %v4040 = vpack.c.bf16 %v4013, %v4012
        %v4041 = vpack.c.bf16 %v4015, %v4014
        %v4042 = vpack.c.bf16 %v4017, %v4016
        %v4043 = vpack.c.bf16 %v4019, %v4018
        %v4044 = vpack.c.bf16 %v4021, %v4020
        %v4045 = vpack.c.bf16 %v4023, %v4022
        %v4046 = vpack.c.bf16 %v4025, %v4024
        %v4047 = vpack.c.bf16 %v4027, %v4026
        %v4048 = vpack.c.bf16 %v4029, %v4028
        %v4049 = vpack.c.bf16 %v4031, %v4030
        %v4050 = vpack.c.bf16 %v4033, %v4032
        %v4051 = vpack.c.bf16 %v4035, %v4034
        %4052 = vmatprep.subr.bf16.mxu0 0
        %4053 = vmatpush1.bf16.msra.mxu0 %v1628
        %4054 = vmatprep.subr.bf16.mxu0 0
        %4055 = vmatpush1.bf16.msra.mxu0 %v1630
        %4056 = vmatprep.subr.bf16.mxu0 0
        %4057 = vmatpush1.bf16.msra.mxu0 %v1632
        %4058 = vmatprep.subr.bf16.mxu0 0
        %4059 = vmatpush1.bf16.msra.mxu0 %v1634
        %4060 = vmatprep.subr.bf16.mxu0 0
        %4061 = vmatpush1.bf16.msra.mxu0 %v1636
        %4062 = vmatprep.subr.bf16.mxu0 0
        %4063 = vmatpush1.bf16.msra.mxu0 %v1638
        %4064 = vmatprep.subr.bf16.mxu0 0
        %4065 = vmatpush1.bf16.msra.mxu0 %v1640
        %4066 = vmatprep.subr.bf16.mxu0 0
        %4067 = vmatpush1.bf16.msra.mxu0 %v1642
        %4068 = vmatprep.subr.bf16.mxu0 0
        %4069 = vmatpush1.bf16.msra.mxu0 0
        %4070 = vmatprep.subr.bf16.mxu0 0
        %4071 = vmatpush1.bf16.msra.mxu0 0
        %4072 = vmatprep.subr.bf16.mxu0 0
        %4073 = vmatpush1.bf16.msra.mxu0 0
        %4074 = vmatprep.subr.bf16.mxu0 0
        %4075 = vmatpush1.bf16.msra.mxu0 0
        %4076 = vmatprep.subr.bf16.mxu0 0
        %4077 = vmatpush1.bf16.msra.mxu0 0
        %4078 = vmatprep.subr.bf16.mxu0 0
        %4079 = vmatpush1.bf16.msra.mxu0 0
        %4080 = vmatprep.subr.bf16.mxu0 0
        %4081 = vmatpush1.bf16.msra.mxu0 0
        %4082 = vmatprep.subr.bf16.mxu0 0
        %4083 = vmatpush1.bf16.msra.mxu0 0
        %4084 = vmatprep.mubr.bf16.mxu0 0
        %4085 = vmatmul.mubr.bf16.gmra.mrb[0].mxu0 %v4036
        %v4086 = vpop.f32.mrb[0].mxu0
        %v4087 = vadd.f32 0.0, %v4086
        %v4088 = vpop.f32.mrb[0].mxu0
        %v4089 = vpop.f32.mrb[0].mxu0
        %v4090 = vadd.f32 0.0, %v4089
        %v4091 = vpop.f32.mrb[0].mxu0
        %4092 = vmatprep.mubr.bf16.mxu0 0
        %4093 = vmatmul.mubr.bf16.gmra.mrb[0].mxu0 %v4037
        %v4094 = vpop.f32.mrb[0].mxu0
        %v4095 = vadd.f32 0.0, %v4094
        %v4096 = vpop.f32.mrb[0].mxu0
        %v4097 = vpop.f32.mrb[0].mxu0
        %v4098 = vadd.f32 0.0, %v4097
        %v4099 = vpop.f32.mrb[0].mxu0
        %4100 = vmatprep.mubr.bf16.mxu0 0
        %4101 = vmatmul.mubr.bf16.gmra.mrb[0].mxu0 %v4038
        %v4102 = vpop.f32.mrb[0].mxu0
        %v4103 = vadd.f32 0.0, %v4102
        %v4104 = vpop.f32.mrb[0].mxu0
        %v4105 = vpop.f32.mrb[0].mxu0
        %v4106 = vadd.f32 0.0, %v4105
        %v4107 = vpop.f32.mrb[0].mxu0
        %4108 = vmatprep.mubr.bf16.mxu0 0
        %4109 = vmatmul.mubr.bf16.gmra.mrb[0].mxu0 %v4039
        %v4110 = vpop.f32.mrb[0].mxu0
        %v4111 = vadd.f32 0.0, %v4110
        %v4112 = vpop.f32.mrb[0].mxu0
        %v4113 = vpop.f32.mrb[0].mxu0
        %v4114 = vadd.f32 0.0, %v4113
        %v4115 = vpop.f32.mrb[0].mxu0
        %4116 = vmatprep.mubr.bf16.mxu0 0
        %4117 = vmatmul.mubr.bf16.gmra.mrb[0].mxu0 %v4040
        %v4118 = vpop.f32.mrb[0].mxu0
        %v4119 = vadd.f32 0.0, %v4118
        %v4120 = vpop.f32.mrb[0].mxu0
        %v4121 = vpop.f32.mrb[0].mxu0
        %v4122 = vadd.f32 0.0, %v4121
        %v4123 = vpop.f32.mrb[0].mxu0
        %4124 = vmatprep.mubr.bf16.mxu0 0
        %4125 = vmatmul.mubr.bf16.gmra.mrb[0].mxu0 %v4041
        %v4126 = vpop.f32.mrb[0].mxu0
        %v4127 = vadd.f32 0.0, %v4126
        %v4128 = vpop.f32.mrb[0].mxu0
        %v4129 = vpop.f32.mrb[0].mxu0
        %v4130 = vadd.f32 0.0, %v4129
        %v4131 = vpop.f32.mrb[0].mxu0
        %4132 = vmatprep.mubr.bf16.mxu0 0
        %4133 = vmatmul.mubr.bf16.gmra.mrb[0].mxu0 %v4042
        %v4134 = vpop.f32.mrb[0].mxu0
        %v4135 = vadd.f32 0.0, %v4134
        %v4136 = vpop.f32.mrb[0].mxu0
        %v4137 = vpop.f32.mrb[0].mxu0
        %v4138 = vadd.f32 0.0, %v4137
        %v4139 = vpop.f32.mrb[0].mxu0
        %4140 = vmatprep.mubr.bf16.mxu0 0
        %4141 = vmatmul.mubr.bf16.gmra.mrb[0].mxu0 %v4043
        %v4142 = vpop.f32.mrb[0].mxu0
        %v4143 = vadd.f32 0.0, %v4142
        %v4144 = vpop.f32.mrb[0].mxu0
        %v4145 = vpop.f32.mrb[0].mxu0
        %v4146 = vadd.f32 0.0, %v4145
        %v4147 = vpop.f32.mrb[0].mxu0
        %4148 = vmatprep.mubr.bf16.mxu0 0
        %4149 = vmatmul.mubr.bf16.gmra.mrb[0].mxu0 %v4044
        %v4150 = vpop.f32.mrb[0].mxu0
        %v4151 = vadd.f32 0.0, %v4150
        %v4152 = vpop.f32.mrb[0].mxu0
        %v4153 = vpop.f32.mrb[0].mxu0
        %v4154 = vadd.f32 0.0, %v4153
        %v4155 = vpop.f32.mrb[0].mxu0
        %4156 = vmatprep.mubr.bf16.mxu0 0
        %4157 = vmatmul.mubr.bf16.gmra.mrb[0].mxu0 %v4045
        %v4158 = vpop.f32.mrb[0].mxu0
        %v4159 = vadd.f32 0.0, %v4158
        %v4160 = vpop.f32.mrb[0].mxu0
        %v4161 = vpop.f32.mrb[0].mxu0
        %v4162 = vadd.f32 0.0, %v4161
        %v4163 = vpop.f32.mrb[0].mxu0
        %4164 = vmatprep.mubr.bf16.mxu0 0
        %4165 = vmatmul.mubr.bf16.gmra.mrb[0].mxu0 %v4046
        %v4166 = vpop.f32.mrb[0].mxu0
        %v4167 = vadd.f32 0.0, %v4166
        %v4168 = vpop.f32.mrb[0].mxu0
        %v4169 = vpop.f32.mrb[0].mxu0
        %v4170 = vadd.f32 0.0, %v4169
        %v4171 = vpop.f32.mrb[0].mxu0
        %4172 = vmatprep.mubr.bf16.mxu0 0
        %4173 = vmatmul.mubr.bf16.gmra.mrb[0].mxu0 %v4047
        %v4174 = vpop.f32.mrb[0].mxu0
        %v4175 = vadd.f32 0.0, %v4174
        %v4176 = vpop.f32.mrb[0].mxu0
        %v4177 = vpop.f32.mrb[0].mxu0
        %v4178 = vadd.f32 0.0, %v4177
        %v4179 = vpop.f32.mrb[0].mxu0
        %4180 = vmatprep.mubr.bf16.mxu0 0
        %4181 = vmatmul.mubr.bf16.gmra.mrb[0].mxu0 %v4048
        %v4182 = vpop.f32.mrb[0].mxu0
        %v4183 = vadd.f32 0.0, %v4182
        %v4184 = vpop.f32.mrb[0].mxu0
        %v4185 = vpop.f32.mrb[0].mxu0
        %v4186 = vadd.f32 0.0, %v4185
        %v4187 = vpop.f32.mrb[0].mxu0
        %4188 = vmatprep.mubr.bf16.mxu0 0
        %4189 = vmatmul.mubr.bf16.gmra.mrb[0].mxu0 %v4049
        %v4190 = vpop.f32.mrb[0].mxu0
        %v4191 = vadd.f32 0.0, %v4190
        %v4192 = vpop.f32.mrb[0].mxu0
        %v4193 = vpop.f32.mrb[0].mxu0
        %v4194 = vadd.f32 0.0, %v4193
        %v4195 = vpop.f32.mrb[0].mxu0
        %4196 = vmatprep.mubr.bf16.mxu0 0
        %4197 = vmatmul.mubr.bf16.gmra.mrb[0].mxu0 %v4050
        %v4198 = vpop.f32.mrb[0].mxu0
        %v4199 = vadd.f32 0.0, %v4198
        %v4200 = vpop.f32.mrb[0].mxu0
        %v4201 = vpop.f32.mrb[0].mxu0
        %v4202 = vadd.f32 0.0, %v4201
        %v4203 = vpop.f32.mrb[0].mxu0
        %4204 = vmatprep.mubr.bf16.mxu0 0
        %4205 = vmatmul.mubr.bf16.gmra.mrb[0].mxu0 %v4051
        %v4206 = vpop.f32.mrb[0].mxu0
        %v4207 = vadd.f32 0.0, %v4206
        %v4208 = vpop.f32.mrb[0].mxu0
        %v4209 = vpop.f32.mrb[0].mxu0
        %v4210 = vadd.f32 0.0, %v4209
        %v4211 = vpop.f32.mrb[0].mxu0
        %4212 = vdwg.mxu0
        %v4213 = vpack.c.bf16 %v3416, %v3413
        %v4214 = vpack.c.bf16 %v4090, %v4087
        %v4215 = vpack.c.bf16 %v3424, %v3421
        %v4216 = vpack.c.bf16 %v4098, %v4095
        %v4217 = vpack.c.bf16 %v3432, %v3429
        %v4218 = vpack.c.bf16 %v4106, %v4103
        %v4219 = vpack.c.bf16 %v3440, %v3437
        %v4220 = vpack.c.bf16 %v4114, %v4111
        %v4221 = vpack.c.bf16 %v3448, %v3445
        %v4222 = vpack.c.bf16 %v4122, %v4119
        %v4223 = vpack.c.bf16 %v3456, %v3453
        %v4224 = vpack.c.bf16 %v4130, %v4127
        %v4225 = vpack.c.bf16 %v3464, %v3461
        %v4226 = vpack.c.bf16 %v4138, %v4135
        %v4227 = vpack.c.bf16 %v3472, %v3469
        %v4228 = vpack.c.bf16 %v4146, %v4143
        %v4229 = vpack.c.bf16 %v3480, %v3477
        %v4230 = vpack.c.bf16 %v4154, %v4151
        %v4231 = vpack.c.bf16 %v3488, %v3485
        %v4232 = vpack.c.bf16 %v4162, %v4159
        %v4233 = vpack.c.bf16 %v3496, %v3493
        %v4234 = vpack.c.bf16 %v4170, %v4167
        %v4235 = vpack.c.bf16 %v3504, %v3501
        %v4236 = vpack.c.bf16 %v4178, %v4175
        %v4237 = vpack.c.bf16 %v3512, %v3509
        %v4238 = vpack.c.bf16 %v4186, %v4183
        %v4239 = vpack.c.bf16 %v3520, %v3517
        %v4240 = vpack.c.bf16 %v4194, %v4191
        %v4241 = vpack.c.bf16 %v3528, %v3525
        %v4242 = vpack.c.bf16 %v4202, %v4199
        %v4243 = vpack.c.bf16 %v3536, %v3533
        %v4244 = vpack.c.bf16 %v4210, %v4207
        %v4245 = vld [vmem:[#allocation14] sm:$0xff]
        %v4246 = vld [vmem:[#allocation14 + $0x8] sm:$0xff]
        %v4247 = vld [vmem:[#allocation14 + $0x10] sm:$0xff]
        %v4248 = vld [vmem:[#allocation14 + $0x18] sm:$0xff]
        %v4249 = vld [vmem:[#allocation14 + $0x20] sm:$0xff]
        %v4250 = vld [vmem:[#allocation14 + $0x28] sm:$0xff]
        %v4251 = vld [vmem:[#allocation14 + $0x30] sm:$0xff]
        %v4252 = vld [vmem:[#allocation14 + $0x38] sm:$0xff]
        %v4253 = vld [vmem:[#allocation14 + $0x40] sm:$0xff]
        %v4254 = vld [vmem:[#allocation14 + $0x48] sm:$0xff]
        %v4255 = vld [vmem:[#allocation14 + $0x50] sm:$0xff]
        %v4256 = vld [vmem:[#allocation14 + $0x58] sm:$0xff]
        %v4257 = vld [vmem:[#allocation14 + $0x60] sm:$0xff]
        %v4258 = vld [vmem:[#allocation14 + $0x68] sm:$0xff]
        %v4259 = vld [vmem:[#allocation14 + $0x70] sm:$0xff]
        %v4260 = vld [vmem:[#allocation14 + $0x78] sm:$0xff]
        %v4261 = vld [vmem:[#allocation14 + $0x80] sm:$0xff]
        %v4262 = vld [vmem:[#allocation14 + $0x88] sm:$0xff]
        %v4263 = vld [vmem:[#allocation14 + $0x90] sm:$0xff]
        %v4264 = vld [vmem:[#allocation14 + $0x98] sm:$0xff]
        %v4265 = vld [vmem:[#allocation14 + $0xa0] sm:$0xff]
        %v4266 = vld [vmem:[#allocation14 + $0xa8] sm:$0xff]
        %v4267 = vld [vmem:[#allocation14 + $0xb0] sm:$0xff]
        %v4268 = vld [vmem:[#allocation14 + $0xb8] sm:$0xff]
        %v4269 = vld [vmem:[#allocation14 + $0xc0] sm:$0xff]
        %v4270 = vld [vmem:[#allocation14 + $0xc8] sm:$0xff]
        %v4271 = vld [vmem:[#allocation14 + $0xd0] sm:$0xff]
        %v4272 = vld [vmem:[#allocation14 + $0xd8] sm:$0xff]
        %v4273 = vld [vmem:[#allocation14 + $0xe0] sm:$0xff]
        %v4274 = vld [vmem:[#allocation14 + $0xe8] sm:$0xff]
        %v4275 = vld [vmem:[#allocation14 + $0xf0] sm:$0xff]
        %v4276 = vld [vmem:[#allocation14 + $0xf8] sm:$0xff]
        %v4277 = vld [vmem:[%s13] sm:$0x3]
        %v4279 = vlaneseq
        %v4280 = vshrl.u32 %v4279, 7
        %v4281 = vsub.s32 0, %v4280
        %v4282 = vrot.slane %v4277, %v4281
        %v4283 = vlaneseq
        %v4284 = vshrl.u32 %v4283, 7
        %v4285 = vsub.s32 1, %v4284
        %v4286 = vrot.slane %v4277, %v4285
        %v4321 = vunpack.c.l.b16 %v4245
        %v4322 = vunpack.c.h.b16 %v4245
        %v4323 = vunpack.c.l.b16 %v4246
        %v4324 = vunpack.c.h.b16 %v4246
        %v4325 = vunpack.c.l.b16 %v4247
        %v4326 = vunpack.c.h.b16 %v4247
        %v4327 = vunpack.c.l.b16 %v4248
        %v4328 = vunpack.c.h.b16 %v4248
        %v4329 = vunpack.c.l.b16 %v4249
        %v4330 = vunpack.c.h.b16 %v4249
        %v4331 = vunpack.c.l.b16 %v4250
        %v4332 = vunpack.c.h.b16 %v4250
        %v4333 = vunpack.c.l.b16 %v4251
        %v4334 = vunpack.c.h.b16 %v4251
        %v4335 = vunpack.c.l.b16 %v4252
        %v4336 = vunpack.c.h.b16 %v4252
        %v4337 = vunpack.c.l.b16 %v4253
        %v4338 = vunpack.c.h.b16 %v4253
        %v4339 = vunpack.c.l.b16 %v4254
        %v4340 = vunpack.c.h.b16 %v4254
        %v4341 = vunpack.c.l.b16 %v4255
        %v4342 = vunpack.c.h.b16 %v4255
        %v4343 = vunpack.c.l.b16 %v4256
        %v4344 = vunpack.c.h.b16 %v4256
        %v4345 = vunpack.c.l.b16 %v4257
        %v4346 = vunpack.c.h.b16 %v4257
        %v4347 = vunpack.c.l.b16 %v4258
        %v4348 = vunpack.c.h.b16 %v4258
        %v4349 = vunpack.c.l.b16 %v4259
        %v4350 = vunpack.c.h.b16 %v4259
        %v4351 = vunpack.c.l.b16 %v4260
        %v4352 = vunpack.c.h.b16 %v4260
        %v4353 = vunpack.c.l.b16 %v4261
        %v4354 = vunpack.c.h.b16 %v4261
        %v4355 = vunpack.c.l.b16 %v4262
        %v4356 = vunpack.c.h.b16 %v4262
        %v4357 = vunpack.c.l.b16 %v4263
        %v4358 = vunpack.c.h.b16 %v4263
        %v4359 = vunpack.c.l.b16 %v4264
        %v4360 = vunpack.c.h.b16 %v4264
        %v4361 = vunpack.c.l.b16 %v4265
        %v4362 = vunpack.c.h.b16 %v4265
        %v4363 = vunpack.c.l.b16 %v4266
        %v4364 = vunpack.c.h.b16 %v4266
        %v4365 = vunpack.c.l.b16 %v4267
        %v4366 = vunpack.c.h.b16 %v4267
        %v4367 = vunpack.c.l.b16 %v4268
        %v4368 = vunpack.c.h.b16 %v4268
        %v4369 = vunpack.c.l.b16 %v4269
        %v4370 = vunpack.c.h.b16 %v4269
        %v4371 = vunpack.c.l.b16 %v4270
        %v4372 = vunpack.c.h.b16 %v4270
        %v4373 = vunpack.c.l.b16 %v4271
        %v4374 = vunpack.c.h.b16 %v4271
        %v4375 = vunpack.c.l.b16 %v4272
        %v4376 = vunpack.c.h.b16 %v4272
        %v4377 = vunpack.c.l.b16 %v4273
        %v4378 = vunpack.c.h.b16 %v4273
        %v4379 = vunpack.c.l.b16 %v4274
        %v4380 = vunpack.c.h.b16 %v4274
        %v4381 = vunpack.c.l.b16 %v4275
        %v4382 = vunpack.c.h.b16 %v4275
        %v4383 = vunpack.c.l.b16 %v4276
        %v4384 = vunpack.c.h.b16 %v4276
        %v4385 = vpack.c.b16 %v4323, %v4321
        %v4386 = vpack.c.b16 %v4324, %v4322
        %v4387 = vpack.c.b16 %v4327, %v4325
        %v4388 = vpack.c.b16 %v4328, %v4326
        %v4389 = vpack.c.b16 %v4331, %v4329
        %v4390 = vpack.c.b16 %v4332, %v4330
        %v4391 = vpack.c.b16 %v4335, %v4333
        %v4392 = vpack.c.b16 %v4336, %v4334
        %v4393 = vpack.c.b16 %v4339, %v4337
        %v4394 = vpack.c.b16 %v4340, %v4338
        %v4395 = vpack.c.b16 %v4343, %v4341
        %v4396 = vpack.c.b16 %v4344, %v4342
        %v4397 = vpack.c.b16 %v4347, %v4345
        %v4398 = vpack.c.b16 %v4348, %v4346
        %v4399 = vpack.c.b16 %v4351, %v4349
        %v4400 = vpack.c.b16 %v4352, %v4350
        %v4401 = vpack.c.b16 %v4355, %v4353
        %v4402 = vpack.c.b16 %v4356, %v4354
        %v4403 = vpack.c.b16 %v4359, %v4357
        %v4404 = vpack.c.b16 %v4360, %v4358
        %v4405 = vpack.c.b16 %v4363, %v4361
        %v4406 = vpack.c.b16 %v4364, %v4362
        %v4407 = vpack.c.b16 %v4367, %v4365
        %v4408 = vpack.c.b16 %v4368, %v4366
        %v4409 = vpack.c.b16 %v4371, %v4369
        %v4410 = vpack.c.b16 %v4372, %v4370
        %v4411 = vpack.c.b16 %v4375, %v4373
        %v4412 = vpack.c.b16 %v4376, %v4374
        %v4413 = vpack.c.b16 %v4379, %v4377
        %v4414 = vpack.c.b16 %v4380, %v4378
        %v4415 = vpack.c.b16 %v4383, %v4381
        %v4416 = vpack.c.b16 %v4384, %v4382
        %4449 = vmatprep.subr.bf16.mxu0 %v4386
        %4450 = vmatpush1.bf16.msra.mxu0 %v4385
        %4451 = vmatprep.subr.bf16.mxu0 %v4388
        %4452 = vmatpush1.bf16.msra.mxu0 %v4387
        %4453 = vmatprep.subr.bf16.mxu0 %v4390
        %4454 = vmatpush1.bf16.msra.mxu0 %v4389
        %4455 = vmatprep.subr.bf16.mxu0 %v4392
        %4456 = vmatpush1.bf16.msra.mxu0 %v4391
        %4457 = vmatprep.subr.bf16.mxu0 %v4394
        %4458 = vmatpush1.bf16.msra.mxu0 %v4393
        %4459 = vmatprep.subr.bf16.mxu0 %v4396
        %4460 = vmatpush1.bf16.msra.mxu0 %v4395
        %4461 = vmatprep.subr.bf16.mxu0 %v4398
        %4462 = vmatpush1.bf16.msra.mxu0 %v4397
        %4463 = vmatprep.subr.bf16.mxu0 %v4400
        %4464 = vmatpush1.bf16.msra.mxu0 %v4399
        %4465 = vmatprep.subr.bf16.mxu0 %v4402
        %4466 = vmatpush1.bf16.msra.mxu0 %v4401
        %4467 = vmatprep.subr.bf16.mxu0 %v4404
        %4468 = vmatpush1.bf16.msra.mxu0 %v4403
        %4469 = vmatprep.subr.bf16.mxu0 %v4406
        %4470 = vmatpush1.bf16.msra.mxu0 %v4405
        %4471 = vmatprep.subr.bf16.mxu0 %v4408
        %4472 = vmatpush1.bf16.msra.mxu0 %v4407
        %4473 = vmatprep.subr.bf16.mxu0 %v4410
        %4474 = vmatpush1.bf16.msra.mxu0 %v4409
        %4475 = vmatprep.subr.bf16.mxu0 %v4412
        %4476 = vmatpush1.bf16.msra.mxu0 %v4411
        %4477 = vmatprep.subr.bf16.mxu0 %v4414
        %4478 = vmatpush1.bf16.msra.mxu0 %v4413
        %4479 = vmatprep.subr.bf16.mxu0 %v4416
        %4480 = vmatpush1.bf16.msra.mxu0 %v4415
        %4481 = vmatprep.mubr.bf16.mxu0 %v4214
        %4482 = vmatmul.mubr.bf16.gmra.mrb[0].mxu0 %v4213
        %v4483 = vpop.f32.mrb[0].mxu0
        %v4484 = vadd.f32 %v4282, %v4483
        %v4485 = vpop.f32.mrb[0].mxu0
        %v4486 = vadd.f32 %v4286, %v4485
        %v4487 = vpop.f32.mrb[0].mxu0
        %v4488 = vadd.f32 %v4282, %v4487
        %v4489 = vpop.f32.mrb[0].mxu0
        %v4490 = vadd.f32 %v4286, %v4489
        %4491 = vmatprep.mubr.bf16.mxu0 %v4216
        %4492 = vmatmul.mubr.bf16.gmra.mrb[0].mxu0 %v4215
        %v4493 = vpop.f32.mrb[0].mxu0
        %v4494 = vadd.f32 %v4282, %v4493
        %v4495 = vpop.f32.mrb[0].mxu0
        %v4496 = vadd.f32 %v4286, %v4495
        %v4497 = vpop.f32.mrb[0].mxu0
        %v4498 = vadd.f32 %v4282, %v4497
        %v4499 = vpop.f32.mrb[0].mxu0
        %v4500 = vadd.f32 %v4286, %v4499
        %4501 = vmatprep.mubr.bf16.mxu0 %v4218
        %4502 = vmatmul.mubr.bf16.gmra.mrb[0].mxu0 %v4217
        %v4503 = vpop.f32.mrb[0].mxu0
        %v4504 = vadd.f32 %v4282, %v4503
        %v4505 = vpop.f32.mrb[0].mxu0
        %v4506 = vadd.f32 %v4286, %v4505
        %v4507 = vpop.f32.mrb[0].mxu0
        %v4508 = vadd.f32 %v4282, %v4507
        %v4509 = vpop.f32.mrb[0].mxu0
        %v4510 = vadd.f32 %v4286, %v4509
        %4511 = vmatprep.mubr.bf16.mxu0 %v4220
        %4512 = vmatmul.mubr.bf16.gmra.mrb[0].mxu0 %v4219
        %v4513 = vpop.f32.mrb[0].mxu0
        %v4514 = vadd.f32 %v4282, %v4513
        %v4515 = vpop.f32.mrb[0].mxu0
        %v4516 = vadd.f32 %v4286, %v4515
        %v4517 = vpop.f32.mrb[0].mxu0
        %v4518 = vadd.f32 %v4282, %v4517
        %v4519 = vpop.f32.mrb[0].mxu0
        %v4520 = vadd.f32 %v4286, %v4519
        %4521 = vmatprep.mubr.bf16.mxu0 %v4222
        %4522 = vmatmul.mubr.bf16.gmra.mrb[0].mxu0 %v4221
        %v4523 = vpop.f32.mrb[0].mxu0
        %v4524 = vadd.f32 %v4282, %v4523
        %v4525 = vpop.f32.mrb[0].mxu0
        %v4526 = vadd.f32 %v4286, %v4525
        %v4527 = vpop.f32.mrb[0].mxu0
        %v4528 = vadd.f32 %v4282, %v4527
        %v4529 = vpop.f32.mrb[0].mxu0
        %v4530 = vadd.f32 %v4286, %v4529
        %4531 = vmatprep.mubr.bf16.mxu0 %v4224
        %4532 = vmatmul.mubr.bf16.gmra.mrb[0].mxu0 %v4223
        %v4533 = vpop.f32.mrb[0].mxu0
        %v4534 = vadd.f32 %v4282, %v4533
        %v4535 = vpop.f32.mrb[0].mxu0
        %v4536 = vadd.f32 %v4286, %v4535
        %v4537 = vpop.f32.mrb[0].mxu0
        %v4538 = vadd.f32 %v4282, %v4537
        %v4539 = vpop.f32.mrb[0].mxu0
        %v4540 = vadd.f32 %v4286, %v4539
        %4541 = vmatprep.mubr.bf16.mxu0 %v4226
        %4542 = vmatmul.mubr.bf16.gmra.mrb[0].mxu0 %v4225
        %v4543 = vpop.f32.mrb[0].mxu0
        %v4544 = vadd.f32 %v4282, %v4543
        %v4545 = vpop.f32.mrb[0].mxu0
        %v4546 = vadd.f32 %v4286, %v4545
        %v4547 = vpop.f32.mrb[0].mxu0
        %v4548 = vadd.f32 %v4282, %v4547
        %v4549 = vpop.f32.mrb[0].mxu0
        %v4550 = vadd.f32 %v4286, %v4549
        %4551 = vmatprep.mubr.bf16.mxu0 %v4228
        %4552 = vmatmul.mubr.bf16.gmra.mrb[0].mxu0 %v4227
        %v4553 = vpop.f32.mrb[0].mxu0
        %v4554 = vadd.f32 %v4282, %v4553
        %v4555 = vpop.f32.mrb[0].mxu0
        %v4556 = vadd.f32 %v4286, %v4555
        %v4557 = vpop.f32.mrb[0].mxu0
        %v4558 = vadd.f32 %v4282, %v4557
        %v4559 = vpop.f32.mrb[0].mxu0
        %v4560 = vadd.f32 %v4286, %v4559
        %4561 = vmatprep.mubr.bf16.mxu0 %v4230
        %4562 = vmatmul.mubr.bf16.gmra.mrb[0].mxu0 %v4229
        %v4563 = vpop.f32.mrb[0].mxu0
        %v4564 = vadd.f32 %v4282, %v4563
        %v4565 = vpop.f32.mrb[0].mxu0
        %v4566 = vadd.f32 %v4286, %v4565
        %v4567 = vpop.f32.mrb[0].mxu0
        %v4568 = vadd.f32 %v4282, %v4567
        %v4569 = vpop.f32.mrb[0].mxu0
        %v4570 = vadd.f32 %v4286, %v4569
        %4571 = vmatprep.mubr.bf16.mxu0 %v4232
        %4572 = vmatmul.mubr.bf16.gmra.mrb[0].mxu0 %v4231
        %v4573 = vpop.f32.mrb[0].mxu0
        %v4574 = vadd.f32 %v4282, %v4573
        %v4575 = vpop.f32.mrb[0].mxu0
        %v4576 = vadd.f32 %v4286, %v4575
        %v4577 = vpop.f32.mrb[0].mxu0
        %v4578 = vadd.f32 %v4282, %v4577
        %v4579 = vpop.f32.mrb[0].mxu0
        %v4580 = vadd.f32 %v4286, %v4579
        %4581 = vmatprep.mubr.bf16.mxu0 %v4234
        %4582 = vmatmul.mubr.bf16.gmra.mrb[0].mxu0 %v4233
        %v4583 = vpop.f32.mrb[0].mxu0
        %v4584 = vadd.f32 %v4282, %v4583
        %v4585 = vpop.f32.mrb[0].mxu0
        %v4586 = vadd.f32 %v4286, %v4585
        %v4587 = vpop.f32.mrb[0].mxu0
        %v4588 = vadd.f32 %v4282, %v4587
        %v4589 = vpop.f32.mrb[0].mxu0
        %v4590 = vadd.f32 %v4286, %v4589
        %4591 = vmatprep.mubr.bf16.mxu0 %v4236
        %4592 = vmatmul.mubr.bf16.gmra.mrb[0].mxu0 %v4235
        %v4593 = vpop.f32.mrb[0].mxu0
        %v4594 = vadd.f32 %v4282, %v4593
        %v4595 = vpop.f32.mrb[0].mxu0
        %v4596 = vadd.f32 %v4286, %v4595
        %v4597 = vpop.f32.mrb[0].mxu0
        %v4598 = vadd.f32 %v4282, %v4597
        %v4599 = vpop.f32.mrb[0].mxu0
        %v4600 = vadd.f32 %v4286, %v4599
        %4601 = vmatprep.mubr.bf16.mxu0 %v4238
        %4602 = vmatmul.mubr.bf16.gmra.mrb[0].mxu0 %v4237
        %v4603 = vpop.f32.mrb[0].mxu0
        %v4604 = vadd.f32 %v4282, %v4603
        %v4605 = vpop.f32.mrb[0].mxu0
        %v4606 = vadd.f32 %v4286, %v4605
        %v4607 = vpop.f32.mrb[0].mxu0
        %v4608 = vadd.f32 %v4282, %v4607
        %v4609 = vpop.f32.mrb[0].mxu0
        %v4610 = vadd.f32 %v4286, %v4609
        %4611 = vmatprep.mubr.bf16.mxu0 %v4240
        %4612 = vmatmul.mubr.bf16.gmra.mrb[0].mxu0 %v4239
        %v4613 = vpop.f32.mrb[0].mxu0
        %v4614 = vadd.f32 %v4282, %v4613
        %v4615 = vpop.f32.mrb[0].mxu0
        %v4616 = vadd.f32 %v4286, %v4615
        %v4617 = vpop.f32.mrb[0].mxu0
        %v4618 = vadd.f32 %v4282, %v4617
        %v4619 = vpop.f32.mrb[0].mxu0
        %v4620 = vadd.f32 %v4286, %v4619
        %4621 = vmatprep.mubr.bf16.mxu0 %v4242
        %4622 = vmatmul.mubr.bf16.gmra.mrb[0].mxu0 %v4241
        %v4623 = vpop.f32.mrb[0].mxu0
        %v4624 = vadd.f32 %v4282, %v4623
        %v4625 = vpop.f32.mrb[0].mxu0
        %v4626 = vadd.f32 %v4286, %v4625
        %v4627 = vpop.f32.mrb[0].mxu0
        %v4628 = vadd.f32 %v4282, %v4627
        %v4629 = vpop.f32.mrb[0].mxu0
        %v4630 = vadd.f32 %v4286, %v4629
        %4631 = vmatprep.mubr.bf16.mxu0 %v4244
        %4632 = vmatmul.mubr.bf16.gmra.mrb[0].mxu0 %v4243
        %v4633 = vpop.f32.mrb[0].mxu0
        %v4634 = vadd.f32 %v4282, %v4633
        %v4635 = vpop.f32.mrb[0].mxu0
        %v4636 = vadd.f32 %v4286, %v4635
        %v4637 = vpop.f32.mrb[0].mxu0
        %v4638 = vadd.f32 %v4282, %v4637
        %v4639 = vpop.f32.mrb[0].mxu0
        %v4640 = vadd.f32 %v4286, %v4639
        %4641 = vdwg.mxu0
        %v4642 = vld [vmem:[%s14] sm:$0x3]
        %v4643 = vld [vmem:[%s15] sm:$0x3]
        %v4644 = vadd.f32 %v4484, %v4486
        %4645 = vadd.xlane.f32.xlu0 %v4644
        %v4646 = vpop.xlane.xlu0 %4645
        %v4647 = vadd.f32 %v4488, %v4490
        %4648 = vadd.xlane.f32.xlu0 %v4647
        %v4649 = vpop.xlane.xlu0 %4648
        %v4650 = vadd.f32 %v4494, %v4496
        %4651 = vadd.xlane.f32.xlu0 %v4650
        %v4652 = vpop.xlane.xlu0 %4651
        %v4653 = vadd.f32 %v4498, %v4500
        %4654 = vadd.xlane.f32.xlu0 %v4653
        %v4655 = vpop.xlane.xlu0 %4654
        %v4656 = vadd.f32 %v4504, %v4506
        %4657 = vadd.xlane.f32.xlu0 %v4656
        %v4658 = vpop.xlane.xlu0 %4657
        %v4659 = vadd.f32 %v4508, %v4510
        %4660 = vadd.xlane.f32.xlu0 %v4659
        %v4661 = vpop.xlane.xlu0 %4660
        %v4662 = vadd.f32 %v4514, %v4516
        %4663 = vadd.xlane.f32.xlu0 %v4662
        %v4664 = vpop.xlane.xlu0 %4663
        %v4665 = vadd.f32 %v4518, %v4520
        %4666 = vadd.xlane.f32.xlu0 %v4665
        %v4667 = vpop.xlane.xlu0 %4666
        %v4668 = vadd.f32 %v4524, %v4526
        %4669 = vadd.xlane.f32.xlu0 %v4668
        %v4670 = vpop.xlane.xlu0 %4669
        %v4671 = vadd.f32 %v4528, %v4530
        %4672 = vadd.xlane.f32.xlu0 %v4671
        %v4673 = vpop.xlane.xlu0 %4672
        %v4674 = vadd.f32 %v4534, %v4536
        %4675 = vadd.xlane.f32.xlu0 %v4674
        %v4676 = vpop.xlane.xlu0 %4675
        %v4677 = vadd.f32 %v4538, %v4540
        %4678 = vadd.xlane.f32.xlu0 %v4677
        %v4679 = vpop.xlane.xlu0 %4678
        %v4680 = vadd.f32 %v4544, %v4546
        %4681 = vadd.xlane.f32.xlu0 %v4680
        %v4682 = vpop.xlane.xlu0 %4681
        %v4683 = vadd.f32 %v4548, %v4550
        %4684 = vadd.xlane.f32.xlu0 %v4683
        %v4685 = vpop.xlane.xlu0 %4684
        %v4686 = vadd.f32 %v4554, %v4556
        %4687 = vadd.xlane.f32.xlu0 %v4686
        %v4688 = vpop.xlane.xlu0 %4687
        %v4689 = vadd.f32 %v4558, %v4560
        %4690 = vadd.xlane.f32.xlu0 %v4689
        %v4691 = vpop.xlane.xlu0 %4690
        %v4692 = vadd.f32 %v4564, %v4566
        %4693 = vadd.xlane.f32.xlu0 %v4692
        %v4694 = vpop.xlane.xlu0 %4693
        %v4695 = vadd.f32 %v4568, %v4570
        %4696 = vadd.xlane.f32.xlu0 %v4695
        %v4697 = vpop.xlane.xlu0 %4696
        %v4698 = vadd.f32 %v4574, %v4576
        %4699 = vadd.xlane.f32.xlu0 %v4698
        %v4700 = vpop.xlane.xlu0 %4699
        %v4701 = vadd.f32 %v4578, %v4580
        %4702 = vadd.xlane.f32.xlu0 %v4701
        %v4703 = vpop.xlane.xlu0 %4702
        %v4704 = vadd.f32 %v4584, %v4586
        %4705 = vadd.xlane.f32.xlu0 %v4704
        %v4706 = vpop.xlane.xlu0 %4705
        %v4707 = vadd.f32 %v4588, %v4590
        %4708 = vadd.xlane.f32.xlu0 %v4707
        %v4709 = vpop.xlane.xlu0 %4708
        %v4710 = vadd.f32 %v4594, %v4596
        %4711 = vadd.xlane.f32.xlu0 %v4710
        %v4712 = vpop.xlane.xlu0 %4711
        %v4713 = vadd.f32 %v4598, %v4600
        %4714 = vadd.xlane.f32.xlu0 %v4713
        %v4715 = vpop.xlane.xlu0 %4714
        %v4716 = vadd.f32 %v4604, %v4606
        %4717 = vadd.xlane.f32.xlu0 %v4716
        %v4718 = vpop.xlane.xlu0 %4717
        %v4719 = vadd.f32 %v4608, %v4610
        %4720 = vadd.xlane.f32.xlu0 %v4719
        %v4721 = vpop.xlane.xlu0 %4720
        %v4722 = vadd.f32 %v4614, %v4616
        %4723 = vadd.xlane.f32.xlu0 %v4722
        %v4724 = vpop.xlane.xlu0 %4723
        %v4725 = vadd.f32 %v4618, %v4620
        %4726 = vadd.xlane.f32.xlu0 %v4725
        %v4727 = vpop.xlane.xlu0 %4726
        %v4728 = vadd.f32 %v4624, %v4626
        %4729 = vadd.xlane.f32.xlu0 %v4728
        %v4730 = vpop.xlane.xlu0 %4729
        %v4731 = vadd.f32 %v4628, %v4630
        %4732 = vadd.xlane.f32.xlu0 %v4731
        %v4733 = vpop.xlane.xlu0 %4732
        %v4734 = vadd.f32 %v4634, %v4636
        %4735 = vadd.xlane.f32.xlu0 %v4734
        %v4736 = vpop.xlane.xlu0 %4735
        %v4737 = vadd.f32 %v4638, %v4640
        %4738 = vadd.xlane.f32.xlu0 %v4737
        %v4739 = vpop.xlane.xlu0 %4738
        %v4740 = vmul.f32 %v4646, %v1805
        %v4741 = vmul.f32 %v4649, %v1805
        %v4742 = vmul.f32 %v4652, %v1805
        %v4743 = vmul.f32 %v4655, %v1805
        %v4744 = vmul.f32 %v4658, %v1805
        %v4745 = vmul.f32 %v4661, %v1805
        %v4746 = vmul.f32 %v4664, %v1805
        %v4747 = vmul.f32 %v4667, %v1805
        %v4748 = vmul.f32 %v4670, %v1805
        %v4749 = vmul.f32 %v4673, %v1805
        %v4750 = vmul.f32 %v4676, %v1805
        %v4751 = vmul.f32 %v4679, %v1805
        %v4752 = vmul.f32 %v4682, %v1805
        %v4753 = vmul.f32 %v4685, %v1805
        %v4754 = vmul.f32 %v4688, %v1805
        %v4755 = vmul.f32 %v4691, %v1805
        %v4756 = vmul.f32 %v4694, %v1805
        %v4757 = vmul.f32 %v4697, %v1805
        %v4758 = vmul.f32 %v4700, %v1805
        %v4759 = vmul.f32 %v4703, %v1805
        %v4760 = vmul.f32 %v4706, %v1805
        %v4761 = vmul.f32 %v4709, %v1805
        %v4762 = vmul.f32 %v4712, %v1805
        %v4763 = vmul.f32 %v4715, %v1805
        %v4764 = vmul.f32 %v4718, %v1805
        %v4765 = vmul.f32 %v4721, %v1805
        %v4766 = vmul.f32 %v4724, %v1805
        %v4767 = vmul.f32 %v4727, %v1805
        %v4768 = vmul.f32 %v4730, %v1805
        %v4769 = vmul.f32 %v4733, %v1805
        %v4770 = vmul.f32 %v4736, %v1805
        %v4771 = vmul.f32 %v4739, %v1805
        %v4772 = vmul.f32 %v4484, %v4484
        %v4773 = vmul.f32 %v4486, %v4486
        %v4774 = vmul.f32 %v4488, %v4488
        %v4775 = vmul.f32 %v4490, %v4490
        %v4776 = vmul.f32 %v4494, %v4494
        %v4777 = vmul.f32 %v4496, %v4496
        %v4778 = vmul.f32 %v4498, %v4498
        %v4779 = vmul.f32 %v4500, %v4500
        %v4780 = vmul.f32 %v4504, %v4504
        %v4781 = vmul.f32 %v4506, %v4506
        %v4782 = vmul.f32 %v4508, %v4508
        %v4783 = vmul.f32 %v4510, %v4510
        %v4784 = vmul.f32 %v4514, %v4514
        %v4785 = vmul.f32 %v4516, %v4516
        %v4786 = vmul.f32 %v4518, %v4518
        %v4787 = vmul.f32 %v4520, %v4520
        %v4788 = vmul.f32 %v4524, %v4524
        %v4789 = vmul.f32 %v4526, %v4526
        %v4790 = vmul.f32 %v4528, %v4528
        %v4791 = vmul.f32 %v4530, %v4530
        %v4792 = vmul.f32 %v4534, %v4534
        %v4793 = vmul.f32 %v4536, %v4536
        %v4794 = vmul.f32 %v4538, %v4538
        %v4795 = vmul.f32 %v4540, %v4540
        %v4796 = vmul.f32 %v4544, %v4544
        %v4797 = vmul.f32 %v4546, %v4546
        %v4798 = vmul.f32 %v4548, %v4548
        %v4799 = vmul.f32 %v4550, %v4550
        %v4800 = vmul.f32 %v4554, %v4554
        %v4801 = vmul.f32 %v4556, %v4556
        %v4802 = vmul.f32 %v4558, %v4558
        %v4803 = vmul.f32 %v4560, %v4560
        %v4804 = vmul.f32 %v4564, %v4564
        %v4805 = vmul.f32 %v4566, %v4566
        %v4806 = vmul.f32 %v4568, %v4568
        %v4807 = vmul.f32 %v4570, %v4570
        %v4808 = vmul.f32 %v4574, %v4574
        %v4809 = vmul.f32 %v4576, %v4576
        %v4810 = vmul.f32 %v4578, %v4578
        %v4811 = vmul.f32 %v4580, %v4580
        %v4812 = vmul.f32 %v4584, %v4584
        %v4813 = vmul.f32 %v4586, %v4586
        %v4814 = vmul.f32 %v4588, %v4588
        %v4815 = vmul.f32 %v4590, %v4590
        %v4816 = vmul.f32 %v4594, %v4594
        %v4817 = vmul.f32 %v4596, %v4596
        %v4818 = vmul.f32 %v4598, %v4598
        %v4819 = vmul.f32 %v4600, %v4600
        %v4820 = vmul.f32 %v4604, %v4604
        %v4821 = vmul.f32 %v4606, %v4606
        %v4822 = vmul.f32 %v4608, %v4608
        %v4823 = vmul.f32 %v4610, %v4610
        %v4824 = vmul.f32 %v4614, %v4614
        %v4825 = vmul.f32 %v4616, %v4616
        %v4826 = vmul.f32 %v4618, %v4618
        %v4827 = vmul.f32 %v4620, %v4620
        %v4828 = vmul.f32 %v4624, %v4624
        %v4829 = vmul.f32 %v4626, %v4626
        %v4830 = vmul.f32 %v4628, %v4628
        %v4831 = vmul.f32 %v4630, %v4630
        %v4832 = vmul.f32 %v4634, %v4634
        %v4833 = vmul.f32 %v4636, %v4636
        %v4834 = vmul.f32 %v4638, %v4638
        %v4835 = vmul.f32 %v4640, %v4640
        %v4836 = vadd.f32 %v4772, %v4773
        %4837 = vadd.xlane.f32.xlu0 %v4836
        %v4838 = vpop.xlane.xlu0 %4837
        %v4839 = vadd.f32 %v4774, %v4775
        %4840 = vadd.xlane.f32.xlu0 %v4839
        %v4841 = vpop.xlane.xlu0 %4840
        %v4842 = vadd.f32 %v4776, %v4777
        %4843 = vadd.xlane.f32.xlu0 %v4842
        %v4844 = vpop.xlane.xlu0 %4843
        %v4845 = vadd.f32 %v4778, %v4779
        %4846 = vadd.xlane.f32.xlu0 %v4845
        %v4847 = vpop.xlane.xlu0 %4846
        %v4848 = vadd.f32 %v4780, %v4781
        %4849 = vadd.xlane.f32.xlu0 %v4848
        %v4850 = vpop.xlane.xlu0 %4849
        %v4851 = vadd.f32 %v4782, %v4783
        %4852 = vadd.xlane.f32.xlu0 %v4851
        %v4853 = vpop.xlane.xlu0 %4852
        %v4854 = vadd.f32 %v4784, %v4785
        %4855 = vadd.xlane.f32.xlu0 %v4854
        %v4856 = vpop.xlane.xlu0 %4855
        %v4857 = vadd.f32 %v4786, %v4787
        %4858 = vadd.xlane.f32.xlu0 %v4857
        %v4859 = vpop.xlane.xlu0 %4858
        %v4860 = vadd.f32 %v4788, %v4789
        %4861 = vadd.xlane.f32.xlu0 %v4860
        %v4862 = vpop.xlane.xlu0 %4861
        %v4863 = vadd.f32 %v4790, %v4791
        %4864 = vadd.xlane.f32.xlu0 %v4863
        %v4865 = vpop.xlane.xlu0 %4864
        %v4866 = vadd.f32 %v4792, %v4793
        %4867 = vadd.xlane.f32.xlu0 %v4866
        %v4868 = vpop.xlane.xlu0 %4867
        %v4869 = vadd.f32 %v4794, %v4795
        %4870 = vadd.xlane.f32.xlu0 %v4869
        %v4871 = vpop.xlane.xlu0 %4870
        %v4872 = vadd.f32 %v4796, %v4797
        %4873 = vadd.xlane.f32.xlu0 %v4872
        %v4874 = vpop.xlane.xlu0 %4873
        %v4875 = vadd.f32 %v4798, %v4799
        %4876 = vadd.xlane.f32.xlu0 %v4875
        %v4877 = vpop.xlane.xlu0 %4876
        %v4878 = vadd.f32 %v4800, %v4801
        %4879 = vadd.xlane.f32.xlu0 %v4878
        %v4880 = vpop.xlane.xlu0 %4879
        %v4881 = vadd.f32 %v4802, %v4803
        %4882 = vadd.xlane.f32.xlu0 %v4881
        %v4883 = vpop.xlane.xlu0 %4882
        %v4884 = vadd.f32 %v4804, %v4805
        %4885 = vadd.xlane.f32.xlu0 %v4884
        %v4886 = vpop.xlane.xlu0 %4885
        %v4887 = vadd.f32 %v4806, %v4807
        %4888 = vadd.xlane.f32.xlu0 %v4887
        %v4889 = vpop.xlane.xlu0 %4888
        %v4890 = vadd.f32 %v4808, %v4809
        %4891 = vadd.xlane.f32.xlu0 %v4890
        %v4892 = vpop.xlane.xlu0 %4891
        %v4893 = vadd.f32 %v4810, %v4811
        %4894 = vadd.xlane.f32.xlu0 %v4893
        %v4895 = vpop.xlane.xlu0 %4894
        %v4896 = vadd.f32 %v4812, %v4813
        %4897 = vadd.xlane.f32.xlu0 %v4896
        %v4898 = vpop.xlane.xlu0 %4897
        %v4899 = vadd.f32 %v4814, %v4815
        %4900 = vadd.xlane.f32.xlu0 %v4899
        %v4901 = vpop.xlane.xlu0 %4900
        %v4902 = vadd.f32 %v4816, %v4817
        %4903 = vadd.xlane.f32.xlu0 %v4902
        %v4904 = vpop.xlane.xlu0 %4903
        %v4905 = vadd.f32 %v4818, %v4819
        %4906 = vadd.xlane.f32.xlu0 %v4905
        %v4907 = vpop.xlane.xlu0 %4906
        %v4908 = vadd.f32 %v4820, %v4821
        %4909 = vadd.xlane.f32.xlu0 %v4908
        %v4910 = vpop.xlane.xlu0 %4909
        %v4911 = vadd.f32 %v4822, %v4823
        %4912 = vadd.xlane.f32.xlu0 %v4911
        %v4913 = vpop.xlane.xlu0 %4912
        %v4914 = vadd.f32 %v4824, %v4825
        %4915 = vadd.xlane.f32.xlu0 %v4914
        %v4916 = vpop.xlane.xlu0 %4915
        %v4917 = vadd.f32 %v4826, %v4827
        %4918 = vadd.xlane.f32.xlu0 %v4917
        %v4919 = vpop.xlane.xlu0 %4918
        %v4920 = vadd.f32 %v4828, %v4829
        %4921 = vadd.xlane.f32.xlu0 %v4920
        %v4922 = vpop.xlane.xlu0 %4921
        %v4923 = vadd.f32 %v4830, %v4831
        %4924 = vadd.xlane.f32.xlu0 %v4923
        %v4925 = vpop.xlane.xlu0 %4924
        %v4926 = vadd.f32 %v4832, %v4833
        %4927 = vadd.xlane.f32.xlu0 %v4926
        %v4928 = vpop.xlane.xlu0 %4927
        %v4929 = vadd.f32 %v4834, %v4835
        %4930 = vadd.xlane.f32.xlu0 %v4929
        %v4931 = vpop.xlane.xlu0 %4930
        %v4932 = vmul.f32 %v4838, %v1805
        %v4933 = vmul.f32 %v4841, %v1805
        %v4934 = vmul.f32 %v4844, %v1805
        %v4935 = vmul.f32 %v4847, %v1805
        %v4936 = vmul.f32 %v4850, %v1805
        %v4937 = vmul.f32 %v4853, %v1805
        %v4938 = vmul.f32 %v4856, %v1805
        %v4939 = vmul.f32 %v4859, %v1805
        %v4940 = vmul.f32 %v4862, %v1805
        %v4941 = vmul.f32 %v4865, %v1805
        %v4942 = vmul.f32 %v4868, %v1805
        %v4943 = vmul.f32 %v4871, %v1805
        %v4944 = vmul.f32 %v4874, %v1805
        %v4945 = vmul.f32 %v4877, %v1805
        %v4946 = vmul.f32 %v4880, %v1805
        %v4947 = vmul.f32 %v4883, %v1805
        %v4948 = vmul.f32 %v4886, %v1805
        %v4949 = vmul.f32 %v4889, %v1805
        %v4950 = vmul.f32 %v4892, %v1805
        %v4951 = vmul.f32 %v4895, %v1805
        %v4952 = vmul.f32 %v4898, %v1805
        %v4953 = vmul.f32 %v4901, %v1805
        %v4954 = vmul.f32 %v4904, %v1805
        %v4955 = vmul.f32 %v4907, %v1805
        %v4956 = vmul.f32 %v4910, %v1805
        %v4957 = vmul.f32 %v4913, %v1805
        %v4958 = vmul.f32 %v4916, %v1805
        %v4959 = vmul.f32 %v4919, %v1805
        %v4960 = vmul.f32 %v4922, %v1805
        %v4961 = vmul.f32 %v4925, %v1805
        %v4962 = vmul.f32 %v4928, %v1805
        %v4963 = vmul.f32 %v4931, %v1805
        %v4964 = vmul.f32 %v4740, %v4740
        %v4965 = vmul.f32 %v4741, %v4741
        %v4966 = vmul.f32 %v4742, %v4742
        %v4967 = vmul.f32 %v4743, %v4743
        %v4968 = vmul.f32 %v4744, %v4744
        %v4969 = vmul.f32 %v4745, %v4745
        %v4970 = vmul.f32 %v4746, %v4746
        %v4971 = vmul.f32 %v4747, %v4747
        %v4972 = vmul.f32 %v4748, %v4748
        %v4973 = vmul.f32 %v4749, %v4749
        %v4974 = vmul.f32 %v4750, %v4750
        %v4975 = vmul.f32 %v4751, %v4751
        %v4976 = vmul.f32 %v4752, %v4752
        %v4977 = vmul.f32 %v4753, %v4753
        %v4978 = vmul.f32 %v4754, %v4754
        %v4979 = vmul.f32 %v4755, %v4755
        %v4980 = vmul.f32 %v4756, %v4756
        %v4981 = vmul.f32 %v4757, %v4757
        %v4982 = vmul.f32 %v4758, %v4758
        %v4983 = vmul.f32 %v4759, %v4759
        %v4984 = vmul.f32 %v4760, %v4760
        %v4985 = vmul.f32 %v4761, %v4761
        %v4986 = vmul.f32 %v4762, %v4762
        %v4987 = vmul.f32 %v4763, %v4763
        %v4988 = vmul.f32 %v4764, %v4764
        %v4989 = vmul.f32 %v4765, %v4765
        %v4990 = vmul.f32 %v4766, %v4766
        %v4991 = vmul.f32 %v4767, %v4767
        %v4992 = vmul.f32 %v4768, %v4768
        %v4993 = vmul.f32 %v4769, %v4769
        %v4994 = vmul.f32 %v4770, %v4770
        %v4995 = vmul.f32 %v4771, %v4771
        %v4996 = vsub.f32 %v4932, %v4964
        %v4997 = vsub.f32 %v4933, %v4965
        %v4998 = vsub.f32 %v4934, %v4966
        %v4999 = vsub.f32 %v4935, %v4967
        %v5000 = vsub.f32 %v4936, %v4968
        %v5001 = vsub.f32 %v4937, %v4969
        %v5002 = vsub.f32 %v4938, %v4970
        %v5003 = vsub.f32 %v4939, %v4971
        %v5004 = vsub.f32 %v4940, %v4972
        %v5005 = vsub.f32 %v4941, %v4973
        %v5006 = vsub.f32 %v4942, %v4974
        %v5007 = vsub.f32 %v4943, %v4975
        %v5008 = vsub.f32 %v4944, %v4976
        %v5009 = vsub.f32 %v4945, %v4977
        %v5010 = vsub.f32 %v4946, %v4978
        %v5011 = vsub.f32 %v4947, %v4979
        %v5012 = vsub.f32 %v4948, %v4980
        %v5013 = vsub.f32 %v4949, %v4981
        %v5014 = vsub.f32 %v4950, %v4982
        %v5015 = vsub.f32 %v4951, %v4983
        %v5016 = vsub.f32 %v4952, %v4984
        %v5017 = vsub.f32 %v4953, %v4985
        %v5018 = vsub.f32 %v4954, %v4986
        %v5019 = vsub.f32 %v4955, %v4987
        %v5020 = vsub.f32 %v4956, %v4988
        %v5021 = vsub.f32 %v4957, %v4989
        %v5022 = vsub.f32 %v4958, %v4990
        %v5023 = vsub.f32 %v4959, %v4991
        %v5024 = vsub.f32 %v4960, %v4992
        %v5025 = vsub.f32 %v4961, %v4993
        %v5026 = vsub.f32 %v4962, %v4994
        %v5027 = vsub.f32 %v4963, %v4995
        %v5028 = vsub.f32 %v4484, %v4740
        %v5029 = vsub.f32 %v4486, %v4740
        %v5030 = vsub.f32 %v4488, %v4741
        %v5031 = vsub.f32 %v4490, %v4741
        %v5032 = vsub.f32 %v4494, %v4742
        %v5033 = vsub.f32 %v4496, %v4742
        %v5034 = vsub.f32 %v4498, %v4743
        %v5035 = vsub.f32 %v4500, %v4743
        %v5036 = vsub.f32 %v4504, %v4744
        %v5037 = vsub.f32 %v4506, %v4744
        %v5038 = vsub.f32 %v4508, %v4745
        %v5039 = vsub.f32 %v4510, %v4745
        %v5040 = vsub.f32 %v4514, %v4746
        %v5041 = vsub.f32 %v4516, %v4746
        %v5042 = vsub.f32 %v4518, %v4747
        %v5043 = vsub.f32 %v4520, %v4747
        %v5044 = vsub.f32 %v4524, %v4748
        %v5045 = vsub.f32 %v4526, %v4748
        %v5046 = vsub.f32 %v4528, %v4749
        %v5047 = vsub.f32 %v4530, %v4749
        %v5048 = vsub.f32 %v4534, %v4750
        %v5049 = vsub.f32 %v4536, %v4750
        %v5050 = vsub.f32 %v4538, %v4751
        %v5051 = vsub.f32 %v4540, %v4751
        %v5052 = vsub.f32 %v4544, %v4752
        %v5053 = vsub.f32 %v4546, %v4752
        %v5054 = vsub.f32 %v4548, %v4753
        %v5055 = vsub.f32 %v4550, %v4753
        %v5056 = vsub.f32 %v4554, %v4754
        %v5057 = vsub.f32 %v4556, %v4754
        %v5058 = vsub.f32 %v4558, %v4755
        %v5059 = vsub.f32 %v4560, %v4755
        %v5060 = vsub.f32 %v4564, %v4756
        %v5061 = vsub.f32 %v4566, %v4756
        %v5062 = vsub.f32 %v4568, %v4757
        %v5063 = vsub.f32 %v4570, %v4757
        %v5064 = vsub.f32 %v4574, %v4758
        %v5065 = vsub.f32 %v4576, %v4758
        %v5066 = vsub.f32 %v4578, %v4759
        %v5067 = vsub.f32 %v4580, %v4759
        %v5068 = vsub.f32 %v4584, %v4760
        %v5069 = vsub.f32 %v4586, %v4760
        %v5070 = vsub.f32 %v4588, %v4761
        %v5071 = vsub.f32 %v4590, %v4761
        %v5072 = vsub.f32 %v4594, %v4762
        %v5073 = vsub.f32 %v4596, %v4762
        %v5074 = vsub.f32 %v4598, %v4763
        %v5075 = vsub.f32 %v4600, %v4763
        %v5076 = vsub.f32 %v4604, %v4764
        %v5077 = vsub.f32 %v4606, %v4764
        %v5078 = vsub.f32 %v4608, %v4765
        %v5079 = vsub.f32 %v4610, %v4765
        %v5080 = vsub.f32 %v4614, %v4766
        %v5081 = vsub.f32 %v4616, %v4766
        %v5082 = vsub.f32 %v4618, %v4767
        %v5083 = vsub.f32 %v4620, %v4767
        %v5084 = vsub.f32 %v4624, %v4768
        %v5085 = vsub.f32 %v4626, %v4768
        %v5086 = vsub.f32 %v4628, %v4769
        %v5087 = vsub.f32 %v4630, %v4769
        %v5088 = vsub.f32 %v4634, %v4770
        %v5089 = vsub.f32 %v4636, %v4770
        %v5090 = vsub.f32 %v4638, %v4771
        %v5091 = vsub.f32 %v4640, %v4771
        %v5092 = vadd.f32 %v4996, 1e-05
        %v5093 = vadd.f32 %v4997, 1e-05
        %v5094 = vadd.f32 %v4998, 1e-05
        %v5095 = vadd.f32 %v4999, 1e-05
        %v5096 = vadd.f32 %v5000, 1e-05
        %v5097 = vadd.f32 %v5001, 1e-05
        %v5098 = vadd.f32 %v5002, 1e-05
        %v5099 = vadd.f32 %v5003, 1e-05
        %v5100 = vadd.f32 %v5004, 1e-05
        %v5101 = vadd.f32 %v5005, 1e-05
        %v5102 = vadd.f32 %v5006, 1e-05
        %v5103 = vadd.f32 %v5007, 1e-05
        %v5104 = vadd.f32 %v5008, 1e-05
        %v5105 = vadd.f32 %v5009, 1e-05
        %v5106 = vadd.f32 %v5010, 1e-05
        %v5107 = vadd.f32 %v5011, 1e-05
        %v5108 = vadd.f32 %v5012, 1e-05
        %v5109 = vadd.f32 %v5013, 1e-05
        %v5110 = vadd.f32 %v5014, 1e-05
        %v5111 = vadd.f32 %v5015, 1e-05
        %v5112 = vadd.f32 %v5016, 1e-05
        %v5113 = vadd.f32 %v5017, 1e-05
        %v5114 = vadd.f32 %v5018, 1e-05
        %v5115 = vadd.f32 %v5019, 1e-05
        %v5116 = vadd.f32 %v5020, 1e-05
        %v5117 = vadd.f32 %v5021, 1e-05
        %v5118 = vadd.f32 %v5022, 1e-05
        %v5119 = vadd.f32 %v5023, 1e-05
        %v5120 = vadd.f32 %v5024, 1e-05
        %v5121 = vadd.f32 %v5025, 1e-05
        %v5122 = vadd.f32 %v5026, 1e-05
        %v5123 = vadd.f32 %v5027, 1e-05
        %v5124 = vrsqrt.pop %v5092
        %v5125 = vrsqrt.pop %v5093
        %v5126 = vrsqrt.pop %v5094
        %v5127 = vrsqrt.pop %v5095
        %v5128 = vrsqrt.pop %v5096
        %v5129 = vrsqrt.pop %v5097
        %v5130 = vrsqrt.pop %v5098
        %v5131 = vrsqrt.pop %v5099
        %v5132 = vrsqrt.pop %v5100
        %v5133 = vrsqrt.pop %v5101
        %v5134 = vrsqrt.pop %v5102
        %v5135 = vrsqrt.pop %v5103
        %v5136 = vrsqrt.pop %v5104
        %v5137 = vrsqrt.pop %v5105
        %v5138 = vrsqrt.pop %v5106
        %v5139 = vrsqrt.pop %v5107
        %v5140 = vrsqrt.pop %v5108
        %v5141 = vrsqrt.pop %v5109
        %v5142 = vrsqrt.pop %v5110
        %v5143 = vrsqrt.pop %v5111
        %v5144 = vrsqrt.pop %v5112
        %v5145 = vrsqrt.pop %v5113
        %v5146 = vrsqrt.pop %v5114
        %v5147 = vrsqrt.pop %v5115
        %v5148 = vrsqrt.pop %v5116
        %v5149 = vrsqrt.pop %v5117
        %v5150 = vrsqrt.pop %v5118
        %v5151 = vrsqrt.pop %v5119
        %v5152 = vrsqrt.pop %v5120
        %v5153 = vrsqrt.pop %v5121
        %v5154 = vrsqrt.pop %v5122
        %v5155 = vrsqrt.pop %v5123
        %v5156 = vmul.f32 %v5028, %v5124
        %v5157 = vmul.f32 %v5029, %v5124
        %v5158 = vmul.f32 %v5030, %v5125
        %v5159 = vmul.f32 %v5031, %v5125
        %v5160 = vmul.f32 %v5032, %v5126
        %v5161 = vmul.f32 %v5033, %v5126
        %v5162 = vmul.f32 %v5034, %v5127
        %v5163 = vmul.f32 %v5035, %v5127
        %v5164 = vmul.f32 %v5036, %v5128
        %v5165 = vmul.f32 %v5037, %v5128
        %v5166 = vmul.f32 %v5038, %v5129
        %v5167 = vmul.f32 %v5039, %v5129
        %v5168 = vmul.f32 %v5040, %v5130
        %v5169 = vmul.f32 %v5041, %v5130
        %v5170 = vmul.f32 %v5042, %v5131
        %v5171 = vmul.f32 %v5043, %v5131
        %v5172 = vmul.f32 %v5044, %v5132
        %v5173 = vmul.f32 %v5045, %v5132
        %v5174 = vmul.f32 %v5046, %v5133
        %v5175 = vmul.f32 %v5047, %v5133
        %v5176 = vmul.f32 %v5048, %v5134
        %v5177 = vmul.f32 %v5049, %v5134
        %v5178 = vmul.f32 %v5050, %v5135
        %v5179 = vmul.f32 %v5051, %v5135
        %v5180 = vmul.f32 %v5052, %v5136
        %v5181 = vmul.f32 %v5053, %v5136
        %v5182 = vmul.f32 %v5054, %v5137
        %v5183 = vmul.f32 %v5055, %v5137
        %v5184 = vmul.f32 %v5056, %v5138
        %v5185 = vmul.f32 %v5057, %v5138
        %v5186 = vmul.f32 %v5058, %v5139
        %v5187 = vmul.f32 %v5059, %v5139
        %v5188 = vmul.f32 %v5060, %v5140
        %v5189 = vmul.f32 %v5061, %v5140
        %v5190 = vmul.f32 %v5062, %v5141
        %v5191 = vmul.f32 %v5063, %v5141
        %v5192 = vmul.f32 %v5064, %v5142
        %v5193 = vmul.f32 %v5065, %v5142
        %v5194 = vmul.f32 %v5066, %v5143
        %v5195 = vmul.f32 %v5067, %v5143
        %v5196 = vmul.f32 %v5068, %v5144
        %v5197 = vmul.f32 %v5069, %v5144
        %v5198 = vmul.f32 %v5070, %v5145
        %v5199 = vmul.f32 %v5071, %v5145
        %v5200 = vmul.f32 %v5072, %v5146
        %v5201 = vmul.f32 %v5073, %v5146
        %v5202 = vmul.f32 %v5074, %v5147
        %v5203 = vmul.f32 %v5075, %v5147
        %v5204 = vmul.f32 %v5076, %v5148
        %v5205 = vmul.f32 %v5077, %v5148
        %v5206 = vmul.f32 %v5078, %v5149
        %v5207 = vmul.f32 %v5079, %v5149
        %v5208 = vmul.f32 %v5080, %v5150
        %v5209 = vmul.f32 %v5081, %v5150
        %v5210 = vmul.f32 %v5082, %v5151
        %v5211 = vmul.f32 %v5083, %v5151
        %v5212 = vmul.f32 %v5084, %v5152
        %v5213 = vmul.f32 %v5085, %v5152
        %v5214 = vmul.f32 %v5086, %v5153
        %v5215 = vmul.f32 %v5087, %v5153
        %v5216 = vmul.f32 %v5088, %v5154
        %v5217 = vmul.f32 %v5089, %v5154
        %v5218 = vmul.f32 %v5090, %v5155
        %v5219 = vmul.f32 %v5091, %v5155
        %v5221 = vlaneseq
        %v5222 = vshrl.u32 %v5221, 7
        %v5223 = vsub.s32 0, %v5222
        %v5224 = vrot.slane %v4642, %v5223
        %v5225 = vlaneseq
        %v5226 = vshrl.u32 %v5225, 7
        %v5227 = vsub.s32 1, %v5226
        %v5228 = vrot.slane %v4642, %v5227
        %v5231 = vmul.f32 %v5156, %v5224
        %v5232 = vmul.f32 %v5157, %v5228
        %v5233 = vmul.f32 %v5158, %v5224
        %v5234 = vmul.f32 %v5159, %v5228
        %v5235 = vmul.f32 %v5160, %v5224
        %v5236 = vmul.f32 %v5161, %v5228
        %v5237 = vmul.f32 %v5162, %v5224
        %v5238 = vmul.f32 %v5163, %v5228
        %v5239 = vmul.f32 %v5164, %v5224
        %v5240 = vmul.f32 %v5165, %v5228
        %v5241 = vmul.f32 %v5166, %v5224
        %v5242 = vmul.f32 %v5167, %v5228
        %v5243 = vmul.f32 %v5168, %v5224
        %v5244 = vmul.f32 %v5169, %v5228
        %v5245 = vmul.f32 %v5170, %v5224
        %v5246 = vmul.f32 %v5171, %v5228
        %v5247 = vmul.f32 %v5172, %v5224
        %v5248 = vmul.f32 %v5173, %v5228
        %v5249 = vmul.f32 %v5174, %v5224
        %v5250 = vmul.f32 %v5175, %v5228
        %v5251 = vmul.f32 %v5176, %v5224
        %v5252 = vmul.f32 %v5177, %v5228
        %v5253 = vmul.f32 %v5178, %v5224
        %v5254 = vmul.f32 %v5179, %v5228
        %v5255 = vmul.f32 %v5180, %v5224
        %v5256 = vmul.f32 %v5181, %v5228
        %v5257 = vmul.f32 %v5182, %v5224
        %v5258 = vmul.f32 %v5183, %v5228
        %v5259 = vmul.f32 %v5184, %v5224
        %v5260 = vmul.f32 %v5185, %v5228
        %v5261 = vmul.f32 %v5186, %v5224
        %v5262 = vmul.f32 %v5187, %v5228
        %v5263 = vmul.f32 %v5188, %v5224
        %v5264 = vmul.f32 %v5189, %v5228
        %v5265 = vmul.f32 %v5190, %v5224
        %v5266 = vmul.f32 %v5191, %v5228
        %v5267 = vmul.f32 %v5192, %v5224
        %v5268 = vmul.f32 %v5193, %v5228
        %v5269 = vmul.f32 %v5194, %v5224
        %v5270 = vmul.f32 %v5195, %v5228
        %v5271 = vmul.f32 %v5196, %v5224
        %v5272 = vmul.f32 %v5197, %v5228
        %v5273 = vmul.f32 %v5198, %v5224
        %v5274 = vmul.f32 %v5199, %v5228
        %v5275 = vmul.f32 %v5200, %v5224
        %v5276 = vmul.f32 %v5201, %v5228
        %v5277 = vmul.f32 %v5202, %v5224
        %v5278 = vmul.f32 %v5203, %v5228
        %v5279 = vmul.f32 %v5204, %v5224
        %v5280 = vmul.f32 %v5205, %v5228
        %v5281 = vmul.f32 %v5206, %v5224
        %v5282 = vmul.f32 %v5207, %v5228
        %v5283 = vmul.f32 %v5208, %v5224
        %v5284 = vmul.f32 %v5209, %v5228
        %v5285 = vmul.f32 %v5210, %v5224
        %v5286 = vmul.f32 %v5211, %v5228
        %v5287 = vmul.f32 %v5212, %v5224
        %v5288 = vmul.f32 %v5213, %v5228
        %v5289 = vmul.f32 %v5214, %v5224
        %v5290 = vmul.f32 %v5215, %v5228
        %v5291 = vmul.f32 %v5216, %v5224
        %v5292 = vmul.f32 %v5217, %v5228
        %v5293 = vmul.f32 %v5218, %v5224
        %v5294 = vmul.f32 %v5219, %v5228
        %v5296 = vlaneseq
        %v5297 = vshrl.u32 %v5296, 7
        %v5298 = vsub.s32 0, %v5297
        %v5299 = vrot.slane %v4643, %v5298
        %v5300 = vlaneseq
        %v5301 = vshrl.u32 %v5300, 7
        %v5302 = vsub.s32 1, %v5301
        %v5303 = vrot.slane %v4643, %v5302
        %v5306 = vadd.f32 %v5231, %v5299
        %v5307 = vadd.f32 %v5232, %v5303
        %v5308 = vadd.f32 %v5233, %v5299
        %v5309 = vadd.f32 %v5234, %v5303
        %v5310 = vadd.f32 %v5235, %v5299
        %v5311 = vadd.f32 %v5236, %v5303
        %v5312 = vadd.f32 %v5237, %v5299
        %v5313 = vadd.f32 %v5238, %v5303
        %v5314 = vadd.f32 %v5239, %v5299
        %v5315 = vadd.f32 %v5240, %v5303
        %v5316 = vadd.f32 %v5241, %v5299
        %v5317 = vadd.f32 %v5242, %v5303
        %v5318 = vadd.f32 %v5243, %v5299
        %v5319 = vadd.f32 %v5244, %v5303
        %v5320 = vadd.f32 %v5245, %v5299
        %v5321 = vadd.f32 %v5246, %v5303
        %v5322 = vadd.f32 %v5247, %v5299
        %v5323 = vadd.f32 %v5248, %v5303
        %v5324 = vadd.f32 %v5249, %v5299
        %v5325 = vadd.f32 %v5250, %v5303
        %v5326 = vadd.f32 %v5251, %v5299
        %v5327 = vadd.f32 %v5252, %v5303
        %v5328 = vadd.f32 %v5253, %v5299
        %v5329 = vadd.f32 %v5254, %v5303
        %v5330 = vadd.f32 %v5255, %v5299
        %v5331 = vadd.f32 %v5256, %v5303
        %v5332 = vadd.f32 %v5257, %v5299
        %v5333 = vadd.f32 %v5258, %v5303
        %v5334 = vadd.f32 %v5259, %v5299
        %v5335 = vadd.f32 %v5260, %v5303
        %v5336 = vadd.f32 %v5261, %v5299
        %v5337 = vadd.f32 %v5262, %v5303
        %v5338 = vadd.f32 %v5263, %v5299
        %v5339 = vadd.f32 %v5264, %v5303
        %v5340 = vadd.f32 %v5265, %v5299
        %v5341 = vadd.f32 %v5266, %v5303
        %v5342 = vadd.f32 %v5267, %v5299
        %v5343 = vadd.f32 %v5268, %v5303
        %v5344 = vadd.f32 %v5269, %v5299
        %v5345 = vadd.f32 %v5270, %v5303
        %v5346 = vadd.f32 %v5271, %v5299
        %v5347 = vadd.f32 %v5272, %v5303
        %v5348 = vadd.f32 %v5273, %v5299
        %v5349 = vadd.f32 %v5274, %v5303
        %v5350 = vadd.f32 %v5275, %v5299
        %v5351 = vadd.f32 %v5276, %v5303
        %v5352 = vadd.f32 %v5277, %v5299
        %v5353 = vadd.f32 %v5278, %v5303
        %v5354 = vadd.f32 %v5279, %v5299
        %v5355 = vadd.f32 %v5280, %v5303
        %v5356 = vadd.f32 %v5281, %v5299
        %v5357 = vadd.f32 %v5282, %v5303
        %v5358 = vadd.f32 %v5283, %v5299
        %v5359 = vadd.f32 %v5284, %v5303
        %v5360 = vadd.f32 %v5285, %v5299
        %v5361 = vadd.f32 %v5286, %v5303
        %v5362 = vadd.f32 %v5287, %v5299
        %v5363 = vadd.f32 %v5288, %v5303
        %v5364 = vadd.f32 %v5289, %v5299
        %v5365 = vadd.f32 %v5290, %v5303
        %v5366 = vadd.f32 %v5291, %v5299
        %v5367 = vadd.f32 %v5292, %v5303
        %v5368 = vadd.f32 %v5293, %v5299
        %v5369 = vadd.f32 %v5294, %v5303
        %v5370 = vpack.c.bf16 %v5308, %v5306
        %v5371 = vpack.c.bf16 %v5309, %v5307
        %v5372 = vpack.c.bf16 %v5312, %v5310
        %v5373 = vpack.c.bf16 %v5313, %v5311
        %v5374 = vpack.c.bf16 %v5316, %v5314
        %v5375 = vpack.c.bf16 %v5317, %v5315
        %v5376 = vpack.c.bf16 %v5320, %v5318
        %v5377 = vpack.c.bf16 %v5321, %v5319
        %v5378 = vpack.c.bf16 %v5324, %v5322
        %v5379 = vpack.c.bf16 %v5325, %v5323
        %v5380 = vpack.c.bf16 %v5328, %v5326
        %v5381 = vpack.c.bf16 %v5329, %v5327
        %v5382 = vpack.c.bf16 %v5332, %v5330
        %v5383 = vpack.c.bf16 %v5333, %v5331
        %v5384 = vpack.c.bf16 %v5336, %v5334
        %v5385 = vpack.c.bf16 %v5337, %v5335
        %v5386 = vpack.c.bf16 %v5340, %v5338
        %v5387 = vpack.c.bf16 %v5341, %v5339
        %v5388 = vpack.c.bf16 %v5344, %v5342
        %v5389 = vpack.c.bf16 %v5345, %v5343
        %v5390 = vpack.c.bf16 %v5348, %v5346
        %v5391 = vpack.c.bf16 %v5349, %v5347
        %v5392 = vpack.c.bf16 %v5352, %v5350
        %v5393 = vpack.c.bf16 %v5353, %v5351
        %v5394 = vpack.c.bf16 %v5356, %v5354
        %v5395 = vpack.c.bf16 %v5357, %v5355
        %v5396 = vpack.c.bf16 %v5360, %v5358
        %v5397 = vpack.c.bf16 %v5361, %v5359
        %v5398 = vpack.c.bf16 %v5364, %v5362
        %v5399 = vpack.c.bf16 %v5365, %v5363
        %v5400 = vpack.c.bf16 %v5368, %v5366
        %v5401 = vpack.c.bf16 %v5369, %v5367
        %v5402 = vld [vmem:[#allocation16] sm:$0xff]
        %v5403 = vld [vmem:[#allocation16 + $0x8] sm:$0xff]
        %v5404 = vld [vmem:[#allocation16 + $0x10] sm:$0xff]
        %v5405 = vld [vmem:[#allocation16 + $0x18] sm:$0xff]
        %v5406 = vld [vmem:[#allocation16 + $0x20] sm:$0xff]
        %v5407 = vld [vmem:[#allocation16 + $0x28] sm:$0xff]
        %v5408 = vld [vmem:[#allocation16 + $0x30] sm:$0xff]
        %v5409 = vld [vmem:[#allocation16 + $0x38] sm:$0xff]
        %v5410 = vld [vmem:[#allocation16 + $0x40] sm:$0xff]
        %v5411 = vld [vmem:[#allocation16 + $0x48] sm:$0xff]
        %v5412 = vld [vmem:[#allocation16 + $0x50] sm:$0xff]
        %v5413 = vld [vmem:[#allocation16 + $0x58] sm:$0xff]
        %v5414 = vld [vmem:[#allocation16 + $0x60] sm:$0xff]
        %v5415 = vld [vmem:[#allocation16 + $0x68] sm:$0xff]
        %v5416 = vld [vmem:[#allocation16 + $0x70] sm:$0xff]
        %v5417 = vld [vmem:[#allocation16 + $0x78] sm:$0xff]
        %v5418 = vld [vmem:[#allocation16 + $0x80] sm:$0xff]
        %v5419 = vld [vmem:[#allocation16 + $0x88] sm:$0xff]
        %v5420 = vld [vmem:[#allocation16 + $0x90] sm:$0xff]
        %v5421 = vld [vmem:[#allocation16 + $0x98] sm:$0xff]
        %v5422 = vld [vmem:[#allocation16 + $0xa0] sm:$0xff]
        %v5423 = vld [vmem:[#allocation16 + $0xa8] sm:$0xff]
        %v5424 = vld [vmem:[#allocation16 + $0xb0] sm:$0xff]
        %v5425 = vld [vmem:[#allocation16 + $0xb8] sm:$0xff]
        %v5426 = vld [vmem:[#allocation16 + $0xc0] sm:$0xff]
        %v5427 = vld [vmem:[#allocation16 + $0xc8] sm:$0xff]
        %v5428 = vld [vmem:[#allocation16 + $0xd0] sm:$0xff]
        %v5429 = vld [vmem:[#allocation16 + $0xd8] sm:$0xff]
        %v5430 = vld [vmem:[#allocation16 + $0xe0] sm:$0xff]
        %v5431 = vld [vmem:[#allocation16 + $0xe8] sm:$0xff]
        %v5432 = vld [vmem:[#allocation16 + $0xf0] sm:$0xff]
        %v5433 = vld [vmem:[#allocation16 + $0xf8] sm:$0xff]
        %v5434 = vld [vmem:[%s17] sm:$0x3]
        %v5436 = vlaneseq
        %v5437 = vshrl.u32 %v5436, 7
        %v5438 = vsub.s32 0, %v5437
        %v5439 = vrot.slane %v5434, %v5438
        %v5440 = vlaneseq
        %v5441 = vshrl.u32 %v5440, 7
        %v5442 = vsub.s32 1, %v5441
        %v5443 = vrot.slane %v5434, %v5442
        %v5478 = vunpack.c.l.b16 %v5402
        %v5479 = vunpack.c.h.b16 %v5402
        %v5480 = vunpack.c.l.b16 %v5403
        %v5481 = vunpack.c.h.b16 %v5403
        %v5482 = vunpack.c.l.b16 %v5404
        %v5483 = vunpack.c.h.b16 %v5404
        %v5484 = vunpack.c.l.b16 %v5405
        %v5485 = vunpack.c.h.b16 %v5405
        %v5486 = vunpack.c.l.b16 %v5406
        %v5487 = vunpack.c.h.b16 %v5406
        %v5488 = vunpack.c.l.b16 %v5407
        %v5489 = vunpack.c.h.b16 %v5407
        %v5490 = vunpack.c.l.b16 %v5408
        %v5491 = vunpack.c.h.b16 %v5408
        %v5492 = vunpack.c.l.b16 %v5409
        %v5493 = vunpack.c.h.b16 %v5409
        %v5494 = vunpack.c.l.b16 %v5410
        %v5495 = vunpack.c.h.b16 %v5410
        %v5496 = vunpack.c.l.b16 %v5411
        %v5497 = vunpack.c.h.b16 %v5411
        %v5498 = vunpack.c.l.b16 %v5412
        %v5499 = vunpack.c.h.b16 %v5412
        %v5500 = vunpack.c.l.b16 %v5413
        %v5501 = vunpack.c.h.b16 %v5413
        %v5502 = vunpack.c.l.b16 %v5414
        %v5503 = vunpack.c.h.b16 %v5414
        %v5504 = vunpack.c.l.b16 %v5415
        %v5505 = vunpack.c.h.b16 %v5415
        %v5506 = vunpack.c.l.b16 %v5416
        %v5507 = vunpack.c.h.b16 %v5416
        %v5508 = vunpack.c.l.b16 %v5417
        %v5509 = vunpack.c.h.b16 %v5417
        %v5510 = vunpack.c.l.b16 %v5418
        %v5511 = vunpack.c.h.b16 %v5418
        %v5512 = vunpack.c.l.b16 %v5419
        %v5513 = vunpack.c.h.b16 %v5419
        %v5514 = vunpack.c.l.b16 %v5420
        %v5515 = vunpack.c.h.b16 %v5420
        %v5516 = vunpack.c.l.b16 %v5421
        %v5517 = vunpack.c.h.b16 %v5421
        %v5518 = vunpack.c.l.b16 %v5422
        %v5519 = vunpack.c.h.b16 %v5422
        %v5520 = vunpack.c.l.b16 %v5423
        %v5521 = vunpack.c.h.b16 %v5423
        %v5522 = vunpack.c.l.b16 %v5424
        %v5523 = vunpack.c.h.b16 %v5424
        %v5524 = vunpack.c.l.b16 %v5425
        %v5525 = vunpack.c.h.b16 %v5425
        %v5526 = vunpack.c.l.b16 %v5426
        %v5527 = vunpack.c.h.b16 %v5426
        %v5528 = vunpack.c.l.b16 %v5427
        %v5529 = vunpack.c.h.b16 %v5427
        %v5530 = vunpack.c.l.b16 %v5428
        %v5531 = vunpack.c.h.b16 %v5428
        %v5532 = vunpack.c.l.b16 %v5429
        %v5533 = vunpack.c.h.b16 %v5429
        %v5534 = vunpack.c.l.b16 %v5430
        %v5535 = vunpack.c.h.b16 %v5430
        %v5536 = vunpack.c.l.b16 %v5431
        %v5537 = vunpack.c.h.b16 %v5431
        %v5538 = vunpack.c.l.b16 %v5432
        %v5539 = vunpack.c.h.b16 %v5432
        %v5540 = vunpack.c.l.b16 %v5433
        %v5541 = vunpack.c.h.b16 %v5433
        %v5542 = vpack.c.b16 %v5480, %v5478
        %v5543 = vpack.c.b16 %v5481, %v5479
        %v5544 = vpack.c.b16 %v5484, %v5482
        %v5545 = vpack.c.b16 %v5485, %v5483
        %v5546 = vpack.c.b16 %v5488, %v5486
        %v5547 = vpack.c.b16 %v5489, %v5487
        %v5548 = vpack.c.b16 %v5492, %v5490
        %v5549 = vpack.c.b16 %v5493, %v5491
        %v5550 = vpack.c.b16 %v5496, %v5494
        %v5551 = vpack.c.b16 %v5497, %v5495
        %v5552 = vpack.c.b16 %v5500, %v5498
        %v5553 = vpack.c.b16 %v5501, %v5499
        %v5554 = vpack.c.b16 %v5504, %v5502
        %v5555 = vpack.c.b16 %v5505, %v5503
        %v5556 = vpack.c.b16 %v5508, %v5506
        %v5557 = vpack.c.b16 %v5509, %v5507
        %v5558 = vpack.c.b16 %v5512, %v5510
        %v5559 = vpack.c.b16 %v5513, %v5511
        %v5560 = vpack.c.b16 %v5516, %v5514
        %v5561 = vpack.c.b16 %v5517, %v5515
        %v5562 = vpack.c.b16 %v5520, %v5518
        %v5563 = vpack.c.b16 %v5521, %v5519
        %v5564 = vpack.c.b16 %v5524, %v5522
        %v5565 = vpack.c.b16 %v5525, %v5523
        %v5566 = vpack.c.b16 %v5528, %v5526
        %v5567 = vpack.c.b16 %v5529, %v5527
        %v5568 = vpack.c.b16 %v5532, %v5530
        %v5569 = vpack.c.b16 %v5533, %v5531
        %v5570 = vpack.c.b16 %v5536, %v5534
        %v5571 = vpack.c.b16 %v5537, %v5535
        %v5572 = vpack.c.b16 %v5540, %v5538
        %v5573 = vpack.c.b16 %v5541, %v5539
        %5606 = vmatprep.subr.bf16.mxu0 %v5543
        %5607 = vmatpush1.bf16.msra.mxu0 %v5542
        %5608 = vmatprep.subr.bf16.mxu0 %v5545
        %5609 = vmatpush1.bf16.msra.mxu0 %v5544
        %5610 = vmatprep.subr.bf16.mxu0 %v5547
        %5611 = vmatpush1.bf16.msra.mxu0 %v5546
        %5612 = vmatprep.subr.bf16.mxu0 %v5549
        %5613 = vmatpush1.bf16.msra.mxu0 %v5548
        %5614 = vmatprep.subr.bf16.mxu0 %v5551
        %5615 = vmatpush1.bf16.msra.mxu0 %v5550
        %5616 = vmatprep.subr.bf16.mxu0 %v5553
        %5617 = vmatpush1.bf16.msra.mxu0 %v5552
        %5618 = vmatprep.subr.bf16.mxu0 %v5555
        %5619 = vmatpush1.bf16.msra.mxu0 %v5554
        %5620 = vmatprep.subr.bf16.mxu0 %v5557
        %5621 = vmatpush1.bf16.msra.mxu0 %v5556
        %5622 = vmatprep.subr.bf16.mxu0 %v5559
        %5623 = vmatpush1.bf16.msra.mxu0 %v5558
        %5624 = vmatprep.subr.bf16.mxu0 %v5561
        %5625 = vmatpush1.bf16.msra.mxu0 %v5560
        %5626 = vmatprep.subr.bf16.mxu0 %v5563
        %5627 = vmatpush1.bf16.msra.mxu0 %v5562
        %5628 = vmatprep.subr.bf16.mxu0 %v5565
        %5629 = vmatpush1.bf16.msra.mxu0 %v5564
        %5630 = vmatprep.subr.bf16.mxu0 %v5567
        %5631 = vmatpush1.bf16.msra.mxu0 %v5566
        %5632 = vmatprep.subr.bf16.mxu0 %v5569
        %5633 = vmatpush1.bf16.msra.mxu0 %v5568
        %5634 = vmatprep.subr.bf16.mxu0 %v5571
        %5635 = vmatpush1.bf16.msra.mxu0 %v5570
        %5636 = vmatprep.subr.bf16.mxu0 %v5573
        %5637 = vmatpush1.bf16.msra.mxu0 %v5572
        %5638 = vmatprep.mubr.bf16.mxu0 %v5371
        %5639 = vmatmul.mubr.bf16.gmra.mrb[0].mxu0 %v5370
        %v5640 = vpop.f32.mrb[0].mxu0
        %v5641 = vadd.f32 %v5439, %v5640
        %v5642 = vpop.f32.mrb[0].mxu0
        %v5643 = vadd.f32 %v5443, %v5642
        %v5644 = vpop.f32.mrb[0].mxu0
        %v5645 = vadd.f32 %v5439, %v5644
        %v5646 = vpop.f32.mrb[0].mxu0
        %v5647 = vadd.f32 %v5443, %v5646
        %5648 = vmatprep.mubr.bf16.mxu0 %v5373
        %5649 = vmatmul.mubr.bf16.gmra.mrb[0].mxu0 %v5372
        %v5650 = vpop.f32.mrb[0].mxu0
        %v5651 = vadd.f32 %v5439, %v5650
        %v5652 = vpop.f32.mrb[0].mxu0
        %v5653 = vadd.f32 %v5443, %v5652
        %v5654 = vpop.f32.mrb[0].mxu0
        %v5655 = vadd.f32 %v5439, %v5654
        %v5656 = vpop.f32.mrb[0].mxu0
        %v5657 = vadd.f32 %v5443, %v5656
        %5658 = vmatprep.mubr.bf16.mxu0 %v5375
        %5659 = vmatmul.mubr.bf16.gmra.mrb[0].mxu0 %v5374
        %v5660 = vpop.f32.mrb[0].mxu0
        %v5661 = vadd.f32 %v5439, %v5660
        %v5662 = vpop.f32.mrb[0].mxu0
        %v5663 = vadd.f32 %v5443, %v5662
        %v5664 = vpop.f32.mrb[0].mxu0
        %v5665 = vadd.f32 %v5439, %v5664
        %v5666 = vpop.f32.mrb[0].mxu0
        %v5667 = vadd.f32 %v5443, %v5666
        %5668 = vmatprep.mubr.bf16.mxu0 %v5377
        %5669 = vmatmul.mubr.bf16.gmra.mrb[0].mxu0 %v5376
        %v5670 = vpop.f32.mrb[0].mxu0
        %v5671 = vadd.f32 %v5439, %v5670
        %v5672 = vpop.f32.mrb[0].mxu0
        %v5673 = vadd.f32 %v5443, %v5672
        %v5674 = vpop.f32.mrb[0].mxu0
        %v5675 = vadd.f32 %v5439, %v5674
        %v5676 = vpop.f32.mrb[0].mxu0
        %v5677 = vadd.f32 %v5443, %v5676
        %5678 = vmatprep.mubr.bf16.mxu0 %v5379
        %5679 = vmatmul.mubr.bf16.gmra.mrb[0].mxu0 %v5378
        %v5680 = vpop.f32.mrb[0].mxu0
        %v5681 = vadd.f32 %v5439, %v5680
        %v5682 = vpop.f32.mrb[0].mxu0
        %v5683 = vadd.f32 %v5443, %v5682
        %v5684 = vpop.f32.mrb[0].mxu0
        %v5685 = vadd.f32 %v5439, %v5684
        %v5686 = vpop.f32.mrb[0].mxu0
        %v5687 = vadd.f32 %v5443, %v5686
        %5688 = vmatprep.mubr.bf16.mxu0 %v5381
        %5689 = vmatmul.mubr.bf16.gmra.mrb[0].mxu0 %v5380
        %v5690 = vpop.f32.mrb[0].mxu0
        %v5691 = vadd.f32 %v5439, %v5690
        %v5692 = vpop.f32.mrb[0].mxu0
        %v5693 = vadd.f32 %v5443, %v5692
        %v5694 = vpop.f32.mrb[0].mxu0
        %v5695 = vadd.f32 %v5439, %v5694
        %v5696 = vpop.f32.mrb[0].mxu0
        %v5697 = vadd.f32 %v5443, %v5696
        %5698 = vmatprep.mubr.bf16.mxu0 %v5383
        %5699 = vmatmul.mubr.bf16.gmra.mrb[0].mxu0 %v5382
        %v5700 = vpop.f32.mrb[0].mxu0
        %v5701 = vadd.f32 %v5439, %v5700
        %v5702 = vpop.f32.mrb[0].mxu0
        %v5703 = vadd.f32 %v5443, %v5702
        %v5704 = vpop.f32.mrb[0].mxu0
        %v5705 = vadd.f32 %v5439, %v5704
        %v5706 = vpop.f32.mrb[0].mxu0
        %v5707 = vadd.f32 %v5443, %v5706
        %5708 = vmatprep.mubr.bf16.mxu0 %v5385
        %5709 = vmatmul.mubr.bf16.gmra.mrb[0].mxu0 %v5384
        %v5710 = vpop.f32.mrb[0].mxu0
        %v5711 = vadd.f32 %v5439, %v5710
        %v5712 = vpop.f32.mrb[0].mxu0
        %v5713 = vadd.f32 %v5443, %v5712
        %v5714 = vpop.f32.mrb[0].mxu0
        %v5715 = vadd.f32 %v5439, %v5714
        %v5716 = vpop.f32.mrb[0].mxu0
        %v5717 = vadd.f32 %v5443, %v5716
        %5718 = vmatprep.mubr.bf16.mxu0 %v5387
        %5719 = vmatmul.mubr.bf16.gmra.mrb[0].mxu0 %v5386
        %v5720 = vpop.f32.mrb[0].mxu0
        %v5721 = vadd.f32 %v5439, %v5720
        %v5722 = vpop.f32.mrb[0].mxu0
        %v5723 = vadd.f32 %v5443, %v5722
        %v5724 = vpop.f32.mrb[0].mxu0
        %v5725 = vadd.f32 %v5439, %v5724
        %v5726 = vpop.f32.mrb[0].mxu0
        %v5727 = vadd.f32 %v5443, %v5726
        %5728 = vmatprep.mubr.bf16.mxu0 %v5389
        %5729 = vmatmul.mubr.bf16.gmra.mrb[0].mxu0 %v5388
        %v5730 = vpop.f32.mrb[0].mxu0
        %v5731 = vadd.f32 %v5439, %v5730
        %v5732 = vpop.f32.mrb[0].mxu0
        %v5733 = vadd.f32 %v5443, %v5732
        %v5734 = vpop.f32.mrb[0].mxu0
        %v5735 = vadd.f32 %v5439, %v5734
        %v5736 = vpop.f32.mrb[0].mxu0
        %v5737 = vadd.f32 %v5443, %v5736
        %5738 = vmatprep.mubr.bf16.mxu0 %v5391
        %5739 = vmatmul.mubr.bf16.gmra.mrb[0].mxu0 %v5390
        %v5740 = vpop.f32.mrb[0].mxu0
        %v5741 = vadd.f32 %v5439, %v5740
        %v5742 = vpop.f32.mrb[0].mxu0
        %v5743 = vadd.f32 %v5443, %v5742
        %v5744 = vpop.f32.mrb[0].mxu0
        %v5745 = vadd.f32 %v5439, %v5744
        %v5746 = vpop.f32.mrb[0].mxu0
        %v5747 = vadd.f32 %v5443, %v5746
        %5748 = vmatprep.mubr.bf16.mxu0 %v5393
        %5749 = vmatmul.mubr.bf16.gmra.mrb[0].mxu0 %v5392
        %v5750 = vpop.f32.mrb[0].mxu0
        %v5751 = vadd.f32 %v5439, %v5750
        %v5752 = vpop.f32.mrb[0].mxu0
        %v5753 = vadd.f32 %v5443, %v5752
        %v5754 = vpop.f32.mrb[0].mxu0
        %v5755 = vadd.f32 %v5439, %v5754
        %v5756 = vpop.f32.mrb[0].mxu0
        %v5757 = vadd.f32 %v5443, %v5756
        %5758 = vmatprep.mubr.bf16.mxu0 %v5395
        %5759 = vmatmul.mubr.bf16.gmra.mrb[0].mxu0 %v5394
        %v5760 = vpop.f32.mrb[0].mxu0
        %v5761 = vadd.f32 %v5439, %v5760
        %v5762 = vpop.f32.mrb[0].mxu0
        %v5763 = vadd.f32 %v5443, %v5762
        %v5764 = vpop.f32.mrb[0].mxu0
        %v5765 = vadd.f32 %v5439, %v5764
        %v5766 = vpop.f32.mrb[0].mxu0
        %v5767 = vadd.f32 %v5443, %v5766
        %5768 = vmatprep.mubr.bf16.mxu0 %v5397
        %5769 = vmatmul.mubr.bf16.gmra.mrb[0].mxu0 %v5396
        %v5770 = vpop.f32.mrb[0].mxu0
        %v5771 = vadd.f32 %v5439, %v5770
        %v5772 = vpop.f32.mrb[0].mxu0
        %v5773 = vadd.f32 %v5443, %v5772
        %v5774 = vpop.f32.mrb[0].mxu0
        %v5775 = vadd.f32 %v5439, %v5774
        %v5776 = vpop.f32.mrb[0].mxu0
        %v5777 = vadd.f32 %v5443, %v5776
        %5778 = vmatprep.mubr.bf16.mxu0 %v5399
        %5779 = vmatmul.mubr.bf16.gmra.mrb[0].mxu0 %v5398
        %v5780 = vpop.f32.mrb[0].mxu0
        %v5781 = vadd.f32 %v5439, %v5780
        %v5782 = vpop.f32.mrb[0].mxu0
        %v5783 = vadd.f32 %v5443, %v5782
        %v5784 = vpop.f32.mrb[0].mxu0
        %v5785 = vadd.f32 %v5439, %v5784
        %v5786 = vpop.f32.mrb[0].mxu0
        %v5787 = vadd.f32 %v5443, %v5786
        %5788 = vmatprep.mubr.bf16.mxu0 %v5401
        %5789 = vmatmul.mubr.bf16.gmra.mrb[0].mxu0 %v5400
        %v5790 = vpop.f32.mrb[0].mxu0
        %v5791 = vadd.f32 %v5439, %v5790
        %v5792 = vpop.f32.mrb[0].mxu0
        %v5793 = vadd.f32 %v5443, %v5792
        %v5794 = vpop.f32.mrb[0].mxu0
        %v5795 = vadd.f32 %v5439, %v5794
        %v5796 = vpop.f32.mrb[0].mxu0
        %v5797 = vadd.f32 %v5443, %v5796
        %5798 = vdwg.mxu0
        %v5799 = vmul.f32 %v5641, 0.5
        %v5800 = vmul.f32 %v5643, 0.5
        %v5801 = vmul.f32 %v5645, 0.5
        %v5802 = vmul.f32 %v5647, 0.5
        %v5803 = vmul.f32 %v5651, 0.5
        %v5804 = vmul.f32 %v5653, 0.5
        %v5805 = vmul.f32 %v5655, 0.5
        %v5806 = vmul.f32 %v5657, 0.5
        %v5807 = vmul.f32 %v5661, 0.5
        %v5808 = vmul.f32 %v5663, 0.5
        %v5809 = vmul.f32 %v5665, 0.5
        %v5810 = vmul.f32 %v5667, 0.5
        %v5811 = vmul.f32 %v5671, 0.5
        %v5812 = vmul.f32 %v5673, 0.5
        %v5813 = vmul.f32 %v5675, 0.5
        %v5814 = vmul.f32 %v5677, 0.5
        %v5815 = vmul.f32 %v5681, 0.5
        %v5816 = vmul.f32 %v5683, 0.5
        %v5817 = vmul.f32 %v5685, 0.5
        %v5818 = vmul.f32 %v5687, 0.5
        %v5819 = vmul.f32 %v5691, 0.5
        %v5820 = vmul.f32 %v5693, 0.5
        %v5821 = vmul.f32 %v5695, 0.5
        %v5822 = vmul.f32 %v5697, 0.5
        %v5823 = vmul.f32 %v5701, 0.5
        %v5824 = vmul.f32 %v5703, 0.5
        %v5825 = vmul.f32 %v5705, 0.5
        %v5826 = vmul.f32 %v5707, 0.5
        %v5827 = vmul.f32 %v5711, 0.5
        %v5828 = vmul.f32 %v5713, 0.5
        %v5829 = vmul.f32 %v5715, 0.5
        %v5830 = vmul.f32 %v5717, 0.5
        %v5831 = vmul.f32 %v5721, 0.5
        %v5832 = vmul.f32 %v5723, 0.5
        %v5833 = vmul.f32 %v5725, 0.5
        %v5834 = vmul.f32 %v5727, 0.5
        %v5835 = vmul.f32 %v5731, 0.5
        %v5836 = vmul.f32 %v5733, 0.5
        %v5837 = vmul.f32 %v5735, 0.5
        %v5838 = vmul.f32 %v5737, 0.5
        %v5839 = vmul.f32 %v5741, 0.5
        %v5840 = vmul.f32 %v5743, 0.5
        %v5841 = vmul.f32 %v5745, 0.5
        %v5842 = vmul.f32 %v5747, 0.5
        %v5843 = vmul.f32 %v5751, 0.5
        %v5844 = vmul.f32 %v5753, 0.5
        %v5845 = vmul.f32 %v5755, 0.5
        %v5846 = vmul.f32 %v5757, 0.5
        %v5847 = vmul.f32 %v5761, 0.5
        %v5848 = vmul.f32 %v5763, 0.5
        %v5849 = vmul.f32 %v5765, 0.5
        %v5850 = vmul.f32 %v5767, 0.5
        %v5851 = vmul.f32 %v5771, 0.5
        %v5852 = vmul.f32 %v5773, 0.5
        %v5853 = vmul.f32 %v5775, 0.5
        %v5854 = vmul.f32 %v5777, 0.5
        %v5855 = vmul.f32 %v5781, 0.5
        %v5856 = vmul.f32 %v5783, 0.5
        %v5857 = vmul.f32 %v5785, 0.5
        %v5858 = vmul.f32 %v5787, 0.5
        %v5859 = vmul.f32 %v5791, 0.5
        %v5860 = vmul.f32 %v5793, 0.5
        %v5861 = vmul.f32 %v5795, 0.5
        %v5862 = vmul.f32 %v5797, 0.5
        %v5863 = vmul.f32 %v5641, 0.044715
        %v5864 = vmul.f32 %v5643, 0.044715
        %v5865 = vmul.f32 %v5645, 0.044715
        %v5866 = vmul.f32 %v5647, 0.044715
        %v5867 = vmul.f32 %v5651, 0.044715
        %v5868 = vmul.f32 %v5653, 0.044715
        %v5869 = vmul.f32 %v5655, 0.044715
        %v5870 = vmul.f32 %v5657, 0.044715
        %v5871 = vmul.f32 %v5661, 0.044715
        %v5872 = vmul.f32 %v5663, 0.044715
        %v5873 = vmul.f32 %v5665, 0.044715
        %v5874 = vmul.f32 %v5667, 0.044715
        %v5875 = vmul.f32 %v5671, 0.044715
        %v5876 = vmul.f32 %v5673, 0.044715
        %v5877 = vmul.f32 %v5675, 0.044715
        %v5878 = vmul.f32 %v5677, 0.044715
        %v5879 = vmul.f32 %v5681, 0.044715
        %v5880 = vmul.f32 %v5683, 0.044715
        %v5881 = vmul.f32 %v5685, 0.044715
        %v5882 = vmul.f32 %v5687, 0.044715
        %v5883 = vmul.f32 %v5691, 0.044715
        %v5884 = vmul.f32 %v5693, 0.044715
        %v5885 = vmul.f32 %v5695, 0.044715
        %v5886 = vmul.f32 %v5697, 0.044715
        %v5887 = vmul.f32 %v5701, 0.044715
        %v5888 = vmul.f32 %v5703, 0.044715
        %v5889 = vmul.f32 %v5705, 0.044715
        %v5890 = vmul.f32 %v5707, 0.044715
        %v5891 = vmul.f32 %v5711, 0.044715
        %v5892 = vmul.f32 %v5713, 0.044715
        %v5893 = vmul.f32 %v5715, 0.044715
        %v5894 = vmul.f32 %v5717, 0.044715
        %v5895 = vmul.f32 %v5721, 0.044715
        %v5896 = vmul.f32 %v5723, 0.044715
        %v5897 = vmul.f32 %v5725, 0.044715
        %v5898 = vmul.f32 %v5727, 0.044715
        %v5899 = vmul.f32 %v5731, 0.044715
        %v5900 = vmul.f32 %v5733, 0.044715
        %v5901 = vmul.f32 %v5735, 0.044715
        %v5902 = vmul.f32 %v5737, 0.044715
        %v5903 = vmul.f32 %v5741, 0.044715
        %v5904 = vmul.f32 %v5743, 0.044715
        %v5905 = vmul.f32 %v5745, 0.044715
        %v5906 = vmul.f32 %v5747, 0.044715
        %v5907 = vmul.f32 %v5751, 0.044715
        %v5908 = vmul.f32 %v5753, 0.044715
        %v5909 = vmul.f32 %v5755, 0.044715
        %v5910 = vmul.f32 %v5757, 0.044715
        %v5911 = vmul.f32 %v5761, 0.044715
        %v5912 = vmul.f32 %v5763, 0.044715
        %v5913 = vmul.f32 %v5765, 0.044715
        %v5914 = vmul.f32 %v5767, 0.044715
        %v5915 = vmul.f32 %v5771, 0.044715
        %v5916 = vmul.f32 %v5773, 0.044715
        %v5917 = vmul.f32 %v5775, 0.044715
        %v5918 = vmul.f32 %v5777, 0.044715
        %v5919 = vmul.f32 %v5781, 0.044715
        %v5920 = vmul.f32 %v5783, 0.044715
        %v5921 = vmul.f32 %v5785, 0.044715
        %v5922 = vmul.f32 %v5787, 0.044715
        %v5923 = vmul.f32 %v5791, 0.044715
        %v5924 = vmul.f32 %v5793, 0.044715
        %v5925 = vmul.f32 %v5795, 0.044715
        %v5926 = vmul.f32 %v5797, 0.044715
        %v5927 = vmul.f32 %v5863, %v5641
        %v5928 = vmul.f32 %v5864, %v5643
        %v5929 = vmul.f32 %v5865, %v5645
        %v5930 = vmul.f32 %v5866, %v5647
        %v5931 = vmul.f32 %v5867, %v5651
        %v5932 = vmul.f32 %v5868, %v5653
        %v5933 = vmul.f32 %v5869, %v5655
        %v5934 = vmul.f32 %v5870, %v5657
        %v5935 = vmul.f32 %v5871, %v5661
        %v5936 = vmul.f32 %v5872, %v5663
        %v5937 = vmul.f32 %v5873, %v5665
        %v5938 = vmul.f32 %v5874, %v5667
        %v5939 = vmul.f32 %v5875, %v5671
        %v5940 = vmul.f32 %v5876, %v5673
        %v5941 = vmul.f32 %v5877, %v5675
        %v5942 = vmul.f32 %v5878, %v5677
        %v5943 = vmul.f32 %v5879, %v5681
        %v5944 = vmul.f32 %v5880, %v5683
        %v5945 = vmul.f32 %v5881, %v5685
        %v5946 = vmul.f32 %v5882, %v5687
        %v5947 = vmul.f32 %v5883, %v5691
        %v5948 = vmul.f32 %v5884, %v5693
        %v5949 = vmul.f32 %v5885, %v5695
        %v5950 = vmul.f32 %v5886, %v5697
        %v5951 = vmul.f32 %v5887, %v5701
        %v5952 = vmul.f32 %v5888, %v5703
        %v5953 = vmul.f32 %v5889, %v5705
        %v5954 = vmul.f32 %v5890, %v5707
        %v5955 = vmul.f32 %v5891, %v5711
        %v5956 = vmul.f32 %v5892, %v5713
        %v5957 = vmul.f32 %v5893, %v5715
        %v5958 = vmul.f32 %v5894, %v5717
        %v5959 = vmul.f32 %v5895, %v5721
        %v5960 = vmul.f32 %v5896, %v5723
        %v5961 = vmul.f32 %v5897, %v5725
        %v5962 = vmul.f32 %v5898, %v5727
        %v5963 = vmul.f32 %v5899, %v5731
        %v5964 = vmul.f32 %v5900, %v5733
        %v5965 = vmul.f32 %v5901, %v5735
        %v5966 = vmul.f32 %v5902, %v5737
        %v5967 = vmul.f32 %v5903, %v5741
        %v5968 = vmul.f32 %v5904, %v5743
        %v5969 = vmul.f32 %v5905, %v5745
        %v5970 = vmul.f32 %v5906, %v5747
        %v5971 = vmul.f32 %v5907, %v5751
        %v5972 = vmul.f32 %v5908, %v5753
        %v5973 = vmul.f32 %v5909, %v5755
        %v5974 = vmul.f32 %v5910, %v5757
        %v5975 = vmul.f32 %v5911, %v5761
        %v5976 = vmul.f32 %v5912, %v5763
        %v5977 = vmul.f32 %v5913, %v5765
        %v5978 = vmul.f32 %v5914, %v5767
        %v5979 = vmul.f32 %v5915, %v5771
        %v5980 = vmul.f32 %v5916, %v5773
        %v5981 = vmul.f32 %v5917, %v5775
        %v5982 = vmul.f32 %v5918, %v5777
        %v5983 = vmul.f32 %v5919, %v5781
        %v5984 = vmul.f32 %v5920, %v5783
        %v5985 = vmul.f32 %v5921, %v5785
        %v5986 = vmul.f32 %v5922, %v5787
        %v5987 = vmul.f32 %v5923, %v5791
        %v5988 = vmul.f32 %v5924, %v5793
        %v5989 = vmul.f32 %v5925, %v5795
        %v5990 = vmul.f32 %v5926, %v5797
        %v5991 = vmul.f32 %v5927, %v5641
        %v5992 = vmul.f32 %v5928, %v5643
        %v5993 = vmul.f32 %v5929, %v5645
        %v5994 = vmul.f32 %v5930, %v5647
        %v5995 = vmul.f32 %v5931, %v5651
        %v5996 = vmul.f32 %v5932, %v5653
        %v5997 = vmul.f32 %v5933, %v5655
        %v5998 = vmul.f32 %v5934, %v5657
        %v5999 = vmul.f32 %v5935, %v5661
        %v6000 = vmul.f32 %v5936, %v5663
        %v6001 = vmul.f32 %v5937, %v5665
        %v6002 = vmul.f32 %v5938, %v5667
        %v6003 = vmul.f32 %v5939, %v5671
        %v6004 = vmul.f32 %v5940, %v5673
        %v6005 = vmul.f32 %v5941, %v5675
        %v6006 = vmul.f32 %v5942, %v5677
        %v6007 = vmul.f32 %v5943, %v5681
        %v6008 = vmul.f32 %v5944, %v5683
        %v6009 = vmul.f32 %v5945, %v5685
        %v6010 = vmul.f32 %v5946, %v5687
        %v6011 = vmul.f32 %v5947, %v5691
        %v6012 = vmul.f32 %v5948, %v5693
        %v6013 = vmul.f32 %v5949, %v5695
        %v6014 = vmul.f32 %v5950, %v5697
        %v6015 = vmul.f32 %v5951, %v5701
        %v6016 = vmul.f32 %v5952, %v5703
        %v6017 = vmul.f32 %v5953, %v5705
        %v6018 = vmul.f32 %v5954, %v5707
        %v6019 = vmul.f32 %v5955, %v5711
        %v6020 = vmul.f32 %v5956, %v5713
        %v6021 = vmul.f32 %v5957, %v5715
        %v6022 = vmul.f32 %v5958, %v5717
        %v6023 = vmul.f32 %v5959, %v5721
        %v6024 = vmul.f32 %v5960, %v5723
        %v6025 = vmul.f32 %v5961, %v5725
        %v6026 = vmul.f32 %v5962, %v5727
        %v6027 = vmul.f32 %v5963, %v5731
        %v6028 = vmul.f32 %v5964, %v5733
        %v6029 = vmul.f32 %v5965, %v5735
        %v6030 = vmul.f32 %v5966, %v5737
        %v6031 = vmul.f32 %v5967, %v5741
        %v6032 = vmul.f32 %v5968, %v5743
        %v6033 = vmul.f32 %v5969, %v5745
        %v6034 = vmul.f32 %v5970, %v5747
        %v6035 = vmul.f32 %v5971, %v5751
        %v6036 = vmul.f32 %v5972, %v5753
        %v6037 = vmul.f32 %v5973, %v5755
        %v6038 = vmul.f32 %v5974, %v5757
        %v6039 = vmul.f32 %v5975, %v5761
        %v6040 = vmul.f32 %v5976, %v5763
        %v6041 = vmul.f32 %v5977, %v5765
        %v6042 = vmul.f32 %v5978, %v5767
        %v6043 = vmul.f32 %v5979, %v5771
        %v6044 = vmul.f32 %v5980, %v5773
        %v6045 = vmul.f32 %v5981, %v5775
        %v6046 = vmul.f32 %v5982, %v5777
        %v6047 = vmul.f32 %v5983, %v5781
        %v6048 = vmul.f32 %v5984, %v5783
        %v6049 = vmul.f32 %v5985, %v5785
        %v6050 = vmul.f32 %v5986, %v5787
        %v6051 = vmul.f32 %v5987, %v5791
        %v6052 = vmul.f32 %v5988, %v5793
        %v6053 = vmul.f32 %v5989, %v5795
        %v6054 = vmul.f32 %v5990, %v5797
        %v6055 = vadd.f32 %v5641, %v5991
        %v6056 = vadd.f32 %v5643, %v5992
        %v6057 = vadd.f32 %v5645, %v5993
        %v6058 = vadd.f32 %v5647, %v5994
        %v6059 = vadd.f32 %v5651, %v5995
        %v6060 = vadd.f32 %v5653, %v5996
        %v6061 = vadd.f32 %v5655, %v5997
        %v6062 = vadd.f32 %v5657, %v5998
        %v6063 = vadd.f32 %v5661, %v5999
        %v6064 = vadd.f32 %v5663, %v6000
        %v6065 = vadd.f32 %v5665, %v6001
        %v6066 = vadd.f32 %v5667, %v6002
        %v6067 = vadd.f32 %v5671, %v6003
        %v6068 = vadd.f32 %v5673, %v6004
        %v6069 = vadd.f32 %v5675, %v6005
        %v6070 = vadd.f32 %v5677, %v6006
        %v6071 = vadd.f32 %v5681, %v6007
        %v6072 = vadd.f32 %v5683, %v6008
        %v6073 = vadd.f32 %v5685, %v6009
        %v6074 = vadd.f32 %v5687, %v6010
        %v6075 = vadd.f32 %v5691, %v6011
        %v6076 = vadd.f32 %v5693, %v6012
        %v6077 = vadd.f32 %v5695, %v6013
        %v6078 = vadd.f32 %v5697, %v6014
        %v6079 = vadd.f32 %v5701, %v6015
        %v6080 = vadd.f32 %v5703, %v6016
        %v6081 = vadd.f32 %v5705, %v6017
        %v6082 = vadd.f32 %v5707, %v6018
        %v6083 = vadd.f32 %v5711, %v6019
        %v6084 = vadd.f32 %v5713, %v6020
        %v6085 = vadd.f32 %v5715, %v6021
        %v6086 = vadd.f32 %v5717, %v6022
        %v6087 = vadd.f32 %v5721, %v6023
        %v6088 = vadd.f32 %v5723, %v6024
        %v6089 = vadd.f32 %v5725, %v6025
        %v6090 = vadd.f32 %v5727, %v6026
        %v6091 = vadd.f32 %v5731, %v6027
        %v6092 = vadd.f32 %v5733, %v6028
        %v6093 = vadd.f32 %v5735, %v6029
        %v6094 = vadd.f32 %v5737, %v6030
        %v6095 = vadd.f32 %v5741, %v6031
        %v6096 = vadd.f32 %v5743, %v6032
        %v6097 = vadd.f32 %v5745, %v6033
        %v6098 = vadd.f32 %v5747, %v6034
        %v6099 = vadd.f32 %v5751, %v6035
        %v6100 = vadd.f32 %v5753, %v6036
        %v6101 = vadd.f32 %v5755, %v6037
        %v6102 = vadd.f32 %v5757, %v6038
        %v6103 = vadd.f32 %v5761, %v6039
        %v6104 = vadd.f32 %v5763, %v6040
        %v6105 = vadd.f32 %v5765, %v6041
        %v6106 = vadd.f32 %v5767, %v6042
        %v6107 = vadd.f32 %v5771, %v6043
        %v6108 = vadd.f32 %v5773, %v6044
        %v6109 = vadd.f32 %v5775, %v6045
        %v6110 = vadd.f32 %v5777, %v6046
        %v6111 = vadd.f32 %v5781, %v6047
        %v6112 = vadd.f32 %v5783, %v6048
        %v6113 = vadd.f32 %v5785, %v6049
        %v6114 = vadd.f32 %v5787, %v6050
        %v6115 = vadd.f32 %v5791, %v6051
        %v6116 = vadd.f32 %v5793, %v6052
        %v6117 = vadd.f32 %v5795, %v6053
        %v6118 = vadd.f32 %v5797, %v6054
        %v6119 = vmul.f32 %v6055, 0.7978846
        %v6120 = vmul.f32 %v6056, 0.7978846
        %v6121 = vmul.f32 %v6057, 0.7978846
        %v6122 = vmul.f32 %v6058, 0.7978846
        %v6123 = vmul.f32 %v6059, 0.7978846
        %v6124 = vmul.f32 %v6060, 0.7978846
        %v6125 = vmul.f32 %v6061, 0.7978846
        %v6126 = vmul.f32 %v6062, 0.7978846
        %v6127 = vmul.f32 %v6063, 0.7978846
        %v6128 = vmul.f32 %v6064, 0.7978846
        %v6129 = vmul.f32 %v6065, 0.7978846
        %v6130 = vmul.f32 %v6066, 0.7978846
        %v6131 = vmul.f32 %v6067, 0.7978846
        %v6132 = vmul.f32 %v6068, 0.7978846
        %v6133 = vmul.f32 %v6069, 0.7978846
        %v6134 = vmul.f32 %v6070, 0.7978846
        %v6135 = vmul.f32 %v6071, 0.7978846
        %v6136 = vmul.f32 %v6072, 0.7978846
        %v6137 = vmul.f32 %v6073, 0.7978846
        %v6138 = vmul.f32 %v6074, 0.7978846
        %v6139 = vmul.f32 %v6075, 0.7978846
        %v6140 = vmul.f32 %v6076, 0.7978846
        %v6141 = vmul.f32 %v6077, 0.7978846
        %v6142 = vmul.f32 %v6078, 0.7978846
        %v6143 = vmul.f32 %v6079, 0.7978846
        %v6144 = vmul.f32 %v6080, 0.7978846
        %v6145 = vmul.f32 %v6081, 0.7978846
        %v6146 = vmul.f32 %v6082, 0.7978846
        %v6147 = vmul.f32 %v6083, 0.7978846
        %v6148 = vmul.f32 %v6084, 0.7978846
        %v6149 = vmul.f32 %v6085, 0.7978846
        %v6150 = vmul.f32 %v6086, 0.7978846
        %v6151 = vmul.f32 %v6087, 0.7978846
        %v6152 = vmul.f32 %v6088, 0.7978846
        %v6153 = vmul.f32 %v6089, 0.7978846
        %v6154 = vmul.f32 %v6090, 0.7978846
        %v6155 = vmul.f32 %v6091, 0.7978846
        %v6156 = vmul.f32 %v6092, 0.7978846
        %v6157 = vmul.f32 %v6093, 0.7978846
        %v6158 = vmul.f32 %v6094, 0.7978846
        %v6159 = vmul.f32 %v6095, 0.7978846
        %v6160 = vmul.f32 %v6096, 0.7978846
        %v6161 = vmul.f32 %v6097, 0.7978846
        %v6162 = vmul.f32 %v6098, 0.7978846
        %v6163 = vmul.f32 %v6099, 0.7978846
        %v6164 = vmul.f32 %v6100, 0.7978846
        %v6165 = vmul.f32 %v6101, 0.7978846
        %v6166 = vmul.f32 %v6102, 0.7978846
        %v6167 = vmul.f32 %v6103, 0.7978846
        %v6168 = vmul.f32 %v6104, 0.7978846
        %v6169 = vmul.f32 %v6105, 0.7978846
        %v6170 = vmul.f32 %v6106, 0.7978846
        %v6171 = vmul.f32 %v6107, 0.7978846
        %v6172 = vmul.f32 %v6108, 0.7978846
        %v6173 = vmul.f32 %v6109, 0.7978846
        %v6174 = vmul.f32 %v6110, 0.7978846
        %v6175 = vmul.f32 %v6111, 0.7978846
        %v6176 = vmul.f32 %v6112, 0.7978846
        %v6177 = vmul.f32 %v6113, 0.7978846
        %v6178 = vmul.f32 %v6114, 0.7978846
        %v6179 = vmul.f32 %v6115, 0.7978846
        %v6180 = vmul.f32 %v6116, 0.7978846
        %v6181 = vmul.f32 %v6117, 0.7978846
        %v6182 = vmul.f32 %v6118, 0.7978846
        %v6183 = vtanh.pop %v6119
        %v6184 = vtanh.pop %v6120
        %v6185 = vtanh.pop %v6121
        %v6186 = vtanh.pop %v6122
        %v6187 = vtanh.pop %v6123
        %v6188 = vtanh.pop %v6124
        %v6189 = vtanh.pop %v6125
        %v6190 = vtanh.pop %v6126
        %v6191 = vtanh.pop %v6127
        %v6192 = vtanh.pop %v6128
        %v6193 = vtanh.pop %v6129
        %v6194 = vtanh.pop %v6130
        %v6195 = vtanh.pop %v6131
        %v6196 = vtanh.pop %v6132
        %v6197 = vtanh.pop %v6133
        %v6198 = vtanh.pop %v6134
        %v6199 = vtanh.pop %v6135
        %v6200 = vtanh.pop %v6136
        %v6201 = vtanh.pop %v6137
        %v6202 = vtanh.pop %v6138
        %v6203 = vtanh.pop %v6139
        %v6204 = vtanh.pop %v6140
        %v6205 = vtanh.pop %v6141
        %v6206 = vtanh.pop %v6142
        %v6207 = vtanh.pop %v6143
        %v6208 = vtanh.pop %v6144
        %v6209 = vtanh.pop %v6145
        %v6210 = vtanh.pop %v6146
        %v6211 = vtanh.pop %v6147
        %v6212 = vtanh.pop %v6148
        %v6213 = vtanh.pop %v6149
        %v6214 = vtanh.pop %v6150
        %v6215 = vtanh.pop %v6151
        %v6216 = vtanh.pop %v6152
        %v6217 = vtanh.pop %v6153
        %v6218 = vtanh.pop %v6154
        %v6219 = vtanh.pop %v6155
        %v6220 = vtanh.pop %v6156
        %v6221 = vtanh.pop %v6157
        %v6222 = vtanh.pop %v6158
        %v6223 = vtanh.pop %v6159
        %v6224 = vtanh.pop %v6160
        %v6225 = vtanh.pop %v6161
        %v6226 = vtanh.pop %v6162
        %v6227 = vtanh.pop %v6163
        %v6228 = vtanh.pop %v6164
        %v6229 = vtanh.pop %v6165
        %v6230 = vtanh.pop %v6166
        %v6231 = vtanh.pop %v6167
        %v6232 = vtanh.pop %v6168
        %v6233 = vtanh.pop %v6169
        %v6234 = vtanh.pop %v6170
        %v6235 = vtanh.pop %v6171
        %v6236 = vtanh.pop %v6172
        %v6237 = vtanh.pop %v6173
        %v6238 = vtanh.pop %v6174
        %v6239 = vtanh.pop %v6175
        %v6240 = vtanh.pop %v6176
        %v6241 = vtanh.pop %v6177
        %v6242 = vtanh.pop %v6178
        %v6243 = vtanh.pop %v6179
        %v6244 = vtanh.pop %v6180
        %v6245 = vtanh.pop %v6181
        %v6246 = vtanh.pop %v6182
        %v6247 = vadd.f32 %v6183, 1.0
        %v6248 = vadd.f32 %v6184, 1.0
        %v6249 = vadd.f32 %v6185, 1.0
        %v6250 = vadd.f32 %v6186, 1.0
        %v6251 = vadd.f32 %v6187, 1.0
        %v6252 = vadd.f32 %v6188, 1.0
        %v6253 = vadd.f32 %v6189, 1.0
        %v6254 = vadd.f32 %v6190, 1.0
        %v6255 = vadd.f32 %v6191, 1.0
        %v6256 = vadd.f32 %v6192, 1.0
        %v6257 = vadd.f32 %v6193, 1.0
        %v6258 = vadd.f32 %v6194, 1.0
        %v6259 = vadd.f32 %v6195, 1.0
        %v6260 = vadd.f32 %v6196, 1.0
        %v6261 = vadd.f32 %v6197, 1.0
        %v6262 = vadd.f32 %v6198, 1.0
        %v6263 = vadd.f32 %v6199, 1.0
        %v6264 = vadd.f32 %v6200, 1.0
        %v6265 = vadd.f32 %v6201, 1.0
        %v6266 = vadd.f32 %v6202, 1.0
        %v6267 = vadd.f32 %v6203, 1.0
        %v6268 = vadd.f32 %v6204, 1.0
        %v6269 = vadd.f32 %v6205, 1.0
        %v6270 = vadd.f32 %v6206, 1.0
        %v6271 = vadd.f32 %v6207, 1.0
        %v6272 = vadd.f32 %v6208, 1.0
        %v6273 = vadd.f32 %v6209, 1.0
        %v6274 = vadd.f32 %v6210, 1.0
        %v6275 = vadd.f32 %v6211, 1.0
        %v6276 = vadd.f32 %v6212, 1.0
        %v6277 = vadd.f32 %v6213, 1.0
        %v6278 = vadd.f32 %v6214, 1.0
        %v6279 = vadd.f32 %v6215, 1.0
        %v6280 = vadd.f32 %v6216, 1.0
        %v6281 = vadd.f32 %v6217, 1.0
        %v6282 = vadd.f32 %v6218, 1.0
        %v6283 = vadd.f32 %v6219, 1.0
        %v6284 = vadd.f32 %v6220, 1.0
        %v6285 = vadd.f32 %v6221, 1.0
        %v6286 = vadd.f32 %v6222, 1.0
        %v6287 = vadd.f32 %v6223, 1.0
        %v6288 = vadd.f32 %v6224, 1.0
        %v6289 = vadd.f32 %v6225, 1.0
        %v6290 = vadd.f32 %v6226, 1.0
        %v6291 = vadd.f32 %v6227, 1.0
        %v6292 = vadd.f32 %v6228, 1.0
        %v6293 = vadd.f32 %v6229, 1.0
        %v6294 = vadd.f32 %v6230, 1.0
        %v6295 = vadd.f32 %v6231, 1.0
        %v6296 = vadd.f32 %v6232, 1.0
        %v6297 = vadd.f32 %v6233, 1.0
        %v6298 = vadd.f32 %v6234, 1.0
        %v6299 = vadd.f32 %v6235, 1.0
        %v6300 = vadd.f32 %v6236, 1.0
        %v6301 = vadd.f32 %v6237, 1.0
        %v6302 = vadd.f32 %v6238, 1.0
        %v6303 = vadd.f32 %v6239, 1.0
        %v6304 = vadd.f32 %v6240, 1.0
        %v6305 = vadd.f32 %v6241, 1.0
        %v6306 = vadd.f32 %v6242, 1.0
        %v6307 = vadd.f32 %v6243, 1.0
        %v6308 = vadd.f32 %v6244, 1.0
        %v6309 = vadd.f32 %v6245, 1.0
        %v6310 = vadd.f32 %v6246, 1.0
        %v6311 = vmul.f32 %v5799, %v6247
        %v6312 = vmul.f32 %v5800, %v6248
        %v6313 = vmul.f32 %v5801, %v6249
        %v6314 = vmul.f32 %v5802, %v6250
        %v6315 = vmul.f32 %v5803, %v6251
        %v6316 = vmul.f32 %v5804, %v6252
        %v6317 = vmul.f32 %v5805, %v6253
        %v6318 = vmul.f32 %v5806, %v6254
        %v6319 = vmul.f32 %v5807, %v6255
        %v6320 = vmul.f32 %v5808, %v6256
        %v6321 = vmul.f32 %v5809, %v6257
        %v6322 = vmul.f32 %v5810, %v6258
        %v6323 = vmul.f32 %v5811, %v6259
        %v6324 = vmul.f32 %v5812, %v6260
        %v6325 = vmul.f32 %v5813, %v6261
        %v6326 = vmul.f32 %v5814, %v6262
        %v6327 = vmul.f32 %v5815, %v6263
        %v6328 = vmul.f32 %v5816, %v6264
        %v6329 = vmul.f32 %v5817, %v6265
        %v6330 = vmul.f32 %v5818, %v6266
        %v6331 = vmul.f32 %v5819, %v6267
        %v6332 = vmul.f32 %v5820, %v6268
        %v6333 = vmul.f32 %v5821, %v6269
        %v6334 = vmul.f32 %v5822, %v6270
        %v6335 = vmul.f32 %v5823, %v6271
        %v6336 = vmul.f32 %v5824, %v6272
        %v6337 = vmul.f32 %v5825, %v6273
        %v6338 = vmul.f32 %v5826, %v6274
        %v6339 = vmul.f32 %v5827, %v6275
        %v6340 = vmul.f32 %v5828, %v6276
        %v6341 = vmul.f32 %v5829, %v6277
        %v6342 = vmul.f32 %v5830, %v6278
        %v6343 = vmul.f32 %v5831, %v6279
        %v6344 = vmul.f32 %v5832, %v6280
        %v6345 = vmul.f32 %v5833, %v6281
        %v6346 = vmul.f32 %v5834, %v6282
        %v6347 = vmul.f32 %v5835, %v6283
        %v6348 = vmul.f32 %v5836, %v6284
        %v6349 = vmul.f32 %v5837, %v6285
        %v6350 = vmul.f32 %v5838, %v6286
        %v6351 = vmul.f32 %v5839, %v6287
        %v6352 = vmul.f32 %v5840, %v6288
        %v6353 = vmul.f32 %v5841, %v6289
        %v6354 = vmul.f32 %v5842, %v6290
        %v6355 = vmul.f32 %v5843, %v6291
        %v6356 = vmul.f32 %v5844, %v6292
        %v6357 = vmul.f32 %v5845, %v6293
        %v6358 = vmul.f32 %v5846, %v6294
        %v6359 = vmul.f32 %v5847, %v6295
        %v6360 = vmul.f32 %v5848, %v6296
        %v6361 = vmul.f32 %v5849, %v6297
        %v6362 = vmul.f32 %v5850, %v6298
        %v6363 = vmul.f32 %v5851, %v6299
        %v6364 = vmul.f32 %v5852, %v6300
        %v6365 = vmul.f32 %v5853, %v6301
        %v6366 = vmul.f32 %v5854, %v6302
        %v6367 = vmul.f32 %v5855, %v6303
        %v6368 = vmul.f32 %v5856, %v6304
        %v6369 = vmul.f32 %v5857, %v6305
        %v6370 = vmul.f32 %v5858, %v6306
        %v6371 = vmul.f32 %v5859, %v6307
        %v6372 = vmul.f32 %v5860, %v6308
        %v6373 = vmul.f32 %v5861, %v6309
        %v6374 = vmul.f32 %v5862, %v6310
        %v6375 = vpack.c.bf16 %v6313, %v6311
        %v6376 = vpack.c.bf16 %v6314, %v6312
        %v6377 = vpack.c.bf16 %v6317, %v6315
        %v6378 = vpack.c.bf16 %v6318, %v6316
        %v6379 = vpack.c.bf16 %v6321, %v6319
        %v6380 = vpack.c.bf16 %v6322, %v6320
        %v6381 = vpack.c.bf16 %v6325, %v6323
        %v6382 = vpack.c.bf16 %v6326, %v6324
        %v6383 = vpack.c.bf16 %v6329, %v6327
        %v6384 = vpack.c.bf16 %v6330, %v6328
        %v6385 = vpack.c.bf16 %v6333, %v6331
        %v6386 = vpack.c.bf16 %v6334, %v6332
        %v6387 = vpack.c.bf16 %v6337, %v6335
        %v6388 = vpack.c.bf16 %v6338, %v6336
        %v6389 = vpack.c.bf16 %v6341, %v6339
        %v6390 = vpack.c.bf16 %v6342, %v6340
        %v6391 = vpack.c.bf16 %v6345, %v6343
        %v6392 = vpack.c.bf16 %v6346, %v6344
        %v6393 = vpack.c.bf16 %v6349, %v6347
        %v6394 = vpack.c.bf16 %v6350, %v6348
        %v6395 = vpack.c.bf16 %v6353, %v6351
        %v6396 = vpack.c.bf16 %v6354, %v6352
        %v6397 = vpack.c.bf16 %v6357, %v6355
        %v6398 = vpack.c.bf16 %v6358, %v6356
        %v6399 = vpack.c.bf16 %v6361, %v6359
        %v6400 = vpack.c.bf16 %v6362, %v6360
        %v6401 = vpack.c.bf16 %v6365, %v6363
        %v6402 = vpack.c.bf16 %v6366, %v6364
        %v6403 = vpack.c.bf16 %v6369, %v6367
        %v6404 = vpack.c.bf16 %v6370, %v6368
        %v6405 = vpack.c.bf16 %v6373, %v6371
        %v6406 = vpack.c.bf16 %v6374, %v6372
        %v6407 = vld [vmem:[#allocation17] sm:$0xff]
        %v6408 = vld [vmem:[#allocation17 + $0x8] sm:$0xff]
        %v6409 = vld [vmem:[#allocation17 + $0x10] sm:$0xff]
        %v6410 = vld [vmem:[#allocation17 + $0x18] sm:$0xff]
        %v6411 = vld [vmem:[#allocation17 + $0x20] sm:$0xff]
        %v6412 = vld [vmem:[#allocation17 + $0x28] sm:$0xff]
        %v6413 = vld [vmem:[#allocation17 + $0x30] sm:$0xff]
        %v6414 = vld [vmem:[#allocation17 + $0x38] sm:$0xff]
        %v6415 = vld [vmem:[#allocation17 + $0x40] sm:$0xff]
        %v6416 = vld [vmem:[#allocation17 + $0x48] sm:$0xff]
        %v6417 = vld [vmem:[#allocation17 + $0x50] sm:$0xff]
        %v6418 = vld [vmem:[#allocation17 + $0x58] sm:$0xff]
        %v6419 = vld [vmem:[#allocation17 + $0x60] sm:$0xff]
        %v6420 = vld [vmem:[#allocation17 + $0x68] sm:$0xff]
        %v6421 = vld [vmem:[#allocation17 + $0x70] sm:$0xff]
        %v6422 = vld [vmem:[#allocation17 + $0x78] sm:$0xff]
        %v6423 = vld [vmem:[#allocation17 + $0x80] sm:$0xff]
        %v6424 = vld [vmem:[#allocation17 + $0x88] sm:$0xff]
        %v6425 = vld [vmem:[#allocation17 + $0x90] sm:$0xff]
        %v6426 = vld [vmem:[#allocation17 + $0x98] sm:$0xff]
        %v6427 = vld [vmem:[#allocation17 + $0xa0] sm:$0xff]
        %v6428 = vld [vmem:[#allocation17 + $0xa8] sm:$0xff]
        %v6429 = vld [vmem:[#allocation17 + $0xb0] sm:$0xff]
        %v6430 = vld [vmem:[#allocation17 + $0xb8] sm:$0xff]
        %v6431 = vld [vmem:[#allocation17 + $0xc0] sm:$0xff]
        %v6432 = vld [vmem:[#allocation17 + $0xc8] sm:$0xff]
        %v6433 = vld [vmem:[#allocation17 + $0xd0] sm:$0xff]
        %v6434 = vld [vmem:[#allocation17 + $0xd8] sm:$0xff]
        %v6435 = vld [vmem:[#allocation17 + $0xe0] sm:$0xff]
        %v6436 = vld [vmem:[#allocation17 + $0xe8] sm:$0xff]
        %v6437 = vld [vmem:[#allocation17 + $0xf0] sm:$0xff]
        %v6438 = vld [vmem:[#allocation17 + $0xf8] sm:$0xff]
        %v6439 = vld [vmem:[%s19] sm:$0x3]
        %v6441 = vlaneseq
        %v6442 = vshrl.u32 %v6441, 7
        %v6443 = vsub.s32 0, %v6442
        %v6444 = vrot.slane %v6439, %v6443
        %v6445 = vlaneseq
        %v6446 = vshrl.u32 %v6445, 7
        %v6447 = vsub.s32 1, %v6446
        %v6448 = vrot.slane %v6439, %v6447
        %v6483 = vunpack.c.l.b16 %v6407
        %v6484 = vunpack.c.h.b16 %v6407
        %v6485 = vunpack.c.l.b16 %v6408
        %v6486 = vunpack.c.h.b16 %v6408
        %v6487 = vunpack.c.l.b16 %v6409
        %v6488 = vunpack.c.h.b16 %v6409
        %v6489 = vunpack.c.l.b16 %v6410
        %v6490 = vunpack.c.h.b16 %v6410
        %v6491 = vunpack.c.l.b16 %v6411
        %v6492 = vunpack.c.h.b16 %v6411
        %v6493 = vunpack.c.l.b16 %v6412
        %v6494 = vunpack.c.h.b16 %v6412
        %v6495 = vunpack.c.l.b16 %v6413
        %v6496 = vunpack.c.h.b16 %v6413
        %v6497 = vunpack.c.l.b16 %v6414
        %v6498 = vunpack.c.h.b16 %v6414
        %v6499 = vunpack.c.l.b16 %v6415
        %v6500 = vunpack.c.h.b16 %v6415
        %v6501 = vunpack.c.l.b16 %v6416
        %v6502 = vunpack.c.h.b16 %v6416
        %v6503 = vunpack.c.l.b16 %v6417
        %v6504 = vunpack.c.h.b16 %v6417
        %v6505 = vunpack.c.l.b16 %v6418
        %v6506 = vunpack.c.h.b16 %v6418
        %v6507 = vunpack.c.l.b16 %v6419
        %v6508 = vunpack.c.h.b16 %v6419
        %v6509 = vunpack.c.l.b16 %v6420
        %v6510 = vunpack.c.h.b16 %v6420
        %v6511 = vunpack.c.l.b16 %v6421
        %v6512 = vunpack.c.h.b16 %v6421
        %v6513 = vunpack.c.l.b16 %v6422
        %v6514 = vunpack.c.h.b16 %v6422
        %v6515 = vunpack.c.l.b16 %v6423
        %v6516 = vunpack.c.h.b16 %v6423
        %v6517 = vunpack.c.l.b16 %v6424
        %v6518 = vunpack.c.h.b16 %v6424
        %v6519 = vunpack.c.l.b16 %v6425
        %v6520 = vunpack.c.h.b16 %v6425
        %v6521 = vunpack.c.l.b16 %v6426
        %v6522 = vunpack.c.h.b16 %v6426
        %v6523 = vunpack.c.l.b16 %v6427
        %v6524 = vunpack.c.h.b16 %v6427
        %v6525 = vunpack.c.l.b16 %v6428
        %v6526 = vunpack.c.h.b16 %v6428
        %v6527 = vunpack.c.l.b16 %v6429
        %v6528 = vunpack.c.h.b16 %v6429
        %v6529 = vunpack.c.l.b16 %v6430
        %v6530 = vunpack.c.h.b16 %v6430
        %v6531 = vunpack.c.l.b16 %v6431
        %v6532 = vunpack.c.h.b16 %v6431
        %v6533 = vunpack.c.l.b16 %v6432
        %v6534 = vunpack.c.h.b16 %v6432
        %v6535 = vunpack.c.l.b16 %v6433
        %v6536 = vunpack.c.h.b16 %v6433
        %v6537 = vunpack.c.l.b16 %v6434
        %v6538 = vunpack.c.h.b16 %v6434
        %v6539 = vunpack.c.l.b16 %v6435
        %v6540 = vunpack.c.h.b16 %v6435
        %v6541 = vunpack.c.l.b16 %v6436
        %v6542 = vunpack.c.h.b16 %v6436
        %v6543 = vunpack.c.l.b16 %v6437
        %v6544 = vunpack.c.h.b16 %v6437
        %v6545 = vunpack.c.l.b16 %v6438
        %v6546 = vunpack.c.h.b16 %v6438
        %v6547 = vpack.c.b16 %v6485, %v6483
        %v6548 = vpack.c.b16 %v6486, %v6484
        %v6549 = vpack.c.b16 %v6489, %v6487
        %v6550 = vpack.c.b16 %v6490, %v6488
        %v6551 = vpack.c.b16 %v6493, %v6491
        %v6552 = vpack.c.b16 %v6494, %v6492
        %v6553 = vpack.c.b16 %v6497, %v6495
        %v6554 = vpack.c.b16 %v6498, %v6496
        %v6555 = vpack.c.b16 %v6501, %v6499
        %v6556 = vpack.c.b16 %v6502, %v6500
        %v6557 = vpack.c.b16 %v6505, %v6503
        %v6558 = vpack.c.b16 %v6506, %v6504
        %v6559 = vpack.c.b16 %v6509, %v6507
        %v6560 = vpack.c.b16 %v6510, %v6508
        %v6561 = vpack.c.b16 %v6513, %v6511
        %v6562 = vpack.c.b16 %v6514, %v6512
        %v6563 = vpack.c.b16 %v6517, %v6515
        %v6564 = vpack.c.b16 %v6518, %v6516
        %v6565 = vpack.c.b16 %v6521, %v6519
        %v6566 = vpack.c.b16 %v6522, %v6520
        %v6567 = vpack.c.b16 %v6525, %v6523
        %v6568 = vpack.c.b16 %v6526, %v6524
        %v6569 = vpack.c.b16 %v6529, %v6527
        %v6570 = vpack.c.b16 %v6530, %v6528
        %v6571 = vpack.c.b16 %v6533, %v6531
        %v6572 = vpack.c.b16 %v6534, %v6532
        %v6573 = vpack.c.b16 %v6537, %v6535
        %v6574 = vpack.c.b16 %v6538, %v6536
        %v6575 = vpack.c.b16 %v6541, %v6539
        %v6576 = vpack.c.b16 %v6542, %v6540
        %v6577 = vpack.c.b16 %v6545, %v6543
        %v6578 = vpack.c.b16 %v6546, %v6544
        %6611 = vmatprep.subr.bf16.mxu0 %v6548
        %6612 = vmatpush1.bf16.msra.mxu0 %v6547
        %6613 = vmatprep.subr.bf16.mxu0 %v6550
        %6614 = vmatpush1.bf16.msra.mxu0 %v6549
        %6615 = vmatprep.subr.bf16.mxu0 %v6552
        %6616 = vmatpush1.bf16.msra.mxu0 %v6551
        %6617 = vmatprep.subr.bf16.mxu0 %v6554
        %6618 = vmatpush1.bf16.msra.mxu0 %v6553
        %6619 = vmatprep.subr.bf16.mxu0 %v6556
        %6620 = vmatpush1.bf16.msra.mxu0 %v6555
        %6621 = vmatprep.subr.bf16.mxu0 %v6558
        %6622 = vmatpush1.bf16.msra.mxu0 %v6557
        %6623 = vmatprep.subr.bf16.mxu0 %v6560
        %6624 = vmatpush1.bf16.msra.mxu0 %v6559
        %6625 = vmatprep.subr.bf16.mxu0 %v6562
        %6626 = vmatpush1.bf16.msra.mxu0 %v6561
        %6627 = vmatprep.subr.bf16.mxu0 %v6564
        %6628 = vmatpush1.bf16.msra.mxu0 %v6563
        %6629 = vmatprep.subr.bf16.mxu0 %v6566
        %6630 = vmatpush1.bf16.msra.mxu0 %v6565
        %6631 = vmatprep.subr.bf16.mxu0 %v6568
        %6632 = vmatpush1.bf16.msra.mxu0 %v6567
        %6633 = vmatprep.subr.bf16.mxu0 %v6570
        %6634 = vmatpush1.bf16.msra.mxu0 %v6569
        %6635 = vmatprep.subr.bf16.mxu0 %v6572
        %6636 = vmatpush1.bf16.msra.mxu0 %v6571
        %6637 = vmatprep.subr.bf16.mxu0 %v6574
        %6638 = vmatpush1.bf16.msra.mxu0 %v6573
        %6639 = vmatprep.subr.bf16.mxu0 %v6576
        %6640 = vmatpush1.bf16.msra.mxu0 %v6575
        %6641 = vmatprep.subr.bf16.mxu0 %v6578
        %6642 = vmatpush1.bf16.msra.mxu0 %v6577
        %6643 = vmatprep.mubr.bf16.mxu0 %v6376
        %6644 = vmatmul.mubr.bf16.gmra.mrb[0].mxu0 %v6375
        %v6645 = vpop.f32.mrb[0].mxu0
        %v6646 = vadd.f32 %v6444, %v6645
        %v6647 = vpop.f32.mrb[0].mxu0
        %v6648 = vadd.f32 %v6448, %v6647
        %v6649 = vpop.f32.mrb[0].mxu0
        %v6650 = vadd.f32 %v6444, %v6649
        %v6651 = vpop.f32.mrb[0].mxu0
        %v6652 = vadd.f32 %v6448, %v6651
        %6653 = vmatprep.mubr.bf16.mxu0 %v6378
        %6654 = vmatmul.mubr.bf16.gmra.mrb[0].mxu0 %v6377
        %v6655 = vpop.f32.mrb[0].mxu0
        %v6656 = vadd.f32 %v6444, %v6655
        %v6657 = vpop.f32.mrb[0].mxu0
        %v6658 = vadd.f32 %v6448, %v6657
        %v6659 = vpop.f32.mrb[0].mxu0
        %v6660 = vadd.f32 %v6444, %v6659
        %v6661 = vpop.f32.mrb[0].mxu0
        %v6662 = vadd.f32 %v6448, %v6661
        %6663 = vmatprep.mubr.bf16.mxu0 %v6380
        %6664 = vmatmul.mubr.bf16.gmra.mrb[0].mxu0 %v6379
        %v6665 = vpop.f32.mrb[0].mxu0
        %v6666 = vadd.f32 %v6444, %v6665
        %v6667 = vpop.f32.mrb[0].mxu0
        %v6668 = vadd.f32 %v6448, %v6667
        %v6669 = vpop.f32.mrb[0].mxu0
        %v6670 = vadd.f32 %v6444, %v6669
        %v6671 = vpop.f32.mrb[0].mxu0
        %v6672 = vadd.f32 %v6448, %v6671
        %6673 = vmatprep.mubr.bf16.mxu0 %v6382
        %6674 = vmatmul.mubr.bf16.gmra.mrb[0].mxu0 %v6381
        %v6675 = vpop.f32.mrb[0].mxu0
        %v6676 = vadd.f32 %v6444, %v6675
        %v6677 = vpop.f32.mrb[0].mxu0
        %v6678 = vadd.f32 %v6448, %v6677
        %v6679 = vpop.f32.mrb[0].mxu0
        %v6680 = vadd.f32 %v6444, %v6679
        %v6681 = vpop.f32.mrb[0].mxu0
        %v6682 = vadd.f32 %v6448, %v6681
        %6683 = vmatprep.mubr.bf16.mxu0 %v6384
        %6684 = vmatmul.mubr.bf16.gmra.mrb[0].mxu0 %v6383
        %v6685 = vpop.f32.mrb[0].mxu0
        %v6686 = vadd.f32 %v6444, %v6685
        %v6687 = vpop.f32.mrb[0].mxu0
        %v6688 = vadd.f32 %v6448, %v6687
        %v6689 = vpop.f32.mrb[0].mxu0
        %v6690 = vadd.f32 %v6444, %v6689
        %v6691 = vpop.f32.mrb[0].mxu0
        %v6692 = vadd.f32 %v6448, %v6691
        %6693 = vmatprep.mubr.bf16.mxu0 %v6386
        %6694 = vmatmul.mubr.bf16.gmra.mrb[0].mxu0 %v6385
        %v6695 = vpop.f32.mrb[0].mxu0
        %v6696 = vadd.f32 %v6444, %v6695
        %v6697 = vpop.f32.mrb[0].mxu0
        %v6698 = vadd.f32 %v6448, %v6697
        %v6699 = vpop.f32.mrb[0].mxu0
        %v6700 = vadd.f32 %v6444, %v6699
        %v6701 = vpop.f32.mrb[0].mxu0
        %v6702 = vadd.f32 %v6448, %v6701
        %6703 = vmatprep.mubr.bf16.mxu0 %v6388
        %6704 = vmatmul.mubr.bf16.gmra.mrb[0].mxu0 %v6387
        %v6705 = vpop.f32.mrb[0].mxu0
        %v6706 = vadd.f32 %v6444, %v6705
        %v6707 = vpop.f32.mrb[0].mxu0
        %v6708 = vadd.f32 %v6448, %v6707
        %v6709 = vpop.f32.mrb[0].mxu0
        %v6710 = vadd.f32 %v6444, %v6709
        %v6711 = vpop.f32.mrb[0].mxu0
        %v6712 = vadd.f32 %v6448, %v6711
        %6713 = vmatprep.mubr.bf16.mxu0 %v6390
        %6714 = vmatmul.mubr.bf16.gmra.mrb[0].mxu0 %v6389
        %v6715 = vpop.f32.mrb[0].mxu0
        %v6716 = vadd.f32 %v6444, %v6715
        %v6717 = vpop.f32.mrb[0].mxu0
        %v6718 = vadd.f32 %v6448, %v6717
        %v6719 = vpop.f32.mrb[0].mxu0
        %v6720 = vadd.f32 %v6444, %v6719
        %v6721 = vpop.f32.mrb[0].mxu0
        %v6722 = vadd.f32 %v6448, %v6721
        %6723 = vmatprep.mubr.bf16.mxu0 %v6392
        %6724 = vmatmul.mubr.bf16.gmra.mrb[0].mxu0 %v6391
        %v6725 = vpop.f32.mrb[0].mxu0
        %v6726 = vadd.f32 %v6444, %v6725
        %v6727 = vpop.f32.mrb[0].mxu0
        %v6728 = vadd.f32 %v6448, %v6727
        %v6729 = vpop.f32.mrb[0].mxu0
        %v6730 = vadd.f32 %v6444, %v6729
        %v6731 = vpop.f32.mrb[0].mxu0
        %v6732 = vadd.f32 %v6448, %v6731
        %6733 = vmatprep.mubr.bf16.mxu0 %v6394
        %6734 = vmatmul.mubr.bf16.gmra.mrb[0].mxu0 %v6393
        %v6735 = vpop.f32.mrb[0].mxu0
        %v6736 = vadd.f32 %v6444, %v6735
        %v6737 = vpop.f32.mrb[0].mxu0
        %v6738 = vadd.f32 %v6448, %v6737
        %v6739 = vpop.f32.mrb[0].mxu0
        %v6740 = vadd.f32 %v6444, %v6739
        %v6741 = vpop.f32.mrb[0].mxu0
        %v6742 = vadd.f32 %v6448, %v6741
        %6743 = vmatprep.mubr.bf16.mxu0 %v6396
        %6744 = vmatmul.mubr.bf16.gmra.mrb[0].mxu0 %v6395
        %v6745 = vpop.f32.mrb[0].mxu0
        %v6746 = vadd.f32 %v6444, %v6745
        %v6747 = vpop.f32.mrb[0].mxu0
        %v6748 = vadd.f32 %v6448, %v6747
        %v6749 = vpop.f32.mrb[0].mxu0
        %v6750 = vadd.f32 %v6444, %v6749
        %v6751 = vpop.f32.mrb[0].mxu0
        %v6752 = vadd.f32 %v6448, %v6751
        %6753 = vmatprep.mubr.bf16.mxu0 %v6398
        %6754 = vmatmul.mubr.bf16.gmra.mrb[0].mxu0 %v6397
        %v6755 = vpop.f32.mrb[0].mxu0
        %v6756 = vadd.f32 %v6444, %v6755
        %v6757 = vpop.f32.mrb[0].mxu0
        %v6758 = vadd.f32 %v6448, %v6757
        %v6759 = vpop.f32.mrb[0].mxu0
        %v6760 = vadd.f32 %v6444, %v6759
        %v6761 = vpop.f32.mrb[0].mxu0
        %v6762 = vadd.f32 %v6448, %v6761
        %6763 = vmatprep.mubr.bf16.mxu0 %v6400
        %6764 = vmatmul.mubr.bf16.gmra.mrb[0].mxu0 %v6399
        %v6765 = vpop.f32.mrb[0].mxu0
        %v6766 = vadd.f32 %v6444, %v6765
        %v6767 = vpop.f32.mrb[0].mxu0
        %v6768 = vadd.f32 %v6448, %v6767
        %v6769 = vpop.f32.mrb[0].mxu0
        %v6770 = vadd.f32 %v6444, %v6769
        %v6771 = vpop.f32.mrb[0].mxu0
        %v6772 = vadd.f32 %v6448, %v6771
        %6773 = vmatprep.mubr.bf16.mxu0 %v6402
        %6774 = vmatmul.mubr.bf16.gmra.mrb[0].mxu0 %v6401
        %v6775 = vpop.f32.mrb[0].mxu0
        %v6776 = vadd.f32 %v6444, %v6775
        %v6777 = vpop.f32.mrb[0].mxu0
        %v6778 = vadd.f32 %v6448, %v6777
        %v6779 = vpop.f32.mrb[0].mxu0
        %v6780 = vadd.f32 %v6444, %v6779
        %v6781 = vpop.f32.mrb[0].mxu0
        %v6782 = vadd.f32 %v6448, %v6781
        %6783 = vmatprep.mubr.bf16.mxu0 %v6404
        %6784 = vmatmul.mubr.bf16.gmra.mrb[0].mxu0 %v6403
        %v6785 = vpop.f32.mrb[0].mxu0
        %v6786 = vadd.f32 %v6444, %v6785
        %v6787 = vpop.f32.mrb[0].mxu0
        %v6788 = vadd.f32 %v6448, %v6787
        %v6789 = vpop.f32.mrb[0].mxu0
        %v6790 = vadd.f32 %v6444, %v6789
        %v6791 = vpop.f32.mrb[0].mxu0
        %v6792 = vadd.f32 %v6448, %v6791
        %6793 = vmatprep.mubr.bf16.mxu0 %v6406
        %6794 = vmatmul.mubr.bf16.gmra.mrb[0].mxu0 %v6405
        %v6795 = vpop.f32.mrb[0].mxu0
        %v6796 = vadd.f32 %v6444, %v6795
        %v6797 = vpop.f32.mrb[0].mxu0
        %v6798 = vadd.f32 %v6448, %v6797
        %v6799 = vpop.f32.mrb[0].mxu0
        %v6800 = vadd.f32 %v6444, %v6799
        %v6801 = vpop.f32.mrb[0].mxu0
        %v6802 = vadd.f32 %v6448, %v6801
        %6803 = vdwg.mxu0
        %v6804 = vadd.f32 %v6646, %v4484
        %v6805 = vadd.f32 %v6648, %v4486
        %v6806 = vadd.f32 %v6650, %v4488
        %v6807 = vadd.f32 %v6652, %v4490
        %v6808 = vadd.f32 %v6656, %v4494
        %v6809 = vadd.f32 %v6658, %v4496
        %v6810 = vadd.f32 %v6660, %v4498
        %v6811 = vadd.f32 %v6662, %v4500
        %v6812 = vadd.f32 %v6666, %v4504
        %v6813 = vadd.f32 %v6668, %v4506
        %v6814 = vadd.f32 %v6670, %v4508
        %v6815 = vadd.f32 %v6672, %v4510
        %v6816 = vadd.f32 %v6676, %v4514
        %v6817 = vadd.f32 %v6678, %v4516
        %v6818 = vadd.f32 %v6680, %v4518
        %v6819 = vadd.f32 %v6682, %v4520
        %v6820 = vadd.f32 %v6686, %v4524
        %v6821 = vadd.f32 %v6688, %v4526
        %v6822 = vadd.f32 %v6690, %v4528
        %v6823 = vadd.f32 %v6692, %v4530
        %v6824 = vadd.f32 %v6696, %v4534
        %v6825 = vadd.f32 %v6698, %v4536
        %v6826 = vadd.f32 %v6700, %v4538
        %v6827 = vadd.f32 %v6702, %v4540
        %v6828 = vadd.f32 %v6706, %v4544
        %v6829 = vadd.f32 %v6708, %v4546
        %v6830 = vadd.f32 %v6710, %v4548
        %v6831 = vadd.f32 %v6712, %v4550
        %v6832 = vadd.f32 %v6716, %v4554
        %v6833 = vadd.f32 %v6718, %v4556
        %v6834 = vadd.f32 %v6720, %v4558
        %v6835 = vadd.f32 %v6722, %v4560
        %v6836 = vadd.f32 %v6726, %v4564
        %v6837 = vadd.f32 %v6728, %v4566
        %v6838 = vadd.f32 %v6730, %v4568
        %v6839 = vadd.f32 %v6732, %v4570
        %v6840 = vadd.f32 %v6736, %v4574
        %v6841 = vadd.f32 %v6738, %v4576
        %v6842 = vadd.f32 %v6740, %v4578
        %v6843 = vadd.f32 %v6742, %v4580
        %v6844 = vadd.f32 %v6746, %v4584
        %v6845 = vadd.f32 %v6748, %v4586
        %v6846 = vadd.f32 %v6750, %v4588
        %v6847 = vadd.f32 %v6752, %v4590
        %v6848 = vadd.f32 %v6756, %v4594
        %v6849 = vadd.f32 %v6758, %v4596
        %v6850 = vadd.f32 %v6760, %v4598
        %v6851 = vadd.f32 %v6762, %v4600
        %v6852 = vadd.f32 %v6766, %v4604
        %v6853 = vadd.f32 %v6768, %v4606
        %v6854 = vadd.f32 %v6770, %v4608
        %v6855 = vadd.f32 %v6772, %v4610
        %v6856 = vadd.f32 %v6776, %v4614
        %v6857 = vadd.f32 %v6778, %v4616
        %v6858 = vadd.f32 %v6780, %v4618
        %v6859 = vadd.f32 %v6782, %v4620
        %v6860 = vadd.f32 %v6786, %v4624
        %v6861 = vadd.f32 %v6788, %v4626
        %v6862 = vadd.f32 %v6790, %v4628
        %v6863 = vadd.f32 %v6792, %v4630
        %v6864 = vadd.f32 %v6796, %v4634
        %v6865 = vadd.f32 %v6798, %v4636
        %v6866 = vadd.f32 %v6800, %v4638
        %v6867 = vadd.f32 %v6802, %v4640
        %v6868 = vpack.c.bf16 %v6806, %v6804
        %v6869 = vpack.c.bf16 %v6807, %v6805
        %v6870 = vpack.c.bf16 %v6810, %v6808
        %v6871 = vpack.c.bf16 %v6811, %v6809
        %v6872 = vpack.c.bf16 %v6814, %v6812
        %v6873 = vpack.c.bf16 %v6815, %v6813
        %v6874 = vpack.c.bf16 %v6818, %v6816
        %v6875 = vpack.c.bf16 %v6819, %v6817
        %v6876 = vpack.c.bf16 %v6822, %v6820
        %v6877 = vpack.c.bf16 %v6823, %v6821
        %v6878 = vpack.c.bf16 %v6826, %v6824
        %v6879 = vpack.c.bf16 %v6827, %v6825
        %v6880 = vpack.c.bf16 %v6830, %v6828
        %v6881 = vpack.c.bf16 %v6831, %v6829
        %v6882 = vpack.c.bf16 %v6834, %v6832
        %v6883 = vpack.c.bf16 %v6835, %v6833
        %v6884 = vpack.c.bf16 %v6838, %v6836
        %v6885 = vpack.c.bf16 %v6839, %v6837
        %v6886 = vpack.c.bf16 %v6842, %v6840
        %v6887 = vpack.c.bf16 %v6843, %v6841
        %v6888 = vpack.c.bf16 %v6846, %v6844
        %v6889 = vpack.c.bf16 %v6847, %v6845
        %v6890 = vpack.c.bf16 %v6850, %v6848
        %v6891 = vpack.c.bf16 %v6851, %v6849
        %v6892 = vpack.c.bf16 %v6854, %v6852
        %v6893 = vpack.c.bf16 %v6855, %v6853
        %v6894 = vpack.c.bf16 %v6858, %v6856
        %v6895 = vpack.c.bf16 %v6859, %v6857
        %v6896 = vpack.c.bf16 %v6862, %v6860
        %v6897 = vpack.c.bf16 %v6863, %v6861
        %v6898 = vpack.c.bf16 %v6866, %v6864
        %v6899 = vpack.c.bf16 %v6867, %v6865
        %v6900 = vld [vmem:[#allocation19] sm:$0xf]
        %v6901 = vld [vmem:[#allocation19 + $0x4] sm:$0xf]
        %v6902 = vld [vmem:[#allocation19 + $0x8] sm:$0xf]
        %v6903 = vld [vmem:[#allocation19 + $0xc] sm:$0xf]
        %v6904 = vld [vmem:[#allocation19 + $0x10] sm:$0xf]
        %v6905 = vld [vmem:[#allocation19 + $0x14] sm:$0xf]
        %v6906 = vld [vmem:[#allocation19 + $0x18] sm:$0xf]
        %v6907 = vld [vmem:[#allocation19 + $0x1c] sm:$0xf]
        %v6908 = vld [vmem:[#allocation19 + $0x20] sm:$0xf]
        %v6909 = vld [vmem:[#allocation19 + $0x24] sm:$0xf]
        %v6910 = vld [vmem:[#allocation19 + $0x28] sm:$0xf]
        %v6911 = vld [vmem:[#allocation19 + $0x2c] sm:$0xf]
        %v6912 = vld [vmem:[#allocation19 + $0x30] sm:$0xf]
        %v6913 = vld [vmem:[#allocation19 + $0x34] sm:$0xf]
        %v6914 = vld [vmem:[#allocation19 + $0x38] sm:$0xf]
        %v6915 = vld [vmem:[#allocation19 + $0x3c] sm:$0xf]
        %v6916 = vld [vmem:[#allocation19 + $0x40] sm:$0xf]
        %v6917 = vld [vmem:[#allocation19 + $0x44] sm:$0xf]
        %v6918 = vld [vmem:[#allocation19 + $0x48] sm:$0xf]
        %v6919 = vld [vmem:[#allocation19 + $0x4c] sm:$0xf]
        %v6920 = vld [vmem:[#allocation19 + $0x50] sm:$0xf]
        %v6921 = vld [vmem:[#allocation19 + $0x54] sm:$0xf]
        %v6922 = vld [vmem:[#allocation19 + $0x58] sm:$0xf]
        %v6923 = vld [vmem:[#allocation19 + $0x5c] sm:$0xf]
        %v6924 = vld [vmem:[#allocation19 + $0x60] sm:$0xf]
        %v6925 = vld [vmem:[#allocation19 + $0x64] sm:$0xf]
        %v6926 = vld [vmem:[#allocation19 + $0x68] sm:$0xf]
        %v6927 = vld [vmem:[#allocation19 + $0x6c] sm:$0xf]
        %v6928 = vld [vmem:[#allocation19 + $0x70] sm:$0xf]
        %v6929 = vld [vmem:[#allocation19 + $0x74] sm:$0xf]
        %v6930 = vld [vmem:[#allocation19 + $0x78] sm:$0xf]
        %v6931 = vld [vmem:[#allocation19 + $0x7c] sm:$0xf]
        %v6932 = vld [vmem:[%s21] sm:$0x1]
        %v6934 = vlaneseq
        %v6935 = vshrl.u32 %v6934, 7
        %v6936 = vsub.s32 0, %v6935
        %v6937 = vrot.slane %v6932, %v6936
        %v6971 = vunpack.c.l.b16 %v6900
        %v6972 = vunpack.c.l.b16 %v6901
        %v6973 = vunpack.c.l.b16 %v6902
        %v6974 = vunpack.c.l.b16 %v6903
        %v6975 = vunpack.c.l.b16 %v6904
        %v6976 = vunpack.c.l.b16 %v6905
        %v6977 = vunpack.c.l.b16 %v6906
        %v6978 = vunpack.c.l.b16 %v6907
        %v6979 = vunpack.c.l.b16 %v6908
        %v6980 = vunpack.c.l.b16 %v6909
        %v6981 = vunpack.c.l.b16 %v6910
        %v6982 = vunpack.c.l.b16 %v6911
        %v6983 = vunpack.c.l.b16 %v6912
        %v6984 = vunpack.c.l.b16 %v6913
        %v6985 = vunpack.c.l.b16 %v6914
        %v6986 = vunpack.c.l.b16 %v6915
        %v6987 = vunpack.c.l.b16 %v6916
        %v6988 = vunpack.c.l.b16 %v6917
        %v6989 = vunpack.c.l.b16 %v6918
        %v6990 = vunpack.c.l.b16 %v6919
        %v6991 = vunpack.c.l.b16 %v6920
        %v6992 = vunpack.c.l.b16 %v6921
        %v6993 = vunpack.c.l.b16 %v6922
        %v6994 = vunpack.c.l.b16 %v6923
        %v6995 = vunpack.c.l.b16 %v6924
        %v6996 = vunpack.c.l.b16 %v6925
        %v6997 = vunpack.c.l.b16 %v6926
        %v6998 = vunpack.c.l.b16 %v6927
        %v6999 = vunpack.c.l.b16 %v6928
        %v7000 = vunpack.c.l.b16 %v6929
        %v7001 = vunpack.c.l.b16 %v6930
        %v7002 = vunpack.c.l.b16 %v6931
        %v7003 = vpack.c.b16 %v6972, %v6971
        %v7004 = vpack.c.b16 %v6974, %v6973
        %v7005 = vpack.c.b16 %v6976, %v6975
        %v7006 = vpack.c.b16 %v6978, %v6977
        %v7007 = vpack.c.b16 %v6980, %v6979
        %v7008 = vpack.c.b16 %v6982, %v6981
        %v7009 = vpack.c.b16 %v6984, %v6983
        %v7010 = vpack.c.b16 %v6986, %v6985
        %v7011 = vpack.c.b16 %v6988, %v6987
        %v7012 = vpack.c.b16 %v6990, %v6989
        %v7013 = vpack.c.b16 %v6992, %v6991
        %v7014 = vpack.c.b16 %v6994, %v6993
        %v7015 = vpack.c.b16 %v6996, %v6995
        %v7016 = vpack.c.b16 %v6998, %v6997
        %v7017 = vpack.c.b16 %v7000, %v6999
        %v7018 = vpack.c.b16 %v7002, %v7001
        %7035 = vmatprep.subr.bf16.mxu0 0
        %7036 = vmatpush1.bf16.msra.mxu0 %v7003
        %7037 = vmatprep.subr.bf16.mxu0 0
        %7038 = vmatpush1.bf16.msra.mxu0 %v7004
        %7039 = vmatprep.subr.bf16.mxu0 0
        %7040 = vmatpush1.bf16.msra.mxu0 %v7005
        %7041 = vmatprep.subr.bf16.mxu0 0
        %7042 = vmatpush1.bf16.msra.mxu0 %v7006
        %7043 = vmatprep.subr.bf16.mxu0 0
        %7044 = vmatpush1.bf16.msra.mxu0 %v7007
        %7045 = vmatprep.subr.bf16.mxu0 0
        %7046 = vmatpush1.bf16.msra.mxu0 %v7008
        %7047 = vmatprep.subr.bf16.mxu0 0
        %7048 = vmatpush1.bf16.msra.mxu0 %v7009
        %7049 = vmatprep.subr.bf16.mxu0 0
        %7050 = vmatpush1.bf16.msra.mxu0 %v7010
        %7051 = vmatprep.subr.bf16.mxu0 0
        %7052 = vmatpush1.bf16.msra.mxu0 %v7011
        %7053 = vmatprep.subr.bf16.mxu0 0
        %7054 = vmatpush1.bf16.msra.mxu0 %v7012
        %7055 = vmatprep.subr.bf16.mxu0 0
        %7056 = vmatpush1.bf16.msra.mxu0 %v7013
        %7057 = vmatprep.subr.bf16.mxu0 0
        %7058 = vmatpush1.bf16.msra.mxu0 %v7014
        %7059 = vmatprep.subr.bf16.mxu0 0
        %7060 = vmatpush1.bf16.msra.mxu0 %v7015
        %7061 = vmatprep.subr.bf16.mxu0 0
        %7062 = vmatpush1.bf16.msra.mxu0 %v7016
        %7063 = vmatprep.subr.bf16.mxu0 0
        %7064 = vmatpush1.bf16.msra.mxu0 %v7017
        %7065 = vmatprep.subr.bf16.mxu0 0
        %7066 = vmatpush1.bf16.msra.mxu0 %v7018
        %7067 = vmatprep.mubr.bf16.mxu0 %v6869
        %7068 = vmatmul.mubr.bf16.gmra.mrb[0].mxu0 %v6868
        %v7069 = vpop.f32.mrb[0].mxu0
        %v7070 = vadd.f32 %v6937, %v7069
        %v7071 = vpop.f32.mrb[0].mxu0
        %v7072 = vpop.f32.mrb[0].mxu0
        %v7073 = vadd.f32 %v6937, %v7072
        %v7074 = vpop.f32.mrb[0].mxu0
        %7075 = vmatprep.mubr.bf16.mxu0 %v6871
        %7076 = vmatmul.mubr.bf16.gmra.mrb[0].mxu0 %v6870
        %v7077 = vpop.f32.mrb[0].mxu0
        %v7078 = vadd.f32 %v6937, %v7077
        %v7079 = vpop.f32.mrb[0].mxu0
        %v7080 = vpop.f32.mrb[0].mxu0
        %v7081 = vadd.f32 %v6937, %v7080
        %v7082 = vpop.f32.mrb[0].mxu0
        %7083 = vmatprep.mubr.bf16.mxu0 %v6873
        %7084 = vmatmul.mubr.bf16.gmra.mrb[0].mxu0 %v6872
        %v7085 = vpop.f32.mrb[0].mxu0
        %v7086 = vadd.f32 %v6937, %v7085
        %v7087 = vpop.f32.mrb[0].mxu0
        %v7088 = vpop.f32.mrb[0].mxu0
        %v7089 = vadd.f32 %v6937, %v7088
        %v7090 = vpop.f32.mrb[0].mxu0
        %7091 = vmatprep.mubr.bf16.mxu0 %v6875
        %7092 = vmatmul.mubr.bf16.gmra.mrb[0].mxu0 %v6874
        %v7093 = vpop.f32.mrb[0].mxu0
        %v7094 = vadd.f32 %v6937, %v7093
        %v7095 = vpop.f32.mrb[0].mxu0
        %v7096 = vpop.f32.mrb[0].mxu0
        %v7097 = vadd.f32 %v6937, %v7096
        %v7098 = vpop.f32.mrb[0].mxu0
        %7099 = vmatprep.mubr.bf16.mxu0 %v6877
        %7100 = vmatmul.mubr.bf16.gmra.mrb[0].mxu0 %v6876
        %v7101 = vpop.f32.mrb[0].mxu0
        %v7102 = vadd.f32 %v6937, %v7101
        %v7103 = vpop.f32.mrb[0].mxu0
        %v7104 = vpop.f32.mrb[0].mxu0
        %v7105 = vadd.f32 %v6937, %v7104
        %v7106 = vpop.f32.mrb[0].mxu0
        %7107 = vmatprep.mubr.bf16.mxu0 %v6879
        %7108 = vmatmul.mubr.bf16.gmra.mrb[0].mxu0 %v6878
        %v7109 = vpop.f32.mrb[0].mxu0
        %v7110 = vadd.f32 %v6937, %v7109
        %v7111 = vpop.f32.mrb[0].mxu0
        %v7112 = vpop.f32.mrb[0].mxu0
        %v7113 = vadd.f32 %v6937, %v7112
        %v7114 = vpop.f32.mrb[0].mxu0
        %7115 = vmatprep.mubr.bf16.mxu0 %v6881
        %7116 = vmatmul.mubr.bf16.gmra.mrb[0].mxu0 %v6880
        %v7117 = vpop.f32.mrb[0].mxu0
        %v7118 = vadd.f32 %v6937, %v7117
        %v7119 = vpop.f32.mrb[0].mxu0
        %v7120 = vpop.f32.mrb[0].mxu0
        %v7121 = vadd.f32 %v6937, %v7120
        %v7122 = vpop.f32.mrb[0].mxu0
        %7123 = vmatprep.mubr.bf16.mxu0 %v6883
        %7124 = vmatmul.mubr.bf16.gmra.mrb[0].mxu0 %v6882
        %v7125 = vpop.f32.mrb[0].mxu0
        %v7126 = vadd.f32 %v6937, %v7125
        %v7127 = vpop.f32.mrb[0].mxu0
        %v7128 = vpop.f32.mrb[0].mxu0
        %v7129 = vadd.f32 %v6937, %v7128
        %v7130 = vpop.f32.mrb[0].mxu0
        %7131 = vmatprep.mubr.bf16.mxu0 %v6885
        %7132 = vmatmul.mubr.bf16.gmra.mrb[0].mxu0 %v6884
        %v7133 = vpop.f32.mrb[0].mxu0
        %v7134 = vadd.f32 %v6937, %v7133
        %v7135 = vpop.f32.mrb[0].mxu0
        %v7136 = vpop.f32.mrb[0].mxu0
        %v7137 = vadd.f32 %v6937, %v7136
        %v7138 = vpop.f32.mrb[0].mxu0
        %7139 = vmatprep.mubr.bf16.mxu0 %v6887
        %7140 = vmatmul.mubr.bf16.gmra.mrb[0].mxu0 %v6886
        %v7141 = vpop.f32.mrb[0].mxu0
        %v7142 = vadd.f32 %v6937, %v7141
        %v7143 = vpop.f32.mrb[0].mxu0
        %v7144 = vpop.f32.mrb[0].mxu0
        %v7145 = vadd.f32 %v6937, %v7144
        %v7146 = vpop.f32.mrb[0].mxu0
        %7147 = vmatprep.mubr.bf16.mxu0 %v6889
        %7148 = vmatmul.mubr.bf16.gmra.mrb[0].mxu0 %v6888
        %v7149 = vpop.f32.mrb[0].mxu0
        %v7150 = vadd.f32 %v6937, %v7149
        %v7151 = vpop.f32.mrb[0].mxu0
        %v7152 = vpop.f32.mrb[0].mxu0
        %v7153 = vadd.f32 %v6937, %v7152
        %v7154 = vpop.f32.mrb[0].mxu0
        %7155 = vmatprep.mubr.bf16.mxu0 %v6891
        %7156 = vmatmul.mubr.bf16.gmra.mrb[0].mxu0 %v6890
        %v7157 = vpop.f32.mrb[0].mxu0
        %v7158 = vadd.f32 %v6937, %v7157
        %v7159 = vpop.f32.mrb[0].mxu0
        %v7160 = vpop.f32.mrb[0].mxu0
        %v7161 = vadd.f32 %v6937, %v7160
        %v7162 = vpop.f32.mrb[0].mxu0
        %7163 = vmatprep.mubr.bf16.mxu0 %v6893
        %7164 = vmatmul.mubr.bf16.gmra.mrb[0].mxu0 %v6892
        %v7165 = vpop.f32.mrb[0].mxu0
        %v7166 = vadd.f32 %v6937, %v7165
        %v7167 = vpop.f32.mrb[0].mxu0
        %v7168 = vpop.f32.mrb[0].mxu0
        %v7169 = vadd.f32 %v6937, %v7168
        %v7170 = vpop.f32.mrb[0].mxu0
        %7171 = vmatprep.mubr.bf16.mxu0 %v6895
        %7172 = vmatmul.mubr.bf16.gmra.mrb[0].mxu0 %v6894
        %v7173 = vpop.f32.mrb[0].mxu0
        %v7174 = vadd.f32 %v6937, %v7173
        %v7175 = vpop.f32.mrb[0].mxu0
        %v7176 = vpop.f32.mrb[0].mxu0
        %v7177 = vadd.f32 %v6937, %v7176
        %v7178 = vpop.f32.mrb[0].mxu0
        %7179 = vmatprep.mubr.bf16.mxu0 %v6897
        %7180 = vmatmul.mubr.bf16.gmra.mrb[0].mxu0 %v6896
        %v7181 = vpop.f32.mrb[0].mxu0
        %v7182 = vadd.f32 %v6937, %v7181
        %v7183 = vpop.f32.mrb[0].mxu0
        %v7184 = vpop.f32.mrb[0].mxu0
        %v7185 = vadd.f32 %v6937, %v7184
        %v7186 = vpop.f32.mrb[0].mxu0
        %7187 = vmatprep.mubr.bf16.mxu0 %v6899
        %7188 = vmatmul.mubr.bf16.gmra.mrb[0].mxu0 %v6898
        %v7189 = vpop.f32.mrb[0].mxu0
        %v7190 = vadd.f32 %v6937, %v7189
        %v7191 = vpop.f32.mrb[0].mxu0
        %v7192 = vpop.f32.mrb[0].mxu0
        %v7193 = vadd.f32 %v6937, %v7192
        %v7194 = vpop.f32.mrb[0].mxu0
        %7195 = vdwg.mxu0
        %7196 = vst [vmem:[%s886] sm:$0xff] %v7070
        %7197 = vst [vmem:[%s886 + $0x8] sm:$0xff] %v7073
        %7198 = vst [vmem:[%s886 + $0x10] sm:$0xff] %v7078
        %7199 = vst [vmem:[%s886 + $0x18] sm:$0xff] %v7081
        %7200 = vst [vmem:[%s886 + $0x20] sm:$0xff] %v7086
        %7201 = vst [vmem:[%s886 + $0x28] sm:$0xff] %v7089
        %7202 = vst [vmem:[%s886 + $0x30] sm:$0xff] %v7094
        %7203 = vst [vmem:[%s886 + $0x38] sm:$0xff] %v7097
        %7204 = vst [vmem:[%s886 + $0x40] sm:$0xff] %v7102
        %7205 = vst [vmem:[%s886 + $0x48] sm:$0xff] %v7105
        %7206 = vst [vmem:[%s886 + $0x50] sm:$0xff] %v7110
        %7207 = vst [vmem:[%s886 + $0x58] sm:$0xff] %v7113
        %7208 = vst [vmem:[%s886 + $0x60] sm:$0xff] %v7118
        %7209 = vst [vmem:[%s886 + $0x68] sm:$0xff] %v7121
        %7210 = vst [vmem:[%s886 + $0x70] sm:$0xff] %v7126
        %7211 = vst [vmem:[%s886 + $0x78] sm:$0xff] %v7129
        %7212 = vst [vmem:[%s886 + $0x80] sm:$0xff] %v7134
        %7213 = vst [vmem:[%s886 + $0x88] sm:$0xff] %v7137
        %7214 = vst [vmem:[%s886 + $0x90] sm:$0xff] %v7142
        %7215 = vst [vmem:[%s886 + $0x98] sm:$0xff] %v7145
        %7216 = vst [vmem:[%s886 + $0xa0] sm:$0xff] %v7150
        %7217 = vst [vmem:[%s886 + $0xa8] sm:$0xff] %v7153
        %7218 = vst [vmem:[%s886 + $0xb0] sm:$0xff] %v7158
        %7219 = vst [vmem:[%s886 + $0xb8] sm:$0xff] %v7161
        %7220 = vst [vmem:[%s886 + $0xc0] sm:$0xff] %v7166
        %7221 = vst [vmem:[%s886 + $0xc8] sm:$0xff] %v7169
        %7222 = vst [vmem:[%s886 + $0xd0] sm:$0xff] %v7174
        %7223 = vst [vmem:[%s886 + $0xd8] sm:$0xff] %v7177
        %7224 = vst [vmem:[%s886 + $0xe0] sm:$0xff] %v7182
        %7225 = vst [vmem:[%s886 + $0xe8] sm:$0xff] %v7185
        %7226 = vst [vmem:[%s886 + $0xf0] sm:$0xff] %v7190
        %7227 = vst [vmem:[%s886 + $0xf8] sm:$0xff] %v7193
        %s7228 = sand.u32 %s542, 1
        %s7229 = scalar_lea.sflag [#allocation4], %s7228
        %s7230 = sand.u32 %s542, 1
        %s7231 = smul.addr %s7230, 256
        %s7232 = scalar_lea.vmem [#allocation20], %s7231
        // Predicated region
        $region153: #{tpu_custom_call.1} parent=107 // pred_check
          %p7233 = pneg %p552
        $region154: #{tpu_custom_call.1} parent=107 // pred_check_branch
          %7235 = sbr.rel (%p7233) target = $region156
        $region155: #{tpu_custom_call.1} parent=107 // pred_region
          %s7236 = smul.u32 32, %s51
          %s7238 = ssub.s32 4096, 4096
          %7239 = vsyncadd %s7229, %s7238
          %s7240 = smul.addr %s50, 32
          %s7241 = sadd.s32 %s7236, %s7240
          %s7242 = smul.addr %s7241, 128
          %s7243 = scalar_lea.hbm %s22, %s7242
          %s7244 = sshll.u32 %s7232, 4
          %s7245 = int_to_ptr.vmem [resolvable:$true] %s7244
          %7250 = dma.vmem_to_hbm [thread:$0]  %s7245, 4096, %s7243, %s7229, 128, 128, 8
        $region156: #{tpu_custom_call.1} parent=107 // pred_fallthru
          _
      $region108: #{tpu_custom_call.1} parent=5 // pred_fallthru
        _
      %p7251 = scmp.le.s32.totalorder 2, %s41
      // Predicated region
      $region157: #{tpu_custom_call.1} parent=5 // pred_check
        %p7252 = pneg %p7251
      $region158: #{tpu_custom_call.1} parent=5 // pred_check_branch
        %7254 = sbr.rel (%p7252) target = $region160
      $region159: #{tpu_custom_call.1} parent=5 // pred_region
        %s7255 = ssub.s32 %s41, 2
        // Predicated region
        $region161: #{tpu_custom_call.1} parent=159 // pred_check
          %p7256 = pneg %p558
        $region162: #{tpu_custom_call.1} parent=159 // pred_check_branch
          %7258 = sbr.rel (%p7256) target = $region164
        $region163: #{tpu_custom_call.1} parent=159 // pred_region
          %s7259 = sand.u32 %s543, 1
          %s7260 = scalar_lea.sflag [#allocation4], %s7259
          %s7261 = sand.u32 %s543, 1
          %s7262 = smul.addr %s7261, 256
          %s7263 = scalar_lea.vmem [#allocation20], %s7262
          %7264 = dma.done %s7260, 4096
        $region164: #{tpu_custom_call.1} parent=159 // pred_fallthru
          _
      $region160: #{tpu_custom_call.1} parent=5 // pred_fallthru
        _
    $region6: #{tpu_custom_call.1} parent=1 // loop_footer
      %s45 = sadd.s32 1, %s41
    $region7: #{tpu_custom_call.1} parent=1 // loop_footer_branch
      %40 = sbr.rel target = $region3
    $region8: #{tpu_custom_call.1} parent=1 // loop_exit
      _
    %7265 = vsyncpa [#allocation3], 1
    %s7266 = scalar_lea.sflag [#allocation3], 1
    %7267 = vsyncpa %s7266, 1
    %7268 = vsyncpa [#allocation6], 1
    %s7269 = scalar_lea.sflag [#allocation6], 1
    %7270 = vsyncpa %s7269, 1
    %7271 = vsyncpa [#allocation9], 1
    %7272 = vsyncpa [#allocation12], 1
    %7273 = vsyncpa [#allocation15], 1
    %7274 = vsyncpa [#allocation18], 1
    %7275 = vsyncpa [#allocation4], 1
    %s7276 = scalar_lea.sflag [#allocation4], 1
    %7277 = vsyncpa %s7276, 1

</llo_original>
